<compile_context>
chip_gen: v5e
topology: v5e:2x2
jax: 0.10.0
libtpu: 0.0.40
codegen_flags: <defaults>
</compile_context>

<pallas_src>
import numpy as np

import jax
import jax.numpy as jnp
from jax.experimental import pallas as pl
from jax.experimental.pallas import tpu as pltpu


# ---------------------------------------------------------------------------
# In-kernel helpers (traced Python, all ops are dots / adds / max)
# ---------------------------------------------------------------------------
def _mm(a, b):
    return jnp.dot(a, b, preferred_element_type=jnp.float32)


def _conv3x3(x, w_ref, t_ref):
    """3x3 'same' conv in (Cin, HW) layout.

    x:     (Cin, HW) value
    w_ref: (9, Cout, Cin) ref, tap k = kh*3 + kw
    t_ref: (9, HW, HW) ref of constant 0/1 shift(+boundary-mask) matrices;
           tap k=4 is the identity and uses x directly.
    """
    acc = None
    for k in range(9):
        xs = x if k == 4 else _mm(x, t_ref[k])
        tap = _mm(w_ref[k], xs)
        acc = tap if acc is None else acc + tap
    return acc


def _bn_relu(acc, s_ref, b_ref):
    # folded BatchNorm affine (per-channel = per-sublane, broadcast over all
    # lanes) + ReLU.
    return jnp.maximum(acc * s_ref[...] + b_ref[...], 0.0)


# ---------------------------------------------------------------------------
# Fused kernel: one grid step == one image
# ---------------------------------------------------------------------------
def _refine_kernel(dmin_ref, dmax_ref,
                   img_ref, d0_ref,
                   w0_ref, s0_ref, b0_ref,
                   w1_ref, s1_ref, b1_ref,
                   w2_ref, s2_ref, b2_ref,
                   wd_ref, sd_ref, bd_ref,
                   w3a_ref, w3b_ref, s3_ref, b3_ref,
                   wr_ref,
                   scat_ref, up_ref, tf_ref, th_ref,
                   out_ref):
    b = pl.program_id(0)
    dmin = dmin_ref[b]
    drange = dmax_ref[b] - dmin

    # normalized coarse depth, (1, h*w)
    dnorm = (d0_ref[0] - dmin) / drange

    # conv0 on the full-res image (3 -> 8), (8, H*W)
    conv0 = _bn_relu(_conv3x3(img_ref[0], w0_ref, tf_ref), s0_ref, b0_ref)

    # conv1 -> conv2 on the half-res normalized depth (1 -> 8 -> 8), (8, h*w)
    c1 = _bn_relu(_conv3x3(dnorm, w1_ref, th_ref), s1_ref, b1_ref)
    c2 = _bn_relu(_conv3x3(c1, w2_ref, th_ref), s2_ref, b2_ref)

    # ConvTranspose2d(8->8, k3, s2, p1, op1): sub-pixel 4-phase decomposition.
    #   out[2a+pa, 2b+pb] uses only the taps listed below (derived from the
    #   PyTorch transposed-conv index equation m = 2i - 1 + kh).
    x00 = c2                      # x[c, a,   b  ]
    x01 = _mm(c2, th_ref[5])      # x[c, a,   b+1]  (zero past the border)
    x10 = _mm(c2, th_ref[7])      # x[c, a+1, b  ]
    x11 = _mm(c2, th_ref[8])      # x[c, a+1, b+1]

    def dtap(kh, kw, xs):
        return _mm(wd_ref[kh, kw], xs)

    p00 = dtap(1, 1, x00)
    p01 = dtap(1, 0, x01) + dtap(1, 2, x00)
    p10 = dtap(0, 1, x10) + dtap(2, 1, x00)
    p11 = dtap(0, 0, x11) + dtap(0, 2, x10) + dtap(2, 0, x01) + dtap(2, 2, x00)

    # Interleave the 4 half-res phases to full resolution with constant 0/1
    # scatter matrices (one MXU matmul per phase), then fused BN + ReLU.
    deconv = (_mm(p00, scat_ref[0]) + _mm(p01, scat_ref[1])
              + _mm(p10, scat_ref[2]) + _mm(p11, scat_ref[3]))
    deconv = _bn_relu(deconv, sd_ref, bd_ref)

    # conv3 on cat([deconv, conv0], C) WITHOUT materializing the concat:
    # the 16-channel weight is split along Cin and the two convs accumulated.
    c3 = _bn_relu(_conv3x3(deconv, w3a_ref, tf_ref)
                  + _conv3x3(conv0, w3b_ref, tf_ref),
                  s3_ref, b3_ref)

    # residual conv (8 -> 1): no BN / no ReLU (identity affine skipped)
    res = _conv3x3(c3, wr_ref, tf_ref)                      # (1, H*W)

    # nearest x2 upsample of dnorm (constant 0/1 matrix) + denormalize + store
    up = _mm(dnorm, up_ref[...])                            # (1, H*W)
    out_ref[0] = (up + res) * drange + dmin


# ---------------------------------------------------------------------------
# Constant-matrix builders (host side, tiny)
# ---------------------------------------------------------------------------
def _make_shift_mats(H, W):
    """t[k, j, i] = 1  iff  source j = (a+dh)*W + (b+dw) for dest i = a*W + b,
    with the source inside the image;  k = (dh+1)*3 + (dw+1)."""
    HW = H * W
    t = np.zeros((9, HW, HW), np.float32)
    for dh in (-1, 0, 1):
        for dw in (-1, 0, 1):
            k = (dh + 1) * 3 + (dw + 1)
            for a in range(H):
                for b in range(W):
                    sa, sb = a + dh, b + dw
                    if 0 <= sa < H and 0 <= sb < W:
                        t[k, sa * W + sb, a * W + b] = 1.0
    return jnp.asarray(t)


def _make_scatter(h, w):
    """S[p, a*w+b, (2a+pa)*(2w) + 2b+pb] = 1,  p = pa*2 + pb."""
    W = 2 * w
    S = np.zeros((4, h * w, (2 * h) * W), np.float32)
    for pa in (0, 1):
        for pb in (0, 1):
            p = pa * 2 + pb
            for a in range(h):
                for b in range(w):
                    S[p, a * w + b, (2 * a + pa) * W + (2 * b + pb)] = 1.0
    return jnp.asarray(S)


# ---------------------------------------------------------------------------
# Parameter construction / kernel-layout preparation
# ---------------------------------------------------------------------------
def init_params(key):
    ks = jax.random.split(key, 11)
    eps = 1e-5

    def conv_w(k, cout, cin):
        w = 0.2 * jax.random.normal(k, (cout, cin, 3, 3), jnp.float32)  # OIHW
        return jnp.transpose(w, (2, 3, 1, 0))                           # HWIO

    def bn_fold(k, c):
        k1, k2, k3, k4 = jax.random.split(k, 4)
        gamma = 1.0 + 0.1 * jax.random.normal(k1, (c,), jnp.float32)
        beta = 0.1 * jax.random.normal(k2, (c,), jnp.float32)
        mean = 0.1 * jax.random.normal(k3, (c,), jnp.float32)
        var = 0.5 + jax.random.uniform(k4, (c,), jnp.float32)
        scale = gamma / jnp.sqrt(var + eps)
        bias = beta - mean * scale
        return scale, bias

    p = {}
    p["conv0"] = (conv_w(ks[0], 8, 3),) + bn_fold(ks[1], 8)
    p["conv1"] = (conv_w(ks[2], 8, 1),) + bn_fold(ks[3], 8)
    p["conv2"] = (conv_w(ks[4], 8, 8),) + bn_fold(ks[5], 8)
    # ConvTranspose2d weight (Cin, Cout, kh, kw) stored as its equivalent
    # regular-conv HWIO weight (spatial flip + transpose).
    wd = 0.2 * jax.random.normal(ks[6], (8, 8, 3, 3), jnp.float32)
    p["deconv"] = (jnp.transpose(wd[:, :, ::-1, ::-1], (2, 3, 0, 1)),) \
        + bn_fold(ks[7], 8)
    p["conv3"] = (conv_w(ks[8], 8, 16),) + bn_fold(ks[9], 8)
    wr = 0.2 * jax.random.normal(ks[10], (1, 8, 3, 3), jnp.float32)
    p["res_w"] = jnp.transpose(wr, (2, 3, 1, 0))
    return p


def _to9(w_hwio):
    # HWIO (3,3,Cin,Cout) -> (9, Cout, Cin), tap index k = kh*3 + kw
    cout, cin = w_hwio.shape[3], w_hwio.shape[2]
    return jnp.transpose(w_hwio, (0, 1, 3, 2)).reshape(9, cout, cin)


def prepare_kernel_params(params, H, W):
    h, w = H // 2, W // 2
    w0, s0, b0 = params["conv0"]
    w1, s1, b1 = params["conv1"]
    w2, s2, b2 = params["conv2"]
    wdc, sd, bd = params["deconv"]           # equivalent-conv HWIO (flipped)
    w3, s3, b3 = params["conv3"]
    wr = params["res_w"]
    col = lambda v: v.reshape(-1, 1)
    scat = _make_scatter(h, w)
    kp = {
        "w0": _to9(w0), "s0": col(s0), "b0": col(b0),
        "w1": _to9(w1), "s1": col(s1), "b1": col(b1),
        "w2": _to9(w2), "s2": col(s2), "b2": col(b2),
        # recover the raw transposed-conv taps: wd[kh,kw,o,c] = Wt[c,o,kh,kw]
        "wd": jnp.transpose(wdc[::-1, ::-1], (0, 1, 3, 2)),
        "sd": col(sd), "bd": col(bd),
        "w3a": _to9(w3[:, :, :8, :]), "w3b": _to9(w3[:, :, 8:, :]),
        "s3": col(s3), "b3": col(b3),
        "wr": _to9(wr),
        "scat": scat,
        "up": jnp.sum(scat, axis=0),
        "t_full": _make_shift_mats(H, W),
        "t_half": _make_shift_mats(h, w),
    }
    return kp


# ---------------------------------------------------------------------------
# pallas_call wrapper
# ---------------------------------------------------------------------------
def _fused_refine(kp, img_flat, d0_flat, dmin, dmax, H, W):
    B = img_flat.shape[0]
    h, w = H // 2, W // 2
    HW, hw = H * W, h * w

    def rep(shape):  # batch-invariant operand (weights / constant matrices)
        return pl.BlockSpec(shape, lambda b, *_, _r=len(shape): (0,) * _r)

    in_specs = [
        pl.BlockSpec((1, 3, HW), lambda b, *_: (b, 0, 0)),          # img
        pl.BlockSpec((1, 1, hw), lambda b, *_: (b, 0, 0)),          # depth_0
        rep((9, 8, 3)), rep((8, 1)), rep((8, 1)),                   # conv0
        rep((9, 8, 1)), rep((8, 1)), rep((8, 1)),                   # conv1
        rep((9, 8, 8)), rep((8, 1)), rep((8, 1)),                   # conv2
        rep((3, 3, 8, 8)), rep((8, 1)), rep((8, 1)),                # deconv
        rep((9, 8, 8)), rep((9, 8, 8)), rep((8, 1)), rep((8, 1)),   # conv3
        rep((9, 1, 8)),                                             # res
        rep((4, hw, HW)), rep((hw, HW)),                            # scat / up
        rep((9, HW, HW)), rep((9, hw, hw)),                         # shift mats
    ]

    return pl.pallas_call(
        _refine_kernel,
        out_shape=jax.ShapeDtypeStruct((B, 1, HW), jnp.float32),
        grid_spec=pltpu.PrefetchScalarGridSpec(
            num_scalar_prefetch=2,
            grid=(B,),
            in_specs=in_specs,
            out_specs=pl.BlockSpec((1, 1, HW), lambda b, *_: (b, 0, 0)),
        ),
        compiler_params=pltpu.CompilerParams(
            dimension_semantics=("parallel",)),   # batch images independent
    )(dmin, dmax,
      img_flat, d0_flat,
      kp["w0"], kp["s0"], kp["b0"],
      kp["w1"], kp["s1"], kp["b1"],
      kp["w2"], kp["s2"], kp["b2"],
      kp["wd"], kp["sd"], kp["bd"],
      kp["w3a"], kp["w3b"], kp["s3"], kp["b3"],
      kp["wr"],
      kp["scat"], kp["up"], kp["t_full"], kp["t_half"])


def refinement_forward(params, img_nchw, depth0_nchw, dmin, dmax):
    B, _, H, W = img_nchw.shape
    kp = prepare_kernel_params(params, H, W)
    # NCHW -> (B, C, H*W) is a pure reshape: no transposes anywhere.
    img_flat = img_nchw.reshape(B, 3, H * W)
    d0_flat = depth0_nchw.reshape(B, 1, (H // 2) * (W // 2))
    out = _fused_refine(kp, img_flat, d0_flat, dmin, dmax, H, W)
    return out.reshape(B, 1, H, W)


# ---------------------------------------------------------------------------
# Pure-JAX reference (silent correctness check)
# ---------------------------------------------------------------------------
def _ref_conv(x, w, s, b, relu, pad=((1, 1), (1, 1)), lhs_dilation=(1, 1)):
    y = jax.lax.conv_general_dilated(
        x, w, (1, 1), pad, lhs_dilation=lhs_dilation,
        dimension_numbers=("NHWC", "HWIO", "NHWC"))
    y = y * s + b
    return jnp.maximum(y, 0.0) if relu else y


def ref_forward(params, img_nchw, depth0_nchw, dmin, dmax):
    img = jnp.transpose(img_nchw, (0, 2, 3, 1))
    depth0 = jnp.transpose(depth0_nchw, (0, 2, 3, 1))
    dmin4 = dmin.reshape(-1, 1, 1, 1)
    dmax4 = dmax.reshape(-1, 1, 1, 1)
    dnorm = (depth0 - dmin4) / (dmax4 - dmin4)
    conv0 = _ref_conv(img, *params["conv0"], True)
    c1 = _ref_conv(dnorm, *params["conv1"], True)
    c2 = _ref_conv(c1, *params["conv2"], True)
    deconv = _ref_conv(c2, *params["deconv"], True,
                       pad=((1, 2), (1, 2)), lhs_dilation=(2, 2))
    cat = jnp.concatenate([deconv, conv0], axis=-1)
    c3 = _ref_conv(cat, *params["conv3"], True)
    res = _ref_conv(c3, params["res_w"], 1.0, 0.0, False)
    up = jnp.repeat(jnp.repeat(dnorm, 2, axis=1), 2, axis=2)
    depth = (up + res) * (dmax4 - dmin4) + dmin4
    return jnp.transpose(depth, (0, 3, 1, 2))


# ---------------------------------------------------------------------------
if __name__ == "__main__":
    key = jax.random.PRNGKey(0)
    B, H, W = 2, 16, 16
    h, w = H // 2, W // 2
    kimg, kdep, kpar = jax.random.split(key, 3)

    img = jax.random.normal(kimg, (B, 3, H, W), jnp.float32)
    depth_min = jnp.array([1.0, 1.5], jnp.float32)
    depth_max = jnp.array([3.0, 4.0], jnp.float32)
    u = jax.random.uniform(kdep, (B, 1, h, w), jnp.float32)
    depth_0 = depth_min.reshape(B, 1, 1, 1) + u * (depth_max
                                                   - depth_min).reshape(B, 1, 1, 1)

    params = init_params(kpar)

    out = refinement_forward(params, img, depth_0, depth_min, depth_max)
    out = jax.block_until_ready(out)
    assert out.shape == (B, 1, H, W)

    ref = ref_forward(params, img, depth_0, depth_min, depth_max)
    if not jnp.allclose(out, ref, rtol=1e-4, atol=1e-3):
        err = float(jnp.max(jnp.abs(out - ref)))
        raise RuntimeError(f"Pallas output mismatch vs reference (max abs err {err})")

    print("KERNEL_OK")
</pallas_src>

<mosaic_0001>
module attributes {stable_mosaic.version = 11 : i64} {
  func.func @_refine_kernel(%arg0: i32, %arg1: memref<2xf32, #tpu.memory_space<smem>>, %arg2: memref<2xf32, #tpu.memory_space<smem>>, %arg3: memref<1x3x256xf32, #tpu.memory_space<vmem>>, %arg4: memref<1x1x64xf32, #tpu.memory_space<vmem>>, %arg5: memref<9x8x3xf32, #tpu.memory_space<vmem>>, %arg6: memref<8x1xf32, #tpu.memory_space<vmem>>, %arg7: memref<8x1xf32, #tpu.memory_space<vmem>>, %arg8: memref<9x8x1xf32, #tpu.memory_space<vmem>>, %arg9: memref<8x1xf32, #tpu.memory_space<vmem>>, %arg10: memref<8x1xf32, #tpu.memory_space<vmem>>, %arg11: memref<9x8x8xf32, #tpu.memory_space<vmem>>, %arg12: memref<8x1xf32, #tpu.memory_space<vmem>>, %arg13: memref<8x1xf32, #tpu.memory_space<vmem>>, %arg14: memref<3x3x8x8xf32, #tpu.memory_space<vmem>>, %arg15: memref<8x1xf32, #tpu.memory_space<vmem>>, %arg16: memref<8x1xf32, #tpu.memory_space<vmem>>, %arg17: memref<9x8x8xf32, #tpu.memory_space<vmem>>, %arg18: memref<9x8x8xf32, #tpu.memory_space<vmem>>, %arg19: memref<8x1xf32, #tpu.memory_space<vmem>>, %arg20: memref<8x1xf32, #tpu.memory_space<vmem>>, %arg21: memref<9x1x8xf32, #tpu.memory_space<vmem>>, %arg22: memref<4x64x256xf32, #tpu.memory_space<vmem>>, %arg23: memref<64x256xf32, #tpu.memory_space<vmem>>, %arg24: memref<9x256x256xf32, #tpu.memory_space<vmem>>, %arg25: memref<9x64x64xf32, #tpu.memory_space<vmem>>, %arg26: memref<1x1x256xf32, #tpu.memory_space<vmem>>) attributes {dimension_semantics = [#tpu.dimension_semantics<parallel>], iteration_bounds = array<i64: 2>, scalar_prefetch = 2 : i64, scratch_operands = 0 : i64, tpu.core_type = #tpu.core_type<tc>, window_params = [{transform_indices = @transform_0, window_bounds = array<i64: 1, 3, 256>}, {transform_indices = @transform_1, window_bounds = array<i64: 1, 1, 64>}, {pipeline_mode = #tpu.pipeline_mode<synchronous>, transform_indices = @transform_2, window_bounds = array<i64: 9, 8, 3>}, {pipeline_mode = #tpu.pipeline_mode<synchronous>, transform_indices = @transform_3, window_bounds = array<i64: 8, 1>}, {pipeline_mode = #tpu.pipeline_mode<synchronous>, transform_indices = @transform_4, window_bounds = array<i64: 8, 1>}, {pipeline_mode = #tpu.pipeline_mode<synchronous>, transform_indices = @transform_5, window_bounds = array<i64: 9, 8, 1>}, {pipeline_mode = #tpu.pipeline_mode<synchronous>, transform_indices = @transform_6, window_bounds = array<i64: 8, 1>}, {pipeline_mode = #tpu.pipeline_mode<synchronous>, transform_indices = @transform_7, window_bounds = array<i64: 8, 1>}, {pipeline_mode = #tpu.pipeline_mode<synchronous>, transform_indices = @transform_8, window_bounds = array<i64: 9, 8, 8>}, {pipeline_mode = #tpu.pipeline_mode<synchronous>, transform_indices = @transform_9, window_bounds = array<i64: 8, 1>}, {pipeline_mode = #tpu.pipeline_mode<synchronous>, transform_indices = @transform_10, window_bounds = array<i64: 8, 1>}, {pipeline_mode = #tpu.pipeline_mode<synchronous>, transform_indices = @transform_11, window_bounds = array<i64: 3, 3, 8, 8>}, {pipeline_mode = #tpu.pipeline_mode<synchronous>, transform_indices = @transform_12, window_bounds = array<i64: 8, 1>}, {pipeline_mode = #tpu.pipeline_mode<synchronous>, transform_indices = @transform_13, window_bounds = array<i64: 8, 1>}, {pipeline_mode = #tpu.pipeline_mode<synchronous>, transform_indices = @transform_14, window_bounds = array<i64: 9, 8, 8>}, {pipeline_mode = #tpu.pipeline_mode<synchronous>, transform_indices = @transform_15, window_bounds = array<i64: 9, 8, 8>}, {pipeline_mode = #tpu.pipeline_mode<synchronous>, transform_indices = @transform_16, window_bounds = array<i64: 8, 1>}, {pipeline_mode = #tpu.pipeline_mode<synchronous>, transform_indices = @transform_17, window_bounds = array<i64: 8, 1>}, {pipeline_mode = #tpu.pipeline_mode<synchronous>, transform_indices = @transform_18, window_bounds = array<i64: 9, 1, 8>}, {pipeline_mode = #tpu.pipeline_mode<synchronous>, transform_indices = @transform_19, window_bounds = array<i64: 4, 64, 256>}, {pipeline_mode = #tpu.pipeline_mode<synchronous>, transform_indices = @transform_20, window_bounds = array<i64: 64, 256>}, {pipeline_mode = #tpu.pipeline_mode<synchronous>, transform_indices = @transform_21, window_bounds = array<i64: 9, 256, 256>}, {pipeline_mode = #tpu.pipeline_mode<synchronous>, transform_indices = @transform_22, window_bounds = array<i64: 9, 64, 64>}, {transform_indices = @transform_23, window_bounds = array<i64: 1, 1, 256>}]} {
    %0 = arith.index_cast %arg0 : i32 to index
    %1 = memref.load %arg1[%0] : memref<2xf32, #tpu.memory_space<smem>>
    %2 = arith.index_cast %arg0 : i32 to index
    %3 = memref.load %arg2[%2] : memref<2xf32, #tpu.memory_space<smem>>
    %4 = arith.subf %3, %1 : f32
    %c0 = arith.constant 0 : index
    %c0_0 = arith.constant 0 : index
    %c0_1 = arith.constant 0 : index
    %5 = vector.load %arg4[%c0, %c0_0, %c0_1] : memref<1x1x64xf32, #tpu.memory_space<vmem>>, vector<1x1x64xf32>
    %6 = vector.shape_cast %5 : vector<1x1x64xf32> to vector<1x64xf32>
    %7 = vector.broadcast %1 : f32 to vector<1x64xf32>
    %8 = arith.subf %6, %7 : vector<1x64xf32>
    %9 = vector.broadcast %4 : f32 to vector<1x64xf32>
    %10 = arith.divf %8, %9 : vector<1x64xf32>
    %c0_2 = arith.constant 0 : index
    %c0_3 = arith.constant 0 : index
    %c0_4 = arith.constant 0 : index
    %11 = vector.load %arg3[%c0_2, %c0_3, %c0_4] : memref<1x3x256xf32, #tpu.memory_space<vmem>>, vector<1x3x256xf32>
    %12 = vector.shape_cast %11 : vector<1x3x256xf32> to vector<3x256xf32>
    %c0_5 = arith.constant 0 : index
    %c0_6 = arith.constant 0 : index
    %c0_7 = arith.constant 0 : index
    %13 = vector.load %arg24[%c0_5, %c0_6, %c0_7] : memref<9x256x256xf32, #tpu.memory_space<vmem>>, vector<1x256x256xf32>
    %14 = vector.shape_cast %13 : vector<1x256x256xf32> to vector<256x256xf32>
    %cst = arith.constant dense<0.000000e+00> : vector<3x256xf32>
    %15 = tpu.matmul %12, %14, %cst {dimension_numbers = #tpu.dot_dimension_numbers<[1], [0], [0], [1], [0, 0, 1, 1], [], []>} : vector<3x256xf32>, vector<256x256xf32>, vector<3x256xf32> -> vector<3x256xf32>
    %c0_8 = arith.constant 0 : index
    %c0_9 = arith.constant 0 : index
    %c0_10 = arith.constant 0 : index
    %16 = vector.load %arg5[%c0_8, %c0_9, %c0_10] : memref<9x8x3xf32, #tpu.memory_space<vmem>>, vector<1x8x3xf32>
    %17 = vector.shape_cast %16 : vector<1x8x3xf32> to vector<8x3xf32>
    %cst_11 = arith.constant dense<0.000000e+00> : vector<8x256xf32>
    %18 = tpu.matmul %17, %15, %cst_11 {dimension_numbers = #tpu.dot_dimension_numbers<[1], [0], [0], [1], [0, 0, 1, 1], [], []>} : vector<8x3xf32>, vector<3x256xf32>, vector<8x256xf32> -> vector<8x256xf32>
    %c1 = arith.constant 1 : index
    %c0_12 = arith.constant 0 : index
    %c0_13 = arith.constant 0 : index
    %19 = vector.load %arg24[%c1, %c0_12, %c0_13] : memref<9x256x256xf32, #tpu.memory_space<vmem>>, vector<1x256x256xf32>
    %20 = vector.shape_cast %19 : vector<1x256x256xf32> to vector<256x256xf32>
    %cst_14 = arith.constant dense<0.000000e+00> : vector<3x256xf32>
    %21 = tpu.matmul %12, %20, %cst_14 {dimension_numbers = #tpu.dot_dimension_numbers<[1], [0], [0], [1], [0, 0, 1, 1], [], []>} : vector<3x256xf32>, vector<256x256xf32>, vector<3x256xf32> -> vector<3x256xf32>
    %c1_15 = arith.constant 1 : index
    %c0_16 = arith.constant 0 : index
    %c0_17 = arith.constant 0 : index
    %22 = vector.load %arg5[%c1_15, %c0_16, %c0_17] : memref<9x8x3xf32, #tpu.memory_space<vmem>>, vector<1x8x3xf32>
    %23 = vector.shape_cast %22 : vector<1x8x3xf32> to vector<8x3xf32>
    %cst_18 = arith.constant dense<0.000000e+00> : vector<8x256xf32>
    %24 = tpu.matmul %23, %21, %cst_18 {dimension_numbers = #tpu.dot_dimension_numbers<[1], [0], [0], [1], [0, 0, 1, 1], [], []>} : vector<8x3xf32>, vector<3x256xf32>, vector<8x256xf32> -> vector<8x256xf32>
    %25 = arith.addf %18, %24 : vector<8x256xf32>
    %c2 = arith.constant 2 : index
    %c0_19 = arith.constant 0 : index
    %c0_20 = arith.constant 0 : index
    %26 = vector.load %arg24[%c2, %c0_19, %c0_20] : memref<9x256x256xf32, #tpu.memory_space<vmem>>, vector<1x256x256xf32>
    %27 = vector.shape_cast %26 : vector<1x256x256xf32> to vector<256x256xf32>
    %cst_21 = arith.constant dense<0.000000e+00> : vector<3x256xf32>
    %28 = tpu.matmul %12, %27, %cst_21 {dimension_numbers = #tpu.dot_dimension_numbers<[1], [0], [0], [1], [0, 0, 1, 1], [], []>} : vector<3x256xf32>, vector<256x256xf32>, vector<3x256xf32> -> vector<3x256xf32>
    %c2_22 = arith.constant 2 : index
    %c0_23 = arith.constant 0 : index
    %c0_24 = arith.constant 0 : index
    %29 = vector.load %arg5[%c2_22, %c0_23, %c0_24] : memref<9x8x3xf32, #tpu.memory_space<vmem>>, vector<1x8x3xf32>
    %30 = vector.shape_cast %29 : vector<1x8x3xf32> to vector<8x3xf32>
    %cst_25 = arith.constant dense<0.000000e+00> : vector<8x256xf32>
    %31 = tpu.matmul %30, %28, %cst_25 {dimension_numbers = #tpu.dot_dimension_numbers<[1], [0], [0], [1], [0, 0, 1, 1], [], []>} : vector<8x3xf32>, vector<3x256xf32>, vector<8x256xf32> -> vector<8x256xf32>
    %32 = arith.addf %25, %31 : vector<8x256xf32>
    %c3 = arith.constant 3 : index
    %c0_26 = arith.constant 0 : index
    %c0_27 = arith.constant 0 : index
    %33 = vector.load %arg24[%c3, %c0_26, %c0_27] : memref<9x256x256xf32, #tpu.memory_space<vmem>>, vector<1x256x256xf32>
    %34 = vector.shape_cast %33 : vector<1x256x256xf32> to vector<256x256xf32>
    %cst_28 = arith.constant dense<0.000000e+00> : vector<3x256xf32>
    %35 = tpu.matmul %12, %34, %cst_28 {dimension_numbers = #tpu.dot_dimension_numbers<[1], [0], [0], [1], [0, 0, 1, 1], [], []>} : vector<3x256xf32>, vector<256x256xf32>, vector<3x256xf32> -> vector<3x256xf32>
    %c3_29 = arith.constant 3 : index
    %c0_30 = arith.constant 0 : index
    %c0_31 = arith.constant 0 : index
    %36 = vector.load %arg5[%c3_29, %c0_30, %c0_31] : memref<9x8x3xf32, #tpu.memory_space<vmem>>, vector<1x8x3xf32>
    %37 = vector.shape_cast %36 : vector<1x8x3xf32> to vector<8x3xf32>
    %cst_32 = arith.constant dense<0.000000e+00> : vector<8x256xf32>
    %38 = tpu.matmul %37, %35, %cst_32 {dimension_numbers = #tpu.dot_dimension_numbers<[1], [0], [0], [1], [0, 0, 1, 1], [], []>} : vector<8x3xf32>, vector<3x256xf32>, vector<8x256xf32> -> vector<8x256xf32>
    %39 = arith.addf %32, %38 : vector<8x256xf32>
    %c4 = arith.constant 4 : index
    %c0_33 = arith.constant 0 : index
    %c0_34 = arith.constant 0 : index
    %40 = vector.load %arg5[%c4, %c0_33, %c0_34] : memref<9x8x3xf32, #tpu.memory_space<vmem>>, vector<1x8x3xf32>
    %41 = vector.shape_cast %40 : vector<1x8x3xf32> to vector<8x3xf32>
    %cst_35 = arith.constant dense<0.000000e+00> : vector<8x256xf32>
    %42 = tpu.matmul %41, %12, %cst_35 {dimension_numbers = #tpu.dot_dimension_numbers<[1], [0], [0], [1], [0, 0, 1, 1], [], []>} : vector<8x3xf32>, vector<3x256xf32>, vector<8x256xf32> -> vector<8x256xf32>
    %43 = arith.addf %39, %42 : vector<8x256xf32>
    %c5 = arith.constant 5 : index
    %c0_36 = arith.constant 0 : index
    %c0_37 = arith.constant 0 : index
    %44 = vector.load %arg24[%c5, %c0_36, %c0_37] : memref<9x256x256xf32, #tpu.memory_space<vmem>>, vector<1x256x256xf32>
    %45 = vector.shape_cast %44 : vector<1x256x256xf32> to vector<256x256xf32>
    %cst_38 = arith.constant dense<0.000000e+00> : vector<3x256xf32>
    %46 = tpu.matmul %12, %45, %cst_38 {dimension_numbers = #tpu.dot_dimension_numbers<[1], [0], [0], [1], [0, 0, 1, 1], [], []>} : vector<3x256xf32>, vector<256x256xf32>, vector<3x256xf32> -> vector<3x256xf32>
    %c5_39 = arith.constant 5 : index
    %c0_40 = arith.constant 0 : index
    %c0_41 = arith.constant 0 : index
    %47 = vector.load %arg5[%c5_39, %c0_40, %c0_41] : memref<9x8x3xf32, #tpu.memory_space<vmem>>, vector<1x8x3xf32>
    %48 = vector.shape_cast %47 : vector<1x8x3xf32> to vector<8x3xf32>
    %cst_42 = arith.constant dense<0.000000e+00> : vector<8x256xf32>
    %49 = tpu.matmul %48, %46, %cst_42 {dimension_numbers = #tpu.dot_dimension_numbers<[1], [0], [0], [1], [0, 0, 1, 1], [], []>} : vector<8x3xf32>, vector<3x256xf32>, vector<8x256xf32> -> vector<8x256xf32>
    %50 = arith.addf %43, %49 : vector<8x256xf32>
    %c6 = arith.constant 6 : index
    %c0_43 = arith.constant 0 : index
    %c0_44 = arith.constant 0 : index
    %51 = vector.load %arg24[%c6, %c0_43, %c0_44] : memref<9x256x256xf32, #tpu.memory_space<vmem>>, vector<1x256x256xf32>
    %52 = vector.shape_cast %51 : vector<1x256x256xf32> to vector<256x256xf32>
    %cst_45 = arith.constant dense<0.000000e+00> : vector<3x256xf32>
    %53 = tpu.matmul %12, %52, %cst_45 {dimension_numbers = #tpu.dot_dimension_numbers<[1], [0], [0], [1], [0, 0, 1, 1], [], []>} : vector<3x256xf32>, vector<256x256xf32>, vector<3x256xf32> -> vector<3x256xf32>
    %c6_46 = arith.constant 6 : index
    %c0_47 = arith.constant 0 : index
    %c0_48 = arith.constant 0 : index
    %54 = vector.load %arg5[%c6_46, %c0_47, %c0_48] : memref<9x8x3xf32, #tpu.memory_space<vmem>>, vector<1x8x3xf32>
    %55 = vector.shape_cast %54 : vector<1x8x3xf32> to vector<8x3xf32>
    %cst_49 = arith.constant dense<0.000000e+00> : vector<8x256xf32>
    %56 = tpu.matmul %55, %53, %cst_49 {dimension_numbers = #tpu.dot_dimension_numbers<[1], [0], [0], [1], [0, 0, 1, 1], [], []>} : vector<8x3xf32>, vector<3x256xf32>, vector<8x256xf32> -> vector<8x256xf32>
    %57 = arith.addf %50, %56 : vector<8x256xf32>
    %c7 = arith.constant 7 : index
    %c0_50 = arith.constant 0 : index
    %c0_51 = arith.constant 0 : index
    %58 = vector.load %arg24[%c7, %c0_50, %c0_51] : memref<9x256x256xf32, #tpu.memory_space<vmem>>, vector<1x256x256xf32>
    %59 = vector.shape_cast %58 : vector<1x256x256xf32> to vector<256x256xf32>
    %cst_52 = arith.constant dense<0.000000e+00> : vector<3x256xf32>
    %60 = tpu.matmul %12, %59, %cst_52 {dimension_numbers = #tpu.dot_dimension_numbers<[1], [0], [0], [1], [0, 0, 1, 1], [], []>} : vector<3x256xf32>, vector<256x256xf32>, vector<3x256xf32> -> vector<3x256xf32>
    %c7_53 = arith.constant 7 : index
    %c0_54 = arith.constant 0 : index
    %c0_55 = arith.constant 0 : index
    %61 = vector.load %arg5[%c7_53, %c0_54, %c0_55] : memref<9x8x3xf32, #tpu.memory_space<vmem>>, vector<1x8x3xf32>
    %62 = vector.shape_cast %61 : vector<1x8x3xf32> to vector<8x3xf32>
    %cst_56 = arith.constant dense<0.000000e+00> : vector<8x256xf32>
    %63 = tpu.matmul %62, %60, %cst_56 {dimension_numbers = #tpu.dot_dimension_numbers<[1], [0], [0], [1], [0, 0, 1, 1], [], []>} : vector<8x3xf32>, vector<3x256xf32>, vector<8x256xf32> -> vector<8x256xf32>
    %64 = arith.addf %57, %63 : vector<8x256xf32>
    %c8 = arith.constant 8 : index
    %c0_57 = arith.constant 0 : index
    %c0_58 = arith.constant 0 : index
    %65 = vector.load %arg24[%c8, %c0_57, %c0_58] : memref<9x256x256xf32, #tpu.memory_space<vmem>>, vector<1x256x256xf32>
    %66 = vector.shape_cast %65 : vector<1x256x256xf32> to vector<256x256xf32>
    %cst_59 = arith.constant dense<0.000000e+00> : vector<3x256xf32>
    %67 = tpu.matmul %12, %66, %cst_59 {dimension_numbers = #tpu.dot_dimension_numbers<[1], [0], [0], [1], [0, 0, 1, 1], [], []>} : vector<3x256xf32>, vector<256x256xf32>, vector<3x256xf32> -> vector<3x256xf32>
    %c8_60 = arith.constant 8 : index
    %c0_61 = arith.constant 0 : index
    %c0_62 = arith.constant 0 : index
    %68 = vector.load %arg5[%c8_60, %c0_61, %c0_62] : memref<9x8x3xf32, #tpu.memory_space<vmem>>, vector<1x8x3xf32>
    %69 = vector.shape_cast %68 : vector<1x8x3xf32> to vector<8x3xf32>
    %cst_63 = arith.constant dense<0.000000e+00> : vector<8x256xf32>
    %70 = tpu.matmul %69, %67, %cst_63 {dimension_numbers = #tpu.dot_dimension_numbers<[1], [0], [0], [1], [0, 0, 1, 1], [], []>} : vector<8x3xf32>, vector<3x256xf32>, vector<8x256xf32> -> vector<8x256xf32>
    %71 = arith.addf %64, %70 : vector<8x256xf32>
    %c0_64 = arith.constant 0 : index
    %c0_65 = arith.constant 0 : index
    %72 = vector.load %arg6[%c0_64, %c0_65] : memref<8x1xf32, #tpu.memory_space<vmem>>, vector<8x1xf32>
    %73 = vector.broadcast %72 : vector<8x1xf32> to vector<8x256xf32>
    %74 = arith.mulf %71, %73 : vector<8x256xf32>
    %c0_66 = arith.constant 0 : index
    %c0_67 = arith.constant 0 : index
    %75 = vector.load %arg7[%c0_66, %c0_67] : memref<8x1xf32, #tpu.memory_space<vmem>>, vector<8x1xf32>
    %76 = vector.broadcast %75 : vector<8x1xf32> to vector<8x256xf32>
    %77 = arith.addf %74, %76 : vector<8x256xf32>
    %cst_68 = arith.constant 0.000000e+00 : f32
    %78 = vector.broadcast %cst_68 : f32 to vector<8x256xf32>
    %79 = arith.maximumf %77, %78 : vector<8x256xf32>
    %c0_69 = arith.constant 0 : index
    %c0_70 = arith.constant 0 : index
    %c0_71 = arith.constant 0 : index
    %80 = vector.load %arg25[%c0_69, %c0_70, %c0_71] : memref<9x64x64xf32, #tpu.memory_space<vmem>>, vector<1x64x64xf32>
    %81 = vector.shape_cast %80 : vector<1x64x64xf32> to vector<64x64xf32>
    %cst_72 = arith.constant dense<0.000000e+00> : vector<1x64xf32>
    %82 = tpu.matmul %10, %81, %cst_72 {dimension_numbers = #tpu.dot_dimension_numbers<[1], [0], [0], [1], [0, 0, 1, 1], [], []>} : vector<1x64xf32>, vector<64x64xf32>, vector<1x64xf32> -> vector<1x64xf32>
    %c0_73 = arith.constant 0 : index
    %c0_74 = arith.constant 0 : index
    %c0_75 = arith.constant 0 : index
    %83 = vector.load %arg8[%c0_73, %c0_74, %c0_75] : memref<9x8x1xf32, #tpu.memory_space<vmem>>, vector<1x8x1xf32>
    %84 = vector.shape_cast %83 : vector<1x8x1xf32> to vector<8x1xf32>
    %cst_76 = arith.constant dense<0.000000e+00> : vector<8x64xf32>
    %85 = tpu.matmul %84, %82, %cst_76 {dimension_numbers = #tpu.dot_dimension_numbers<[1], [0], [0], [1], [0, 0, 1, 1], [], []>} : vector<8x1xf32>, vector<1x64xf32>, vector<8x64xf32> -> vector<8x64xf32>
    %c1_77 = arith.constant 1 : index
    %c0_78 = arith.constant 0 : index
    %c0_79 = arith.constant 0 : index
    %86 = vector.load %arg25[%c1_77, %c0_78, %c0_79] : memref<9x64x64xf32, #tpu.memory_space<vmem>>, vector<1x64x64xf32>
    %87 = vector.shape_cast %86 : vector<1x64x64xf32> to vector<64x64xf32>
    %cst_80 = arith.constant dense<0.000000e+00> : vector<1x64xf32>
    %88 = tpu.matmul %10, %87, %cst_80 {dimension_numbers = #tpu.dot_dimension_numbers<[1], [0], [0], [1], [0, 0, 1, 1], [], []>} : vector<1x64xf32>, vector<64x64xf32>, vector<1x64xf32> -> vector<1x64xf32>
    %c1_81 = arith.constant 1 : index
    %c0_82 = arith.constant 0 : index
    %c0_83 = arith.constant 0 : index
    %89 = vector.load %arg8[%c1_81, %c0_82, %c0_83] : memref<9x8x1xf32, #tpu.memory_space<vmem>>, vector<1x8x1xf32>
    %90 = vector.shape_cast %89 : vector<1x8x1xf32> to vector<8x1xf32>
    %cst_84 = arith.constant dense<0.000000e+00> : vector<8x64xf32>
    %91 = tpu.matmul %90, %88, %cst_84 {dimension_numbers = #tpu.dot_dimension_numbers<[1], [0], [0], [1], [0, 0, 1, 1], [], []>} : vector<8x1xf32>, vector<1x64xf32>, vector<8x64xf32> -> vector<8x64xf32>
    %92 = arith.addf %85, %91 : vector<8x64xf32>
    %c2_85 = arith.constant 2 : index
    %c0_86 = arith.constant 0 : index
    %c0_87 = arith.constant 0 : index
    %93 = vector.load %arg25[%c2_85, %c0_86, %c0_87] : memref<9x64x64xf32, #tpu.memory_space<vmem>>, vector<1x64x64xf32>
    %94 = vector.shape_cast %93 : vector<1x64x64xf32> to vector<64x64xf32>
    %cst_88 = arith.constant dense<0.000000e+00> : vector<1x64xf32>
    %95 = tpu.matmul %10, %94, %cst_88 {dimension_numbers = #tpu.dot_dimension_numbers<[1], [0], [0], [1], [0, 0, 1, 1], [], []>} : vector<1x64xf32>, vector<64x64xf32>, vector<1x64xf32> -> vector<1x64xf32>
    %c2_89 = arith.constant 2 : index
    %c0_90 = arith.constant 0 : index
    %c0_91 = arith.constant 0 : index
    %96 = vector.load %arg8[%c2_89, %c0_90, %c0_91] : memref<9x8x1xf32, #tpu.memory_space<vmem>>, vector<1x8x1xf32>
    %97 = vector.shape_cast %96 : vector<1x8x1xf32> to vector<8x1xf32>
    %cst_92 = arith.constant dense<0.000000e+00> : vector<8x64xf32>
    %98 = tpu.matmul %97, %95, %cst_92 {dimension_numbers = #tpu.dot_dimension_numbers<[1], [0], [0], [1], [0, 0, 1, 1], [], []>} : vector<8x1xf32>, vector<1x64xf32>, vector<8x64xf32> -> vector<8x64xf32>
    %99 = arith.addf %92, %98 : vector<8x64xf32>
    %c3_93 = arith.constant 3 : index
    %c0_94 = arith.constant 0 : index
    %c0_95 = arith.constant 0 : index
    %100 = vector.load %arg25[%c3_93, %c0_94, %c0_95] : memref<9x64x64xf32, #tpu.memory_space<vmem>>, vector<1x64x64xf32>
    %101 = vector.shape_cast %100 : vector<1x64x64xf32> to vector<64x64xf32>
    %cst_96 = arith.constant dense<0.000000e+00> : vector<1x64xf32>
    %102 = tpu.matmul %10, %101, %cst_96 {dimension_numbers = #tpu.dot_dimension_numbers<[1], [0], [0], [1], [0, 0, 1, 1], [], []>} : vector<1x64xf32>, vector<64x64xf32>, vector<1x64xf32> -> vector<1x64xf32>
    %c3_97 = arith.constant 3 : index
    %c0_98 = arith.constant 0 : index
    %c0_99 = arith.constant 0 : index
    %103 = vector.load %arg8[%c3_97, %c0_98, %c0_99] : memref<9x8x1xf32, #tpu.memory_space<vmem>>, vector<1x8x1xf32>
    %104 = vector.shape_cast %103 : vector<1x8x1xf32> to vector<8x1xf32>
    %cst_100 = arith.constant dense<0.000000e+00> : vector<8x64xf32>
    %105 = tpu.matmul %104, %102, %cst_100 {dimension_numbers = #tpu.dot_dimension_numbers<[1], [0], [0], [1], [0, 0, 1, 1], [], []>} : vector<8x1xf32>, vector<1x64xf32>, vector<8x64xf32> -> vector<8x64xf32>
    %106 = arith.addf %99, %105 : vector<8x64xf32>
    %c4_101 = arith.constant 4 : index
    %c0_102 = arith.constant 0 : index
    %c0_103 = arith.constant 0 : index
    %107 = vector.load %arg8[%c4_101, %c0_102, %c0_103] : memref<9x8x1xf32, #tpu.memory_space<vmem>>, vector<1x8x1xf32>
    %108 = vector.shape_cast %107 : vector<1x8x1xf32> to vector<8x1xf32>
    %cst_104 = arith.constant dense<0.000000e+00> : vector<8x64xf32>
    %109 = tpu.matmul %108, %10, %cst_104 {dimension_numbers = #tpu.dot_dimension_numbers<[1], [0], [0], [1], [0, 0, 1, 1], [], []>} : vector<8x1xf32>, vector<1x64xf32>, vector<8x64xf32> -> vector<8x64xf32>
    %110 = arith.addf %106, %109 : vector<8x64xf32>
    %c5_105 = arith.constant 5 : index
    %c0_106 = arith.constant 0 : index
    %c0_107 = arith.constant 0 : index
    %111 = vector.load %arg25[%c5_105, %c0_106, %c0_107] : memref<9x64x64xf32, #tpu.memory_space<vmem>>, vector<1x64x64xf32>
    %112 = vector.shape_cast %111 : vector<1x64x64xf32> to vector<64x64xf32>
    %cst_108 = arith.constant dense<0.000000e+00> : vector<1x64xf32>
    %113 = tpu.matmul %10, %112, %cst_108 {dimension_numbers = #tpu.dot_dimension_numbers<[1], [0], [0], [1], [0, 0, 1, 1], [], []>} : vector<1x64xf32>, vector<64x64xf32>, vector<1x64xf32> -> vector<1x64xf32>
    %c5_109 = arith.constant 5 : index
    %c0_110 = arith.constant 0 : index
    %c0_111 = arith.constant 0 : index
    %114 = vector.load %arg8[%c5_109, %c0_110, %c0_111] : memref<9x8x1xf32, #tpu.memory_space<vmem>>, vector<1x8x1xf32>
    %115 = vector.shape_cast %114 : vector<1x8x1xf32> to vector<8x1xf32>
    %cst_112 = arith.constant dense<0.000000e+00> : vector<8x64xf32>
    %116 = tpu.matmul %115, %113, %cst_112 {dimension_numbers = #tpu.dot_dimension_numbers<[1], [0], [0], [1], [0, 0, 1, 1], [], []>} : vector<8x1xf32>, vector<1x64xf32>, vector<8x64xf32> -> vector<8x64xf32>
    %117 = arith.addf %110, %116 : vector<8x64xf32>
    %c6_113 = arith.constant 6 : index
    %c0_114 = arith.constant 0 : index
    %c0_115 = arith.constant 0 : index
    %118 = vector.load %arg25[%c6_113, %c0_114, %c0_115] : memref<9x64x64xf32, #tpu.memory_space<vmem>>, vector<1x64x64xf32>
    %119 = vector.shape_cast %118 : vector<1x64x64xf32> to vector<64x64xf32>
    %cst_116 = arith.constant dense<0.000000e+00> : vector<1x64xf32>
    %120 = tpu.matmul %10, %119, %cst_116 {dimension_numbers = #tpu.dot_dimension_numbers<[1], [0], [0], [1], [0, 0, 1, 1], [], []>} : vector<1x64xf32>, vector<64x64xf32>, vector<1x64xf32> -> vector<1x64xf32>
    %c6_117 = arith.constant 6 : index
    %c0_118 = arith.constant 0 : index
    %c0_119 = arith.constant 0 : index
    %121 = vector.load %arg8[%c6_117, %c0_118, %c0_119] : memref<9x8x1xf32, #tpu.memory_space<vmem>>, vector<1x8x1xf32>
    %122 = vector.shape_cast %121 : vector<1x8x1xf32> to vector<8x1xf32>
    %cst_120 = arith.constant dense<0.000000e+00> : vector<8x64xf32>
    %123 = tpu.matmul %122, %120, %cst_120 {dimension_numbers = #tpu.dot_dimension_numbers<[1], [0], [0], [1], [0, 0, 1, 1], [], []>} : vector<8x1xf32>, vector<1x64xf32>, vector<8x64xf32> -> vector<8x64xf32>
    %124 = arith.addf %117, %123 : vector<8x64xf32>
    %c7_121 = arith.constant 7 : index
    %c0_122 = arith.constant 0 : index
    %c0_123 = arith.constant 0 : index
    %125 = vector.load %arg25[%c7_121, %c0_122, %c0_123] : memref<9x64x64xf32, #tpu.memory_space<vmem>>, vector<1x64x64xf32>
    %126 = vector.shape_cast %125 : vector<1x64x64xf32> to vector<64x64xf32>
    %cst_124 = arith.constant dense<0.000000e+00> : vector<1x64xf32>
    %127 = tpu.matmul %10, %126, %cst_124 {dimension_numbers = #tpu.dot_dimension_numbers<[1], [0], [0], [1], [0, 0, 1, 1], [], []>} : vector<1x64xf32>, vector<64x64xf32>, vector<1x64xf32> -> vector<1x64xf32>
    %c7_125 = arith.constant 7 : index
    %c0_126 = arith.constant 0 : index
    %c0_127 = arith.constant 0 : index
    %128 = vector.load %arg8[%c7_125, %c0_126, %c0_127] : memref<9x8x1xf32, #tpu.memory_space<vmem>>, vector<1x8x1xf32>
    %129 = vector.shape_cast %128 : vector<1x8x1xf32> to vector<8x1xf32>
    %cst_128 = arith.constant dense<0.000000e+00> : vector<8x64xf32>
    %130 = tpu.matmul %129, %127, %cst_128 {dimension_numbers = #tpu.dot_dimension_numbers<[1], [0], [0], [1], [0, 0, 1, 1], [], []>} : vector<8x1xf32>, vector<1x64xf32>, vector<8x64xf32> -> vector<8x64xf32>
    %131 = arith.addf %124, %130 : vector<8x64xf32>
    %c8_129 = arith.constant 8 : index
    %c0_130 = arith.constant 0 : index
    %c0_131 = arith.constant 0 : index
    %132 = vector.load %arg25[%c8_129, %c0_130, %c0_131] : memref<9x64x64xf32, #tpu.memory_space<vmem>>, vector<1x64x64xf32>
    %133 = vector.shape_cast %132 : vector<1x64x64xf32> to vector<64x64xf32>
    %cst_132 = arith.constant dense<0.000000e+00> : vector<1x64xf32>
    %134 = tpu.matmul %10, %133, %cst_132 {dimension_numbers = #tpu.dot_dimension_numbers<[1], [0], [0], [1], [0, 0, 1, 1], [], []>} : vector<1x64xf32>, vector<64x64xf32>, vector<1x64xf32> -> vector<1x64xf32>
    %c8_133 = arith.constant 8 : index
    %c0_134 = arith.constant 0 : index
    %c0_135 = arith.constant 0 : index
    %135 = vector.load %arg8[%c8_133, %c0_134, %c0_135] : memref<9x8x1xf32, #tpu.memory_space<vmem>>, vector<1x8x1xf32>
    %136 = vector.shape_cast %135 : vector<1x8x1xf32> to vector<8x1xf32>
    %cst_136 = arith.constant dense<0.000000e+00> : vector<8x64xf32>
    %137 = tpu.matmul %136, %134, %cst_136 {dimension_numbers = #tpu.dot_dimension_numbers<[1], [0], [0], [1], [0, 0, 1, 1], [], []>} : vector<8x1xf32>, vector<1x64xf32>, vector<8x64xf32> -> vector<8x64xf32>
    %138 = arith.addf %131, %137 : vector<8x64xf32>
    %c0_137 = arith.constant 0 : index
    %c0_138 = arith.constant 0 : index
    %139 = vector.load %arg9[%c0_137, %c0_138] : memref<8x1xf32, #tpu.memory_space<vmem>>, vector<8x1xf32>
    %140 = vector.broadcast %139 : vector<8x1xf32> to vector<8x64xf32>
    %141 = arith.mulf %138, %140 : vector<8x64xf32>
    %c0_139 = arith.constant 0 : index
    %c0_140 = arith.constant 0 : index
    %142 = vector.load %arg10[%c0_139, %c0_140] : memref<8x1xf32, #tpu.memory_space<vmem>>, vector<8x1xf32>
    %143 = vector.broadcast %142 : vector<8x1xf32> to vector<8x64xf32>
    %144 = arith.addf %141, %143 : vector<8x64xf32>
    %cst_141 = arith.constant 0.000000e+00 : f32
    %145 = vector.broadcast %cst_141 : f32 to vector<8x64xf32>
    %146 = arith.maximumf %144, %145 : vector<8x64xf32>
    %c0_142 = arith.constant 0 : index
    %c0_143 = arith.constant 0 : index
    %c0_144 = arith.constant 0 : index
    %147 = vector.load %arg25[%c0_142, %c0_143, %c0_144] : memref<9x64x64xf32, #tpu.memory_space<vmem>>, vector<1x64x64xf32>
    %148 = vector.shape_cast %147 : vector<1x64x64xf32> to vector<64x64xf32>
    %cst_145 = arith.constant dense<0.000000e+00> : vector<8x64xf32>
    %149 = tpu.matmul %146, %148, %cst_145 {dimension_numbers = #tpu.dot_dimension_numbers<[1], [0], [0], [1], [0, 0, 1, 1], [], []>} : vector<8x64xf32>, vector<64x64xf32>, vector<8x64xf32> -> vector<8x64xf32>
    %c0_146 = arith.constant 0 : index
    %c0_147 = arith.constant 0 : index
    %c0_148 = arith.constant 0 : index
    %150 = vector.load %arg11[%c0_146, %c0_147, %c0_148] : memref<9x8x8xf32, #tpu.memory_space<vmem>>, vector<1x8x8xf32>
    %151 = vector.shape_cast %150 : vector<1x8x8xf32> to vector<8x8xf32>
    %cst_149 = arith.constant dense<0.000000e+00> : vector<8x64xf32>
    %152 = tpu.matmul %151, %149, %cst_149 {dimension_numbers = #tpu.dot_dimension_numbers<[1], [0], [0], [1], [0, 0, 1, 1], [], []>} : vector<8x8xf32>, vector<8x64xf32>, vector<8x64xf32> -> vector<8x64xf32>
    %c1_150 = arith.constant 1 : index
    %c0_151 = arith.constant 0 : index
    %c0_152 = arith.constant 0 : index
    %153 = vector.load %arg25[%c1_150, %c0_151, %c0_152] : memref<9x64x64xf32, #tpu.memory_space<vmem>>, vector<1x64x64xf32>
    %154 = vector.shape_cast %153 : vector<1x64x64xf32> to vector<64x64xf32>
    %cst_153 = arith.constant dense<0.000000e+00> : vector<8x64xf32>
    %155 = tpu.matmul %146, %154, %cst_153 {dimension_numbers = #tpu.dot_dimension_numbers<[1], [0], [0], [1], [0, 0, 1, 1], [], []>} : vector<8x64xf32>, vector<64x64xf32>, vector<8x64xf32> -> vector<8x64xf32>
    %c1_154 = arith.constant 1 : index
    %c0_155 = arith.constant 0 : index
    %c0_156 = arith.constant 0 : index
    %156 = vector.load %arg11[%c1_154, %c0_155, %c0_156] : memref<9x8x8xf32, #tpu.memory_space<vmem>>, vector<1x8x8xf32>
    %157 = vector.shape_cast %156 : vector<1x8x8xf32> to vector<8x8xf32>
    %cst_157 = arith.constant dense<0.000000e+00> : vector<8x64xf32>
    %158 = tpu.matmul %157, %155, %cst_157 {dimension_numbers = #tpu.dot_dimension_numbers<[1], [0], [0], [1], [0, 0, 1, 1], [], []>} : vector<8x8xf32>, vector<8x64xf32>, vector<8x64xf32> -> vector<8x64xf32>
    %159 = arith.addf %152, %158 : vector<8x64xf32>
    %c2_158 = arith.constant 2 : index
    %c0_159 = arith.constant 0 : index
    %c0_160 = arith.constant 0 : index
    %160 = vector.load %arg25[%c2_158, %c0_159, %c0_160] : memref<9x64x64xf32, #tpu.memory_space<vmem>>, vector<1x64x64xf32>
    %161 = vector.shape_cast %160 : vector<1x64x64xf32> to vector<64x64xf32>
    %cst_161 = arith.constant dense<0.000000e+00> : vector<8x64xf32>
    %162 = tpu.matmul %146, %161, %cst_161 {dimension_numbers = #tpu.dot_dimension_numbers<[1], [0], [0], [1], [0, 0, 1, 1], [], []>} : vector<8x64xf32>, vector<64x64xf32>, vector<8x64xf32> -> vector<8x64xf32>
    %c2_162 = arith.constant 2 : index
    %c0_163 = arith.constant 0 : index
    %c0_164 = arith.constant 0 : index
    %163 = vector.load %arg11[%c2_162, %c0_163, %c0_164] : memref<9x8x8xf32, #tpu.memory_space<vmem>>, vector<1x8x8xf32>
    %164 = vector.shape_cast %163 : vector<1x8x8xf32> to vector<8x8xf32>
    %cst_165 = arith.constant dense<0.000000e+00> : vector<8x64xf32>
    %165 = tpu.matmul %164, %162, %cst_165 {dimension_numbers = #tpu.dot_dimension_numbers<[1], [0], [0], [1], [0, 0, 1, 1], [], []>} : vector<8x8xf32>, vector<8x64xf32>, vector<8x64xf32> -> vector<8x64xf32>
    %166 = arith.addf %159, %165 : vector<8x64xf32>
    %c3_166 = arith.constant 3 : index
    %c0_167 = arith.constant 0 : index
    %c0_168 = arith.constant 0 : index
    %167 = vector.load %arg25[%c3_166, %c0_167, %c0_168] : memref<9x64x64xf32, #tpu.memory_space<vmem>>, vector<1x64x64xf32>
    %168 = vector.shape_cast %167 : vector<1x64x64xf32> to vector<64x64xf32>
    %cst_169 = arith.constant dense<0.000000e+00> : vector<8x64xf32>
    %169 = tpu.matmul %146, %168, %cst_169 {dimension_numbers = #tpu.dot_dimension_numbers<[1], [0], [0], [1], [0, 0, 1, 1], [], []>} : vector<8x64xf32>, vector<64x64xf32>, vector<8x64xf32> -> vector<8x64xf32>
    %c3_170 = arith.constant 3 : index
    %c0_171 = arith.constant 0 : index
    %c0_172 = arith.constant 0 : index
    %170 = vector.load %arg11[%c3_170, %c0_171, %c0_172] : memref<9x8x8xf32, #tpu.memory_space<vmem>>, vector<1x8x8xf32>
    %171 = vector.shape_cast %170 : vector<1x8x8xf32> to vector<8x8xf32>
    %cst_173 = arith.constant dense<0.000000e+00> : vector<8x64xf32>
    %172 = tpu.matmul %171, %169, %cst_173 {dimension_numbers = #tpu.dot_dimension_numbers<[1], [0], [0], [1], [0, 0, 1, 1], [], []>} : vector<8x8xf32>, vector<8x64xf32>, vector<8x64xf32> -> vector<8x64xf32>
    %173 = arith.addf %166, %172 : vector<8x64xf32>
    %c4_174 = arith.constant 4 : index
    %c0_175 = arith.constant 0 : index
    %c0_176 = arith.constant 0 : index
    %174 = vector.load %arg11[%c4_174, %c0_175, %c0_176] : memref<9x8x8xf32, #tpu.memory_space<vmem>>, vector<1x8x8xf32>
    %175 = vector.shape_cast %174 : vector<1x8x8xf32> to vector<8x8xf32>
    %cst_177 = arith.constant dense<0.000000e+00> : vector<8x64xf32>
    %176 = tpu.matmul %175, %146, %cst_177 {dimension_numbers = #tpu.dot_dimension_numbers<[1], [0], [0], [1], [0, 0, 1, 1], [], []>} : vector<8x8xf32>, vector<8x64xf32>, vector<8x64xf32> -> vector<8x64xf32>
    %177 = arith.addf %173, %176 : vector<8x64xf32>
    %c5_178 = arith.constant 5 : index
    %c0_179 = arith.constant 0 : index
    %c0_180 = arith.constant 0 : index
    %178 = vector.load %arg25[%c5_178, %c0_179, %c0_180] : memref<9x64x64xf32, #tpu.memory_space<vmem>>, vector<1x64x64xf32>
    %179 = vector.shape_cast %178 : vector<1x64x64xf32> to vector<64x64xf32>
    %cst_181 = arith.constant dense<0.000000e+00> : vector<8x64xf32>
    %180 = tpu.matmul %146, %179, %cst_181 {dimension_numbers = #tpu.dot_dimension_numbers<[1], [0], [0], [1], [0, 0, 1, 1], [], []>} : vector<8x64xf32>, vector<64x64xf32>, vector<8x64xf32> -> vector<8x64xf32>
    %c5_182 = arith.constant 5 : index
    %c0_183 = arith.constant 0 : index
    %c0_184 = arith.constant 0 : index
    %181 = vector.load %arg11[%c5_182, %c0_183, %c0_184] : memref<9x8x8xf32, #tpu.memory_space<vmem>>, vector<1x8x8xf32>
    %182 = vector.shape_cast %181 : vector<1x8x8xf32> to vector<8x8xf32>
    %cst_185 = arith.constant dense<0.000000e+00> : vector<8x64xf32>
    %183 = tpu.matmul %182, %180, %cst_185 {dimension_numbers = #tpu.dot_dimension_numbers<[1], [0], [0], [1], [0, 0, 1, 1], [], []>} : vector<8x8xf32>, vector<8x64xf32>, vector<8x64xf32> -> vector<8x64xf32>
    %184 = arith.addf %177, %183 : vector<8x64xf32>
    %c6_186 = arith.constant 6 : index
    %c0_187 = arith.constant 0 : index
    %c0_188 = arith.constant 0 : index
    %185 = vector.load %arg25[%c6_186, %c0_187, %c0_188] : memref<9x64x64xf32, #tpu.memory_space<vmem>>, vector<1x64x64xf32>
    %186 = vector.shape_cast %185 : vector<1x64x64xf32> to vector<64x64xf32>
    %cst_189 = arith.constant dense<0.000000e+00> : vector<8x64xf32>
    %187 = tpu.matmul %146, %186, %cst_189 {dimension_numbers = #tpu.dot_dimension_numbers<[1], [0], [0], [1], [0, 0, 1, 1], [], []>} : vector<8x64xf32>, vector<64x64xf32>, vector<8x64xf32> -> vector<8x64xf32>
    %c6_190 = arith.constant 6 : index
    %c0_191 = arith.constant 0 : index
    %c0_192 = arith.constant 0 : index
    %188 = vector.load %arg11[%c6_190, %c0_191, %c0_192] : memref<9x8x8xf32, #tpu.memory_space<vmem>>, vector<1x8x8xf32>
    %189 = vector.shape_cast %188 : vector<1x8x8xf32> to vector<8x8xf32>
    %cst_193 = arith.constant dense<0.000000e+00> : vector<8x64xf32>
    %190 = tpu.matmul %189, %187, %cst_193 {dimension_numbers = #tpu.dot_dimension_numbers<[1], [0], [0], [1], [0, 0, 1, 1], [], []>} : vector<8x8xf32>, vector<8x64xf32>, vector<8x64xf32> -> vector<8x64xf32>
    %191 = arith.addf %184, %190 : vector<8x64xf32>
    %c7_194 = arith.constant 7 : index
    %c0_195 = arith.constant 0 : index
    %c0_196 = arith.constant 0 : index
    %192 = vector.load %arg25[%c7_194, %c0_195, %c0_196] : memref<9x64x64xf32, #tpu.memory_space<vmem>>, vector<1x64x64xf32>
    %193 = vector.shape_cast %192 : vector<1x64x64xf32> to vector<64x64xf32>
    %cst_197 = arith.constant dense<0.000000e+00> : vector<8x64xf32>
    %194 = tpu.matmul %146, %193, %cst_197 {dimension_numbers = #tpu.dot_dimension_numbers<[1], [0], [0], [1], [0, 0, 1, 1], [], []>} : vector<8x64xf32>, vector<64x64xf32>, vector<8x64xf32> -> vector<8x64xf32>
    %c7_198 = arith.constant 7 : index
    %c0_199 = arith.constant 0 : index
    %c0_200 = arith.constant 0 : index
    %195 = vector.load %arg11[%c7_198, %c0_199, %c0_200] : memref<9x8x8xf32, #tpu.memory_space<vmem>>, vector<1x8x8xf32>
    %196 = vector.shape_cast %195 : vector<1x8x8xf32> to vector<8x8xf32>
    %cst_201 = arith.constant dense<0.000000e+00> : vector<8x64xf32>
    %197 = tpu.matmul %196, %194, %cst_201 {dimension_numbers = #tpu.dot_dimension_numbers<[1], [0], [0], [1], [0, 0, 1, 1], [], []>} : vector<8x8xf32>, vector<8x64xf32>, vector<8x64xf32> -> vector<8x64xf32>
    %198 = arith.addf %191, %197 : vector<8x64xf32>
    %c8_202 = arith.constant 8 : index
    %c0_203 = arith.constant 0 : index
    %c0_204 = arith.constant 0 : index
    %199 = vector.load %arg25[%c8_202, %c0_203, %c0_204] : memref<9x64x64xf32, #tpu.memory_space<vmem>>, vector<1x64x64xf32>
    %200 = vector.shape_cast %199 : vector<1x64x64xf32> to vector<64x64xf32>
    %cst_205 = arith.constant dense<0.000000e+00> : vector<8x64xf32>
    %201 = tpu.matmul %146, %200, %cst_205 {dimension_numbers = #tpu.dot_dimension_numbers<[1], [0], [0], [1], [0, 0, 1, 1], [], []>} : vector<8x64xf32>, vector<64x64xf32>, vector<8x64xf32> -> vector<8x64xf32>
    %c8_206 = arith.constant 8 : index
    %c0_207 = arith.constant 0 : index
    %c0_208 = arith.constant 0 : index
    %202 = vector.load %arg11[%c8_206, %c0_207, %c0_208] : memref<9x8x8xf32, #tpu.memory_space<vmem>>, vector<1x8x8xf32>
    %203 = vector.shape_cast %202 : vector<1x8x8xf32> to vector<8x8xf32>
    %cst_209 = arith.constant dense<0.000000e+00> : vector<8x64xf32>
    %204 = tpu.matmul %203, %201, %cst_209 {dimension_numbers = #tpu.dot_dimension_numbers<[1], [0], [0], [1], [0, 0, 1, 1], [], []>} : vector<8x8xf32>, vector<8x64xf32>, vector<8x64xf32> -> vector<8x64xf32>
    %205 = arith.addf %198, %204 : vector<8x64xf32>
    %c0_210 = arith.constant 0 : index
    %c0_211 = arith.constant 0 : index
    %206 = vector.load %arg12[%c0_210, %c0_211] : memref<8x1xf32, #tpu.memory_space<vmem>>, vector<8x1xf32>
    %207 = vector.broadcast %206 : vector<8x1xf32> to vector<8x64xf32>
    %208 = arith.mulf %205, %207 : vector<8x64xf32>
    %c0_212 = arith.constant 0 : index
    %c0_213 = arith.constant 0 : index
    %209 = vector.load %arg13[%c0_212, %c0_213] : memref<8x1xf32, #tpu.memory_space<vmem>>, vector<8x1xf32>
    %210 = vector.broadcast %209 : vector<8x1xf32> to vector<8x64xf32>
    %211 = arith.addf %208, %210 : vector<8x64xf32>
    %cst_214 = arith.constant 0.000000e+00 : f32
    %212 = vector.broadcast %cst_214 : f32 to vector<8x64xf32>
    %213 = arith.maximumf %211, %212 : vector<8x64xf32>
    %c5_215 = arith.constant 5 : index
    %c0_216 = arith.constant 0 : index
    %c0_217 = arith.constant 0 : index
    %214 = vector.load %arg25[%c5_215, %c0_216, %c0_217] : memref<9x64x64xf32, #tpu.memory_space<vmem>>, vector<1x64x64xf32>
    %215 = vector.shape_cast %214 : vector<1x64x64xf32> to vector<64x64xf32>
    %cst_218 = arith.constant dense<0.000000e+00> : vector<8x64xf32>
    %216 = tpu.matmul %213, %215, %cst_218 {dimension_numbers = #tpu.dot_dimension_numbers<[1], [0], [0], [1], [0, 0, 1, 1], [], []>} : vector<8x64xf32>, vector<64x64xf32>, vector<8x64xf32> -> vector<8x64xf32>
    %c7_219 = arith.constant 7 : index
    %c0_220 = arith.constant 0 : index
    %c0_221 = arith.constant 0 : index
    %217 = vector.load %arg25[%c7_219, %c0_220, %c0_221] : memref<9x64x64xf32, #tpu.memory_space<vmem>>, vector<1x64x64xf32>
    %218 = vector.shape_cast %217 : vector<1x64x64xf32> to vector<64x64xf32>
    %cst_222 = arith.constant dense<0.000000e+00> : vector<8x64xf32>
    %219 = tpu.matmul %213, %218, %cst_222 {dimension_numbers = #tpu.dot_dimension_numbers<[1], [0], [0], [1], [0, 0, 1, 1], [], []>} : vector<8x64xf32>, vector<64x64xf32>, vector<8x64xf32> -> vector<8x64xf32>
    %c8_223 = arith.constant 8 : index
    %c0_224 = arith.constant 0 : index
    %c0_225 = arith.constant 0 : index
    %220 = vector.load %arg25[%c8_223, %c0_224, %c0_225] : memref<9x64x64xf32, #tpu.memory_space<vmem>>, vector<1x64x64xf32>
    %221 = vector.shape_cast %220 : vector<1x64x64xf32> to vector<64x64xf32>
    %cst_226 = arith.constant dense<0.000000e+00> : vector<8x64xf32>
    %222 = tpu.matmul %213, %221, %cst_226 {dimension_numbers = #tpu.dot_dimension_numbers<[1], [0], [0], [1], [0, 0, 1, 1], [], []>} : vector<8x64xf32>, vector<64x64xf32>, vector<8x64xf32> -> vector<8x64xf32>
    %c1_227 = arith.constant 1 : index
    %c1_228 = arith.constant 1 : index
    %c0_229 = arith.constant 0 : index
    %c0_230 = arith.constant 0 : index
    %223 = vector.load %arg14[%c1_227, %c1_228, %c0_229, %c0_230] : memref<3x3x8x8xf32, #tpu.memory_space<vmem>>, vector<1x1x8x8xf32>
    %224 = vector.shape_cast %223 : vector<1x1x8x8xf32> to vector<8x8xf32>
    %cst_231 = arith.constant dense<0.000000e+00> : vector<8x64xf32>
    %225 = tpu.matmul %224, %213, %cst_231 {dimension_numbers = #tpu.dot_dimension_numbers<[1], [0], [0], [1], [0, 0, 1, 1], [], []>} : vector<8x8xf32>, vector<8x64xf32>, vector<8x64xf32> -> vector<8x64xf32>
    %c1_232 = arith.constant 1 : index
    %c0_233 = arith.constant 0 : index
    %c0_234 = arith.constant 0 : index
    %c0_235 = arith.constant 0 : index
    %226 = vector.load %arg14[%c1_232, %c0_233, %c0_234, %c0_235] : memref<3x3x8x8xf32, #tpu.memory_space<vmem>>, vector<1x1x8x8xf32>
    %227 = vector.shape_cast %226 : vector<1x1x8x8xf32> to vector<8x8xf32>
    %cst_236 = arith.constant dense<0.000000e+00> : vector<8x64xf32>
    %228 = tpu.matmul %227, %216, %cst_236 {dimension_numbers = #tpu.dot_dimension_numbers<[1], [0], [0], [1], [0, 0, 1, 1], [], []>} : vector<8x8xf32>, vector<8x64xf32>, vector<8x64xf32> -> vector<8x64xf32>
    %c1_237 = arith.constant 1 : index
    %c2_238 = arith.constant 2 : index
    %c0_239 = arith.constant 0 : index
    %c0_240 = arith.constant 0 : index
    %229 = vector.load %arg14[%c1_237, %c2_238, %c0_239, %c0_240] : memref<3x3x8x8xf32, #tpu.memory_space<vmem>>, vector<1x1x8x8xf32>
    %230 = vector.shape_cast %229 : vector<1x1x8x8xf32> to vector<8x8xf32>
    %cst_241 = arith.constant dense<0.000000e+00> : vector<8x64xf32>
    %231 = tpu.matmul %230, %213, %cst_241 {dimension_numbers = #tpu.dot_dimension_numbers<[1], [0], [0], [1], [0, 0, 1, 1], [], []>} : vector<8x8xf32>, vector<8x64xf32>, vector<8x64xf32> -> vector<8x64xf32>
    %232 = arith.addf %228, %231 : vector<8x64xf32>
    %c0_242 = arith.constant 0 : index
    %c1_243 = arith.constant 1 : index
    %c0_244 = arith.constant 0 : index
    %c0_245 = arith.constant 0 : index
    %233 = vector.load %arg14[%c0_242, %c1_243, %c0_244, %c0_245] : memref<3x3x8x8xf32, #tpu.memory_space<vmem>>, vector<1x1x8x8xf32>
    %234 = vector.shape_cast %233 : vector<1x1x8x8xf32> to vector<8x8xf32>
    %cst_246 = arith.constant dense<0.000000e+00> : vector<8x64xf32>
    %235 = tpu.matmul %234, %219, %cst_246 {dimension_numbers = #tpu.dot_dimension_numbers<[1], [0], [0], [1], [0, 0, 1, 1], [], []>} : vector<8x8xf32>, vector<8x64xf32>, vector<8x64xf32> -> vector<8x64xf32>
    %c2_247 = arith.constant 2 : index
    %c1_248 = arith.constant 1 : index
    %c0_249 = arith.constant 0 : index
    %c0_250 = arith.constant 0 : index
    %236 = vector.load %arg14[%c2_247, %c1_248, %c0_249, %c0_250] : memref<3x3x8x8xf32, #tpu.memory_space<vmem>>, vector<1x1x8x8xf32>
    %237 = vector.shape_cast %236 : vector<1x1x8x8xf32> to vector<8x8xf32>
    %cst_251 = arith.constant dense<0.000000e+00> : vector<8x64xf32>
    %238 = tpu.matmul %237, %213, %cst_251 {dimension_numbers = #tpu.dot_dimension_numbers<[1], [0], [0], [1], [0, 0, 1, 1], [], []>} : vector<8x8xf32>, vector<8x64xf32>, vector<8x64xf32> -> vector<8x64xf32>
    %239 = arith.addf %235, %238 : vector<8x64xf32>
    %c0_252 = arith.constant 0 : index
    %c0_253 = arith.constant 0 : index
    %c0_254 = arith.constant 0 : index
    %c0_255 = arith.constant 0 : index
    %240 = vector.load %arg14[%c0_252, %c0_253, %c0_254, %c0_255] : memref<3x3x8x8xf32, #tpu.memory_space<vmem>>, vector<1x1x8x8xf32>
    %241 = vector.shape_cast %240 : vector<1x1x8x8xf32> to vector<8x8xf32>
    %cst_256 = arith.constant dense<0.000000e+00> : vector<8x64xf32>
    %242 = tpu.matmul %241, %222, %cst_256 {dimension_numbers = #tpu.dot_dimension_numbers<[1], [0], [0], [1], [0, 0, 1, 1], [], []>} : vector<8x8xf32>, vector<8x64xf32>, vector<8x64xf32> -> vector<8x64xf32>
    %c0_257 = arith.constant 0 : index
    %c2_258 = arith.constant 2 : index
    %c0_259 = arith.constant 0 : index
    %c0_260 = arith.constant 0 : index
    %243 = vector.load %arg14[%c0_257, %c2_258, %c0_259, %c0_260] : memref<3x3x8x8xf32, #tpu.memory_space<vmem>>, vector<1x1x8x8xf32>
    %244 = vector.shape_cast %243 : vector<1x1x8x8xf32> to vector<8x8xf32>
    %cst_261 = arith.constant dense<0.000000e+00> : vector<8x64xf32>
    %245 = tpu.matmul %244, %219, %cst_261 {dimension_numbers = #tpu.dot_dimension_numbers<[1], [0], [0], [1], [0, 0, 1, 1], [], []>} : vector<8x8xf32>, vector<8x64xf32>, vector<8x64xf32> -> vector<8x64xf32>
    %246 = arith.addf %242, %245 : vector<8x64xf32>
    %c2_262 = arith.constant 2 : index
    %c0_263 = arith.constant 0 : index
    %c0_264 = arith.constant 0 : index
    %c0_265 = arith.constant 0 : index
    %247 = vector.load %arg14[%c2_262, %c0_263, %c0_264, %c0_265] : memref<3x3x8x8xf32, #tpu.memory_space<vmem>>, vector<1x1x8x8xf32>
    %248 = vector.shape_cast %247 : vector<1x1x8x8xf32> to vector<8x8xf32>
    %cst_266 = arith.constant dense<0.000000e+00> : vector<8x64xf32>
    %249 = tpu.matmul %248, %216, %cst_266 {dimension_numbers = #tpu.dot_dimension_numbers<[1], [0], [0], [1], [0, 0, 1, 1], [], []>} : vector<8x8xf32>, vector<8x64xf32>, vector<8x64xf32> -> vector<8x64xf32>
    %250 = arith.addf %246, %249 : vector<8x64xf32>
    %c2_267 = arith.constant 2 : index
    %c2_268 = arith.constant 2 : index
    %c0_269 = arith.constant 0 : index
    %c0_270 = arith.constant 0 : index
    %251 = vector.load %arg14[%c2_267, %c2_268, %c0_269, %c0_270] : memref<3x3x8x8xf32, #tpu.memory_space<vmem>>, vector<1x1x8x8xf32>
    %252 = vector.shape_cast %251 : vector<1x1x8x8xf32> to vector<8x8xf32>
    %cst_271 = arith.constant dense<0.000000e+00> : vector<8x64xf32>
    %253 = tpu.matmul %252, %213, %cst_271 {dimension_numbers = #tpu.dot_dimension_numbers<[1], [0], [0], [1], [0, 0, 1, 1], [], []>} : vector<8x8xf32>, vector<8x64xf32>, vector<8x64xf32> -> vector<8x64xf32>
    %254 = arith.addf %250, %253 : vector<8x64xf32>
    %c0_272 = arith.constant 0 : index
    %c0_273 = arith.constant 0 : index
    %c0_274 = arith.constant 0 : index
    %255 = vector.load %arg22[%c0_272, %c0_273, %c0_274] : memref<4x64x256xf32, #tpu.memory_space<vmem>>, vector<1x64x256xf32>
    %256 = vector.shape_cast %255 : vector<1x64x256xf32> to vector<64x256xf32>
    %cst_275 = arith.constant dense<0.000000e+00> : vector<8x256xf32>
    %257 = tpu.matmul %225, %256, %cst_275 {dimension_numbers = #tpu.dot_dimension_numbers<[1], [0], [0], [1], [0, 0, 1, 1], [], []>} : vector<8x64xf32>, vector<64x256xf32>, vector<8x256xf32> -> vector<8x256xf32>
    %c1_276 = arith.constant 1 : index
    %c0_277 = arith.constant 0 : index
    %c0_278 = arith.constant 0 : index
    %258 = vector.load %arg22[%c1_276, %c0_277, %c0_278] : memref<4x64x256xf32, #tpu.memory_space<vmem>>, vector<1x64x256xf32>
    %259 = vector.shape_cast %258 : vector<1x64x256xf32> to vector<64x256xf32>
    %cst_279 = arith.constant dense<0.000000e+00> : vector<8x256xf32>
    %260 = tpu.matmul %232, %259, %cst_279 {dimension_numbers = #tpu.dot_dimension_numbers<[1], [0], [0], [1], [0, 0, 1, 1], [], []>} : vector<8x64xf32>, vector<64x256xf32>, vector<8x256xf32> -> vector<8x256xf32>
    %261 = arith.addf %257, %260 : vector<8x256xf32>
    %c2_280 = arith.constant 2 : index
    %c0_281 = arith.constant 0 : index
    %c0_282 = arith.constant 0 : index
    %262 = vector.load %arg22[%c2_280, %c0_281, %c0_282] : memref<4x64x256xf32, #tpu.memory_space<vmem>>, vector<1x64x256xf32>
    %263 = vector.shape_cast %262 : vector<1x64x256xf32> to vector<64x256xf32>
    %cst_283 = arith.constant dense<0.000000e+00> : vector<8x256xf32>
    %264 = tpu.matmul %239, %263, %cst_283 {dimension_numbers = #tpu.dot_dimension_numbers<[1], [0], [0], [1], [0, 0, 1, 1], [], []>} : vector<8x64xf32>, vector<64x256xf32>, vector<8x256xf32> -> vector<8x256xf32>
    %265 = arith.addf %261, %264 : vector<8x256xf32>
    %c3_284 = arith.constant 3 : index
    %c0_285 = arith.constant 0 : index
    %c0_286 = arith.constant 0 : index
    %266 = vector.load %arg22[%c3_284, %c0_285, %c0_286] : memref<4x64x256xf32, #tpu.memory_space<vmem>>, vector<1x64x256xf32>
    %267 = vector.shape_cast %266 : vector<1x64x256xf32> to vector<64x256xf32>
    %cst_287 = arith.constant dense<0.000000e+00> : vector<8x256xf32>
    %268 = tpu.matmul %254, %267, %cst_287 {dimension_numbers = #tpu.dot_dimension_numbers<[1], [0], [0], [1], [0, 0, 1, 1], [], []>} : vector<8x64xf32>, vector<64x256xf32>, vector<8x256xf32> -> vector<8x256xf32>
    %269 = arith.addf %265, %268 : vector<8x256xf32>
    %c0_288 = arith.constant 0 : index
    %c0_289 = arith.constant 0 : index
    %270 = vector.load %arg15[%c0_288, %c0_289] : memref<8x1xf32, #tpu.memory_space<vmem>>, vector<8x1xf32>
    %271 = vector.broadcast %270 : vector<8x1xf32> to vector<8x256xf32>
    %272 = arith.mulf %269, %271 : vector<8x256xf32>
    %c0_290 = arith.constant 0 : index
    %c0_291 = arith.constant 0 : index
    %273 = vector.load %arg16[%c0_290, %c0_291] : memref<8x1xf32, #tpu.memory_space<vmem>>, vector<8x1xf32>
    %274 = vector.broadcast %273 : vector<8x1xf32> to vector<8x256xf32>
    %275 = arith.addf %272, %274 : vector<8x256xf32>
    %cst_292 = arith.constant 0.000000e+00 : f32
    %276 = vector.broadcast %cst_292 : f32 to vector<8x256xf32>
    %277 = arith.maximumf %275, %276 : vector<8x256xf32>
    %c0_293 = arith.constant 0 : index
    %c0_294 = arith.constant 0 : index
    %c0_295 = arith.constant 0 : index
    %278 = vector.load %arg24[%c0_293, %c0_294, %c0_295] : memref<9x256x256xf32, #tpu.memory_space<vmem>>, vector<1x256x256xf32>
    %279 = vector.shape_cast %278 : vector<1x256x256xf32> to vector<256x256xf32>
    %cst_296 = arith.constant dense<0.000000e+00> : vector<8x256xf32>
    %280 = tpu.matmul %277, %279, %cst_296 {dimension_numbers = #tpu.dot_dimension_numbers<[1], [0], [0], [1], [0, 0, 1, 1], [], []>} : vector<8x256xf32>, vector<256x256xf32>, vector<8x256xf32> -> vector<8x256xf32>
    %c0_297 = arith.constant 0 : index
    %c0_298 = arith.constant 0 : index
    %c0_299 = arith.constant 0 : index
    %281 = vector.load %arg17[%c0_297, %c0_298, %c0_299] : memref<9x8x8xf32, #tpu.memory_space<vmem>>, vector<1x8x8xf32>
    %282 = vector.shape_cast %281 : vector<1x8x8xf32> to vector<8x8xf32>
    %cst_300 = arith.constant dense<0.000000e+00> : vector<8x256xf32>
    %283 = tpu.matmul %282, %280, %cst_300 {dimension_numbers = #tpu.dot_dimension_numbers<[1], [0], [0], [1], [0, 0, 1, 1], [], []>} : vector<8x8xf32>, vector<8x256xf32>, vector<8x256xf32> -> vector<8x256xf32>
    %c1_301 = arith.constant 1 : index
    %c0_302 = arith.constant 0 : index
    %c0_303 = arith.constant 0 : index
    %284 = vector.load %arg24[%c1_301, %c0_302, %c0_303] : memref<9x256x256xf32, #tpu.memory_space<vmem>>, vector<1x256x256xf32>
    %285 = vector.shape_cast %284 : vector<1x256x256xf32> to vector<256x256xf32>
    %cst_304 = arith.constant dense<0.000000e+00> : vector<8x256xf32>
    %286 = tpu.matmul %277, %285, %cst_304 {dimension_numbers = #tpu.dot_dimension_numbers<[1], [0], [0], [1], [0, 0, 1, 1], [], []>} : vector<8x256xf32>, vector<256x256xf32>, vector<8x256xf32> -> vector<8x256xf32>
    %c1_305 = arith.constant 1 : index
    %c0_306 = arith.constant 0 : index
    %c0_307 = arith.constant 0 : index
    %287 = vector.load %arg17[%c1_305, %c0_306, %c0_307] : memref<9x8x8xf32, #tpu.memory_space<vmem>>, vector<1x8x8xf32>
    %288 = vector.shape_cast %287 : vector<1x8x8xf32> to vector<8x8xf32>
    %cst_308 = arith.constant dense<0.000000e+00> : vector<8x256xf32>
    %289 = tpu.matmul %288, %286, %cst_308 {dimension_numbers = #tpu.dot_dimension_numbers<[1], [0], [0], [1], [0, 0, 1, 1], [], []>} : vector<8x8xf32>, vector<8x256xf32>, vector<8x256xf32> -> vector<8x256xf32>
    %290 = arith.addf %283, %289 : vector<8x256xf32>
    %c2_309 = arith.constant 2 : index
    %c0_310 = arith.constant 0 : index
    %c0_311 = arith.constant 0 : index
    %291 = vector.load %arg24[%c2_309, %c0_310, %c0_311] : memref<9x256x256xf32, #tpu.memory_space<vmem>>, vector<1x256x256xf32>
    %292 = vector.shape_cast %291 : vector<1x256x256xf32> to vector<256x256xf32>
    %cst_312 = arith.constant dense<0.000000e+00> : vector<8x256xf32>
    %293 = tpu.matmul %277, %292, %cst_312 {dimension_numbers = #tpu.dot_dimension_numbers<[1], [0], [0], [1], [0, 0, 1, 1], [], []>} : vector<8x256xf32>, vector<256x256xf32>, vector<8x256xf32> -> vector<8x256xf32>
    %c2_313 = arith.constant 2 : index
    %c0_314 = arith.constant 0 : index
    %c0_315 = arith.constant 0 : index
    %294 = vector.load %arg17[%c2_313, %c0_314, %c0_315] : memref<9x8x8xf32, #tpu.memory_space<vmem>>, vector<1x8x8xf32>
    %295 = vector.shape_cast %294 : vector<1x8x8xf32> to vector<8x8xf32>
    %cst_316 = arith.constant dense<0.000000e+00> : vector<8x256xf32>
    %296 = tpu.matmul %295, %293, %cst_316 {dimension_numbers = #tpu.dot_dimension_numbers<[1], [0], [0], [1], [0, 0, 1, 1], [], []>} : vector<8x8xf32>, vector<8x256xf32>, vector<8x256xf32> -> vector<8x256xf32>
    %297 = arith.addf %290, %296 : vector<8x256xf32>
    %c3_317 = arith.constant 3 : index
    %c0_318 = arith.constant 0 : index
    %c0_319 = arith.constant 0 : index
    %298 = vector.load %arg24[%c3_317, %c0_318, %c0_319] : memref<9x256x256xf32, #tpu.memory_space<vmem>>, vector<1x256x256xf32>
    %299 = vector.shape_cast %298 : vector<1x256x256xf32> to vector<256x256xf32>
    %cst_320 = arith.constant dense<0.000000e+00> : vector<8x256xf32>
    %300 = tpu.matmul %277, %299, %cst_320 {dimension_numbers = #tpu.dot_dimension_numbers<[1], [0], [0], [1], [0, 0, 1, 1], [], []>} : vector<8x256xf32>, vector<256x256xf32>, vector<8x256xf32> -> vector<8x256xf32>
    %c3_321 = arith.constant 3 : index
    %c0_322 = arith.constant 0 : index
    %c0_323 = arith.constant 0 : index
    %301 = vector.load %arg17[%c3_321, %c0_322, %c0_323] : memref<9x8x8xf32, #tpu.memory_space<vmem>>, vector<1x8x8xf32>
    %302 = vector.shape_cast %301 : vector<1x8x8xf32> to vector<8x8xf32>
    %cst_324 = arith.constant dense<0.000000e+00> : vector<8x256xf32>
    %303 = tpu.matmul %302, %300, %cst_324 {dimension_numbers = #tpu.dot_dimension_numbers<[1], [0], [0], [1], [0, 0, 1, 1], [], []>} : vector<8x8xf32>, vector<8x256xf32>, vector<8x256xf32> -> vector<8x256xf32>
    %304 = arith.addf %297, %303 : vector<8x256xf32>
    %c4_325 = arith.constant 4 : index
    %c0_326 = arith.constant 0 : index
    %c0_327 = arith.constant 0 : index
    %305 = vector.load %arg17[%c4_325, %c0_326, %c0_327] : memref<9x8x8xf32, #tpu.memory_space<vmem>>, vector<1x8x8xf32>
    %306 = vector.shape_cast %305 : vector<1x8x8xf32> to vector<8x8xf32>
    %cst_328 = arith.constant dense<0.000000e+00> : vector<8x256xf32>
    %307 = tpu.matmul %306, %277, %cst_328 {dimension_numbers = #tpu.dot_dimension_numbers<[1], [0], [0], [1], [0, 0, 1, 1], [], []>} : vector<8x8xf32>, vector<8x256xf32>, vector<8x256xf32> -> vector<8x256xf32>
    %308 = arith.addf %304, %307 : vector<8x256xf32>
    %c5_329 = arith.constant 5 : index
    %c0_330 = arith.constant 0 : index
    %c0_331 = arith.constant 0 : index
    %309 = vector.load %arg24[%c5_329, %c0_330, %c0_331] : memref<9x256x256xf32, #tpu.memory_space<vmem>>, vector<1x256x256xf32>
    %310 = vector.shape_cast %309 : vector<1x256x256xf32> to vector<256x256xf32>
    %cst_332 = arith.constant dense<0.000000e+00> : vector<8x256xf32>
    %311 = tpu.matmul %277, %310, %cst_332 {dimension_numbers = #tpu.dot_dimension_numbers<[1], [0], [0], [1], [0, 0, 1, 1], [], []>} : vector<8x256xf32>, vector<256x256xf32>, vector<8x256xf32> -> vector<8x256xf32>
    %c5_333 = arith.constant 5 : index
    %c0_334 = arith.constant 0 : index
    %c0_335 = arith.constant 0 : index
    %312 = vector.load %arg17[%c5_333, %c0_334, %c0_335] : memref<9x8x8xf32, #tpu.memory_space<vmem>>, vector<1x8x8xf32>
    %313 = vector.shape_cast %312 : vector<1x8x8xf32> to vector<8x8xf32>
    %cst_336 = arith.constant dense<0.000000e+00> : vector<8x256xf32>
    %314 = tpu.matmul %313, %311, %cst_336 {dimension_numbers = #tpu.dot_dimension_numbers<[1], [0], [0], [1], [0, 0, 1, 1], [], []>} : vector<8x8xf32>, vector<8x256xf32>, vector<8x256xf32> -> vector<8x256xf32>
    %315 = arith.addf %308, %314 : vector<8x256xf32>
    %c6_337 = arith.constant 6 : index
    %c0_338 = arith.constant 0 : index
    %c0_339 = arith.constant 0 : index
    %316 = vector.load %arg24[%c6_337, %c0_338, %c0_339] : memref<9x256x256xf32, #tpu.memory_space<vmem>>, vector<1x256x256xf32>
    %317 = vector.shape_cast %316 : vector<1x256x256xf32> to vector<256x256xf32>
    %cst_340 = arith.constant dense<0.000000e+00> : vector<8x256xf32>
    %318 = tpu.matmul %277, %317, %cst_340 {dimension_numbers = #tpu.dot_dimension_numbers<[1], [0], [0], [1], [0, 0, 1, 1], [], []>} : vector<8x256xf32>, vector<256x256xf32>, vector<8x256xf32> -> vector<8x256xf32>
    %c6_341 = arith.constant 6 : index
    %c0_342 = arith.constant 0 : index
    %c0_343 = arith.constant 0 : index
    %319 = vector.load %arg17[%c6_341, %c0_342, %c0_343] : memref<9x8x8xf32, #tpu.memory_space<vmem>>, vector<1x8x8xf32>
    %320 = vector.shape_cast %319 : vector<1x8x8xf32> to vector<8x8xf32>
    %cst_344 = arith.constant dense<0.000000e+00> : vector<8x256xf32>
    %321 = tpu.matmul %320, %318, %cst_344 {dimension_numbers = #tpu.dot_dimension_numbers<[1], [0], [0], [1], [0, 0, 1, 1], [], []>} : vector<8x8xf32>, vector<8x256xf32>, vector<8x256xf32> -> vector<8x256xf32>
    %322 = arith.addf %315, %321 : vector<8x256xf32>
    %c7_345 = arith.constant 7 : index
    %c0_346 = arith.constant 0 : index
    %c0_347 = arith.constant 0 : index
    %323 = vector.load %arg24[%c7_345, %c0_346, %c0_347] : memref<9x256x256xf32, #tpu.memory_space<vmem>>, vector<1x256x256xf32>
    %324 = vector.shape_cast %323 : vector<1x256x256xf32> to vector<256x256xf32>
    %cst_348 = arith.constant dense<0.000000e+00> : vector<8x256xf32>
    %325 = tpu.matmul %277, %324, %cst_348 {dimension_numbers = #tpu.dot_dimension_numbers<[1], [0], [0], [1], [0, 0, 1, 1], [], []>} : vector<8x256xf32>, vector<256x256xf32>, vector<8x256xf32> -> vector<8x256xf32>
    %c7_349 = arith.constant 7 : index
    %c0_350 = arith.constant 0 : index
    %c0_351 = arith.constant 0 : index
    %326 = vector.load %arg17[%c7_349, %c0_350, %c0_351] : memref<9x8x8xf32, #tpu.memory_space<vmem>>, vector<1x8x8xf32>
    %327 = vector.shape_cast %326 : vector<1x8x8xf32> to vector<8x8xf32>
    %cst_352 = arith.constant dense<0.000000e+00> : vector<8x256xf32>
    %328 = tpu.matmul %327, %325, %cst_352 {dimension_numbers = #tpu.dot_dimension_numbers<[1], [0], [0], [1], [0, 0, 1, 1], [], []>} : vector<8x8xf32>, vector<8x256xf32>, vector<8x256xf32> -> vector<8x256xf32>
    %329 = arith.addf %322, %328 : vector<8x256xf32>
    %c8_353 = arith.constant 8 : index
    %c0_354 = arith.constant 0 : index
    %c0_355 = arith.constant 0 : index
    %330 = vector.load %arg24[%c8_353, %c0_354, %c0_355] : memref<9x256x256xf32, #tpu.memory_space<vmem>>, vector<1x256x256xf32>
    %331 = vector.shape_cast %330 : vector<1x256x256xf32> to vector<256x256xf32>
    %cst_356 = arith.constant dense<0.000000e+00> : vector<8x256xf32>
    %332 = tpu.matmul %277, %331, %cst_356 {dimension_numbers = #tpu.dot_dimension_numbers<[1], [0], [0], [1], [0, 0, 1, 1], [], []>} : vector<8x256xf32>, vector<256x256xf32>, vector<8x256xf32> -> vector<8x256xf32>
    %c8_357 = arith.constant 8 : index
    %c0_358 = arith.constant 0 : index
    %c0_359 = arith.constant 0 : index
    %333 = vector.load %arg17[%c8_357, %c0_358, %c0_359] : memref<9x8x8xf32, #tpu.memory_space<vmem>>, vector<1x8x8xf32>
    %334 = vector.shape_cast %333 : vector<1x8x8xf32> to vector<8x8xf32>
    %cst_360 = arith.constant dense<0.000000e+00> : vector<8x256xf32>
    %335 = tpu.matmul %334, %332, %cst_360 {dimension_numbers = #tpu.dot_dimension_numbers<[1], [0], [0], [1], [0, 0, 1, 1], [], []>} : vector<8x8xf32>, vector<8x256xf32>, vector<8x256xf32> -> vector<8x256xf32>
    %336 = arith.addf %329, %335 : vector<8x256xf32>
    %c0_361 = arith.constant 0 : index
    %c0_362 = arith.constant 0 : index
    %c0_363 = arith.constant 0 : index
    %337 = vector.load %arg24[%c0_361, %c0_362, %c0_363] : memref<9x256x256xf32, #tpu.memory_space<vmem>>, vector<1x256x256xf32>
    %338 = vector.shape_cast %337 : vector<1x256x256xf32> to vector<256x256xf32>
    %cst_364 = arith.constant dense<0.000000e+00> : vector<8x256xf32>
    %339 = tpu.matmul %79, %338, %cst_364 {dimension_numbers = #tpu.dot_dimension_numbers<[1], [0], [0], [1], [0, 0, 1, 1], [], []>} : vector<8x256xf32>, vector<256x256xf32>, vector<8x256xf32> -> vector<8x256xf32>
    %c0_365 = arith.constant 0 : index
    %c0_366 = arith.constant 0 : index
    %c0_367 = arith.constant 0 : index
    %340 = vector.load %arg18[%c0_365, %c0_366, %c0_367] : memref<9x8x8xf32, #tpu.memory_space<vmem>>, vector<1x8x8xf32>
    %341 = vector.shape_cast %340 : vector<1x8x8xf32> to vector<8x8xf32>
    %cst_368 = arith.constant dense<0.000000e+00> : vector<8x256xf32>
    %342 = tpu.matmul %341, %339, %cst_368 {dimension_numbers = #tpu.dot_dimension_numbers<[1], [0], [0], [1], [0, 0, 1, 1], [], []>} : vector<8x8xf32>, vector<8x256xf32>, vector<8x256xf32> -> vector<8x256xf32>
    %c1_369 = arith.constant 1 : index
    %c0_370 = arith.constant 0 : index
    %c0_371 = arith.constant 0 : index
    %343 = vector.load %arg24[%c1_369, %c0_370, %c0_371] : memref<9x256x256xf32, #tpu.memory_space<vmem>>, vector<1x256x256xf32>
    %344 = vector.shape_cast %343 : vector<1x256x256xf32> to vector<256x256xf32>
    %cst_372 = arith.constant dense<0.000000e+00> : vector<8x256xf32>
    %345 = tpu.matmul %79, %344, %cst_372 {dimension_numbers = #tpu.dot_dimension_numbers<[1], [0], [0], [1], [0, 0, 1, 1], [], []>} : vector<8x256xf32>, vector<256x256xf32>, vector<8x256xf32> -> vector<8x256xf32>
    %c1_373 = arith.constant 1 : index
    %c0_374 = arith.constant 0 : index
    %c0_375 = arith.constant 0 : index
    %346 = vector.load %arg18[%c1_373, %c0_374, %c0_375] : memref<9x8x8xf32, #tpu.memory_space<vmem>>, vector<1x8x8xf32>
    %347 = vector.shape_cast %346 : vector<1x8x8xf32> to vector<8x8xf32>
    %cst_376 = arith.constant dense<0.000000e+00> : vector<8x256xf32>
    %348 = tpu.matmul %347, %345, %cst_376 {dimension_numbers = #tpu.dot_dimension_numbers<[1], [0], [0], [1], [0, 0, 1, 1], [], []>} : vector<8x8xf32>, vector<8x256xf32>, vector<8x256xf32> -> vector<8x256xf32>
    %349 = arith.addf %342, %348 : vector<8x256xf32>
    %c2_377 = arith.constant 2 : index
    %c0_378 = arith.constant 0 : index
    %c0_379 = arith.constant 0 : index
    %350 = vector.load %arg24[%c2_377, %c0_378, %c0_379] : memref<9x256x256xf32, #tpu.memory_space<vmem>>, vector<1x256x256xf32>
    %351 = vector.shape_cast %350 : vector<1x256x256xf32> to vector<256x256xf32>
    %cst_380 = arith.constant dense<0.000000e+00> : vector<8x256xf32>
    %352 = tpu.matmul %79, %351, %cst_380 {dimension_numbers = #tpu.dot_dimension_numbers<[1], [0], [0], [1], [0, 0, 1, 1], [], []>} : vector<8x256xf32>, vector<256x256xf32>, vector<8x256xf32> -> vector<8x256xf32>
    %c2_381 = arith.constant 2 : index
    %c0_382 = arith.constant 0 : index
    %c0_383 = arith.constant 0 : index
    %353 = vector.load %arg18[%c2_381, %c0_382, %c0_383] : memref<9x8x8xf32, #tpu.memory_space<vmem>>, vector<1x8x8xf32>
    %354 = vector.shape_cast %353 : vector<1x8x8xf32> to vector<8x8xf32>
    %cst_384 = arith.constant dense<0.000000e+00> : vector<8x256xf32>
    %355 = tpu.matmul %354, %352, %cst_384 {dimension_numbers = #tpu.dot_dimension_numbers<[1], [0], [0], [1], [0, 0, 1, 1], [], []>} : vector<8x8xf32>, vector<8x256xf32>, vector<8x256xf32> -> vector<8x256xf32>
    %356 = arith.addf %349, %355 : vector<8x256xf32>
    %c3_385 = arith.constant 3 : index
    %c0_386 = arith.constant 0 : index
    %c0_387 = arith.constant 0 : index
    %357 = vector.load %arg24[%c3_385, %c0_386, %c0_387] : memref<9x256x256xf32, #tpu.memory_space<vmem>>, vector<1x256x256xf32>
    %358 = vector.shape_cast %357 : vector<1x256x256xf32> to vector<256x256xf32>
    %cst_388 = arith.constant dense<0.000000e+00> : vector<8x256xf32>
    %359 = tpu.matmul %79, %358, %cst_388 {dimension_numbers = #tpu.dot_dimension_numbers<[1], [0], [0], [1], [0, 0, 1, 1], [], []>} : vector<8x256xf32>, vector<256x256xf32>, vector<8x256xf32> -> vector<8x256xf32>
    %c3_389 = arith.constant 3 : index
    %c0_390 = arith.constant 0 : index
    %c0_391 = arith.constant 0 : index
    %360 = vector.load %arg18[%c3_389, %c0_390, %c0_391] : memref<9x8x8xf32, #tpu.memory_space<vmem>>, vector<1x8x8xf32>
    %361 = vector.shape_cast %360 : vector<1x8x8xf32> to vector<8x8xf32>
    %cst_392 = arith.constant dense<0.000000e+00> : vector<8x256xf32>
    %362 = tpu.matmul %361, %359, %cst_392 {dimension_numbers = #tpu.dot_dimension_numbers<[1], [0], [0], [1], [0, 0, 1, 1], [], []>} : vector<8x8xf32>, vector<8x256xf32>, vector<8x256xf32> -> vector<8x256xf32>
    %363 = arith.addf %356, %362 : vector<8x256xf32>
    %c4_393 = arith.constant 4 : index
    %c0_394 = arith.constant 0 : index
    %c0_395 = arith.constant 0 : index
    %364 = vector.load %arg18[%c4_393, %c0_394, %c0_395] : memref<9x8x8xf32, #tpu.memory_space<vmem>>, vector<1x8x8xf32>
    %365 = vector.shape_cast %364 : vector<1x8x8xf32> to vector<8x8xf32>
    %cst_396 = arith.constant dense<0.000000e+00> : vector<8x256xf32>
    %366 = tpu.matmul %365, %79, %cst_396 {dimension_numbers = #tpu.dot_dimension_numbers<[1], [0], [0], [1], [0, 0, 1, 1], [], []>} : vector<8x8xf32>, vector<8x256xf32>, vector<8x256xf32> -> vector<8x256xf32>
    %367 = arith.addf %363, %366 : vector<8x256xf32>
    %c5_397 = arith.constant 5 : index
    %c0_398 = arith.constant 0 : index
    %c0_399 = arith.constant 0 : index
    %368 = vector.load %arg24[%c5_397, %c0_398, %c0_399] : memref<9x256x256xf32, #tpu.memory_space<vmem>>, vector<1x256x256xf32>
    %369 = vector.shape_cast %368 : vector<1x256x256xf32> to vector<256x256xf32>
    %cst_400 = arith.constant dense<0.000000e+00> : vector<8x256xf32>
    %370 = tpu.matmul %79, %369, %cst_400 {dimension_numbers = #tpu.dot_dimension_numbers<[1], [0], [0], [1], [0, 0, 1, 1], [], []>} : vector<8x256xf32>, vector<256x256xf32>, vector<8x256xf32> -> vector<8x256xf32>
    %c5_401 = arith.constant 5 : index
    %c0_402 = arith.constant 0 : index
    %c0_403 = arith.constant 0 : index
    %371 = vector.load %arg18[%c5_401, %c0_402, %c0_403] : memref<9x8x8xf32, #tpu.memory_space<vmem>>, vector<1x8x8xf32>
    %372 = vector.shape_cast %371 : vector<1x8x8xf32> to vector<8x8xf32>
    %cst_404 = arith.constant dense<0.000000e+00> : vector<8x256xf32>
    %373 = tpu.matmul %372, %370, %cst_404 {dimension_numbers = #tpu.dot_dimension_numbers<[1], [0], [0], [1], [0, 0, 1, 1], [], []>} : vector<8x8xf32>, vector<8x256xf32>, vector<8x256xf32> -> vector<8x256xf32>
    %374 = arith.addf %367, %373 : vector<8x256xf32>
    %c6_405 = arith.constant 6 : index
    %c0_406 = arith.constant 0 : index
    %c0_407 = arith.constant 0 : index
    %375 = vector.load %arg24[%c6_405, %c0_406, %c0_407] : memref<9x256x256xf32, #tpu.memory_space<vmem>>, vector<1x256x256xf32>
    %376 = vector.shape_cast %375 : vector<1x256x256xf32> to vector<256x256xf32>
    %cst_408 = arith.constant dense<0.000000e+00> : vector<8x256xf32>
    %377 = tpu.matmul %79, %376, %cst_408 {dimension_numbers = #tpu.dot_dimension_numbers<[1], [0], [0], [1], [0, 0, 1, 1], [], []>} : vector<8x256xf32>, vector<256x256xf32>, vector<8x256xf32> -> vector<8x256xf32>
    %c6_409 = arith.constant 6 : index
    %c0_410 = arith.constant 0 : index
    %c0_411 = arith.constant 0 : index
    %378 = vector.load %arg18[%c6_409, %c0_410, %c0_411] : memref<9x8x8xf32, #tpu.memory_space<vmem>>, vector<1x8x8xf32>
    %379 = vector.shape_cast %378 : vector<1x8x8xf32> to vector<8x8xf32>
    %cst_412 = arith.constant dense<0.000000e+00> : vector<8x256xf32>
    %380 = tpu.matmul %379, %377, %cst_412 {dimension_numbers = #tpu.dot_dimension_numbers<[1], [0], [0], [1], [0, 0, 1, 1], [], []>} : vector<8x8xf32>, vector<8x256xf32>, vector<8x256xf32> -> vector<8x256xf32>
    %381 = arith.addf %374, %380 : vector<8x256xf32>
    %c7_413 = arith.constant 7 : index
    %c0_414 = arith.constant 0 : index
    %c0_415 = arith.constant 0 : index
    %382 = vector.load %arg24[%c7_413, %c0_414, %c0_415] : memref<9x256x256xf32, #tpu.memory_space<vmem>>, vector<1x256x256xf32>
    %383 = vector.shape_cast %382 : vector<1x256x256xf32> to vector<256x256xf32>
    %cst_416 = arith.constant dense<0.000000e+00> : vector<8x256xf32>
    %384 = tpu.matmul %79, %383, %cst_416 {dimension_numbers = #tpu.dot_dimension_numbers<[1], [0], [0], [1], [0, 0, 1, 1], [], []>} : vector<8x256xf32>, vector<256x256xf32>, vector<8x256xf32> -> vector<8x256xf32>
    %c7_417 = arith.constant 7 : index
    %c0_418 = arith.constant 0 : index
    %c0_419 = arith.constant 0 : index
    %385 = vector.load %arg18[%c7_417, %c0_418, %c0_419] : memref<9x8x8xf32, #tpu.memory_space<vmem>>, vector<1x8x8xf32>
    %386 = vector.shape_cast %385 : vector<1x8x8xf32> to vector<8x8xf32>
    %cst_420 = arith.constant dense<0.000000e+00> : vector<8x256xf32>
    %387 = tpu.matmul %386, %384, %cst_420 {dimension_numbers = #tpu.dot_dimension_numbers<[1], [0], [0], [1], [0, 0, 1, 1], [], []>} : vector<8x8xf32>, vector<8x256xf32>, vector<8x256xf32> -> vector<8x256xf32>
    %388 = arith.addf %381, %387 : vector<8x256xf32>
    %c8_421 = arith.constant 8 : index
    %c0_422 = arith.constant 0 : index
    %c0_423 = arith.constant 0 : index
    %389 = vector.load %arg24[%c8_421, %c0_422, %c0_423] : memref<9x256x256xf32, #tpu.memory_space<vmem>>, vector<1x256x256xf32>
    %390 = vector.shape_cast %389 : vector<1x256x256xf32> to vector<256x256xf32>
    %cst_424 = arith.constant dense<0.000000e+00> : vector<8x256xf32>
    %391 = tpu.matmul %79, %390, %cst_424 {dimension_numbers = #tpu.dot_dimension_numbers<[1], [0], [0], [1], [0, 0, 1, 1], [], []>} : vector<8x256xf32>, vector<256x256xf32>, vector<8x256xf32> -> vector<8x256xf32>
    %c8_425 = arith.constant 8 : index
    %c0_426 = arith.constant 0 : index
    %c0_427 = arith.constant 0 : index
    %392 = vector.load %arg18[%c8_425, %c0_426, %c0_427] : memref<9x8x8xf32, #tpu.memory_space<vmem>>, vector<1x8x8xf32>
    %393 = vector.shape_cast %392 : vector<1x8x8xf32> to vector<8x8xf32>
    %cst_428 = arith.constant dense<0.000000e+00> : vector<8x256xf32>
    %394 = tpu.matmul %393, %391, %cst_428 {dimension_numbers = #tpu.dot_dimension_numbers<[1], [0], [0], [1], [0, 0, 1, 1], [], []>} : vector<8x8xf32>, vector<8x256xf32>, vector<8x256xf32> -> vector<8x256xf32>
    %395 = arith.addf %388, %394 : vector<8x256xf32>
    %396 = arith.addf %336, %395 : vector<8x256xf32>
    %c0_429 = arith.constant 0 : index
    %c0_430 = arith.constant 0 : index
    %397 = vector.load %arg19[%c0_429, %c0_430] : memref<8x1xf32, #tpu.memory_space<vmem>>, vector<8x1xf32>
    %398 = vector.broadcast %397 : vector<8x1xf32> to vector<8x256xf32>
    %399 = arith.mulf %396, %398 : vector<8x256xf32>
    %c0_431 = arith.constant 0 : index
    %c0_432 = arith.constant 0 : index
    %400 = vector.load %arg20[%c0_431, %c0_432] : memref<8x1xf32, #tpu.memory_space<vmem>>, vector<8x1xf32>
    %401 = vector.broadcast %400 : vector<8x1xf32> to vector<8x256xf32>
    %402 = arith.addf %399, %401 : vector<8x256xf32>
    %cst_433 = arith.constant 0.000000e+00 : f32
    %403 = vector.broadcast %cst_433 : f32 to vector<8x256xf32>
    %404 = arith.maximumf %402, %403 : vector<8x256xf32>
    %c0_434 = arith.constant 0 : index
    %c0_435 = arith.constant 0 : index
    %c0_436 = arith.constant 0 : index
    %405 = vector.load %arg24[%c0_434, %c0_435, %c0_436] : memref<9x256x256xf32, #tpu.memory_space<vmem>>, vector<1x256x256xf32>
    %406 = vector.shape_cast %405 : vector<1x256x256xf32> to vector<256x256xf32>
    %cst_437 = arith.constant dense<0.000000e+00> : vector<8x256xf32>
    %407 = tpu.matmul %404, %406, %cst_437 {dimension_numbers = #tpu.dot_dimension_numbers<[1], [0], [0], [1], [0, 0, 1, 1], [], []>} : vector<8x256xf32>, vector<256x256xf32>, vector<8x256xf32> -> vector<8x256xf32>
    %c0_438 = arith.constant 0 : index
    %c0_439 = arith.constant 0 : index
    %c0_440 = arith.constant 0 : index
    %408 = vector.load %arg21[%c0_438, %c0_439, %c0_440] : memref<9x1x8xf32, #tpu.memory_space<vmem>>, vector<1x1x8xf32>
    %409 = vector.shape_cast %408 : vector<1x1x8xf32> to vector<1x8xf32>
    %cst_441 = arith.constant dense<0.000000e+00> : vector<1x256xf32>
    %410 = tpu.matmul %409, %407, %cst_441 {dimension_numbers = #tpu.dot_dimension_numbers<[1], [0], [0], [1], [0, 0, 1, 1], [], []>} : vector<1x8xf32>, vector<8x256xf32>, vector<1x256xf32> -> vector<1x256xf32>
    %c1_442 = arith.constant 1 : index
    %c0_443 = arith.constant 0 : index
    %c0_444 = arith.constant 0 : index
    %411 = vector.load %arg24[%c1_442, %c0_443, %c0_444] : memref<9x256x256xf32, #tpu.memory_space<vmem>>, vector<1x256x256xf32>
    %412 = vector.shape_cast %411 : vector<1x256x256xf32> to vector<256x256xf32>
    %cst_445 = arith.constant dense<0.000000e+00> : vector<8x256xf32>
    %413 = tpu.matmul %404, %412, %cst_445 {dimension_numbers = #tpu.dot_dimension_numbers<[1], [0], [0], [1], [0, 0, 1, 1], [], []>} : vector<8x256xf32>, vector<256x256xf32>, vector<8x256xf32> -> vector<8x256xf32>
    %c1_446 = arith.constant 1 : index
    %c0_447 = arith.constant 0 : index
    %c0_448 = arith.constant 0 : index
    %414 = vector.load %arg21[%c1_446, %c0_447, %c0_448] : memref<9x1x8xf32, #tpu.memory_space<vmem>>, vector<1x1x8xf32>
    %415 = vector.shape_cast %414 : vector<1x1x8xf32> to vector<1x8xf32>
    %cst_449 = arith.constant dense<0.000000e+00> : vector<1x256xf32>
    %416 = tpu.matmul %415, %413, %cst_449 {dimension_numbers = #tpu.dot_dimension_numbers<[1], [0], [0], [1], [0, 0, 1, 1], [], []>} : vector<1x8xf32>, vector<8x256xf32>, vector<1x256xf32> -> vector<1x256xf32>
    %417 = arith.addf %410, %416 : vector<1x256xf32>
    %c2_450 = arith.constant 2 : index
    %c0_451 = arith.constant 0 : index
    %c0_452 = arith.constant 0 : index
    %418 = vector.load %arg24[%c2_450, %c0_451, %c0_452] : memref<9x256x256xf32, #tpu.memory_space<vmem>>, vector<1x256x256xf32>
    %419 = vector.shape_cast %418 : vector<1x256x256xf32> to vector<256x256xf32>
    %cst_453 = arith.constant dense<0.000000e+00> : vector<8x256xf32>
    %420 = tpu.matmul %404, %419, %cst_453 {dimension_numbers = #tpu.dot_dimension_numbers<[1], [0], [0], [1], [0, 0, 1, 1], [], []>} : vector<8x256xf32>, vector<256x256xf32>, vector<8x256xf32> -> vector<8x256xf32>
    %c2_454 = arith.constant 2 : index
    %c0_455 = arith.constant 0 : index
    %c0_456 = arith.constant 0 : index
    %421 = vector.load %arg21[%c2_454, %c0_455, %c0_456] : memref<9x1x8xf32, #tpu.memory_space<vmem>>, vector<1x1x8xf32>
    %422 = vector.shape_cast %421 : vector<1x1x8xf32> to vector<1x8xf32>
    %cst_457 = arith.constant dense<0.000000e+00> : vector<1x256xf32>
    %423 = tpu.matmul %422, %420, %cst_457 {dimension_numbers = #tpu.dot_dimension_numbers<[1], [0], [0], [1], [0, 0, 1, 1], [], []>} : vector<1x8xf32>, vector<8x256xf32>, vector<1x256xf32> -> vector<1x256xf32>
    %424 = arith.addf %417, %423 : vector<1x256xf32>
    %c3_458 = arith.constant 3 : index
    %c0_459 = arith.constant 0 : index
    %c0_460 = arith.constant 0 : index
    %425 = vector.load %arg24[%c3_458, %c0_459, %c0_460] : memref<9x256x256xf32, #tpu.memory_space<vmem>>, vector<1x256x256xf32>
    %426 = vector.shape_cast %425 : vector<1x256x256xf32> to vector<256x256xf32>
    %cst_461 = arith.constant dense<0.000000e+00> : vector<8x256xf32>
    %427 = tpu.matmul %404, %426, %cst_461 {dimension_numbers = #tpu.dot_dimension_numbers<[1], [0], [0], [1], [0, 0, 1, 1], [], []>} : vector<8x256xf32>, vector<256x256xf32>, vector<8x256xf32> -> vector<8x256xf32>
    %c3_462 = arith.constant 3 : index
    %c0_463 = arith.constant 0 : index
    %c0_464 = arith.constant 0 : index
    %428 = vector.load %arg21[%c3_462, %c0_463, %c0_464] : memref<9x1x8xf32, #tpu.memory_space<vmem>>, vector<1x1x8xf32>
    %429 = vector.shape_cast %428 : vector<1x1x8xf32> to vector<1x8xf32>
    %cst_465 = arith.constant dense<0.000000e+00> : vector<1x256xf32>
    %430 = tpu.matmul %429, %427, %cst_465 {dimension_numbers = #tpu.dot_dimension_numbers<[1], [0], [0], [1], [0, 0, 1, 1], [], []>} : vector<1x8xf32>, vector<8x256xf32>, vector<1x256xf32> -> vector<1x256xf32>
    %431 = arith.addf %424, %430 : vector<1x256xf32>
    %c4_466 = arith.constant 4 : index
    %c0_467 = arith.constant 0 : index
    %c0_468 = arith.constant 0 : index
    %432 = vector.load %arg21[%c4_466, %c0_467, %c0_468] : memref<9x1x8xf32, #tpu.memory_space<vmem>>, vector<1x1x8xf32>
    %433 = vector.shape_cast %432 : vector<1x1x8xf32> to vector<1x8xf32>
    %cst_469 = arith.constant dense<0.000000e+00> : vector<1x256xf32>
    %434 = tpu.matmul %433, %404, %cst_469 {dimension_numbers = #tpu.dot_dimension_numbers<[1], [0], [0], [1], [0, 0, 1, 1], [], []>} : vector<1x8xf32>, vector<8x256xf32>, vector<1x256xf32> -> vector<1x256xf32>
    %435 = arith.addf %431, %434 : vector<1x256xf32>
    %c5_470 = arith.constant 5 : index
    %c0_471 = arith.constant 0 : index
    %c0_472 = arith.constant 0 : index
    %436 = vector.load %arg24[%c5_470, %c0_471, %c0_472] : memref<9x256x256xf32, #tpu.memory_space<vmem>>, vector<1x256x256xf32>
    %437 = vector.shape_cast %436 : vector<1x256x256xf32> to vector<256x256xf32>
    %cst_473 = arith.constant dense<0.000000e+00> : vector<8x256xf32>
    %438 = tpu.matmul %404, %437, %cst_473 {dimension_numbers = #tpu.dot_dimension_numbers<[1], [0], [0], [1], [0, 0, 1, 1], [], []>} : vector<8x256xf32>, vector<256x256xf32>, vector<8x256xf32> -> vector<8x256xf32>
    %c5_474 = arith.constant 5 : index
    %c0_475 = arith.constant 0 : index
    %c0_476 = arith.constant 0 : index
    %439 = vector.load %arg21[%c5_474, %c0_475, %c0_476] : memref<9x1x8xf32, #tpu.memory_space<vmem>>, vector<1x1x8xf32>
    %440 = vector.shape_cast %439 : vector<1x1x8xf32> to vector<1x8xf32>
    %cst_477 = arith.constant dense<0.000000e+00> : vector<1x256xf32>
    %441 = tpu.matmul %440, %438, %cst_477 {dimension_numbers = #tpu.dot_dimension_numbers<[1], [0], [0], [1], [0, 0, 1, 1], [], []>} : vector<1x8xf32>, vector<8x256xf32>, vector<1x256xf32> -> vector<1x256xf32>
    %442 = arith.addf %435, %441 : vector<1x256xf32>
    %c6_478 = arith.constant 6 : index
    %c0_479 = arith.constant 0 : index
    %c0_480 = arith.constant 0 : index
    %443 = vector.load %arg24[%c6_478, %c0_479, %c0_480] : memref<9x256x256xf32, #tpu.memory_space<vmem>>, vector<1x256x256xf32>
    %444 = vector.shape_cast %443 : vector<1x256x256xf32> to vector<256x256xf32>
    %cst_481 = arith.constant dense<0.000000e+00> : vector<8x256xf32>
    %445 = tpu.matmul %404, %444, %cst_481 {dimension_numbers = #tpu.dot_dimension_numbers<[1], [0], [0], [1], [0, 0, 1, 1], [], []>} : vector<8x256xf32>, vector<256x256xf32>, vector<8x256xf32> -> vector<8x256xf32>
    %c6_482 = arith.constant 6 : index
    %c0_483 = arith.constant 0 : index
    %c0_484 = arith.constant 0 : index
    %446 = vector.load %arg21[%c6_482, %c0_483, %c0_484] : memref<9x1x8xf32, #tpu.memory_space<vmem>>, vector<1x1x8xf32>
    %447 = vector.shape_cast %446 : vector<1x1x8xf32> to vector<1x8xf32>
    %cst_485 = arith.constant dense<0.000000e+00> : vector<1x256xf32>
    %448 = tpu.matmul %447, %445, %cst_485 {dimension_numbers = #tpu.dot_dimension_numbers<[1], [0], [0], [1], [0, 0, 1, 1], [], []>} : vector<1x8xf32>, vector<8x256xf32>, vector<1x256xf32> -> vector<1x256xf32>
    %449 = arith.addf %442, %448 : vector<1x256xf32>
    %c7_486 = arith.constant 7 : index
    %c0_487 = arith.constant 0 : index
    %c0_488 = arith.constant 0 : index
    %450 = vector.load %arg24[%c7_486, %c0_487, %c0_488] : memref<9x256x256xf32, #tpu.memory_space<vmem>>, vector<1x256x256xf32>
    %451 = vector.shape_cast %450 : vector<1x256x256xf32> to vector<256x256xf32>
    %cst_489 = arith.constant dense<0.000000e+00> : vector<8x256xf32>
    %452 = tpu.matmul %404, %451, %cst_489 {dimension_numbers = #tpu.dot_dimension_numbers<[1], [0], [0], [1], [0, 0, 1, 1], [], []>} : vector<8x256xf32>, vector<256x256xf32>, vector<8x256xf32> -> vector<8x256xf32>
    %c7_490 = arith.constant 7 : index
    %c0_491 = arith.constant 0 : index
    %c0_492 = arith.constant 0 : index
    %453 = vector.load %arg21[%c7_490, %c0_491, %c0_492] : memref<9x1x8xf32, #tpu.memory_space<vmem>>, vector<1x1x8xf32>
    %454 = vector.shape_cast %453 : vector<1x1x8xf32> to vector<1x8xf32>
    %cst_493 = arith.constant dense<0.000000e+00> : vector<1x256xf32>
    %455 = tpu.matmul %454, %452, %cst_493 {dimension_numbers = #tpu.dot_dimension_numbers<[1], [0], [0], [1], [0, 0, 1, 1], [], []>} : vector<1x8xf32>, vector<8x256xf32>, vector<1x256xf32> -> vector<1x256xf32>
    %456 = arith.addf %449, %455 : vector<1x256xf32>
    %c8_494 = arith.constant 8 : index
    %c0_495 = arith.constant 0 : index
    %c0_496 = arith.constant 0 : index
    %457 = vector.load %arg24[%c8_494, %c0_495, %c0_496] : memref<9x256x256xf32, #tpu.memory_space<vmem>>, vector<1x256x256xf32>
    %458 = vector.shape_cast %457 : vector<1x256x256xf32> to vector<256x256xf32>
    %cst_497 = arith.constant dense<0.000000e+00> : vector<8x256xf32>
    %459 = tpu.matmul %404, %458, %cst_497 {dimension_numbers = #tpu.dot_dimension_numbers<[1], [0], [0], [1], [0, 0, 1, 1], [], []>} : vector<8x256xf32>, vector<256x256xf32>, vector<8x256xf32> -> vector<8x256xf32>
    %c8_498 = arith.constant 8 : index
    %c0_499 = arith.constant 0 : index
    %c0_500 = arith.constant 0 : index
    %460 = vector.load %arg21[%c8_498, %c0_499, %c0_500] : memref<9x1x8xf32, #tpu.memory_space<vmem>>, vector<1x1x8xf32>
    %461 = vector.shape_cast %460 : vector<1x1x8xf32> to vector<1x8xf32>
    %cst_501 = arith.constant dense<0.000000e+00> : vector<1x256xf32>
    %462 = tpu.matmul %461, %459, %cst_501 {dimension_numbers = #tpu.dot_dimension_numbers<[1], [0], [0], [1], [0, 0, 1, 1], [], []>} : vector<1x8xf32>, vector<8x256xf32>, vector<1x256xf32> -> vector<1x256xf32>
    %463 = arith.addf %456, %462 : vector<1x256xf32>
    %c0_502 = arith.constant 0 : index
    %c0_503 = arith.constant 0 : index
    %464 = vector.load %arg23[%c0_502, %c0_503] : memref<64x256xf32, #tpu.memory_space<vmem>>, vector<64x256xf32>
    %cst_504 = arith.constant dense<0.000000e+00> : vector<1x256xf32>
    %465 = tpu.matmul %10, %464, %cst_504 {dimension_numbers = #tpu.dot_dimension_numbers<[1], [0], [0], [1], [0, 0, 1, 1], [], []>} : vector<1x64xf32>, vector<64x256xf32>, vector<1x256xf32> -> vector<1x256xf32>
    %466 = arith.addf %465, %463 : vector<1x256xf32>
    %467 = vector.broadcast %4 : f32 to vector<1x256xf32>
    %468 = arith.mulf %466, %467 : vector<1x256xf32>
    %469 = vector.broadcast %1 : f32 to vector<1x256xf32>
    %470 = arith.addf %468, %469 : vector<1x256xf32>
    %c0_505 = arith.constant 0 : index
    %c0_506 = arith.constant 0 : index
    %c0_507 = arith.constant 0 : index
    %471 = vector.load %arg26[%c0_505, %c0_506, %c0_507] : memref<1x1x256xf32, #tpu.memory_space<vmem>>, vector<1x1x256xf32>
    %472 = vector.shape_cast %471 : vector<1x1x256xf32> to vector<1x256xf32>
    %473 = vector.shape_cast %470 : vector<1x256xf32> to vector<1x1x256xf32>
    tpu.vector_store %arg26[%c0_505, %c0_506, %c0_507], %473 {strides = array<i32>} : memref<1x1x256xf32, #tpu.memory_space<vmem>>, vector<1x1x256xf32>,
    return
  }
  func.func @transform_0(%arg0: i32, %arg1: memref<2xf32, #tpu.memory_space<smem>>, %arg2: memref<2xf32, #tpu.memory_space<smem>>) -> (i32, i32, i32) {
    %c0_i32 = arith.constant 0 : i32
    %c0_i32_0 = arith.constant 0 : i32
    %c0_i32_1 = arith.constant 0 : i32
    return %arg0, %c0_i32, %c0_i32_0 : i32, i32, i32
  }
  func.func @transform_1(%arg0: i32, %arg1: memref<2xf32, #tpu.memory_space<smem>>, %arg2: memref<2xf32, #tpu.memory_space<smem>>) -> (i32, i32, i32) {
    %c0_i32 = arith.constant 0 : i32
    %c0_i32_0 = arith.constant 0 : i32
    %c0_i32_1 = arith.constant 0 : i32
    return %arg0, %c0_i32, %c0_i32_0 : i32, i32, i32
  }
  func.func @transform_2(%arg0: i32, %arg1: memref<2xf32, #tpu.memory_space<smem>>, %arg2: memref<2xf32, #tpu.memory_space<smem>>) -> (i32, i32, i32) {
    %c0_i32 = arith.constant 0 : i32
    %c0_i32_0 = arith.constant 0 : i32
    %c0_i32_1 = arith.constant 0 : i32
    %c0_i32_2 = arith.constant 0 : i32
    return %c0_i32, %c0_i32_0, %c0_i32_1 : i32, i32, i32
  }
  func.func @transform_3(%arg0: i32, %arg1: memref<2xf32, #tpu.memory_space<smem>>, %arg2: memref<2xf32, #tpu.memory_space<smem>>) -> (i32, i32) {
    %c0_i32 = arith.constant 0 : i32
    %c0_i32_0 = arith.constant 0 : i32
    %c0_i32_1 = arith.constant 0 : i32
    return %c0_i32, %c0_i32_0 : i32, i32
  }
  func.func @transform_4(%arg0: i32, %arg1: memref<2xf32, #tpu.memory_space<smem>>, %arg2: memref<2xf32, #tpu.memory_space<smem>>) -> (i32, i32) {
    %c0_i32 = arith.constant 0 : i32
    %c0_i32_0 = arith.constant 0 : i32
    %c0_i32_1 = arith.constant 0 : i32
    return %c0_i32, %c0_i32_0 : i32, i32
  }
  func.func @transform_5(%arg0: i32, %arg1: memref<2xf32, #tpu.memory_space<smem>>, %arg2: memref<2xf32, #tpu.memory_space<smem>>) -> (i32, i32, i32) {
    %c0_i32 = arith.constant 0 : i32
    %c0_i32_0 = arith.constant 0 : i32
    %c0_i32_1 = arith.constant 0 : i32
    %c0_i32_2 = arith.constant 0 : i32
    return %c0_i32, %c0_i32_0, %c0_i32_1 : i32, i32, i32
  }
  func.func @transform_6(%arg0: i32, %arg1: memref<2xf32, #tpu.memory_space<smem>>, %arg2: memref<2xf32, #tpu.memory_space<smem>>) -> (i32, i32) {
    %c0_i32 = arith.constant 0 : i32
    %c0_i32_0 = arith.constant 0 : i32
    %c0_i32_1 = arith.constant 0 : i32
    return %c0_i32, %c0_i32_0 : i32, i32
  }
  func.func @transform_7(%arg0: i32, %arg1: memref<2xf32, #tpu.memory_space<smem>>, %arg2: memref<2xf32, #tpu.memory_space<smem>>) -> (i32, i32) {
    %c0_i32 = arith.constant 0 : i32
    %c0_i32_0 = arith.constant 0 : i32
    %c0_i32_1 = arith.constant 0 : i32
    return %c0_i32, %c0_i32_0 : i32, i32
  }
  func.func @transform_8(%arg0: i32, %arg1: memref<2xf32, #tpu.memory_space<smem>>, %arg2: memref<2xf32, #tpu.memory_space<smem>>) -> (i32, i32, i32) {
    %c0_i32 = arith.constant 0 : i32
    %c0_i32_0 = arith.constant 0 : i32
    %c0_i32_1 = arith.constant 0 : i32
    %c0_i32_2 = arith.constant 0 : i32
    return %c0_i32, %c0_i32_0, %c0_i32_1 : i32, i32, i32
  }
  func.func @transform_9(%arg0: i32, %arg1: memref<2xf32, #tpu.memory_space<smem>>, %arg2: memref<2xf32, #tpu.memory_space<smem>>) -> (i32, i32) {
    %c0_i32 = arith.constant 0 : i32
    %c0_i32_0 = arith.constant 0 : i32
    %c0_i32_1 = arith.constant 0 : i32
    return %c0_i32, %c0_i32_0 : i32, i32
  }
  func.func @transform_10(%arg0: i32, %arg1: memref<2xf32, #tpu.memory_space<smem>>, %arg2: memref<2xf32, #tpu.memory_space<smem>>) -> (i32, i32) {
    %c0_i32 = arith.constant 0 : i32
    %c0_i32_0 = arith.constant 0 : i32
    %c0_i32_1 = arith.constant 0 : i32
    return %c0_i32, %c0_i32_0 : i32, i32
  }
  func.func @transform_11(%arg0: i32, %arg1: memref<2xf32, #tpu.memory_space<smem>>, %arg2: memref<2xf32, #tpu.memory_space<smem>>) -> (i32, i32, i32, i32) {
    %c0_i32 = arith.constant 0 : i32
    %c0_i32_0 = arith.constant 0 : i32
    %c0_i32_1 = arith.constant 0 : i32
    %c0_i32_2 = arith.constant 0 : i32
    %c0_i32_3 = arith.constant 0 : i32
    return %c0_i32, %c0_i32_0, %c0_i32_1, %c0_i32_2 : i32, i32, i32, i32
  }
  func.func @transform_12(%arg0: i32, %arg1: memref<2xf32, #tpu.memory_space<smem>>, %arg2: memref<2xf32, #tpu.memory_space<smem>>) -> (i32, i32) {
    %c0_i32 = arith.constant 0 : i32
    %c0_i32_0 = arith.constant 0 : i32
    %c0_i32_1 = arith.constant 0 : i32
    return %c0_i32, %c0_i32_0 : i32, i32
  }
  func.func @transform_13(%arg0: i32, %arg1: memref<2xf32, #tpu.memory_space<smem>>, %arg2: memref<2xf32, #tpu.memory_space<smem>>) -> (i32, i32) {
    %c0_i32 = arith.constant 0 : i32
    %c0_i32_0 = arith.constant 0 : i32
    %c0_i32_1 = arith.constant 0 : i32
    return %c0_i32, %c0_i32_0 : i32, i32
  }
  func.func @transform_14(%arg0: i32, %arg1: memref<2xf32, #tpu.memory_space<smem>>, %arg2: memref<2xf32, #tpu.memory_space<smem>>) -> (i32, i32, i32) {
    %c0_i32 = arith.constant 0 : i32
    %c0_i32_0 = arith.constant 0 : i32
    %c0_i32_1 = arith.constant 0 : i32
    %c0_i32_2 = arith.constant 0 : i32
    return %c0_i32, %c0_i32_0, %c0_i32_1 : i32, i32, i32
  }
  func.func @transform_15(%arg0: i32, %arg1: memref<2xf32, #tpu.memory_space<smem>>, %arg2: memref<2xf32, #tpu.memory_space<smem>>) -> (i32, i32, i32) {
    %c0_i32 = arith.constant 0 : i32
    %c0_i32_0 = arith.constant 0 : i32
    %c0_i32_1 = arith.constant 0 : i32
    %c0_i32_2 = arith.constant 0 : i32
    return %c0_i32, %c0_i32_0, %c0_i32_1 : i32, i32, i32
  }
  func.func @transform_16(%arg0: i32, %arg1: memref<2xf32, #tpu.memory_space<smem>>, %arg2: memref<2xf32, #tpu.memory_space<smem>>) -> (i32, i32) {
    %c0_i32 = arith.constant 0 : i32
    %c0_i32_0 = arith.constant 0 : i32
    %c0_i32_1 = arith.constant 0 : i32
    return %c0_i32, %c0_i32_0 : i32, i32
  }
  func.func @transform_17(%arg0: i32, %arg1: memref<2xf32, #tpu.memory_space<smem>>, %arg2: memref<2xf32, #tpu.memory_space<smem>>) -> (i32, i32) {
    %c0_i32 = arith.constant 0 : i32
    %c0_i32_0 = arith.constant 0 : i32
    %c0_i32_1 = arith.constant 0 : i32
    return %c0_i32, %c0_i32_0 : i32, i32
  }
  func.func @transform_18(%arg0: i32, %arg1: memref<2xf32, #tpu.memory_space<smem>>, %arg2: memref<2xf32, #tpu.memory_space<smem>>) -> (i32, i32, i32) {
    %c0_i32 = arith.constant 0 : i32
    %c0_i32_0 = arith.constant 0 : i32
    %c0_i32_1 = arith.constant 0 : i32
    %c0_i32_2 = arith.constant 0 : i32
    return %c0_i32, %c0_i32_0, %c0_i32_1 : i32, i32, i32
  }
  func.func @transform_19(%arg0: i32, %arg1: memref<2xf32, #tpu.memory_space<smem>>, %arg2: memref<2xf32, #tpu.memory_space<smem>>) -> (i32, i32, i32) {
    %c0_i32 = arith.constant 0 : i32
    %c0_i32_0 = arith.constant 0 : i32
    %c0_i32_1 = arith.constant 0 : i32
    %c0_i32_2 = arith.constant 0 : i32
    return %c0_i32, %c0_i32_0, %c0_i32_1 : i32, i32, i32
  }
  func.func @transform_20(%arg0: i32, %arg1: memref<2xf32, #tpu.memory_space<smem>>, %arg2: memref<2xf32, #tpu.memory_space<smem>>) -> (i32, i32) {
    %c0_i32 = arith.constant 0 : i32
    %c0_i32_0 = arith.constant 0 : i32
    %c0_i32_1 = arith.constant 0 : i32
    return %c0_i32, %c0_i32_0 : i32, i32
  }
  func.func @transform_21(%arg0: i32, %arg1: memref<2xf32, #tpu.memory_space<smem>>, %arg2: memref<2xf32, #tpu.memory_space<smem>>) -> (i32, i32, i32) {
    %c0_i32 = arith.constant 0 : i32
    %c0_i32_0 = arith.constant 0 : i32
    %c0_i32_1 = arith.constant 0 : i32
    %c0_i32_2 = arith.constant 0 : i32
    return %c0_i32, %c0_i32_0, %c0_i32_1 : i32, i32, i32
  }
  func.func @transform_22(%arg0: i32, %arg1: memref<2xf32, #tpu.memory_space<smem>>, %arg2: memref<2xf32, #tpu.memory_space<smem>>) -> (i32, i32, i32) {
    %c0_i32 = arith.constant 0 : i32
    %c0_i32_0 = arith.constant 0 : i32
    %c0_i32_1 = arith.constant 0 : i32
    %c0_i32_2 = arith.constant 0 : i32
    return %c0_i32, %c0_i32_0, %c0_i32_1 : i32, i32, i32
  }
  func.func @transform_23(%arg0: i32, %arg1: memref<2xf32, #tpu.memory_space<smem>>, %arg2: memref<2xf32, #tpu.memory_space<smem>>) -> (i32, i32, i32) {
    %c0_i32 = arith.constant 0 : i32
    %c0_i32_0 = arith.constant 0 : i32
    %c0_i32_1 = arith.constant 0 : i32
    return %arg0, %c0_i32, %c0_i32_0 : i32, i32, i32
  }
}

</mosaic_0001>

<llo_original>
// kernel: tpu_custom_call.1
$region0: #{tpu_custom_call.1}
  #allocation0 [shape = 'u32[]', space=smem, size = 0x4, offset = 0x4, fixed_abs, tag = 'smem constant byte address 0x4 - core index']
  #allocation1 [shape = 'u32[72,128]{1,0:T(1,128)}', space=vmem, size = 0x9000, scoped, tag = 'internal scratch']
  #allocation2 [shape = 's32[1]{0}', space=sflag, size = 0x4, scoped, tag = 'scoped memory for tpu_custom_call.1']
  #allocation3 [shape = 'u8[512]{0}', space=smem, size = 0x200, scoped, tag = 'prefetched SMEM operand 0']
  #allocation4 [shape = 'u8[512]{0}', space=smem, size = 0x200, scoped, tag = 'prefetched SMEM operand 1']
  %s0 = inlined_call_operand.hbm [shape: f32[2], index: 0, kind: input, shape index: {}]
  %s1 = inlined_call_operand.hbm [shape: f32[2], index: 1, kind: input, shape index: {}]
  %s2 = inlined_call_operand.vmem [shape: f32[2,3,256], index: 2, kind: input, shape index: {}]
  %s3 = inlined_call_operand.hbm [shape: f32[2,1,64], index: 3, kind: input, shape index: {}]
  %s4 = inlined_call_operand.vmem [shape: f32[9,8,3], index: 4, kind: input, shape index: {}]
  %s5 = inlined_call_operand.vmem [shape: f32[8,1], index: 5, kind: input, shape index: {}]
  %s6 = inlined_call_operand.vmem [shape: f32[8,1], index: 6, kind: input, shape index: {}]
  %s7 = inlined_call_operand.vmem [shape: f32[9,8,1], index: 7, kind: input, shape index: {}]
  %s8 = inlined_call_operand.vmem [shape: f32[8,1], index: 8, kind: input, shape index: {}]
  %s9 = inlined_call_operand.vmem [shape: f32[8,1], index: 9, kind: input, shape index: {}]
  %s10 = inlined_call_operand.vmem [shape: f32[9,8,8], index: 10, kind: input, shape index: {}]
  %s11 = inlined_call_operand.vmem [shape: f32[8,1], index: 11, kind: input, shape index: {}]
  %s12 = inlined_call_operand.vmem [shape: f32[8,1], index: 12, kind: input, shape index: {}]
  %s13 = inlined_call_operand.hbm [shape: f32[3,3,8,8], index: 13, kind: input, shape index: {}]
  %s14 = inlined_call_operand.vmem [shape: f32[8,1], index: 14, kind: input, shape index: {}]
  %s15 = inlined_call_operand.vmem [shape: f32[8,1], index: 15, kind: input, shape index: {}]
  %s16 = inlined_call_operand.vmem [shape: f32[9,8,8], index: 16, kind: input, shape index: {}]
  %s17 = inlined_call_operand.vmem [shape: f32[9,8,8], index: 17, kind: input, shape index: {}]
  %s18 = inlined_call_operand.vmem [shape: f32[8,1], index: 18, kind: input, shape index: {}]
  %s19 = inlined_call_operand.vmem [shape: f32[8,1], index: 19, kind: input, shape index: {}]
  %s20 = inlined_call_operand.vmem [shape: f32[9,1,8], index: 20, kind: input, shape index: {}]
  %s21 = inlined_call_operand.hbm [shape: f32[4,64,256], index: 21, kind: input, shape index: {}]
  %s22 = inlined_call_operand.hbm [shape: f32[64,256], index: 22, kind: input, shape index: {}]
  %s23 = inlined_call_operand.hbm [shape: f32[9,256,256], index: 23, kind: input, shape index: {}]
  %s24 = inlined_call_operand.hbm [shape: f32[9,64,64], index: 24, kind: input, shape index: {}]
  %s25 = inlined_call_operand.hbm [shape: f32[2,1,256], index: 25, kind: output, shape index: {}]
  %s26 = sld [smem:[#allocation0]]
  $region149: #{tpu_custom_call.1} parent=0
    _
  %s28 = ssub.s32 1, %s26
  %s29 = scalar_select 0, %s28, %s26
  %s31 = sshll.u32 %s0, 4
  %s32 = int_to_ptr.hbm [resolvable:$true] %s31
  %34 = dma.hbm_to_smem %s32, 16, [#allocation3], [#allocation2]
  %s36 = sshll.u32 %s1, 4
  %s37 = int_to_ptr.hbm [resolvable:$true] %s36
  %39 = dma.hbm_to_smem %s37, 16, [#allocation4], [#allocation2]
  %41 = dma.done [#allocation2], 32
  %42 = sfence
  $region1: #{tpu_custom_call.1} parent=0
    #allocation5 [shape = 'u8[1024]{0}', space=vmem, size = 0x400, scoped, tag = 'input window, operand 3']
    #allocation6 [shape = 's32[2]{0}', space=sflag, size = 0x8, scoped, tag = 'scoped memory for tpu_custom_call.1']
    #allocation7 [shape = 's32[2]{0}', space=sflag, size = 0x8, scoped, tag = 'scoped memory for tpu_custom_call.1']
    #allocation8 [shape = 'u8[36864]{0}', space=vmem, size = 0x9000, scoped, tag = 'input window, operand 13, single buffered']
    #allocation9 [shape = 's32[1]{0}', space=sflag, size = 0x4, scoped, tag = 'scoped memory for tpu_custom_call.1']
    #allocation10 [shape = 'u8[262144]{0}', space=vmem, size = 0x40000, scoped, tag = 'input window, operand 21, single buffered']
    #allocation11 [shape = 'u8[65536]{0}', space=vmem, size = 0x10000, scoped, tag = 'input window, operand 22, single buffered']
    #allocation12 [shape = 's32[1]{0}', space=sflag, size = 0x4, scoped, tag = 'scoped memory for tpu_custom_call.1']
    #allocation13 [shape = 'u8[2359296]{0}', space=vmem, size = 0x240000, scoped, tag = 'input window, operand 23, single buffered']
    #allocation14 [shape = 'u8[294912]{0}', space=vmem, size = 0x48000, scoped, tag = 'input window, operand 24, single buffered']
    #allocation15 [shape = 's32[1]{0}', space=sflag, size = 0x4, scoped, tag = 'scoped memory for tpu_custom_call.1']
    #allocation16 [shape = 'u8[2048]{0}', space=vmem, size = 0x800, scoped, tag = 'output window, operand 0']
    %43 = vsyncpa [#allocation6], 0
    %s44 = scalar_lea.sflag [#allocation6], 1
    %45 = vsyncpa %s44, 0
    %46 = vsyncpa [#allocation9], 0
    %47 = vsyncpa [#allocation12], 0
    %48 = vsyncpa [#allocation15], 0
    %49 = vsyncpa [#allocation7], 0
    %s50 = scalar_lea.sflag [#allocation7], 1
    %51 = vsyncpa %s50, 0
    loop: start=0, step=1, limit=4
    $region2: #{tpu_custom_call.1} parent=1 // loop_pre_header
      _
    $region3: #{tpu_custom_call.1} parent=1 // loop_header
      %s53 = sphi 0, %s57
      %p54 = scmp.ge.s32.totalorder %s53, 4
      %s63 = sphi 0, %s65
      %s66 = sphi 0, %s63
      %s67 = sphi 0, %s66
      %s83 = sphi 0, %s67
      %s89 = sphi 0, %s91
      %s92 = sphi 0, %s89
      %s93 = sphi 0, %s92
      %s109 = sphi 0, %s93
      %s113 = sphi 0, %s113
      %s115 = sphi 0, %s113
      %s116 = sphi 0, %s115
      %s130 = sphi 0, %s116
      %s134 = sphi 0, %s134
      %s136 = sphi 0, %s134
      %s137 = sphi 0, %s136
      %s151 = sphi 0, %s137
      %s155 = sphi 0, %s155
      %s157 = sphi 0, %s155
      %s158 = sphi 0, %s157
      %s172 = sphi 0, %s158
      %s176 = sphi 0, %s176
      %s178 = sphi 0, %s176
      %s179 = sphi 0, %s178
      %s193 = sphi 0, %s179
      %s197 = sphi 0, %s197
      %s199 = sphi 0, %s197
      %s200 = sphi 0, %s199
      %s214 = sphi 0, %s200
      %s218 = sphi 0, %s218
      %s220 = sphi 0, %s218
      %s221 = sphi 0, %s220
      %s235 = sphi 0, %s221
      %s239 = sphi 0, %s239
      %s241 = sphi 0, %s239
      %s242 = sphi 0, %s241
      %s256 = sphi 0, %s242
      %s260 = sphi 0, %s260
      %s262 = sphi 0, %s260
      %s263 = sphi 0, %s262
      %s277 = sphi 0, %s263
      %s281 = sphi 0, %s281
      %s283 = sphi 0, %s281
      %s284 = sphi 0, %s283
      %s298 = sphi 0, %s284
      %s302 = sphi 0, %s302
      %s304 = sphi 0, %s302
      %s305 = sphi 0, %s304
      %s319 = sphi 0, %s305
      %s323 = sphi 0, %s323
      %s325 = sphi 0, %s323
      %s326 = sphi 0, %s325
      %s340 = sphi 0, %s326
      %s344 = sphi 0, %s344
      %s346 = sphi 0, %s344
      %s347 = sphi 0, %s346
      %s361 = sphi 0, %s347
      %s365 = sphi 0, %s365
      %s367 = sphi 0, %s365
      %s368 = sphi 0, %s367
      %s382 = sphi 0, %s368
      %s386 = sphi 0, %s386
      %s388 = sphi 0, %s386
      %s389 = sphi 0, %s388
      %s403 = sphi 0, %s389
      %s407 = sphi 0, %s407
      %s409 = sphi 0, %s407
      %s410 = sphi 0, %s409
      %s424 = sphi 0, %s410
      %s428 = sphi 0, %s428
      %s430 = sphi 0, %s428
      %s431 = sphi 0, %s430
      %s445 = sphi 0, %s431
      %s449 = sphi 0, %s449
      %s451 = sphi 0, %s449
      %s452 = sphi 0, %s451
      %s466 = sphi 0, %s452
      %s470 = sphi 0, %s470
      %s472 = sphi 0, %s470
      %s473 = sphi 0, %s472
      %s487 = sphi 0, %s473
      %s491 = sphi 0, %s491
      %s493 = sphi 0, %s491
      %s494 = sphi 0, %s493
      %s508 = sphi 0, %s494
      %s512 = sphi 0, %s512
      %s514 = sphi 0, %s512
      %s515 = sphi 0, %s514
      %s529 = sphi 0, %s515
      %s533 = sphi 0, %s533
      %s535 = sphi 0, %s533
      %s536 = sphi 0, %s535
      %s550 = sphi 0, %s536
      %s556 = sphi 0, %s558
      %s559 = sphi 0, %s556
      %s560 = sphi 0, %s559
      %s576 = sphi 0, %s560
    $region4: #{tpu_custom_call.1} parent=1 // loop_header_branch
      %56 = sbr.rel (%p54) target = $region8
    $region5: #{tpu_custom_call.1} parent=1 // loop_body
      %s58 = ssub.s32 %s53, 1
      %s59 = ssub.s32 %s53, 2
      %s60 = sadd.s32 %s53, 1
      %s61 = ssub.s32 %s53, %s60
      %p62 = scmp.eq.s32.totalorder %s61, 0
      %s64 = sadd.s32 %s63, 1
      %s65 = scalar_select %p62, %s63, %s64
      %p68 = pneg %p62
      %p69 = scmp.eq.s32.totalorder %s53, 1
      %p70 = por %p68, %p69
      %p71 = scmp.ne.s32.totalorder %s63, %s66
      %p72 = scmp.eq.s32.totalorder %s53, 0
      %p73 = por %p71, %p72
      %p74 = scmp.ne.s32.totalorder %s63, %s66
      %p75 = scmp.eq.s32.totalorder %s58, 1
      %p76 = por %p74, %p75
      %p77 = scmp.ne.s32.totalorder %s66, %s67
      %p78 = scmp.eq.s32.totalorder %s58, 0
      %p79 = por %p77, %p78
      %p80 = scmp.ne.s32.totalorder %s66, %s67
      %p81 = scmp.eq.s32.totalorder %s59, 1
      %p82 = por %p80, %p81
      %p84 = scmp.ne.s32.totalorder %s67, %s83
      %p85 = scmp.eq.s32.totalorder %s59, 0
      %p86 = por %p84, %p85
      %s87 = ssub.s32 %s53, %s60
      %p88 = scmp.eq.s32.totalorder %s87, 0
      %s90 = sadd.s32 %s89, 1
      %s91 = scalar_select %p88, %s89, %s90
      %p94 = pneg %p88
      %p95 = scmp.eq.s32.totalorder %s53, 1
      %p96 = por %p94, %p95
      %p97 = scmp.ne.s32.totalorder %s89, %s92
      %p98 = scmp.eq.s32.totalorder %s53, 0
      %p99 = por %p97, %p98
      %p100 = scmp.ne.s32.totalorder %s89, %s92
      %p101 = scmp.eq.s32.totalorder %s58, 1
      %p102 = por %p100, %p101
      %p103 = scmp.ne.s32.totalorder %s92, %s93
      %p104 = scmp.eq.s32.totalorder %s58, 0
      %p105 = por %p103, %p104
      %p106 = scmp.ne.s32.totalorder %s92, %s93
      %p107 = scmp.eq.s32.totalorder %s59, 1
      %p108 = por %p106, %p107
      %p110 = scmp.ne.s32.totalorder %s93, %s109
      %p111 = scmp.eq.s32.totalorder %s59, 0
      %p112 = por %p110, %p111
      %s114 = sadd.s32 %s113, 1
      %p117 = scmp.eq.s32.totalorder %s53, 1
      %p118 = scmp.ne.s32.totalorder %s113, %s115
      %p119 = scmp.eq.s32.totalorder %s53, 0
      %p120 = por %p118, %p119
      %p121 = scmp.ne.s32.totalorder %s113, %s115
      %p122 = scmp.eq.s32.totalorder %s58, 1
      %p123 = por %p121, %p122
      %p124 = scmp.ne.s32.totalorder %s115, %s116
      %p125 = scmp.eq.s32.totalorder %s58, 0
      %p126 = por %p124, %p125
      %p127 = scmp.ne.s32.totalorder %s115, %s116
      %p128 = scmp.eq.s32.totalorder %s59, 1
      %p129 = por %p127, %p128
      %p131 = scmp.ne.s32.totalorder %s116, %s130
      %p132 = scmp.eq.s32.totalorder %s59, 0
      %p133 = por %p131, %p132
      %s135 = sadd.s32 %s134, 1
      %p138 = scmp.eq.s32.totalorder %s53, 1
      %p139 = scmp.ne.s32.totalorder %s134, %s136
      %p140 = scmp.eq.s32.totalorder %s53, 0
      %p141 = por %p139, %p140
      %p142 = scmp.ne.s32.totalorder %s134, %s136
      %p143 = scmp.eq.s32.totalorder %s58, 1
      %p144 = por %p142, %p143
      %p145 = scmp.ne.s32.totalorder %s136, %s137
      %p146 = scmp.eq.s32.totalorder %s58, 0
      %p147 = por %p145, %p146
      %p148 = scmp.ne.s32.totalorder %s136, %s137
      %p149 = scmp.eq.s32.totalorder %s59, 1
      %p150 = por %p148, %p149
      %p152 = scmp.ne.s32.totalorder %s137, %s151
      %p153 = scmp.eq.s32.totalorder %s59, 0
      %p154 = por %p152, %p153
      %s156 = sadd.s32 %s155, 1
      %p159 = scmp.eq.s32.totalorder %s53, 1
      %p160 = scmp.ne.s32.totalorder %s155, %s157
      %p161 = scmp.eq.s32.totalorder %s53, 0
      %p162 = por %p160, %p161
      %p163 = scmp.ne.s32.totalorder %s155, %s157
      %p164 = scmp.eq.s32.totalorder %s58, 1
      %p165 = por %p163, %p164
      %p166 = scmp.ne.s32.totalorder %s157, %s158
      %p167 = scmp.eq.s32.totalorder %s58, 0
      %p168 = por %p166, %p167
      %p169 = scmp.ne.s32.totalorder %s157, %s158
      %p170 = scmp.eq.s32.totalorder %s59, 1
      %p171 = por %p169, %p170
      %p173 = scmp.ne.s32.totalorder %s158, %s172
      %p174 = scmp.eq.s32.totalorder %s59, 0
      %p175 = por %p173, %p174
      %s177 = sadd.s32 %s176, 1
      %p180 = scmp.eq.s32.totalorder %s53, 1
      %p181 = scmp.ne.s32.totalorder %s176, %s178
      %p182 = scmp.eq.s32.totalorder %s53, 0
      %p183 = por %p181, %p182
      %p184 = scmp.ne.s32.totalorder %s176, %s178
      %p185 = scmp.eq.s32.totalorder %s58, 1
      %p186 = por %p184, %p185
      %p187 = scmp.ne.s32.totalorder %s178, %s179
      %p188 = scmp.eq.s32.totalorder %s58, 0
      %p189 = por %p187, %p188
      %p190 = scmp.ne.s32.totalorder %s178, %s179
      %p191 = scmp.eq.s32.totalorder %s59, 1
      %p192 = por %p190, %p191
      %p194 = scmp.ne.s32.totalorder %s179, %s193
      %p195 = scmp.eq.s32.totalorder %s59, 0
      %p196 = por %p194, %p195
      %s198 = sadd.s32 %s197, 1
      %p201 = scmp.eq.s32.totalorder %s53, 1
      %p202 = scmp.ne.s32.totalorder %s197, %s199
      %p203 = scmp.eq.s32.totalorder %s53, 0
      %p204 = por %p202, %p203
      %p205 = scmp.ne.s32.totalorder %s197, %s199
      %p206 = scmp.eq.s32.totalorder %s58, 1
      %p207 = por %p205, %p206
      %p208 = scmp.ne.s32.totalorder %s199, %s200
      %p209 = scmp.eq.s32.totalorder %s58, 0
      %p210 = por %p208, %p209
      %p211 = scmp.ne.s32.totalorder %s199, %s200
      %p212 = scmp.eq.s32.totalorder %s59, 1
      %p213 = por %p211, %p212
      %p215 = scmp.ne.s32.totalorder %s200, %s214
      %p216 = scmp.eq.s32.totalorder %s59, 0
      %p217 = por %p215, %p216
      %s219 = sadd.s32 %s218, 1
      %p222 = scmp.eq.s32.totalorder %s53, 1
      %p223 = scmp.ne.s32.totalorder %s218, %s220
      %p224 = scmp.eq.s32.totalorder %s53, 0
      %p225 = por %p223, %p224
      %p226 = scmp.ne.s32.totalorder %s218, %s220
      %p227 = scmp.eq.s32.totalorder %s58, 1
      %p228 = por %p226, %p227
      %p229 = scmp.ne.s32.totalorder %s220, %s221
      %p230 = scmp.eq.s32.totalorder %s58, 0
      %p231 = por %p229, %p230
      %p232 = scmp.ne.s32.totalorder %s220, %s221
      %p233 = scmp.eq.s32.totalorder %s59, 1
      %p234 = por %p232, %p233
      %p236 = scmp.ne.s32.totalorder %s221, %s235
      %p237 = scmp.eq.s32.totalorder %s59, 0
      %p238 = por %p236, %p237
      %s240 = sadd.s32 %s239, 1
      %p243 = scmp.eq.s32.totalorder %s53, 1
      %p244 = scmp.ne.s32.totalorder %s239, %s241
      %p245 = scmp.eq.s32.totalorder %s53, 0
      %p246 = por %p244, %p245
      %p247 = scmp.ne.s32.totalorder %s239, %s241
      %p248 = scmp.eq.s32.totalorder %s58, 1
      %p249 = por %p247, %p248
      %p250 = scmp.ne.s32.totalorder %s241, %s242
      %p251 = scmp.eq.s32.totalorder %s58, 0
      %p252 = por %p250, %p251
      %p253 = scmp.ne.s32.totalorder %s241, %s242
      %p254 = scmp.eq.s32.totalorder %s59, 1
      %p255 = por %p253, %p254
      %p257 = scmp.ne.s32.totalorder %s242, %s256
      %p258 = scmp.eq.s32.totalorder %s59, 0
      %p259 = por %p257, %p258
      %s261 = sadd.s32 %s260, 1
      %p264 = scmp.eq.s32.totalorder %s53, 1
      %p265 = scmp.ne.s32.totalorder %s260, %s262
      %p266 = scmp.eq.s32.totalorder %s53, 0
      %p267 = por %p265, %p266
      %p268 = scmp.ne.s32.totalorder %s260, %s262
      %p269 = scmp.eq.s32.totalorder %s58, 1
      %p270 = por %p268, %p269
      %p271 = scmp.ne.s32.totalorder %s262, %s263
      %p272 = scmp.eq.s32.totalorder %s58, 0
      %p273 = por %p271, %p272
      %p274 = scmp.ne.s32.totalorder %s262, %s263
      %p275 = scmp.eq.s32.totalorder %s59, 1
      %p276 = por %p274, %p275
      %p278 = scmp.ne.s32.totalorder %s263, %s277
      %p279 = scmp.eq.s32.totalorder %s59, 0
      %p280 = por %p278, %p279
      %s282 = sadd.s32 %s281, 1
      %p285 = scmp.eq.s32.totalorder %s53, 1
      %p286 = scmp.ne.s32.totalorder %s281, %s283
      %p287 = scmp.eq.s32.totalorder %s53, 0
      %p288 = por %p286, %p287
      %p289 = scmp.ne.s32.totalorder %s281, %s283
      %p290 = scmp.eq.s32.totalorder %s58, 1
      %p291 = por %p289, %p290
      %p292 = scmp.ne.s32.totalorder %s283, %s284
      %p293 = scmp.eq.s32.totalorder %s58, 0
      %p294 = por %p292, %p293
      %p295 = scmp.ne.s32.totalorder %s283, %s284
      %p296 = scmp.eq.s32.totalorder %s59, 1
      %p297 = por %p295, %p296
      %p299 = scmp.ne.s32.totalorder %s284, %s298
      %p300 = scmp.eq.s32.totalorder %s59, 0
      %p301 = por %p299, %p300
      %s303 = sadd.s32 %s302, 1
      %p306 = scmp.eq.s32.totalorder %s53, 1
      %p307 = scmp.ne.s32.totalorder %s302, %s304
      %p308 = scmp.eq.s32.totalorder %s53, 0
      %p309 = por %p307, %p308
      %p310 = scmp.ne.s32.totalorder %s302, %s304
      %p311 = scmp.eq.s32.totalorder %s58, 1
      %p312 = por %p310, %p311
      %p313 = scmp.ne.s32.totalorder %s304, %s305
      %p314 = scmp.eq.s32.totalorder %s58, 0
      %p315 = por %p313, %p314
      %p316 = scmp.ne.s32.totalorder %s304, %s305
      %p317 = scmp.eq.s32.totalorder %s59, 1
      %p318 = por %p316, %p317
      %p320 = scmp.ne.s32.totalorder %s305, %s319
      %p321 = scmp.eq.s32.totalorder %s59, 0
      %p322 = por %p320, %p321
      %s324 = sadd.s32 %s323, 1
      %p327 = scmp.eq.s32.totalorder %s53, 1
      %p328 = scmp.ne.s32.totalorder %s323, %s325
      %p329 = scmp.eq.s32.totalorder %s53, 0
      %p330 = por %p328, %p329
      %p331 = scmp.ne.s32.totalorder %s323, %s325
      %p332 = scmp.eq.s32.totalorder %s58, 1
      %p333 = por %p331, %p332
      %p334 = scmp.ne.s32.totalorder %s325, %s326
      %p335 = scmp.eq.s32.totalorder %s58, 0
      %p336 = por %p334, %p335
      %p337 = scmp.ne.s32.totalorder %s325, %s326
      %p338 = scmp.eq.s32.totalorder %s59, 1
      %p339 = por %p337, %p338
      %p341 = scmp.ne.s32.totalorder %s326, %s340
      %p342 = scmp.eq.s32.totalorder %s59, 0
      %p343 = por %p341, %p342
      %s345 = sadd.s32 %s344, 1
      %p348 = scmp.eq.s32.totalorder %s53, 1
      %p349 = scmp.ne.s32.totalorder %s344, %s346
      %p350 = scmp.eq.s32.totalorder %s53, 0
      %p351 = por %p349, %p350
      %p352 = scmp.ne.s32.totalorder %s344, %s346
      %p353 = scmp.eq.s32.totalorder %s58, 1
      %p354 = por %p352, %p353
      %p355 = scmp.ne.s32.totalorder %s346, %s347
      %p356 = scmp.eq.s32.totalorder %s58, 0
      %p357 = por %p355, %p356
      %p358 = scmp.ne.s32.totalorder %s346, %s347
      %p359 = scmp.eq.s32.totalorder %s59, 1
      %p360 = por %p358, %p359
      %p362 = scmp.ne.s32.totalorder %s347, %s361
      %p363 = scmp.eq.s32.totalorder %s59, 0
      %p364 = por %p362, %p363
      %s366 = sadd.s32 %s365, 1
      %p369 = scmp.eq.s32.totalorder %s53, 1
      %p370 = scmp.ne.s32.totalorder %s365, %s367
      %p371 = scmp.eq.s32.totalorder %s53, 0
      %p372 = por %p370, %p371
      %p373 = scmp.ne.s32.totalorder %s365, %s367
      %p374 = scmp.eq.s32.totalorder %s58, 1
      %p375 = por %p373, %p374
      %p376 = scmp.ne.s32.totalorder %s367, %s368
      %p377 = scmp.eq.s32.totalorder %s58, 0
      %p378 = por %p376, %p377
      %p379 = scmp.ne.s32.totalorder %s367, %s368
      %p380 = scmp.eq.s32.totalorder %s59, 1
      %p381 = por %p379, %p380
      %p383 = scmp.ne.s32.totalorder %s368, %s382
      %p384 = scmp.eq.s32.totalorder %s59, 0
      %p385 = por %p383, %p384
      %s387 = sadd.s32 %s386, 1
      %p390 = scmp.eq.s32.totalorder %s53, 1
      %p391 = scmp.ne.s32.totalorder %s386, %s388
      %p392 = scmp.eq.s32.totalorder %s53, 0
      %p393 = por %p391, %p392
      %p394 = scmp.ne.s32.totalorder %s386, %s388
      %p395 = scmp.eq.s32.totalorder %s58, 1
      %p396 = por %p394, %p395
      %p397 = scmp.ne.s32.totalorder %s388, %s389
      %p398 = scmp.eq.s32.totalorder %s58, 0
      %p399 = por %p397, %p398
      %p400 = scmp.ne.s32.totalorder %s388, %s389
      %p401 = scmp.eq.s32.totalorder %s59, 1
      %p402 = por %p400, %p401
      %p404 = scmp.ne.s32.totalorder %s389, %s403
      %p405 = scmp.eq.s32.totalorder %s59, 0
      %p406 = por %p404, %p405
      %s408 = sadd.s32 %s407, 1
      %p411 = scmp.eq.s32.totalorder %s53, 1
      %p412 = scmp.ne.s32.totalorder %s407, %s409
      %p413 = scmp.eq.s32.totalorder %s53, 0
      %p414 = por %p412, %p413
      %p415 = scmp.ne.s32.totalorder %s407, %s409
      %p416 = scmp.eq.s32.totalorder %s58, 1
      %p417 = por %p415, %p416
      %p418 = scmp.ne.s32.totalorder %s409, %s410
      %p419 = scmp.eq.s32.totalorder %s58, 0
      %p420 = por %p418, %p419
      %p421 = scmp.ne.s32.totalorder %s409, %s410
      %p422 = scmp.eq.s32.totalorder %s59, 1
      %p423 = por %p421, %p422
      %p425 = scmp.ne.s32.totalorder %s410, %s424
      %p426 = scmp.eq.s32.totalorder %s59, 0
      %p427 = por %p425, %p426
      %s429 = sadd.s32 %s428, 1
      %p432 = scmp.eq.s32.totalorder %s53, 1
      %p433 = scmp.ne.s32.totalorder %s428, %s430
      %p434 = scmp.eq.s32.totalorder %s53, 0
      %p435 = por %p433, %p434
      %p436 = scmp.ne.s32.totalorder %s428, %s430
      %p437 = scmp.eq.s32.totalorder %s58, 1
      %p438 = por %p436, %p437
      %p439 = scmp.ne.s32.totalorder %s430, %s431
      %p440 = scmp.eq.s32.totalorder %s58, 0
      %p441 = por %p439, %p440
      %p442 = scmp.ne.s32.totalorder %s430, %s431
      %p443 = scmp.eq.s32.totalorder %s59, 1
      %p444 = por %p442, %p443
      %p446 = scmp.ne.s32.totalorder %s431, %s445
      %p447 = scmp.eq.s32.totalorder %s59, 0
      %p448 = por %p446, %p447
      %s450 = sadd.s32 %s449, 1
      %p453 = scmp.eq.s32.totalorder %s53, 1
      %p454 = scmp.ne.s32.totalorder %s449, %s451
      %p455 = scmp.eq.s32.totalorder %s53, 0
      %p456 = por %p454, %p455
      %p457 = scmp.ne.s32.totalorder %s449, %s451
      %p458 = scmp.eq.s32.totalorder %s58, 1
      %p459 = por %p457, %p458
      %p460 = scmp.ne.s32.totalorder %s451, %s452
      %p461 = scmp.eq.s32.totalorder %s58, 0
      %p462 = por %p460, %p461
      %p463 = scmp.ne.s32.totalorder %s451, %s452
      %p464 = scmp.eq.s32.totalorder %s59, 1
      %p465 = por %p463, %p464
      %p467 = scmp.ne.s32.totalorder %s452, %s466
      %p468 = scmp.eq.s32.totalorder %s59, 0
      %p469 = por %p467, %p468
      %s471 = sadd.s32 %s470, 1
      %p474 = scmp.eq.s32.totalorder %s53, 1
      %p475 = scmp.ne.s32.totalorder %s470, %s472
      %p476 = scmp.eq.s32.totalorder %s53, 0
      %p477 = por %p475, %p476
      %p478 = scmp.ne.s32.totalorder %s470, %s472
      %p479 = scmp.eq.s32.totalorder %s58, 1
      %p480 = por %p478, %p479
      %p481 = scmp.ne.s32.totalorder %s472, %s473
      %p482 = scmp.eq.s32.totalorder %s58, 0
      %p483 = por %p481, %p482
      %p484 = scmp.ne.s32.totalorder %s472, %s473
      %p485 = scmp.eq.s32.totalorder %s59, 1
      %p486 = por %p484, %p485
      %p488 = scmp.ne.s32.totalorder %s473, %s487
      %p489 = scmp.eq.s32.totalorder %s59, 0
      %p490 = por %p488, %p489
      %s492 = sadd.s32 %s491, 1
      %p495 = scmp.eq.s32.totalorder %s53, 1
      %p496 = scmp.ne.s32.totalorder %s491, %s493
      %p497 = scmp.eq.s32.totalorder %s53, 0
      %p498 = por %p496, %p497
      %p499 = scmp.ne.s32.totalorder %s491, %s493
      %p500 = scmp.eq.s32.totalorder %s58, 1
      %p501 = por %p499, %p500
      %p502 = scmp.ne.s32.totalorder %s493, %s494
      %p503 = scmp.eq.s32.totalorder %s58, 0
      %p504 = por %p502, %p503
      %p505 = scmp.ne.s32.totalorder %s493, %s494
      %p506 = scmp.eq.s32.totalorder %s59, 1
      %p507 = por %p505, %p506
      %p509 = scmp.ne.s32.totalorder %s494, %s508
      %p510 = scmp.eq.s32.totalorder %s59, 0
      %p511 = por %p509, %p510
      %s513 = sadd.s32 %s512, 1
      %p516 = scmp.eq.s32.totalorder %s53, 1
      %p517 = scmp.ne.s32.totalorder %s512, %s514
      %p518 = scmp.eq.s32.totalorder %s53, 0
      %p519 = por %p517, %p518
      %p520 = scmp.ne.s32.totalorder %s512, %s514
      %p521 = scmp.eq.s32.totalorder %s58, 1
      %p522 = por %p520, %p521
      %p523 = scmp.ne.s32.totalorder %s514, %s515
      %p524 = scmp.eq.s32.totalorder %s58, 0
      %p525 = por %p523, %p524
      %p526 = scmp.ne.s32.totalorder %s514, %s515
      %p527 = scmp.eq.s32.totalorder %s59, 1
      %p528 = por %p526, %p527
      %p530 = scmp.ne.s32.totalorder %s515, %s529
      %p531 = scmp.eq.s32.totalorder %s59, 0
      %p532 = por %p530, %p531
      %s534 = sadd.s32 %s533, 1
      %p537 = scmp.eq.s32.totalorder %s53, 1
      %p538 = scmp.ne.s32.totalorder %s533, %s535
      %p539 = scmp.eq.s32.totalorder %s53, 0
      %p540 = por %p538, %p539
      %p541 = scmp.ne.s32.totalorder %s533, %s535
      %p542 = scmp.eq.s32.totalorder %s58, 1
      %p543 = por %p541, %p542
      %p544 = scmp.ne.s32.totalorder %s535, %s536
      %p545 = scmp.eq.s32.totalorder %s58, 0
      %p546 = por %p544, %p545
      %p547 = scmp.ne.s32.totalorder %s535, %s536
      %p548 = scmp.eq.s32.totalorder %s59, 1
      %p549 = por %p547, %p548
      %p551 = scmp.ne.s32.totalorder %s536, %s550
      %p552 = scmp.eq.s32.totalorder %s59, 0
      %p553 = por %p551, %p552
      %s554 = ssub.s32 %s53, %s60
      %p555 = scmp.eq.s32.totalorder %s554, 0
      %s557 = sadd.s32 %s556, 1
      %s558 = scalar_select %p555, %s556, %s557
      %p561 = pneg %p555
      %p562 = scmp.eq.s32.totalorder %s53, 1
      %p563 = por %p561, %p562
      %p564 = scmp.ne.s32.totalorder %s556, %s559
      %p565 = scmp.eq.s32.totalorder %s53, 0
      %p566 = por %p564, %p565
      %p567 = scmp.ne.s32.totalorder %s556, %s559
      %p568 = scmp.eq.s32.totalorder %s58, 1
      %p569 = por %p567, %p568
      %p570 = scmp.ne.s32.totalorder %s559, %s560
      %p571 = scmp.eq.s32.totalorder %s58, 0
      %p572 = por %p570, %p571
      %p573 = scmp.ne.s32.totalorder %s559, %s560
      %p574 = scmp.eq.s32.totalorder %s59, 1
      %p575 = por %p573, %p574
      %p577 = scmp.ne.s32.totalorder %s560, %s576
      %p578 = scmp.eq.s32.totalorder %s59, 0
      %p579 = por %p577, %p578
      %p580 = scmp.le.s32.totalorder 1, %s53
      %p581 = scmp.lt.s32.totalorder %s53, 3
      %p582 = pnand %p580, %p581
      %p583 = pneg %p582
      // Predicated region
      $region9: #{tpu_custom_call.1} parent=5 // pred_check
        _
      $region10: #{tpu_custom_call.1} parent=5 // pred_check_branch
        %585 = sbr.rel (%p582) target = $region12
      $region11: #{tpu_custom_call.1} parent=5 // pred_region
        %s586 = ssub.s32 %s53, 1
        // Predicated region
        $region13: #{tpu_custom_call.1} parent=11 // pred_check
          %p587 = pneg %p126
        $region14: #{tpu_custom_call.1} parent=11 // pred_check_branch
          %589 = sbr.rel (%p587) target = $region16
        $region15: #{tpu_custom_call.1} parent=11 // pred_region
          _
        $region16: #{tpu_custom_call.1} parent=11 // pred_fallthru
          _
        // Predicated region
        $region17: #{tpu_custom_call.1} parent=11 // pred_check
          %p590 = pneg %p147
        $region18: #{tpu_custom_call.1} parent=11 // pred_check_branch
          %592 = sbr.rel (%p590) target = $region20
        $region19: #{tpu_custom_call.1} parent=11 // pred_region
          _
        $region20: #{tpu_custom_call.1} parent=11 // pred_fallthru
          _
        // Predicated region
        $region21: #{tpu_custom_call.1} parent=11 // pred_check
          %p593 = pneg %p168
        $region22: #{tpu_custom_call.1} parent=11 // pred_check_branch
          %595 = sbr.rel (%p593) target = $region24
        $region23: #{tpu_custom_call.1} parent=11 // pred_region
          _
        $region24: #{tpu_custom_call.1} parent=11 // pred_fallthru
          _
        // Predicated region
        $region25: #{tpu_custom_call.1} parent=11 // pred_check
          %p596 = pneg %p189
        $region26: #{tpu_custom_call.1} parent=11 // pred_check_branch
          %598 = sbr.rel (%p596) target = $region28
        $region27: #{tpu_custom_call.1} parent=11 // pred_region
          _
        $region28: #{tpu_custom_call.1} parent=11 // pred_fallthru
          _
        // Predicated region
        $region29: #{tpu_custom_call.1} parent=11 // pred_check
          %p599 = pneg %p210
        $region30: #{tpu_custom_call.1} parent=11 // pred_check_branch
          %601 = sbr.rel (%p599) target = $region32
        $region31: #{tpu_custom_call.1} parent=11 // pred_region
          _
        $region32: #{tpu_custom_call.1} parent=11 // pred_fallthru
          _
        // Predicated region
        $region33: #{tpu_custom_call.1} parent=11 // pred_check
          %p602 = pneg %p231
        $region34: #{tpu_custom_call.1} parent=11 // pred_check_branch
          %604 = sbr.rel (%p602) target = $region36
        $region35: #{tpu_custom_call.1} parent=11 // pred_region
          _
        $region36: #{tpu_custom_call.1} parent=11 // pred_fallthru
          _
        // Predicated region
        $region37: #{tpu_custom_call.1} parent=11 // pred_check
          %p605 = pneg %p252
        $region38: #{tpu_custom_call.1} parent=11 // pred_check_branch
          %607 = sbr.rel (%p605) target = $region40
        $region39: #{tpu_custom_call.1} parent=11 // pred_region
          _
        $region40: #{tpu_custom_call.1} parent=11 // pred_fallthru
          _
        // Predicated region
        $region41: #{tpu_custom_call.1} parent=11 // pred_check
          %p608 = pneg %p273
        $region42: #{tpu_custom_call.1} parent=11 // pred_check_branch
          %610 = sbr.rel (%p608) target = $region44
        $region43: #{tpu_custom_call.1} parent=11 // pred_region
          _
        $region44: #{tpu_custom_call.1} parent=11 // pred_fallthru
          _
        // Predicated region
        $region45: #{tpu_custom_call.1} parent=11 // pred_check
          %p611 = pneg %p294
        $region46: #{tpu_custom_call.1} parent=11 // pred_check_branch
          %613 = sbr.rel (%p611) target = $region48
        $region47: #{tpu_custom_call.1} parent=11 // pred_region
          _
        $region48: #{tpu_custom_call.1} parent=11 // pred_fallthru
          _
        // Predicated region
        $region49: #{tpu_custom_call.1} parent=11 // pred_check
          %p614 = pneg %p315
        $region50: #{tpu_custom_call.1} parent=11 // pred_check_branch
          %616 = sbr.rel (%p614) target = $region52
        $region51: #{tpu_custom_call.1} parent=11 // pred_region
          %618 = vsyncadd [#allocation9], 0
          %s619 = sshll.u32 %s13, 4
          %s620 = int_to_ptr.hbm [resolvable:$true] %s619
          %s621 = sshll.u32 [#allocation8], 4
          %s622 = int_to_ptr.vmem [resolvable:$true] %s621
          %627 = dma.hbm_to_vmem [thread:$0]  %s620, 1152, %s622, [#allocation9], 128, 128, 8
        $region52: #{tpu_custom_call.1} parent=11 // pred_fallthru
          _
        // Predicated region
        $region53: #{tpu_custom_call.1} parent=11 // pred_check
          %p628 = pneg %p336
        $region54: #{tpu_custom_call.1} parent=11 // pred_check_branch
          %630 = sbr.rel (%p628) target = $region56
        $region55: #{tpu_custom_call.1} parent=11 // pred_region
          _
        $region56: #{tpu_custom_call.1} parent=11 // pred_fallthru
          _
        // Predicated region
        $region57: #{tpu_custom_call.1} parent=11 // pred_check
          %p631 = pneg %p357
        $region58: #{tpu_custom_call.1} parent=11 // pred_check_branch
          %633 = sbr.rel (%p631) target = $region60
        $region59: #{tpu_custom_call.1} parent=11 // pred_region
          _
        $region60: #{tpu_custom_call.1} parent=11 // pred_fallthru
          _
        // Predicated region
        $region61: #{tpu_custom_call.1} parent=11 // pred_check
          %p634 = pneg %p378
        $region62: #{tpu_custom_call.1} parent=11 // pred_check_branch
          %636 = sbr.rel (%p634) target = $region64
        $region63: #{tpu_custom_call.1} parent=11 // pred_region
          _
        $region64: #{tpu_custom_call.1} parent=11 // pred_fallthru
          _
        // Predicated region
        $region65: #{tpu_custom_call.1} parent=11 // pred_check
          %p637 = pneg %p399
        $region66: #{tpu_custom_call.1} parent=11 // pred_check_branch
          %639 = sbr.rel (%p637) target = $region68
        $region67: #{tpu_custom_call.1} parent=11 // pred_region
          _
        $region68: #{tpu_custom_call.1} parent=11 // pred_fallthru
          _
        // Predicated region
        $region69: #{tpu_custom_call.1} parent=11 // pred_check
          %p640 = pneg %p420
        $region70: #{tpu_custom_call.1} parent=11 // pred_check_branch
          %642 = sbr.rel (%p640) target = $region72
        $region71: #{tpu_custom_call.1} parent=11 // pred_region
          _
        $region72: #{tpu_custom_call.1} parent=11 // pred_fallthru
          _
        // Predicated region
        $region73: #{tpu_custom_call.1} parent=11 // pred_check
          %p643 = pneg %p441
        $region74: #{tpu_custom_call.1} parent=11 // pred_check_branch
          %645 = sbr.rel (%p643) target = $region76
        $region75: #{tpu_custom_call.1} parent=11 // pred_region
          _
        $region76: #{tpu_custom_call.1} parent=11 // pred_fallthru
          _
        // Predicated region
        $region77: #{tpu_custom_call.1} parent=11 // pred_check
          %p646 = pneg %p462
        $region78: #{tpu_custom_call.1} parent=11 // pred_check_branch
          %648 = sbr.rel (%p646) target = $region80
        $region79: #{tpu_custom_call.1} parent=11 // pred_region
          _
        $region80: #{tpu_custom_call.1} parent=11 // pred_fallthru
          _
        // Predicated region
        $region81: #{tpu_custom_call.1} parent=11 // pred_check
          %p649 = pneg %p483
        $region82: #{tpu_custom_call.1} parent=11 // pred_check_branch
          %651 = sbr.rel (%p649) target = $region84
        $region83: #{tpu_custom_call.1} parent=11 // pred_region
          %653 = vsyncadd [#allocation9], 0
          %s654 = sshll.u32 %s21, 4
          %s655 = int_to_ptr.hbm [resolvable:$true] %s654
          %s656 = sshll.u32 [#allocation10], 4
          %s657 = int_to_ptr.vmem [resolvable:$true] %s656
          %662 = dma.hbm_to_vmem [thread:$0]  %s655, 8192, %s657, [#allocation9], 256, 256, 16
        $region84: #{tpu_custom_call.1} parent=11 // pred_fallthru
          _
        // Predicated region
        $region85: #{tpu_custom_call.1} parent=11 // pred_check
          %p663 = pneg %p504
        $region86: #{tpu_custom_call.1} parent=11 // pred_check_branch
          %665 = sbr.rel (%p663) target = $region88
        $region87: #{tpu_custom_call.1} parent=11 // pred_region
          %667 = vsyncadd [#allocation12], 0
          %s668 = sshll.u32 %s22, 4
          %s669 = int_to_ptr.hbm [resolvable:$true] %s668
          %s670 = sshll.u32 [#allocation11], 4
          %s671 = int_to_ptr.vmem [resolvable:$true] %s670
          %676 = dma.hbm_to_vmem [thread:$0]  %s669, 2048, %s671, [#allocation12], 256, 256, 16
        $region88: #{tpu_custom_call.1} parent=11 // pred_fallthru
          _
        // Predicated region
        $region89: #{tpu_custom_call.1} parent=11 // pred_check
          %p677 = pneg %p525
        $region90: #{tpu_custom_call.1} parent=11 // pred_check_branch
          %679 = sbr.rel (%p677) target = $region92
        $region91: #{tpu_custom_call.1} parent=11 // pred_region
          %681 = vsyncadd [#allocation12], 0
          %s682 = sshll.u32 %s23, 4
          %s683 = int_to_ptr.hbm [resolvable:$true] %s682
          %s684 = sshll.u32 [#allocation13], 4
          %s685 = int_to_ptr.vmem [resolvable:$true] %s684
          %690 = dma.hbm_to_vmem [thread:$0]  %s683, 73728, %s685, [#allocation12], 256, 256, 16
        $region92: #{tpu_custom_call.1} parent=11 // pred_fallthru
          _
        // Predicated region
        $region93: #{tpu_custom_call.1} parent=11 // pred_check
          %p691 = pneg %p546
        $region94: #{tpu_custom_call.1} parent=11 // pred_check_branch
          %693 = sbr.rel (%p691) target = $region96
        $region95: #{tpu_custom_call.1} parent=11 // pred_region
          %695 = vsyncadd [#allocation15], 0
          %s696 = sshll.u32 %s24, 4
          %s697 = int_to_ptr.hbm [resolvable:$true] %s696
          %s698 = sshll.u32 [#allocation14], 4
          %s699 = int_to_ptr.vmem [resolvable:$true] %s698
          %704 = dma.hbm_to_vmem [thread:$0]  %s697, 9216, %s699, [#allocation15], 128, 128, 8
        $region96: #{tpu_custom_call.1} parent=11 // pred_fallthru
          _
      $region12: #{tpu_custom_call.1} parent=5 // pred_fallthru
        _
      %p705 = scmp.lt.s32.totalorder %s53, 2
      // Predicated region
      $region97: #{tpu_custom_call.1} parent=5 // pred_check
        %p706 = pneg %p705
      $region98: #{tpu_custom_call.1} parent=5 // pred_check_branch
        %708 = sbr.rel (%p706) target = $region100
      $region99: #{tpu_custom_call.1} parent=5 // pred_region
        // Predicated region
        $region101: #{tpu_custom_call.1} parent=99 // pred_check
          %p709 = pneg %p73
        $region102: #{tpu_custom_call.1} parent=99 // pred_check_branch
          %711 = sbr.rel (%p709) target = $region104
        $region103: #{tpu_custom_call.1} parent=99 // pred_region
          %p712 = scmp.lt.s32.totalorder %s53, 1
          %s713 = scalar_select %p712, %s53, 1
          %s714 = smul.addr %s713, 2
          %s715 = smul.addr %s714, 4
          %s716 = scalar_lea.vmem %s2, %s715
        $region104: #{tpu_custom_call.1} parent=99 // pred_fallthru
          _
        // Predicated region
        $region105: #{tpu_custom_call.1} parent=99 // pred_check
          %p717 = pneg %p99
        $region106: #{tpu_custom_call.1} parent=99 // pred_check_branch
          %719 = sbr.rel (%p717) target = $region108
        $region107: #{tpu_custom_call.1} parent=99 // pred_region
          %s720 = sand.u32 %s89, 1
          %s721 = scalar_lea.sflag [#allocation6], %s720
          %s722 = sand.u32 %s89, 1
          %s723 = scalar_lea.vmem [#allocation5], %s722
          %725 = vsyncadd %s721, 0
          %s726 = scalar_lea.hbm %s3, %s53
          %s728 = sshll.u32 %s726, 4
          %s729 = int_to_ptr.hbm [resolvable:$true] %s728
          %s730 = sshll.u32 %s723, 4
          %s731 = int_to_ptr.vmem [resolvable:$true] %s730
          %733 = dma.hbm_to_vmem [thread:$0]  %s729, 16, %s731, %s721
        $region108: #{tpu_custom_call.1} parent=99 // pred_fallthru
          _
      $region100: #{tpu_custom_call.1} parent=5 // pred_fallthru
        _
      %p734 = scmp.le.s32.totalorder 1, %s53
      %p735 = scmp.lt.s32.totalorder %s53, 3
      %p736 = pnand %p734, %p735
      %p737 = pneg %p736
      // Predicated region
      $region109: #{tpu_custom_call.1} parent=5 // pred_check
        _
      $region110: #{tpu_custom_call.1} parent=5 // pred_check_branch
        %739 = sbr.rel (%p736) target = $region112
      $region111: #{tpu_custom_call.1} parent=5 // pred_region
        %s740 = ssub.s32 %s53, 1
        %s741 = sand.u32 %s92, 1
        %s742 = scalar_lea.sflag [#allocation6], %s741
        %s743 = sand.u32 %s92, 1
        %s744 = scalar_lea.vmem [#allocation5], %s743
        // Predicated region
        $region113: #{tpu_custom_call.1} parent=111 // pred_check
          %p745 = pneg %p105
        $region114: #{tpu_custom_call.1} parent=111 // pred_check_branch
          %747 = sbr.rel (%p745) target = $region116
        $region115: #{tpu_custom_call.1} parent=111 // pred_region
          %749 = dma.done %s742, 16
        $region116: #{tpu_custom_call.1} parent=111 // pred_fallthru
          _
        // Predicated region
        $region117: #{tpu_custom_call.1} parent=111 // pred_check
          %p750 = pneg %p315
        $region118: #{tpu_custom_call.1} parent=111 // pred_check_branch
          %752 = sbr.rel (%p750) target = $region120
        $region119: #{tpu_custom_call.1} parent=111 // pred_region
          %754 = dma.done [#allocation9], 1152
        $region120: #{tpu_custom_call.1} parent=111 // pred_fallthru
          _
        // Predicated region
        $region121: #{tpu_custom_call.1} parent=111 // pred_check
          %p755 = pneg %p483
        $region122: #{tpu_custom_call.1} parent=111 // pred_check_branch
          %757 = sbr.rel (%p755) target = $region124
        $region123: #{tpu_custom_call.1} parent=111 // pred_region
          %759 = dma.done [#allocation9], 8192
        $region124: #{tpu_custom_call.1} parent=111 // pred_fallthru
          _
        // Predicated region
        $region125: #{tpu_custom_call.1} parent=111 // pred_check
          %p760 = pneg %p504
        $region126: #{tpu_custom_call.1} parent=111 // pred_check_branch
          %762 = sbr.rel (%p760) target = $region128
        $region127: #{tpu_custom_call.1} parent=111 // pred_region
          %764 = dma.done [#allocation12], 2048
        $region128: #{tpu_custom_call.1} parent=111 // pred_fallthru
          _
        // Predicated region
        $region129: #{tpu_custom_call.1} parent=111 // pred_check
          %p765 = pneg %p525
        $region130: #{tpu_custom_call.1} parent=111 // pred_check_branch
          %767 = sbr.rel (%p765) target = $region132
        $region131: #{tpu_custom_call.1} parent=111 // pred_region
          %769 = dma.done [#allocation12], 73728
        $region132: #{tpu_custom_call.1} parent=111 // pred_fallthru
          _
        // Predicated region
        $region133: #{tpu_custom_call.1} parent=111 // pred_check
          %p770 = pneg %p546
        $region134: #{tpu_custom_call.1} parent=111 // pred_check_branch
          %772 = sbr.rel (%p770) target = $region136
        $region135: #{tpu_custom_call.1} parent=111 // pred_region
          %774 = dma.done [#allocation15], 9216
        $region136: #{tpu_custom_call.1} parent=111 // pred_fallthru
          _
        %p775 = scmp.lt.s32.totalorder %s58, 1
        %s776 = scalar_select %p775, %s58, 1
        %s777 = smul.addr %s776, 2
        %s778 = smul.addr %s777, 4
        %s779 = scalar_lea.vmem %s2, %s778
        %p780 = pneg %p79
        %p781 = pneg %p76
        %s782 = sand.u32 %s92, 1
        %s783 = scalar_lea.sflag [#allocation6], %s782
        %s784 = sand.u32 %s92, 1
        %s785 = scalar_lea.vmem [#allocation5], %s784
        %p786 = pneg %p105
        %p787 = pneg %p102
        %p788 = pneg %p126
        %p789 = pneg %p123
        %p790 = pneg %p147
        %p791 = pneg %p144
        %p792 = pneg %p168
        %p793 = pneg %p165
        %p794 = pneg %p189
        %p795 = pneg %p186
        %p796 = pneg %p210
        %p797 = pneg %p207
        %p798 = pneg %p231
        %p799 = pneg %p228
        %p800 = pneg %p252
        %p801 = pneg %p249
        %p802 = pneg %p273
        %p803 = pneg %p270
        %p804 = pneg %p294
        %p805 = pneg %p291
        %p806 = pneg %p315
        %p807 = pneg %p312
        %p808 = pneg %p336
        %p809 = pneg %p333
        %p810 = pneg %p357
        %p811 = pneg %p354
        %p812 = pneg %p378
        %p813 = pneg %p375
        %p814 = pneg %p399
        %p815 = pneg %p396
        %p816 = pneg %p420
        %p817 = pneg %p417
        %p818 = pneg %p441
        %p819 = pneg %p438
        %p820 = pneg %p462
        %p821 = pneg %p459
        %p822 = pneg %p483
        %p823 = pneg %p480
        %p824 = pneg %p504
        %p825 = pneg %p501
        %p826 = pneg %p525
        %p827 = pneg %p522
        %p828 = pneg %p546
        %p829 = pneg %p543
        %p830 = pneg %p572
        %p831 = pneg %p569
        %s832 = sand.u32 %s559, 1
        %s833 = scalar_lea.sflag [#allocation7], %s832
        %s834 = sand.u32 %s559, 1
        %s835 = smul.addr %s834, 2
        %s836 = scalar_lea.vmem [#allocation16], %s835
        %p837 = scmp.lt.s32.totalorder %s58, 1
        %s838 = scalar_select %p837, %s58, 1
        %s839 = smul.addr %s838, 2
        %s840 = smul.addr %s839, 4
        %s841 = scalar_lea.vmem %s2, %s840
        %s842 = sld [smem:[#allocation3 + %s58]]
        %s843 = sld [smem:[#allocation4 + %s58]]
        %s844 = ssub.f32 %s843, %s842
        %v845 = vld [vmem:[%s744] sm:$0x1]
        %v846 = vstv %s842
        %v847 = vsub.f32 %v845, %v846
        %v848 = vstv %s844
        %v849 = vrcp.pop %v848
        %v850 = vmul.f32 %v848, %v849
        %v851 = vsub.f32 1.0, %v850
        %v852 = vmul.f32 %v849, %v851
        %v853 = vadd.f32 %v849, %v852
        %vm854 = vweird.f32 %v848
        %vm855 = vweird.f32 %v849
        %vm856 = vmor %vm854, %vm855
        %v857 = vsel %vm856, %v849, %v853
        %v858 = vand.u32 2147483647, %v848
        %vm859 = vcmp.eq.f32.partialorder %v858, 8.507059e+37
        %v860 = vand.u32 %v848, 2147483648
        %v861 = vor.u32 1.1754944e-38, %v860
        %v862 = vsel %vm859, %v861, %v857
        %v863 = vmul.f32 %v847, %v862
        %v864 = vld [vmem:[%s841] sm:$0x77]
        %v865 = vld [vmem:[#allocation13] sm:$0xff]
        %v866 = vld [vmem:[#allocation13 + $0x8] sm:$0xff]
        %v867 = vld [vmem:[#allocation13 + $0x10] sm:$0xff]
        %v868 = vld [vmem:[#allocation13 + $0x18] sm:$0xff]
        %v869 = vld [vmem:[#allocation13 + $0x20] sm:$0xff]
        %v870 = vld [vmem:[#allocation13 + $0x28] sm:$0xff]
        %v871 = vld [vmem:[#allocation13 + $0x30] sm:$0xff]
        %v872 = vld [vmem:[#allocation13 + $0x38] sm:$0xff]
        %v873 = vld [vmem:[#allocation13 + $0x40] sm:$0xff]
        %v874 = vld [vmem:[#allocation13 + $0x48] sm:$0xff]
        %v875 = vld [vmem:[#allocation13 + $0x50] sm:$0xff]
        %v876 = vld [vmem:[#allocation13 + $0x58] sm:$0xff]
        %v877 = vld [vmem:[#allocation13 + $0x60] sm:$0xff]
        %v878 = vld [vmem:[#allocation13 + $0x68] sm:$0xff]
        %v879 = vld [vmem:[#allocation13 + $0x70] sm:$0xff]
        %v880 = vld [vmem:[#allocation13 + $0x78] sm:$0xff]
        %v881 = vld [vmem:[#allocation13 + $0x80] sm:$0xff]
        %v882 = vld [vmem:[#allocation13 + $0x88] sm:$0xff]
        %v883 = vld [vmem:[#allocation13 + $0x90] sm:$0xff]
        %v884 = vld [vmem:[#allocation13 + $0x98] sm:$0xff]
        %v885 = vld [vmem:[#allocation13 + $0xa0] sm:$0xff]
        %v886 = vld [vmem:[#allocation13 + $0xa8] sm:$0xff]
        %v887 = vld [vmem:[#allocation13 + $0xb0] sm:$0xff]
        %v888 = vld [vmem:[#allocation13 + $0xb8] sm:$0xff]
        %v889 = vld [vmem:[#allocation13 + $0xc0] sm:$0xff]
        %v890 = vld [vmem:[#allocation13 + $0xc8] sm:$0xff]
        %v891 = vld [vmem:[#allocation13 + $0xd0] sm:$0xff]
        %v892 = vld [vmem:[#allocation13 + $0xd8] sm:$0xff]
        %v893 = vld [vmem:[#allocation13 + $0xe0] sm:$0xff]
        %v894 = vld [vmem:[#allocation13 + $0xe8] sm:$0xff]
        %v895 = vld [vmem:[#allocation13 + $0xf0] sm:$0xff]
        %v896 = vld [vmem:[#allocation13 + $0xf8] sm:$0xff]
        %v897 = vld [vmem:[#allocation13 + $0x100] sm:$0xff]
        %v898 = vld [vmem:[#allocation13 + $0x108] sm:$0xff]
        %v899 = vld [vmem:[#allocation13 + $0x110] sm:$0xff]
        %v900 = vld [vmem:[#allocation13 + $0x118] sm:$0xff]
        %v901 = vld [vmem:[#allocation13 + $0x120] sm:$0xff]
        %v902 = vld [vmem:[#allocation13 + $0x128] sm:$0xff]
        %v903 = vld [vmem:[#allocation13 + $0x130] sm:$0xff]
        %v904 = vld [vmem:[#allocation13 + $0x138] sm:$0xff]
        %v905 = vld [vmem:[#allocation13 + $0x140] sm:$0xff]
        %v906 = vld [vmem:[#allocation13 + $0x148] sm:$0xff]
        %v907 = vld [vmem:[#allocation13 + $0x150] sm:$0xff]
        %v908 = vld [vmem:[#allocation13 + $0x158] sm:$0xff]
        %v909 = vld [vmem:[#allocation13 + $0x160] sm:$0xff]
        %v910 = vld [vmem:[#allocation13 + $0x168] sm:$0xff]
        %v911 = vld [vmem:[#allocation13 + $0x170] sm:$0xff]
        %v912 = vld [vmem:[#allocation13 + $0x178] sm:$0xff]
        %v913 = vld [vmem:[#allocation13 + $0x180] sm:$0xff]
        %v914 = vld [vmem:[#allocation13 + $0x188] sm:$0xff]
        %v915 = vld [vmem:[#allocation13 + $0x190] sm:$0xff]
        %v916 = vld [vmem:[#allocation13 + $0x198] sm:$0xff]
        %v917 = vld [vmem:[#allocation13 + $0x1a0] sm:$0xff]
        %v918 = vld [vmem:[#allocation13 + $0x1a8] sm:$0xff]
        %v919 = vld [vmem:[#allocation13 + $0x1b0] sm:$0xff]
        %v920 = vld [vmem:[#allocation13 + $0x1b8] sm:$0xff]
        %v921 = vld [vmem:[#allocation13 + $0x1c0] sm:$0xff]
        %v922 = vld [vmem:[#allocation13 + $0x1c8] sm:$0xff]
        %v923 = vld [vmem:[#allocation13 + $0x1d0] sm:$0xff]
        %v924 = vld [vmem:[#allocation13 + $0x1d8] sm:$0xff]
        %v925 = vld [vmem:[#allocation13 + $0x1e0] sm:$0xff]
        %v926 = vld [vmem:[#allocation13 + $0x1e8] sm:$0xff]
        %v927 = vld [vmem:[#allocation13 + $0x1f0] sm:$0xff]
        %v928 = vld [vmem:[#allocation13 + $0x1f8] sm:$0xff]
        %930 = vst [vmem:[#allocation1] ss:$2 sm:$0xff] %v864
        %v931 = vld.sshfl [vmem:[#allocation1] sm:$0xff pattern:$0x75316420]
        %v932 = vld.sshfl [vmem:[#allocation1 + $0x8] sm:$0xff pattern:$0x75316420]
        %935 = vmatpush.msra.mxu0 %v895
        %936 = vmatpush.msra.mxu0 %v893
        %937 = vmatpush.msra.mxu0 %v891
        %938 = vmatpush.msra.mxu0 %v889
        %939 = vmatpush.msra.mxu0 %v887
        %940 = vmatpush.msra.mxu0 %v885
        %941 = vmatpush.msra.mxu0 %v883
        %942 = vmatpush.msra.mxu0 %v881
        %943 = vmatpush.msra.mxu0 %v879
        %944 = vmatpush.msra.mxu0 %v877
        %945 = vmatpush.msra.mxu0 %v875
        %946 = vmatpush.msra.mxu0 %v873
        %947 = vmatpush.msra.mxu0 %v871
        %948 = vmatpush.msra.mxu0 %v869
        %949 = vmatpush.msra.mxu0 %v867
        %950 = vmatpush.msra.mxu0 %v865
        %951 = vmatmul.f32.gmra.mxu0 %v931
        %v952 = vpop.f32.mrf.mxu0
        %v953 = vadd.f32 0.0, %v952
        %954 = vdwg.mxu0
        %955 = vmatpush.msra.mxu0 %v927
        %956 = vmatpush.msra.mxu0 %v925
        %957 = vmatpush.msra.mxu0 %v923
        %958 = vmatpush.msra.mxu0 %v921
        %959 = vmatpush.msra.mxu0 %v919
        %960 = vmatpush.msra.mxu0 %v917
        %961 = vmatpush.msra.mxu0 %v915
        %962 = vmatpush.msra.mxu0 %v913
        %963 = vmatpush.msra.mxu0 %v911
        %964 = vmatpush.msra.mxu0 %v909
        %965 = vmatpush.msra.mxu0 %v907
        %966 = vmatpush.msra.mxu0 %v905
        %967 = vmatpush.msra.mxu0 %v903
        %968 = vmatpush.msra.mxu0 %v901
        %969 = vmatpush.msra.mxu0 %v899
        %970 = vmatpush.msra.mxu0 %v897
        %971 = vmatmul.f32.gmra.mxu0 %v932
        %v972 = vpop.f32.mrf.mxu0
        %v973 = vadd.f32 %v953, %v972
        %974 = vdwg.mxu0
        %975 = vmatpush.msra.mxu0 %v896
        %976 = vmatpush.msra.mxu0 %v894
        %977 = vmatpush.msra.mxu0 %v892
        %978 = vmatpush.msra.mxu0 %v890
        %979 = vmatpush.msra.mxu0 %v888
        %980 = vmatpush.msra.mxu0 %v886
        %981 = vmatpush.msra.mxu0 %v884
        %982 = vmatpush.msra.mxu0 %v882
        %983 = vmatpush.msra.mxu0 %v880
        %984 = vmatpush.msra.mxu0 %v878
        %985 = vmatpush.msra.mxu0 %v876
        %986 = vmatpush.msra.mxu0 %v874
        %987 = vmatpush.msra.mxu0 %v872
        %988 = vmatpush.msra.mxu0 %v870
        %989 = vmatpush.msra.mxu0 %v868
        %990 = vmatpush.msra.mxu0 %v866
        %991 = vmatmul.f32.gmra.mxu0 %v931
        %v992 = vpop.f32.mrf.mxu0
        %v993 = vadd.f32 0.0, %v992
        %994 = vdwg.mxu0
        %995 = vmatpush.msra.mxu0 %v928
        %996 = vmatpush.msra.mxu0 %v926
        %997 = vmatpush.msra.mxu0 %v924
        %998 = vmatpush.msra.mxu0 %v922
        %999 = vmatpush.msra.mxu0 %v920
        %1000 = vmatpush.msra.mxu0 %v918
        %1001 = vmatpush.msra.mxu0 %v916
        %1002 = vmatpush.msra.mxu0 %v914
        %1003 = vmatpush.msra.mxu0 %v912
        %1004 = vmatpush.msra.mxu0 %v910
        %1005 = vmatpush.msra.mxu0 %v908
        %1006 = vmatpush.msra.mxu0 %v906
        %1007 = vmatpush.msra.mxu0 %v904
        %1008 = vmatpush.msra.mxu0 %v902
        %1009 = vmatpush.msra.mxu0 %v900
        %1010 = vmatpush.msra.mxu0 %v898
        %1011 = vmatmul.f32.gmra.mxu0 %v932
        %v1012 = vpop.f32.mrf.mxu0
        %v1013 = vadd.f32 %v993, %v1012
        %1014 = vdwg.mxu0
        %v1015 = vld [vmem:[%s4] sm:$0xff]
        %s1016 = scalar_lea.vmem [#allocation13], 512
        %v1017 = vld [vmem:[%s1016] sm:$0xff]
        %v1018 = vld [vmem:[%s1016 + $0x8] sm:$0xff]
        %v1019 = vld [vmem:[%s1016 + $0x10] sm:$0xff]
        %v1020 = vld [vmem:[%s1016 + $0x18] sm:$0xff]
        %v1021 = vld [vmem:[%s1016 + $0x20] sm:$0xff]
        %v1022 = vld [vmem:[%s1016 + $0x28] sm:$0xff]
        %v1023 = vld [vmem:[%s1016 + $0x30] sm:$0xff]
        %v1024 = vld [vmem:[%s1016 + $0x38] sm:$0xff]
        %v1025 = vld [vmem:[%s1016 + $0x40] sm:$0xff]
        %v1026 = vld [vmem:[%s1016 + $0x48] sm:$0xff]
        %v1027 = vld [vmem:[%s1016 + $0x50] sm:$0xff]
        %v1028 = vld [vmem:[%s1016 + $0x58] sm:$0xff]
        %v1029 = vld [vmem:[%s1016 + $0x60] sm:$0xff]
        %v1030 = vld [vmem:[%s1016 + $0x68] sm:$0xff]
        %v1031 = vld [vmem:[%s1016 + $0x70] sm:$0xff]
        %v1032 = vld [vmem:[%s1016 + $0x78] sm:$0xff]
        %v1033 = vld [vmem:[%s1016 + $0x80] sm:$0xff]
        %v1034 = vld [vmem:[%s1016 + $0x88] sm:$0xff]
        %v1035 = vld [vmem:[%s1016 + $0x90] sm:$0xff]
        %v1036 = vld [vmem:[%s1016 + $0x98] sm:$0xff]
        %v1037 = vld [vmem:[%s1016 + $0xa0] sm:$0xff]
        %v1038 = vld [vmem:[%s1016 + $0xa8] sm:$0xff]
        %v1039 = vld [vmem:[%s1016 + $0xb0] sm:$0xff]
        %v1040 = vld [vmem:[%s1016 + $0xb8] sm:$0xff]
        %v1041 = vld [vmem:[%s1016 + $0xc0] sm:$0xff]
        %v1042 = vld [vmem:[%s1016 + $0xc8] sm:$0xff]
        %v1043 = vld [vmem:[%s1016 + $0xd0] sm:$0xff]
        %v1044 = vld [vmem:[%s1016 + $0xd8] sm:$0xff]
        %v1045 = vld [vmem:[%s1016 + $0xe0] sm:$0xff]
        %v1046 = vld [vmem:[%s1016 + $0xe8] sm:$0xff]
        %v1047 = vld [vmem:[%s1016 + $0xf0] sm:$0xff]
        %v1048 = vld [vmem:[%s1016 + $0xf8] sm:$0xff]
        %v1049 = vld [vmem:[%s1016 + $0x100] sm:$0xff]
        %v1050 = vld [vmem:[%s1016 + $0x108] sm:$0xff]
        %v1051 = vld [vmem:[%s1016 + $0x110] sm:$0xff]
        %v1052 = vld [vmem:[%s1016 + $0x118] sm:$0xff]
        %v1053 = vld [vmem:[%s1016 + $0x120] sm:$0xff]
        %v1054 = vld [vmem:[%s1016 + $0x128] sm:$0xff]
        %v1055 = vld [vmem:[%s1016 + $0x130] sm:$0xff]
        %v1056 = vld [vmem:[%s1016 + $0x138] sm:$0xff]
        %v1057 = vld [vmem:[%s1016 + $0x140] sm:$0xff]
        %v1058 = vld [vmem:[%s1016 + $0x148] sm:$0xff]
        %v1059 = vld [vmem:[%s1016 + $0x150] sm:$0xff]
        %v1060 = vld [vmem:[%s1016 + $0x158] sm:$0xff]
        %v1061 = vld [vmem:[%s1016 + $0x160] sm:$0xff]
        %v1062 = vld [vmem:[%s1016 + $0x168] sm:$0xff]
        %v1063 = vld [vmem:[%s1016 + $0x170] sm:$0xff]
        %v1064 = vld [vmem:[%s1016 + $0x178] sm:$0xff]
        %v1065 = vld [vmem:[%s1016 + $0x180] sm:$0xff]
        %v1066 = vld [vmem:[%s1016 + $0x188] sm:$0xff]
        %v1067 = vld [vmem:[%s1016 + $0x190] sm:$0xff]
        %v1068 = vld [vmem:[%s1016 + $0x198] sm:$0xff]
        %v1069 = vld [vmem:[%s1016 + $0x1a0] sm:$0xff]
        %v1070 = vld [vmem:[%s1016 + $0x1a8] sm:$0xff]
        %v1071 = vld [vmem:[%s1016 + $0x1b0] sm:$0xff]
        %v1072 = vld [vmem:[%s1016 + $0x1b8] sm:$0xff]
        %v1073 = vld [vmem:[%s1016 + $0x1c0] sm:$0xff]
        %v1074 = vld [vmem:[%s1016 + $0x1c8] sm:$0xff]
        %v1075 = vld [vmem:[%s1016 + $0x1d0] sm:$0xff]
        %v1076 = vld [vmem:[%s1016 + $0x1d8] sm:$0xff]
        %v1077 = vld [vmem:[%s1016 + $0x1e0] sm:$0xff]
        %v1078 = vld [vmem:[%s1016 + $0x1e8] sm:$0xff]
        %v1079 = vld [vmem:[%s1016 + $0x1f0] sm:$0xff]
        %v1080 = vld [vmem:[%s1016 + $0x1f8] sm:$0xff]
        %1081 = vst [vmem:[#allocation1] ss:$2 sm:$0xff] %v864
        %v1082 = vld.sshfl [vmem:[#allocation1] sm:$0xff pattern:$0x75316420]
        %v1083 = vld.sshfl [vmem:[#allocation1 + $0x8] sm:$0xff pattern:$0x75316420]
        %1086 = vmatpush.msra.mxu0 %v1047
        %1087 = vmatpush.msra.mxu0 %v1045
        %1088 = vmatpush.msra.mxu0 %v1043
        %1089 = vmatpush.msra.mxu0 %v1041
        %1090 = vmatpush.msra.mxu0 %v1039
        %1091 = vmatpush.msra.mxu0 %v1037
        %1092 = vmatpush.msra.mxu0 %v1035
        %1093 = vmatpush.msra.mxu0 %v1033
        %1094 = vmatpush.msra.mxu0 %v1031
        %1095 = vmatpush.msra.mxu0 %v1029
        %1096 = vmatpush.msra.mxu0 %v1027
        %1097 = vmatpush.msra.mxu0 %v1025
        %1098 = vmatpush.msra.mxu0 %v1023
        %1099 = vmatpush.msra.mxu0 %v1021
        %1100 = vmatpush.msra.mxu0 %v1019
        %1101 = vmatpush.msra.mxu0 %v1017
        %1102 = vmatmul.f32.gmra.mxu0 %v1082
        %v1103 = vpop.f32.mrf.mxu0
        %v1104 = vadd.f32 0.0, %v1103
        %1105 = vdwg.mxu0
        %1106 = vmatpush.msra.mxu0 %v1079
        %1107 = vmatpush.msra.mxu0 %v1077
        %1108 = vmatpush.msra.mxu0 %v1075
        %1109 = vmatpush.msra.mxu0 %v1073
        %1110 = vmatpush.msra.mxu0 %v1071
        %1111 = vmatpush.msra.mxu0 %v1069
        %1112 = vmatpush.msra.mxu0 %v1067
        %1113 = vmatpush.msra.mxu0 %v1065
        %1114 = vmatpush.msra.mxu0 %v1063
        %1115 = vmatpush.msra.mxu0 %v1061
        %1116 = vmatpush.msra.mxu0 %v1059
        %1117 = vmatpush.msra.mxu0 %v1057
        %1118 = vmatpush.msra.mxu0 %v1055
        %1119 = vmatpush.msra.mxu0 %v1053
        %1120 = vmatpush.msra.mxu0 %v1051
        %1121 = vmatpush.msra.mxu0 %v1049
        %1122 = vmatmul.f32.gmra.mxu0 %v1083
        %v1123 = vpop.f32.mrf.mxu0
        %v1124 = vadd.f32 %v1104, %v1123
        %1125 = vdwg.mxu0
        %1126 = vmatpush.msra.mxu0 %v1048
        %1127 = vmatpush.msra.mxu0 %v1046
        %1128 = vmatpush.msra.mxu0 %v1044
        %1129 = vmatpush.msra.mxu0 %v1042
        %1130 = vmatpush.msra.mxu0 %v1040
        %1131 = vmatpush.msra.mxu0 %v1038
        %1132 = vmatpush.msra.mxu0 %v1036
        %1133 = vmatpush.msra.mxu0 %v1034
        %1134 = vmatpush.msra.mxu0 %v1032
        %1135 = vmatpush.msra.mxu0 %v1030
        %1136 = vmatpush.msra.mxu0 %v1028
        %1137 = vmatpush.msra.mxu0 %v1026
        %1138 = vmatpush.msra.mxu0 %v1024
        %1139 = vmatpush.msra.mxu0 %v1022
        %1140 = vmatpush.msra.mxu0 %v1020
        %1141 = vmatpush.msra.mxu0 %v1018
        %1142 = vmatmul.f32.gmra.mxu0 %v1082
        %v1143 = vpop.f32.mrf.mxu0
        %v1144 = vadd.f32 0.0, %v1143
        %1145 = vdwg.mxu0
        %1146 = vmatpush.msra.mxu0 %v1080
        %1147 = vmatpush.msra.mxu0 %v1078
        %1148 = vmatpush.msra.mxu0 %v1076
        %1149 = vmatpush.msra.mxu0 %v1074
        %1150 = vmatpush.msra.mxu0 %v1072
        %1151 = vmatpush.msra.mxu0 %v1070
        %1152 = vmatpush.msra.mxu0 %v1068
        %1153 = vmatpush.msra.mxu0 %v1066
        %1154 = vmatpush.msra.mxu0 %v1064
        %1155 = vmatpush.msra.mxu0 %v1062
        %1156 = vmatpush.msra.mxu0 %v1060
        %1157 = vmatpush.msra.mxu0 %v1058
        %1158 = vmatpush.msra.mxu0 %v1056
        %1159 = vmatpush.msra.mxu0 %v1054
        %1160 = vmatpush.msra.mxu0 %v1052
        %1161 = vmatpush.msra.mxu0 %v1050
        %1162 = vmatmul.f32.gmra.mxu0 %v1083
        %v1163 = vpop.f32.mrf.mxu0
        %v1164 = vadd.f32 %v1144, %v1163
        %1165 = vdwg.mxu0
        %s1166 = scalar_lea.vmem %s4, 8
        %v1167 = vld [vmem:[%s1166] sm:$0xff]
        %vm1168 = vcmask 23552
        %v1170 = vsel %vm1168, %v1167, 0
        %vm1172 = vcmask 1042432
        %v1174 = vsel %vm1172, %v1124, 0
        %v1177 = vsel %vm1172, %v1164, 0
        %1179 = vmatpush.msra.mxu0 0.0
        %1180 = vmatpush.msra.mxu0 0.0
        %1181 = vmatpush.msra.mxu0 0.0
        %1182 = vmatpush.msra.mxu0 0.0
        %1183 = vmatpush.msra.mxu0 0.0
        %1184 = vmatpush.msra.mxu0 0.0
        %1185 = vmatpush.msra.mxu0 0.0
        %1186 = vmatpush.msra.mxu0 0.0
        %1187 = vmatpush.msra.mxu0 0.0
        %1188 = vmatpush.msra.mxu0 0.0
        %1189 = vmatpush.msra.mxu0 0.0
        %1190 = vmatpush.msra.mxu0 0.0
        %1191 = vmatpush.msra.mxu0 0.0
        %1192 = vmatpush.msra.mxu0 0.0
        %1193 = vmatpush.msra.mxu0 0.0
        %1194 = vmatpush.msra.mxu0 %v1174
        %1195 = vmatmul.f32.gmra.mxu0 %v1170
        %v1196 = vpop.f32.mrf.mxu0
        %v1197 = vadd.f32 0.0, %v1196
        %1198 = vdwg.mxu0
        %1199 = vmatpush.msra.mxu0 0.0
        %1200 = vmatpush.msra.mxu0 0.0
        %1201 = vmatpush.msra.mxu0 0.0
        %1202 = vmatpush.msra.mxu0 0.0
        %1203 = vmatpush.msra.mxu0 0.0
        %1204 = vmatpush.msra.mxu0 0.0
        %1205 = vmatpush.msra.mxu0 0.0
        %1206 = vmatpush.msra.mxu0 0.0
        %1207 = vmatpush.msra.mxu0 0.0
        %1208 = vmatpush.msra.mxu0 0.0
        %1209 = vmatpush.msra.mxu0 0.0
        %1210 = vmatpush.msra.mxu0 0.0
        %1211 = vmatpush.msra.mxu0 0.0
        %1212 = vmatpush.msra.mxu0 0.0
        %1213 = vmatpush.msra.mxu0 0.0
        %1214 = vmatpush.msra.mxu0 %v1177
        %1215 = vmatmul.f32.gmra.mxu0 %v1170
        %v1216 = vpop.f32.mrf.mxu0
        %v1217 = vadd.f32 0.0, %v1216
        %1218 = vdwg.mxu0
        %v1220 = vsel %vm1168, %v1015, 0
        %v1223 = vsel %vm1172, %v973, 0
        %v1226 = vsel %vm1172, %v1013, 0
        %1228 = vmatpush.msra.mxu0 0.0
        %1229 = vmatpush.msra.mxu0 0.0
        %1230 = vmatpush.msra.mxu0 0.0
        %1231 = vmatpush.msra.mxu0 0.0
        %1232 = vmatpush.msra.mxu0 0.0
        %1233 = vmatpush.msra.mxu0 0.0
        %1234 = vmatpush.msra.mxu0 0.0
        %1235 = vmatpush.msra.mxu0 0.0
        %1236 = vmatpush.msra.mxu0 0.0
        %1237 = vmatpush.msra.mxu0 0.0
        %1238 = vmatpush.msra.mxu0 0.0
        %1239 = vmatpush.msra.mxu0 0.0
        %1240 = vmatpush.msra.mxu0 0.0
        %1241 = vmatpush.msra.mxu0 0.0
        %1242 = vmatpush.msra.mxu0 0.0
        %1243 = vmatpush.msra.mxu0 %v1223
        %1244 = vmatmul.f32.gmra.mxu0 %v1220
        %v1245 = vpop.f32.mrf.mxu0
        %v1246 = vadd.f32 %v1197, %v1245
        %1247 = vdwg.mxu0
        %1248 = vmatpush.msra.mxu0 0.0
        %1249 = vmatpush.msra.mxu0 0.0
        %1250 = vmatpush.msra.mxu0 0.0
        %1251 = vmatpush.msra.mxu0 0.0
        %1252 = vmatpush.msra.mxu0 0.0
        %1253 = vmatpush.msra.mxu0 0.0
        %1254 = vmatpush.msra.mxu0 0.0
        %1255 = vmatpush.msra.mxu0 0.0
        %1256 = vmatpush.msra.mxu0 0.0
        %1257 = vmatpush.msra.mxu0 0.0
        %1258 = vmatpush.msra.mxu0 0.0
        %1259 = vmatpush.msra.mxu0 0.0
        %1260 = vmatpush.msra.mxu0 0.0
        %1261 = vmatpush.msra.mxu0 0.0
        %1262 = vmatpush.msra.mxu0 0.0
        %1263 = vmatpush.msra.mxu0 %v1226
        %1264 = vmatmul.f32.gmra.mxu0 %v1220
        %v1265 = vpop.f32.mrf.mxu0
        %v1266 = vadd.f32 %v1217, %v1265
        %1267 = vdwg.mxu0
        %s1268 = scalar_lea.vmem [#allocation13], 1024
        %v1269 = vld [vmem:[%s1268] sm:$0xff]
        %v1270 = vld [vmem:[%s1268 + $0x8] sm:$0xff]
        %v1271 = vld [vmem:[%s1268 + $0x10] sm:$0xff]
        %v1272 = vld [vmem:[%s1268 + $0x18] sm:$0xff]
        %v1273 = vld [vmem:[%s1268 + $0x20] sm:$0xff]
        %v1274 = vld [vmem:[%s1268 + $0x28] sm:$0xff]
        %v1275 = vld [vmem:[%s1268 + $0x30] sm:$0xff]
        %v1276 = vld [vmem:[%s1268 + $0x38] sm:$0xff]
        %v1277 = vld [vmem:[%s1268 + $0x40] sm:$0xff]
        %v1278 = vld [vmem:[%s1268 + $0x48] sm:$0xff]
        %v1279 = vld [vmem:[%s1268 + $0x50] sm:$0xff]
        %v1280 = vld [vmem:[%s1268 + $0x58] sm:$0xff]
        %v1281 = vld [vmem:[%s1268 + $0x60] sm:$0xff]
        %v1282 = vld [vmem:[%s1268 + $0x68] sm:$0xff]
        %v1283 = vld [vmem:[%s1268 + $0x70] sm:$0xff]
        %v1284 = vld [vmem:[%s1268 + $0x78] sm:$0xff]
        %v1285 = vld [vmem:[%s1268 + $0x80] sm:$0xff]
        %v1286 = vld [vmem:[%s1268 + $0x88] sm:$0xff]
        %v1287 = vld [vmem:[%s1268 + $0x90] sm:$0xff]
        %v1288 = vld [vmem:[%s1268 + $0x98] sm:$0xff]
        %v1289 = vld [vmem:[%s1268 + $0xa0] sm:$0xff]
        %v1290 = vld [vmem:[%s1268 + $0xa8] sm:$0xff]
        %v1291 = vld [vmem:[%s1268 + $0xb0] sm:$0xff]
        %v1292 = vld [vmem:[%s1268 + $0xb8] sm:$0xff]
        %v1293 = vld [vmem:[%s1268 + $0xc0] sm:$0xff]
        %v1294 = vld [vmem:[%s1268 + $0xc8] sm:$0xff]
        %v1295 = vld [vmem:[%s1268 + $0xd0] sm:$0xff]
        %v1296 = vld [vmem:[%s1268 + $0xd8] sm:$0xff]
        %v1297 = vld [vmem:[%s1268 + $0xe0] sm:$0xff]
        %v1298 = vld [vmem:[%s1268 + $0xe8] sm:$0xff]
        %v1299 = vld [vmem:[%s1268 + $0xf0] sm:$0xff]
        %v1300 = vld [vmem:[%s1268 + $0xf8] sm:$0xff]
        %v1301 = vld [vmem:[%s1268 + $0x100] sm:$0xff]
        %v1302 = vld [vmem:[%s1268 + $0x108] sm:$0xff]
        %v1303 = vld [vmem:[%s1268 + $0x110] sm:$0xff]
        %v1304 = vld [vmem:[%s1268 + $0x118] sm:$0xff]
        %v1305 = vld [vmem:[%s1268 + $0x120] sm:$0xff]
        %v1306 = vld [vmem:[%s1268 + $0x128] sm:$0xff]
        %v1307 = vld [vmem:[%s1268 + $0x130] sm:$0xff]
        %v1308 = vld [vmem:[%s1268 + $0x138] sm:$0xff]
        %v1309 = vld [vmem:[%s1268 + $0x140] sm:$0xff]
        %v1310 = vld [vmem:[%s1268 + $0x148] sm:$0xff]
        %v1311 = vld [vmem:[%s1268 + $0x150] sm:$0xff]
        %v1312 = vld [vmem:[%s1268 + $0x158] sm:$0xff]
        %v1313 = vld [vmem:[%s1268 + $0x160] sm:$0xff]
        %v1314 = vld [vmem:[%s1268 + $0x168] sm:$0xff]
        %v1315 = vld [vmem:[%s1268 + $0x170] sm:$0xff]
        %v1316 = vld [vmem:[%s1268 + $0x178] sm:$0xff]
        %v1317 = vld [vmem:[%s1268 + $0x180] sm:$0xff]
        %v1318 = vld [vmem:[%s1268 + $0x188] sm:$0xff]
        %v1319 = vld [vmem:[%s1268 + $0x190] sm:$0xff]
        %v1320 = vld [vmem:[%s1268 + $0x198] sm:$0xff]
        %v1321 = vld [vmem:[%s1268 + $0x1a0] sm:$0xff]
        %v1322 = vld [vmem:[%s1268 + $0x1a8] sm:$0xff]
        %v1323 = vld [vmem:[%s1268 + $0x1b0] sm:$0xff]
        %v1324 = vld [vmem:[%s1268 + $0x1b8] sm:$0xff]
        %v1325 = vld [vmem:[%s1268 + $0x1c0] sm:$0xff]
        %v1326 = vld [vmem:[%s1268 + $0x1c8] sm:$0xff]
        %v1327 = vld [vmem:[%s1268 + $0x1d0] sm:$0xff]
        %v1328 = vld [vmem:[%s1268 + $0x1d8] sm:$0xff]
        %v1329 = vld [vmem:[%s1268 + $0x1e0] sm:$0xff]
        %v1330 = vld [vmem:[%s1268 + $0x1e8] sm:$0xff]
        %v1331 = vld [vmem:[%s1268 + $0x1f0] sm:$0xff]
        %v1332 = vld [vmem:[%s1268 + $0x1f8] sm:$0xff]
        %1333 = vst [vmem:[#allocation1] ss:$2 sm:$0xff] %v864
        %v1334 = vld.sshfl [vmem:[#allocation1] sm:$0xff pattern:$0x75316420]
        %v1335 = vld.sshfl [vmem:[#allocation1 + $0x8] sm:$0xff pattern:$0x75316420]
        %1338 = vmatpush.msra.mxu0 %v1299
        %1339 = vmatpush.msra.mxu0 %v1297
        %1340 = vmatpush.msra.mxu0 %v1295
        %1341 = vmatpush.msra.mxu0 %v1293
        %1342 = vmatpush.msra.mxu0 %v1291
        %1343 = vmatpush.msra.mxu0 %v1289
        %1344 = vmatpush.msra.mxu0 %v1287
        %1345 = vmatpush.msra.mxu0 %v1285
        %1346 = vmatpush.msra.mxu0 %v1283
        %1347 = vmatpush.msra.mxu0 %v1281
        %1348 = vmatpush.msra.mxu0 %v1279
        %1349 = vmatpush.msra.mxu0 %v1277
        %1350 = vmatpush.msra.mxu0 %v1275
        %1351 = vmatpush.msra.mxu0 %v1273
        %1352 = vmatpush.msra.mxu0 %v1271
        %1353 = vmatpush.msra.mxu0 %v1269
        %1354 = vmatmul.f32.gmra.mxu0 %v1334
        %v1355 = vpop.f32.mrf.mxu0
        %v1356 = vadd.f32 0.0, %v1355
        %1357 = vdwg.mxu0
        %1358 = vmatpush.msra.mxu0 %v1331
        %1359 = vmatpush.msra.mxu0 %v1329
        %1360 = vmatpush.msra.mxu0 %v1327
        %1361 = vmatpush.msra.mxu0 %v1325
        %1362 = vmatpush.msra.mxu0 %v1323
        %1363 = vmatpush.msra.mxu0 %v1321
        %1364 = vmatpush.msra.mxu0 %v1319
        %1365 = vmatpush.msra.mxu0 %v1317
        %1366 = vmatpush.msra.mxu0 %v1315
        %1367 = vmatpush.msra.mxu0 %v1313
        %1368 = vmatpush.msra.mxu0 %v1311
        %1369 = vmatpush.msra.mxu0 %v1309
        %1370 = vmatpush.msra.mxu0 %v1307
        %1371 = vmatpush.msra.mxu0 %v1305
        %1372 = vmatpush.msra.mxu0 %v1303
        %1373 = vmatpush.msra.mxu0 %v1301
        %1374 = vmatmul.f32.gmra.mxu0 %v1335
        %v1375 = vpop.f32.mrf.mxu0
        %v1376 = vadd.f32 %v1356, %v1375
        %1377 = vdwg.mxu0
        %1378 = vmatpush.msra.mxu0 %v1300
        %1379 = vmatpush.msra.mxu0 %v1298
        %1380 = vmatpush.msra.mxu0 %v1296
        %1381 = vmatpush.msra.mxu0 %v1294
        %1382 = vmatpush.msra.mxu0 %v1292
        %1383 = vmatpush.msra.mxu0 %v1290
        %1384 = vmatpush.msra.mxu0 %v1288
        %1385 = vmatpush.msra.mxu0 %v1286
        %1386 = vmatpush.msra.mxu0 %v1284
        %1387 = vmatpush.msra.mxu0 %v1282
        %1388 = vmatpush.msra.mxu0 %v1280
        %1389 = vmatpush.msra.mxu0 %v1278
        %1390 = vmatpush.msra.mxu0 %v1276
        %1391 = vmatpush.msra.mxu0 %v1274
        %1392 = vmatpush.msra.mxu0 %v1272
        %1393 = vmatpush.msra.mxu0 %v1270
        %1394 = vmatmul.f32.gmra.mxu0 %v1334
        %v1395 = vpop.f32.mrf.mxu0
        %v1396 = vadd.f32 0.0, %v1395
        %1397 = vdwg.mxu0
        %1398 = vmatpush.msra.mxu0 %v1332
        %1399 = vmatpush.msra.mxu0 %v1330
        %1400 = vmatpush.msra.mxu0 %v1328
        %1401 = vmatpush.msra.mxu0 %v1326
        %1402 = vmatpush.msra.mxu0 %v1324
        %1403 = vmatpush.msra.mxu0 %v1322
        %1404 = vmatpush.msra.mxu0 %v1320
        %1405 = vmatpush.msra.mxu0 %v1318
        %1406 = vmatpush.msra.mxu0 %v1316
        %1407 = vmatpush.msra.mxu0 %v1314
        %1408 = vmatpush.msra.mxu0 %v1312
        %1409 = vmatpush.msra.mxu0 %v1310
        %1410 = vmatpush.msra.mxu0 %v1308
        %1411 = vmatpush.msra.mxu0 %v1306
        %1412 = vmatpush.msra.mxu0 %v1304
        %1413 = vmatpush.msra.mxu0 %v1302
        %1414 = vmatmul.f32.gmra.mxu0 %v1335
        %v1415 = vpop.f32.mrf.mxu0
        %v1416 = vadd.f32 %v1396, %v1415
        %1417 = vdwg.mxu0
        %s1418 = scalar_lea.vmem %s4, 16
        %v1419 = vld [vmem:[%s1418] sm:$0xff]
        %v1421 = vsel %vm1168, %v1419, 0
        %v1424 = vsel %vm1172, %v1376, 0
        %v1427 = vsel %vm1172, %v1416, 0
        %1429 = vmatpush.msra.mxu0 0.0
        %1430 = vmatpush.msra.mxu0 0.0
        %1431 = vmatpush.msra.mxu0 0.0
        %1432 = vmatpush.msra.mxu0 0.0
        %1433 = vmatpush.msra.mxu0 0.0
        %1434 = vmatpush.msra.mxu0 0.0
        %1435 = vmatpush.msra.mxu0 0.0
        %1436 = vmatpush.msra.mxu0 0.0
        %1437 = vmatpush.msra.mxu0 0.0
        %1438 = vmatpush.msra.mxu0 0.0
        %1439 = vmatpush.msra.mxu0 0.0
        %1440 = vmatpush.msra.mxu0 0.0
        %1441 = vmatpush.msra.mxu0 0.0
        %1442 = vmatpush.msra.mxu0 0.0
        %1443 = vmatpush.msra.mxu0 0.0
        %1444 = vmatpush.msra.mxu0 %v1424
        %1445 = vmatmul.f32.gmra.mxu0 %v1421
        %v1446 = vpop.f32.mrf.mxu0
        %v1447 = vadd.f32 0.0, %v1446
        %1448 = vdwg.mxu0
        %1449 = vmatpush.msra.mxu0 0.0
        %1450 = vmatpush.msra.mxu0 0.0
        %1451 = vmatpush.msra.mxu0 0.0
        %1452 = vmatpush.msra.mxu0 0.0
        %1453 = vmatpush.msra.mxu0 0.0
        %1454 = vmatpush.msra.mxu0 0.0
        %1455 = vmatpush.msra.mxu0 0.0
        %1456 = vmatpush.msra.mxu0 0.0
        %1457 = vmatpush.msra.mxu0 0.0
        %1458 = vmatpush.msra.mxu0 0.0
        %1459 = vmatpush.msra.mxu0 0.0
        %1460 = vmatpush.msra.mxu0 0.0
        %1461 = vmatpush.msra.mxu0 0.0
        %1462 = vmatpush.msra.mxu0 0.0
        %1463 = vmatpush.msra.mxu0 0.0
        %1464 = vmatpush.msra.mxu0 %v1427
        %1465 = vmatmul.f32.gmra.mxu0 %v1421
        %v1466 = vpop.f32.mrf.mxu0
        %v1467 = vadd.f32 0.0, %v1466
        %1468 = vdwg.mxu0
        %v1469 = vadd.f32 %v1246, %v1447
        %v1470 = vadd.f32 %v1266, %v1467
        %s1471 = scalar_lea.vmem [#allocation13], 1536
        %v1472 = vld [vmem:[%s1471] sm:$0xff]
        %v1473 = vld [vmem:[%s1471 + $0x8] sm:$0xff]
        %v1474 = vld [vmem:[%s1471 + $0x10] sm:$0xff]
        %v1475 = vld [vmem:[%s1471 + $0x18] sm:$0xff]
        %v1476 = vld [vmem:[%s1471 + $0x20] sm:$0xff]
        %v1477 = vld [vmem:[%s1471 + $0x28] sm:$0xff]
        %v1478 = vld [vmem:[%s1471 + $0x30] sm:$0xff]
        %v1479 = vld [vmem:[%s1471 + $0x38] sm:$0xff]
        %v1480 = vld [vmem:[%s1471 + $0x40] sm:$0xff]
        %v1481 = vld [vmem:[%s1471 + $0x48] sm:$0xff]
        %v1482 = vld [vmem:[%s1471 + $0x50] sm:$0xff]
        %v1483 = vld [vmem:[%s1471 + $0x58] sm:$0xff]
        %v1484 = vld [vmem:[%s1471 + $0x60] sm:$0xff]
        %v1485 = vld [vmem:[%s1471 + $0x68] sm:$0xff]
        %v1486 = vld [vmem:[%s1471 + $0x70] sm:$0xff]
        %v1487 = vld [vmem:[%s1471 + $0x78] sm:$0xff]
        %v1488 = vld [vmem:[%s1471 + $0x80] sm:$0xff]
        %v1489 = vld [vmem:[%s1471 + $0x88] sm:$0xff]
        %v1490 = vld [vmem:[%s1471 + $0x90] sm:$0xff]
        %v1491 = vld [vmem:[%s1471 + $0x98] sm:$0xff]
        %v1492 = vld [vmem:[%s1471 + $0xa0] sm:$0xff]
        %v1493 = vld [vmem:[%s1471 + $0xa8] sm:$0xff]
        %v1494 = vld [vmem:[%s1471 + $0xb0] sm:$0xff]
        %v1495 = vld [vmem:[%s1471 + $0xb8] sm:$0xff]
        %v1496 = vld [vmem:[%s1471 + $0xc0] sm:$0xff]
        %v1497 = vld [vmem:[%s1471 + $0xc8] sm:$0xff]
        %v1498 = vld [vmem:[%s1471 + $0xd0] sm:$0xff]
        %v1499 = vld [vmem:[%s1471 + $0xd8] sm:$0xff]
        %v1500 = vld [vmem:[%s1471 + $0xe0] sm:$0xff]
        %v1501 = vld [vmem:[%s1471 + $0xe8] sm:$0xff]
        %v1502 = vld [vmem:[%s1471 + $0xf0] sm:$0xff]
        %v1503 = vld [vmem:[%s1471 + $0xf8] sm:$0xff]
        %v1504 = vld [vmem:[%s1471 + $0x100] sm:$0xff]
        %v1505 = vld [vmem:[%s1471 + $0x108] sm:$0xff]
        %v1506 = vld [vmem:[%s1471 + $0x110] sm:$0xff]
        %v1507 = vld [vmem:[%s1471 + $0x118] sm:$0xff]
        %v1508 = vld [vmem:[%s1471 + $0x120] sm:$0xff]
        %v1509 = vld [vmem:[%s1471 + $0x128] sm:$0xff]
        %v1510 = vld [vmem:[%s1471 + $0x130] sm:$0xff]
        %v1511 = vld [vmem:[%s1471 + $0x138] sm:$0xff]
        %v1512 = vld [vmem:[%s1471 + $0x140] sm:$0xff]
        %v1513 = vld [vmem:[%s1471 + $0x148] sm:$0xff]
        %v1514 = vld [vmem:[%s1471 + $0x150] sm:$0xff]
        %v1515 = vld [vmem:[%s1471 + $0x158] sm:$0xff]
        %v1516 = vld [vmem:[%s1471 + $0x160] sm:$0xff]
        %v1517 = vld [vmem:[%s1471 + $0x168] sm:$0xff]
        %v1518 = vld [vmem:[%s1471 + $0x170] sm:$0xff]
        %v1519 = vld [vmem:[%s1471 + $0x178] sm:$0xff]
        %v1520 = vld [vmem:[%s1471 + $0x180] sm:$0xff]
        %v1521 = vld [vmem:[%s1471 + $0x188] sm:$0xff]
        %v1522 = vld [vmem:[%s1471 + $0x190] sm:$0xff]
        %v1523 = vld [vmem:[%s1471 + $0x198] sm:$0xff]
        %v1524 = vld [vmem:[%s1471 + $0x1a0] sm:$0xff]
        %v1525 = vld [vmem:[%s1471 + $0x1a8] sm:$0xff]
        %v1526 = vld [vmem:[%s1471 + $0x1b0] sm:$0xff]
        %v1527 = vld [vmem:[%s1471 + $0x1b8] sm:$0xff]
        %v1528 = vld [vmem:[%s1471 + $0x1c0] sm:$0xff]
        %v1529 = vld [vmem:[%s1471 + $0x1c8] sm:$0xff]
        %v1530 = vld [vmem:[%s1471 + $0x1d0] sm:$0xff]
        %v1531 = vld [vmem:[%s1471 + $0x1d8] sm:$0xff]
        %v1532 = vld [vmem:[%s1471 + $0x1e0] sm:$0xff]
        %v1533 = vld [vmem:[%s1471 + $0x1e8] sm:$0xff]
        %v1534 = vld [vmem:[%s1471 + $0x1f0] sm:$0xff]
        %v1535 = vld [vmem:[%s1471 + $0x1f8] sm:$0xff]
        %1536 = vst [vmem:[#allocation1] ss:$2 sm:$0xff] %v864
        %v1537 = vld.sshfl [vmem:[#allocation1] sm:$0xff pattern:$0x75316420]
        %v1538 = vld.sshfl [vmem:[#allocation1 + $0x8] sm:$0xff pattern:$0x75316420]
        %1541 = vmatpush.msra.mxu0 %v1502
        %1542 = vmatpush.msra.mxu0 %v1500
        %1543 = vmatpush.msra.mxu0 %v1498
        %1544 = vmatpush.msra.mxu0 %v1496
        %1545 = vmatpush.msra.mxu0 %v1494
        %1546 = vmatpush.msra.mxu0 %v1492
        %1547 = vmatpush.msra.mxu0 %v1490
        %1548 = vmatpush.msra.mxu0 %v1488
        %1549 = vmatpush.msra.mxu0 %v1486
        %1550 = vmatpush.msra.mxu0 %v1484
        %1551 = vmatpush.msra.mxu0 %v1482
        %1552 = vmatpush.msra.mxu0 %v1480
        %1553 = vmatpush.msra.mxu0 %v1478
        %1554 = vmatpush.msra.mxu0 %v1476
        %1555 = vmatpush.msra.mxu0 %v1474
        %1556 = vmatpush.msra.mxu0 %v1472
        %1557 = vmatmul.f32.gmra.mxu0 %v1537
        %v1558 = vpop.f32.mrf.mxu0
        %v1559 = vadd.f32 0.0, %v1558
        %1560 = vdwg.mxu0
        %1561 = vmatpush.msra.mxu0 %v1534
        %1562 = vmatpush.msra.mxu0 %v1532
        %1563 = vmatpush.msra.mxu0 %v1530
        %1564 = vmatpush.msra.mxu0 %v1528
        %1565 = vmatpush.msra.mxu0 %v1526
        %1566 = vmatpush.msra.mxu0 %v1524
        %1567 = vmatpush.msra.mxu0 %v1522
        %1568 = vmatpush.msra.mxu0 %v1520
        %1569 = vmatpush.msra.mxu0 %v1518
        %1570 = vmatpush.msra.mxu0 %v1516
        %1571 = vmatpush.msra.mxu0 %v1514
        %1572 = vmatpush.msra.mxu0 %v1512
        %1573 = vmatpush.msra.mxu0 %v1510
        %1574 = vmatpush.msra.mxu0 %v1508
        %1575 = vmatpush.msra.mxu0 %v1506
        %1576 = vmatpush.msra.mxu0 %v1504
        %1577 = vmatmul.f32.gmra.mxu0 %v1538
        %v1578 = vpop.f32.mrf.mxu0
        %v1579 = vadd.f32 %v1559, %v1578
        %1580 = vdwg.mxu0
        %1581 = vmatpush.msra.mxu0 %v1503
        %1582 = vmatpush.msra.mxu0 %v1501
        %1583 = vmatpush.msra.mxu0 %v1499
        %1584 = vmatpush.msra.mxu0 %v1497
        %1585 = vmatpush.msra.mxu0 %v1495
        %1586 = vmatpush.msra.mxu0 %v1493
        %1587 = vmatpush.msra.mxu0 %v1491
        %1588 = vmatpush.msra.mxu0 %v1489
        %1589 = vmatpush.msra.mxu0 %v1487
        %1590 = vmatpush.msra.mxu0 %v1485
        %1591 = vmatpush.msra.mxu0 %v1483
        %1592 = vmatpush.msra.mxu0 %v1481
        %1593 = vmatpush.msra.mxu0 %v1479
        %1594 = vmatpush.msra.mxu0 %v1477
        %1595 = vmatpush.msra.mxu0 %v1475
        %1596 = vmatpush.msra.mxu0 %v1473
        %1597 = vmatmul.f32.gmra.mxu0 %v1537
        %v1598 = vpop.f32.mrf.mxu0
        %v1599 = vadd.f32 0.0, %v1598
        %1600 = vdwg.mxu0
        %1601 = vmatpush.msra.mxu0 %v1535
        %1602 = vmatpush.msra.mxu0 %v1533
        %1603 = vmatpush.msra.mxu0 %v1531
        %1604 = vmatpush.msra.mxu0 %v1529
        %1605 = vmatpush.msra.mxu0 %v1527
        %1606 = vmatpush.msra.mxu0 %v1525
        %1607 = vmatpush.msra.mxu0 %v1523
        %1608 = vmatpush.msra.mxu0 %v1521
        %1609 = vmatpush.msra.mxu0 %v1519
        %1610 = vmatpush.msra.mxu0 %v1517
        %1611 = vmatpush.msra.mxu0 %v1515
        %1612 = vmatpush.msra.mxu0 %v1513
        %1613 = vmatpush.msra.mxu0 %v1511
        %1614 = vmatpush.msra.mxu0 %v1509
        %1615 = vmatpush.msra.mxu0 %v1507
        %1616 = vmatpush.msra.mxu0 %v1505
        %1617 = vmatmul.f32.gmra.mxu0 %v1538
        %v1618 = vpop.f32.mrf.mxu0
        %v1619 = vadd.f32 %v1599, %v1618
        %1620 = vdwg.mxu0
        %s1621 = scalar_lea.vmem %s4, 24
        %v1622 = vld [vmem:[%s1621] sm:$0xff]
        %v1624 = vsel %vm1168, %v1622, 0
        %v1627 = vsel %vm1172, %v1579, 0
        %v1630 = vsel %vm1172, %v1619, 0
        %1632 = vmatpush.msra.mxu0 0.0
        %1633 = vmatpush.msra.mxu0 0.0
        %1634 = vmatpush.msra.mxu0 0.0
        %1635 = vmatpush.msra.mxu0 0.0
        %1636 = vmatpush.msra.mxu0 0.0
        %1637 = vmatpush.msra.mxu0 0.0
        %1638 = vmatpush.msra.mxu0 0.0
        %1639 = vmatpush.msra.mxu0 0.0
        %1640 = vmatpush.msra.mxu0 0.0
        %1641 = vmatpush.msra.mxu0 0.0
        %1642 = vmatpush.msra.mxu0 0.0
        %1643 = vmatpush.msra.mxu0 0.0
        %1644 = vmatpush.msra.mxu0 0.0
        %1645 = vmatpush.msra.mxu0 0.0
        %1646 = vmatpush.msra.mxu0 0.0
        %1647 = vmatpush.msra.mxu0 %v1627
        %1648 = vmatmul.f32.gmra.mxu0 %v1624
        %v1649 = vpop.f32.mrf.mxu0
        %v1650 = vadd.f32 0.0, %v1649
        %1651 = vdwg.mxu0
        %1652 = vmatpush.msra.mxu0 0.0
        %1653 = vmatpush.msra.mxu0 0.0
        %1654 = vmatpush.msra.mxu0 0.0
        %1655 = vmatpush.msra.mxu0 0.0
        %1656 = vmatpush.msra.mxu0 0.0
        %1657 = vmatpush.msra.mxu0 0.0
        %1658 = vmatpush.msra.mxu0 0.0
        %1659 = vmatpush.msra.mxu0 0.0
        %1660 = vmatpush.msra.mxu0 0.0
        %1661 = vmatpush.msra.mxu0 0.0
        %1662 = vmatpush.msra.mxu0 0.0
        %1663 = vmatpush.msra.mxu0 0.0
        %1664 = vmatpush.msra.mxu0 0.0
        %1665 = vmatpush.msra.mxu0 0.0
        %1666 = vmatpush.msra.mxu0 0.0
        %1667 = vmatpush.msra.mxu0 %v1630
        %1668 = vmatmul.f32.gmra.mxu0 %v1624
        %v1669 = vpop.f32.mrf.mxu0
        %v1670 = vadd.f32 0.0, %v1669
        %1671 = vdwg.mxu0
        %v1672 = vadd.f32 %v1469, %v1650
        %v1673 = vadd.f32 %v1470, %v1670
        %s1674 = scalar_lea.vmem %s4, 32
        %v1675 = vld [vmem:[%s1674] sm:$0xff]
        %1676 = vst [vmem:[#allocation1] ss:$2 sm:$0xff] %v864
        %v1677 = vld.sshfl [vmem:[#allocation1] sm:$0xff pattern:$0x75316420]
        %v1678 = vld.sshfl [vmem:[#allocation1 + $0x8] sm:$0xff pattern:$0x75316420]
        %v1680 = vsel %vm1168, %v1675, 0
        %v1682 = vsel %vm1172, %v1677, 0
        %v1684 = vsel %vm1172, %v1678, 0
        %1686 = vmatpush.msra.mxu0 0.0
        %1687 = vmatpush.msra.mxu0 0.0
        %1688 = vmatpush.msra.mxu0 0.0
        %1689 = vmatpush.msra.mxu0 0.0
        %1690 = vmatpush.msra.mxu0 0.0
        %1691 = vmatpush.msra.mxu0 0.0
        %1692 = vmatpush.msra.mxu0 0.0
        %1693 = vmatpush.msra.mxu0 0.0
        %1694 = vmatpush.msra.mxu0 0.0
        %1695 = vmatpush.msra.mxu0 0.0
        %1696 = vmatpush.msra.mxu0 0.0
        %1697 = vmatpush.msra.mxu0 0.0
        %1698 = vmatpush.msra.mxu0 0.0
        %1699 = vmatpush.msra.mxu0 0.0
        %1700 = vmatpush.msra.mxu0 0.0
        %1701 = vmatpush.msra.mxu0 %v1682
        %1702 = vmatmul.f32.gmra.mxu0 %v1680
        %v1703 = vpop.f32.mrf.mxu0
        %v1704 = vadd.f32 0.0, %v1703
        %1705 = vdwg.mxu0
        %1706 = vmatpush.msra.mxu0 0.0
        %1707 = vmatpush.msra.mxu0 0.0
        %1708 = vmatpush.msra.mxu0 0.0
        %1709 = vmatpush.msra.mxu0 0.0
        %1710 = vmatpush.msra.mxu0 0.0
        %1711 = vmatpush.msra.mxu0 0.0
        %1712 = vmatpush.msra.mxu0 0.0
        %1713 = vmatpush.msra.mxu0 0.0
        %1714 = vmatpush.msra.mxu0 0.0
        %1715 = vmatpush.msra.mxu0 0.0
        %1716 = vmatpush.msra.mxu0 0.0
        %1717 = vmatpush.msra.mxu0 0.0
        %1718 = vmatpush.msra.mxu0 0.0
        %1719 = vmatpush.msra.mxu0 0.0
        %1720 = vmatpush.msra.mxu0 0.0
        %1721 = vmatpush.msra.mxu0 %v1684
        %1722 = vmatmul.f32.gmra.mxu0 %v1680
        %v1723 = vpop.f32.mrf.mxu0
        %v1724 = vadd.f32 0.0, %v1723
        %1725 = vdwg.mxu0
        %v1726 = vadd.f32 %v1672, %v1704
        %v1727 = vadd.f32 %v1673, %v1724
        %s1728 = scalar_lea.vmem [#allocation13], 2560
        %v1729 = vld [vmem:[%s1728] sm:$0xff]
        %v1730 = vld [vmem:[%s1728 + $0x8] sm:$0xff]
        %v1731 = vld [vmem:[%s1728 + $0x10] sm:$0xff]
        %v1732 = vld [vmem:[%s1728 + $0x18] sm:$0xff]
        %v1733 = vld [vmem:[%s1728 + $0x20] sm:$0xff]
        %v1734 = vld [vmem:[%s1728 + $0x28] sm:$0xff]
        %v1735 = vld [vmem:[%s1728 + $0x30] sm:$0xff]
        %v1736 = vld [vmem:[%s1728 + $0x38] sm:$0xff]
        %v1737 = vld [vmem:[%s1728 + $0x40] sm:$0xff]
        %v1738 = vld [vmem:[%s1728 + $0x48] sm:$0xff]
        %v1739 = vld [vmem:[%s1728 + $0x50] sm:$0xff]
        %v1740 = vld [vmem:[%s1728 + $0x58] sm:$0xff]
        %v1741 = vld [vmem:[%s1728 + $0x60] sm:$0xff]
        %v1742 = vld [vmem:[%s1728 + $0x68] sm:$0xff]
        %v1743 = vld [vmem:[%s1728 + $0x70] sm:$0xff]
        %v1744 = vld [vmem:[%s1728 + $0x78] sm:$0xff]
        %v1745 = vld [vmem:[%s1728 + $0x80] sm:$0xff]
        %v1746 = vld [vmem:[%s1728 + $0x88] sm:$0xff]
        %v1747 = vld [vmem:[%s1728 + $0x90] sm:$0xff]
        %v1748 = vld [vmem:[%s1728 + $0x98] sm:$0xff]
        %v1749 = vld [vmem:[%s1728 + $0xa0] sm:$0xff]
        %v1750 = vld [vmem:[%s1728 + $0xa8] sm:$0xff]
        %v1751 = vld [vmem:[%s1728 + $0xb0] sm:$0xff]
        %v1752 = vld [vmem:[%s1728 + $0xb8] sm:$0xff]
        %v1753 = vld [vmem:[%s1728 + $0xc0] sm:$0xff]
        %v1754 = vld [vmem:[%s1728 + $0xc8] sm:$0xff]
        %v1755 = vld [vmem:[%s1728 + $0xd0] sm:$0xff]
        %v1756 = vld [vmem:[%s1728 + $0xd8] sm:$0xff]
        %v1757 = vld [vmem:[%s1728 + $0xe0] sm:$0xff]
        %v1758 = vld [vmem:[%s1728 + $0xe8] sm:$0xff]
        %v1759 = vld [vmem:[%s1728 + $0xf0] sm:$0xff]
        %v1760 = vld [vmem:[%s1728 + $0xf8] sm:$0xff]
        %v1761 = vld [vmem:[%s1728 + $0x100] sm:$0xff]
        %v1762 = vld [vmem:[%s1728 + $0x108] sm:$0xff]
        %v1763 = vld [vmem:[%s1728 + $0x110] sm:$0xff]
        %v1764 = vld [vmem:[%s1728 + $0x118] sm:$0xff]
        %v1765 = vld [vmem:[%s1728 + $0x120] sm:$0xff]
        %v1766 = vld [vmem:[%s1728 + $0x128] sm:$0xff]
        %v1767 = vld [vmem:[%s1728 + $0x130] sm:$0xff]
        %v1768 = vld [vmem:[%s1728 + $0x138] sm:$0xff]
        %v1769 = vld [vmem:[%s1728 + $0x140] sm:$0xff]
        %v1770 = vld [vmem:[%s1728 + $0x148] sm:$0xff]
        %v1771 = vld [vmem:[%s1728 + $0x150] sm:$0xff]
        %v1772 = vld [vmem:[%s1728 + $0x158] sm:$0xff]
        %v1773 = vld [vmem:[%s1728 + $0x160] sm:$0xff]
        %v1774 = vld [vmem:[%s1728 + $0x168] sm:$0xff]
        %v1775 = vld [vmem:[%s1728 + $0x170] sm:$0xff]
        %v1776 = vld [vmem:[%s1728 + $0x178] sm:$0xff]
        %v1777 = vld [vmem:[%s1728 + $0x180] sm:$0xff]
        %v1778 = vld [vmem:[%s1728 + $0x188] sm:$0xff]
        %v1779 = vld [vmem:[%s1728 + $0x190] sm:$0xff]
        %v1780 = vld [vmem:[%s1728 + $0x198] sm:$0xff]
        %v1781 = vld [vmem:[%s1728 + $0x1a0] sm:$0xff]
        %v1782 = vld [vmem:[%s1728 + $0x1a8] sm:$0xff]
        %v1783 = vld [vmem:[%s1728 + $0x1b0] sm:$0xff]
        %v1784 = vld [vmem:[%s1728 + $0x1b8] sm:$0xff]
        %v1785 = vld [vmem:[%s1728 + $0x1c0] sm:$0xff]
        %v1786 = vld [vmem:[%s1728 + $0x1c8] sm:$0xff]
        %v1787 = vld [vmem:[%s1728 + $0x1d0] sm:$0xff]
        %v1788 = vld [vmem:[%s1728 + $0x1d8] sm:$0xff]
        %v1789 = vld [vmem:[%s1728 + $0x1e0] sm:$0xff]
        %v1790 = vld [vmem:[%s1728 + $0x1e8] sm:$0xff]
        %v1791 = vld [vmem:[%s1728 + $0x1f0] sm:$0xff]
        %v1792 = vld [vmem:[%s1728 + $0x1f8] sm:$0xff]
        %1793 = vst [vmem:[#allocation1] ss:$2 sm:$0xff] %v864
        %v1794 = vld.sshfl [vmem:[#allocation1] sm:$0xff pattern:$0x75316420]
        %v1795 = vld.sshfl [vmem:[#allocation1 + $0x8] sm:$0xff pattern:$0x75316420]
        %1798 = vmatpush.msra.mxu0 %v1759
        %1799 = vmatpush.msra.mxu0 %v1757
        %1800 = vmatpush.msra.mxu0 %v1755
        %1801 = vmatpush.msra.mxu0 %v1753
        %1802 = vmatpush.msra.mxu0 %v1751
        %1803 = vmatpush.msra.mxu0 %v1749
        %1804 = vmatpush.msra.mxu0 %v1747
        %1805 = vmatpush.msra.mxu0 %v1745
        %1806 = vmatpush.msra.mxu0 %v1743
        %1807 = vmatpush.msra.mxu0 %v1741
        %1808 = vmatpush.msra.mxu0 %v1739
        %1809 = vmatpush.msra.mxu0 %v1737
        %1810 = vmatpush.msra.mxu0 %v1735
        %1811 = vmatpush.msra.mxu0 %v1733
        %1812 = vmatpush.msra.mxu0 %v1731
        %1813 = vmatpush.msra.mxu0 %v1729
        %1814 = vmatmul.f32.gmra.mxu0 %v1794
        %v1815 = vpop.f32.mrf.mxu0
        %v1816 = vadd.f32 0.0, %v1815
        %1817 = vdwg.mxu0
        %1818 = vmatpush.msra.mxu0 %v1791
        %1819 = vmatpush.msra.mxu0 %v1789
        %1820 = vmatpush.msra.mxu0 %v1787
        %1821 = vmatpush.msra.mxu0 %v1785
        %1822 = vmatpush.msra.mxu0 %v1783
        %1823 = vmatpush.msra.mxu0 %v1781
        %1824 = vmatpush.msra.mxu0 %v1779
        %1825 = vmatpush.msra.mxu0 %v1777
        %1826 = vmatpush.msra.mxu0 %v1775
        %1827 = vmatpush.msra.mxu0 %v1773
        %1828 = vmatpush.msra.mxu0 %v1771
        %1829 = vmatpush.msra.mxu0 %v1769
        %1830 = vmatpush.msra.mxu0 %v1767
        %1831 = vmatpush.msra.mxu0 %v1765
        %1832 = vmatpush.msra.mxu0 %v1763
        %1833 = vmatpush.msra.mxu0 %v1761
        %1834 = vmatmul.f32.gmra.mxu0 %v1795
        %v1835 = vpop.f32.mrf.mxu0
        %v1836 = vadd.f32 %v1816, %v1835
        %1837 = vdwg.mxu0
        %1838 = vmatpush.msra.mxu0 %v1760
        %1839 = vmatpush.msra.mxu0 %v1758
        %1840 = vmatpush.msra.mxu0 %v1756
        %1841 = vmatpush.msra.mxu0 %v1754
        %1842 = vmatpush.msra.mxu0 %v1752
        %1843 = vmatpush.msra.mxu0 %v1750
        %1844 = vmatpush.msra.mxu0 %v1748
        %1845 = vmatpush.msra.mxu0 %v1746
        %1846 = vmatpush.msra.mxu0 %v1744
        %1847 = vmatpush.msra.mxu0 %v1742
        %1848 = vmatpush.msra.mxu0 %v1740
        %1849 = vmatpush.msra.mxu0 %v1738
        %1850 = vmatpush.msra.mxu0 %v1736
        %1851 = vmatpush.msra.mxu0 %v1734
        %1852 = vmatpush.msra.mxu0 %v1732
        %1853 = vmatpush.msra.mxu0 %v1730
        %1854 = vmatmul.f32.gmra.mxu0 %v1794
        %v1855 = vpop.f32.mrf.mxu0
        %v1856 = vadd.f32 0.0, %v1855
        %1857 = vdwg.mxu0
        %1858 = vmatpush.msra.mxu0 %v1792
        %1859 = vmatpush.msra.mxu0 %v1790
        %1860 = vmatpush.msra.mxu0 %v1788
        %1861 = vmatpush.msra.mxu0 %v1786
        %1862 = vmatpush.msra.mxu0 %v1784
        %1863 = vmatpush.msra.mxu0 %v1782
        %1864 = vmatpush.msra.mxu0 %v1780
        %1865 = vmatpush.msra.mxu0 %v1778
        %1866 = vmatpush.msra.mxu0 %v1776
        %1867 = vmatpush.msra.mxu0 %v1774
        %1868 = vmatpush.msra.mxu0 %v1772
        %1869 = vmatpush.msra.mxu0 %v1770
        %1870 = vmatpush.msra.mxu0 %v1768
        %1871 = vmatpush.msra.mxu0 %v1766
        %1872 = vmatpush.msra.mxu0 %v1764
        %1873 = vmatpush.msra.mxu0 %v1762
        %1874 = vmatmul.f32.gmra.mxu0 %v1795
        %v1875 = vpop.f32.mrf.mxu0
        %v1876 = vadd.f32 %v1856, %v1875
        %1877 = vdwg.mxu0
        %s1878 = scalar_lea.vmem %s4, 40
        %v1879 = vld [vmem:[%s1878] sm:$0xff]
        %v1881 = vsel %vm1168, %v1879, 0
        %v1884 = vsel %vm1172, %v1836, 0
        %v1887 = vsel %vm1172, %v1876, 0
        %1889 = vmatpush.msra.mxu0 0.0
        %1890 = vmatpush.msra.mxu0 0.0
        %1891 = vmatpush.msra.mxu0 0.0
        %1892 = vmatpush.msra.mxu0 0.0
        %1893 = vmatpush.msra.mxu0 0.0
        %1894 = vmatpush.msra.mxu0 0.0
        %1895 = vmatpush.msra.mxu0 0.0
        %1896 = vmatpush.msra.mxu0 0.0
        %1897 = vmatpush.msra.mxu0 0.0
        %1898 = vmatpush.msra.mxu0 0.0
        %1899 = vmatpush.msra.mxu0 0.0
        %1900 = vmatpush.msra.mxu0 0.0
        %1901 = vmatpush.msra.mxu0 0.0
        %1902 = vmatpush.msra.mxu0 0.0
        %1903 = vmatpush.msra.mxu0 0.0
        %1904 = vmatpush.msra.mxu0 %v1884
        %1905 = vmatmul.f32.gmra.mxu0 %v1881
        %v1906 = vpop.f32.mrf.mxu0
        %v1907 = vadd.f32 0.0, %v1906
        %1908 = vdwg.mxu0
        %1909 = vmatpush.msra.mxu0 0.0
        %1910 = vmatpush.msra.mxu0 0.0
        %1911 = vmatpush.msra.mxu0 0.0
        %1912 = vmatpush.msra.mxu0 0.0
        %1913 = vmatpush.msra.mxu0 0.0
        %1914 = vmatpush.msra.mxu0 0.0
        %1915 = vmatpush.msra.mxu0 0.0
        %1916 = vmatpush.msra.mxu0 0.0
        %1917 = vmatpush.msra.mxu0 0.0
        %1918 = vmatpush.msra.mxu0 0.0
        %1919 = vmatpush.msra.mxu0 0.0
        %1920 = vmatpush.msra.mxu0 0.0
        %1921 = vmatpush.msra.mxu0 0.0
        %1922 = vmatpush.msra.mxu0 0.0
        %1923 = vmatpush.msra.mxu0 0.0
        %1924 = vmatpush.msra.mxu0 %v1887
        %1925 = vmatmul.f32.gmra.mxu0 %v1881
        %v1926 = vpop.f32.mrf.mxu0
        %v1927 = vadd.f32 0.0, %v1926
        %1928 = vdwg.mxu0
        %v1929 = vadd.f32 %v1726, %v1907
        %v1930 = vadd.f32 %v1727, %v1927
        %s1931 = scalar_lea.vmem [#allocation13], 3072
        %v1932 = vld [vmem:[%s1931] sm:$0xff]
        %v1933 = vld [vmem:[%s1931 + $0x8] sm:$0xff]
        %v1934 = vld [vmem:[%s1931 + $0x10] sm:$0xff]
        %v1935 = vld [vmem:[%s1931 + $0x18] sm:$0xff]
        %v1936 = vld [vmem:[%s1931 + $0x20] sm:$0xff]
        %v1937 = vld [vmem:[%s1931 + $0x28] sm:$0xff]
        %v1938 = vld [vmem:[%s1931 + $0x30] sm:$0xff]
        %v1939 = vld [vmem:[%s1931 + $0x38] sm:$0xff]
        %v1940 = vld [vmem:[%s1931 + $0x40] sm:$0xff]
        %v1941 = vld [vmem:[%s1931 + $0x48] sm:$0xff]
        %v1942 = vld [vmem:[%s1931 + $0x50] sm:$0xff]
        %v1943 = vld [vmem:[%s1931 + $0x58] sm:$0xff]
        %v1944 = vld [vmem:[%s1931 + $0x60] sm:$0xff]
        %v1945 = vld [vmem:[%s1931 + $0x68] sm:$0xff]
        %v1946 = vld [vmem:[%s1931 + $0x70] sm:$0xff]
        %v1947 = vld [vmem:[%s1931 + $0x78] sm:$0xff]
        %v1948 = vld [vmem:[%s1931 + $0x80] sm:$0xff]
        %v1949 = vld [vmem:[%s1931 + $0x88] sm:$0xff]
        %v1950 = vld [vmem:[%s1931 + $0x90] sm:$0xff]
        %v1951 = vld [vmem:[%s1931 + $0x98] sm:$0xff]
        %v1952 = vld [vmem:[%s1931 + $0xa0] sm:$0xff]
        %v1953 = vld [vmem:[%s1931 + $0xa8] sm:$0xff]
        %v1954 = vld [vmem:[%s1931 + $0xb0] sm:$0xff]
        %v1955 = vld [vmem:[%s1931 + $0xb8] sm:$0xff]
        %v1956 = vld [vmem:[%s1931 + $0xc0] sm:$0xff]
        %v1957 = vld [vmem:[%s1931 + $0xc8] sm:$0xff]
        %v1958 = vld [vmem:[%s1931 + $0xd0] sm:$0xff]
        %v1959 = vld [vmem:[%s1931 + $0xd8] sm:$0xff]
        %v1960 = vld [vmem:[%s1931 + $0xe0] sm:$0xff]
        %v1961 = vld [vmem:[%s1931 + $0xe8] sm:$0xff]
        %v1962 = vld [vmem:[%s1931 + $0xf0] sm:$0xff]
        %v1963 = vld [vmem:[%s1931 + $0xf8] sm:$0xff]
        %v1964 = vld [vmem:[%s1931 + $0x100] sm:$0xff]
        %v1965 = vld [vmem:[%s1931 + $0x108] sm:$0xff]
        %v1966 = vld [vmem:[%s1931 + $0x110] sm:$0xff]
        %v1967 = vld [vmem:[%s1931 + $0x118] sm:$0xff]
        %v1968 = vld [vmem:[%s1931 + $0x120] sm:$0xff]
        %v1969 = vld [vmem:[%s1931 + $0x128] sm:$0xff]
        %v1970 = vld [vmem:[%s1931 + $0x130] sm:$0xff]
        %v1971 = vld [vmem:[%s1931 + $0x138] sm:$0xff]
        %v1972 = vld [vmem:[%s1931 + $0x140] sm:$0xff]
        %v1973 = vld [vmem:[%s1931 + $0x148] sm:$0xff]
        %v1974 = vld [vmem:[%s1931 + $0x150] sm:$0xff]
        %v1975 = vld [vmem:[%s1931 + $0x158] sm:$0xff]
        %v1976 = vld [vmem:[%s1931 + $0x160] sm:$0xff]
        %v1977 = vld [vmem:[%s1931 + $0x168] sm:$0xff]
        %v1978 = vld [vmem:[%s1931 + $0x170] sm:$0xff]
        %v1979 = vld [vmem:[%s1931 + $0x178] sm:$0xff]
        %v1980 = vld [vmem:[%s1931 + $0x180] sm:$0xff]
        %v1981 = vld [vmem:[%s1931 + $0x188] sm:$0xff]
        %v1982 = vld [vmem:[%s1931 + $0x190] sm:$0xff]
        %v1983 = vld [vmem:[%s1931 + $0x198] sm:$0xff]
        %v1984 = vld [vmem:[%s1931 + $0x1a0] sm:$0xff]
        %v1985 = vld [vmem:[%s1931 + $0x1a8] sm:$0xff]
        %v1986 = vld [vmem:[%s1931 + $0x1b0] sm:$0xff]
        %v1987 = vld [vmem:[%s1931 + $0x1b8] sm:$0xff]
        %v1988 = vld [vmem:[%s1931 + $0x1c0] sm:$0xff]
        %v1989 = vld [vmem:[%s1931 + $0x1c8] sm:$0xff]
        %v1990 = vld [vmem:[%s1931 + $0x1d0] sm:$0xff]
        %v1991 = vld [vmem:[%s1931 + $0x1d8] sm:$0xff]
        %v1992 = vld [vmem:[%s1931 + $0x1e0] sm:$0xff]
        %v1993 = vld [vmem:[%s1931 + $0x1e8] sm:$0xff]
        %v1994 = vld [vmem:[%s1931 + $0x1f0] sm:$0xff]
        %v1995 = vld [vmem:[%s1931 + $0x1f8] sm:$0xff]
        %1996 = vst [vmem:[#allocation1] ss:$2 sm:$0xff] %v864
        %v1997 = vld.sshfl [vmem:[#allocation1] sm:$0xff pattern:$0x75316420]
        %v1998 = vld.sshfl [vmem:[#allocation1 + $0x8] sm:$0xff pattern:$0x75316420]
        %2001 = vmatpush.msra.mxu0 %v1962
        %2002 = vmatpush.msra.mxu0 %v1960
        %2003 = vmatpush.msra.mxu0 %v1958
        %2004 = vmatpush.msra.mxu0 %v1956
        %2005 = vmatpush.msra.mxu0 %v1954
        %2006 = vmatpush.msra.mxu0 %v1952
        %2007 = vmatpush.msra.mxu0 %v1950
        %2008 = vmatpush.msra.mxu0 %v1948
        %2009 = vmatpush.msra.mxu0 %v1946
        %2010 = vmatpush.msra.mxu0 %v1944
        %2011 = vmatpush.msra.mxu0 %v1942
        %2012 = vmatpush.msra.mxu0 %v1940
        %2013 = vmatpush.msra.mxu0 %v1938
        %2014 = vmatpush.msra.mxu0 %v1936
        %2015 = vmatpush.msra.mxu0 %v1934
        %2016 = vmatpush.msra.mxu0 %v1932
        %2017 = vmatmul.f32.gmra.mxu0 %v1997
        %v2018 = vpop.f32.mrf.mxu0
        %v2019 = vadd.f32 0.0, %v2018
        %2020 = vdwg.mxu0
        %2021 = vmatpush.msra.mxu0 %v1994
        %2022 = vmatpush.msra.mxu0 %v1992
        %2023 = vmatpush.msra.mxu0 %v1990
        %2024 = vmatpush.msra.mxu0 %v1988
        %2025 = vmatpush.msra.mxu0 %v1986
        %2026 = vmatpush.msra.mxu0 %v1984
        %2027 = vmatpush.msra.mxu0 %v1982
        %2028 = vmatpush.msra.mxu0 %v1980
        %2029 = vmatpush.msra.mxu0 %v1978
        %2030 = vmatpush.msra.mxu0 %v1976
        %2031 = vmatpush.msra.mxu0 %v1974
        %2032 = vmatpush.msra.mxu0 %v1972
        %2033 = vmatpush.msra.mxu0 %v1970
        %2034 = vmatpush.msra.mxu0 %v1968
        %2035 = vmatpush.msra.mxu0 %v1966
        %2036 = vmatpush.msra.mxu0 %v1964
        %2037 = vmatmul.f32.gmra.mxu0 %v1998
        %v2038 = vpop.f32.mrf.mxu0
        %v2039 = vadd.f32 %v2019, %v2038
        %2040 = vdwg.mxu0
        %2041 = vmatpush.msra.mxu0 %v1963
        %2042 = vmatpush.msra.mxu0 %v1961
        %2043 = vmatpush.msra.mxu0 %v1959
        %2044 = vmatpush.msra.mxu0 %v1957
        %2045 = vmatpush.msra.mxu0 %v1955
        %2046 = vmatpush.msra.mxu0 %v1953
        %2047 = vmatpush.msra.mxu0 %v1951
        %2048 = vmatpush.msra.mxu0 %v1949
        %2049 = vmatpush.msra.mxu0 %v1947
        %2050 = vmatpush.msra.mxu0 %v1945
        %2051 = vmatpush.msra.mxu0 %v1943
        %2052 = vmatpush.msra.mxu0 %v1941
        %2053 = vmatpush.msra.mxu0 %v1939
        %2054 = vmatpush.msra.mxu0 %v1937
        %2055 = vmatpush.msra.mxu0 %v1935
        %2056 = vmatpush.msra.mxu0 %v1933
        %2057 = vmatmul.f32.gmra.mxu0 %v1997
        %v2058 = vpop.f32.mrf.mxu0
        %v2059 = vadd.f32 0.0, %v2058
        %2060 = vdwg.mxu0
        %2061 = vmatpush.msra.mxu0 %v1995
        %2062 = vmatpush.msra.mxu0 %v1993
        %2063 = vmatpush.msra.mxu0 %v1991
        %2064 = vmatpush.msra.mxu0 %v1989
        %2065 = vmatpush.msra.mxu0 %v1987
        %2066 = vmatpush.msra.mxu0 %v1985
        %2067 = vmatpush.msra.mxu0 %v1983
        %2068 = vmatpush.msra.mxu0 %v1981
        %2069 = vmatpush.msra.mxu0 %v1979
        %2070 = vmatpush.msra.mxu0 %v1977
        %2071 = vmatpush.msra.mxu0 %v1975
        %2072 = vmatpush.msra.mxu0 %v1973
        %2073 = vmatpush.msra.mxu0 %v1971
        %2074 = vmatpush.msra.mxu0 %v1969
        %2075 = vmatpush.msra.mxu0 %v1967
        %2076 = vmatpush.msra.mxu0 %v1965
        %2077 = vmatmul.f32.gmra.mxu0 %v1998
        %v2078 = vpop.f32.mrf.mxu0
        %v2079 = vadd.f32 %v2059, %v2078
        %2080 = vdwg.mxu0
        %s2081 = scalar_lea.vmem %s4, 48
        %v2082 = vld [vmem:[%s2081] sm:$0xff]
        %v2084 = vsel %vm1168, %v2082, 0
        %v2087 = vsel %vm1172, %v2039, 0
        %v2090 = vsel %vm1172, %v2079, 0
        %2092 = vmatpush.msra.mxu0 0.0
        %2093 = vmatpush.msra.mxu0 0.0
        %2094 = vmatpush.msra.mxu0 0.0
        %2095 = vmatpush.msra.mxu0 0.0
        %2096 = vmatpush.msra.mxu0 0.0
        %2097 = vmatpush.msra.mxu0 0.0
        %2098 = vmatpush.msra.mxu0 0.0
        %2099 = vmatpush.msra.mxu0 0.0
        %2100 = vmatpush.msra.mxu0 0.0
        %2101 = vmatpush.msra.mxu0 0.0
        %2102 = vmatpush.msra.mxu0 0.0
        %2103 = vmatpush.msra.mxu0 0.0
        %2104 = vmatpush.msra.mxu0 0.0
        %2105 = vmatpush.msra.mxu0 0.0
        %2106 = vmatpush.msra.mxu0 0.0
        %2107 = vmatpush.msra.mxu0 %v2087
        %2108 = vmatmul.f32.gmra.mxu0 %v2084
        %v2109 = vpop.f32.mrf.mxu0
        %v2110 = vadd.f32 0.0, %v2109
        %2111 = vdwg.mxu0
        %2112 = vmatpush.msra.mxu0 0.0
        %2113 = vmatpush.msra.mxu0 0.0
        %2114 = vmatpush.msra.mxu0 0.0
        %2115 = vmatpush.msra.mxu0 0.0
        %2116 = vmatpush.msra.mxu0 0.0
        %2117 = vmatpush.msra.mxu0 0.0
        %2118 = vmatpush.msra.mxu0 0.0
        %2119 = vmatpush.msra.mxu0 0.0
        %2120 = vmatpush.msra.mxu0 0.0
        %2121 = vmatpush.msra.mxu0 0.0
        %2122 = vmatpush.msra.mxu0 0.0
        %2123 = vmatpush.msra.mxu0 0.0
        %2124 = vmatpush.msra.mxu0 0.0
        %2125 = vmatpush.msra.mxu0 0.0
        %2126 = vmatpush.msra.mxu0 0.0
        %2127 = vmatpush.msra.mxu0 %v2090
        %2128 = vmatmul.f32.gmra.mxu0 %v2084
        %v2129 = vpop.f32.mrf.mxu0
        %v2130 = vadd.f32 0.0, %v2129
        %2131 = vdwg.mxu0
        %v2132 = vadd.f32 %v1929, %v2110
        %v2133 = vadd.f32 %v1930, %v2130
        %s2134 = scalar_lea.vmem [#allocation13], 3584
        %v2135 = vld [vmem:[%s2134] sm:$0xff]
        %v2136 = vld [vmem:[%s2134 + $0x8] sm:$0xff]
        %v2137 = vld [vmem:[%s2134 + $0x10] sm:$0xff]
        %v2138 = vld [vmem:[%s2134 + $0x18] sm:$0xff]
        %v2139 = vld [vmem:[%s2134 + $0x20] sm:$0xff]
        %v2140 = vld [vmem:[%s2134 + $0x28] sm:$0xff]
        %v2141 = vld [vmem:[%s2134 + $0x30] sm:$0xff]
        %v2142 = vld [vmem:[%s2134 + $0x38] sm:$0xff]
        %v2143 = vld [vmem:[%s2134 + $0x40] sm:$0xff]
        %v2144 = vld [vmem:[%s2134 + $0x48] sm:$0xff]
        %v2145 = vld [vmem:[%s2134 + $0x50] sm:$0xff]
        %v2146 = vld [vmem:[%s2134 + $0x58] sm:$0xff]
        %v2147 = vld [vmem:[%s2134 + $0x60] sm:$0xff]
        %v2148 = vld [vmem:[%s2134 + $0x68] sm:$0xff]
        %v2149 = vld [vmem:[%s2134 + $0x70] sm:$0xff]
        %v2150 = vld [vmem:[%s2134 + $0x78] sm:$0xff]
        %v2151 = vld [vmem:[%s2134 + $0x80] sm:$0xff]
        %v2152 = vld [vmem:[%s2134 + $0x88] sm:$0xff]
        %v2153 = vld [vmem:[%s2134 + $0x90] sm:$0xff]
        %v2154 = vld [vmem:[%s2134 + $0x98] sm:$0xff]
        %v2155 = vld [vmem:[%s2134 + $0xa0] sm:$0xff]
        %v2156 = vld [vmem:[%s2134 + $0xa8] sm:$0xff]
        %v2157 = vld [vmem:[%s2134 + $0xb0] sm:$0xff]
        %v2158 = vld [vmem:[%s2134 + $0xb8] sm:$0xff]
        %v2159 = vld [vmem:[%s2134 + $0xc0] sm:$0xff]
        %v2160 = vld [vmem:[%s2134 + $0xc8] sm:$0xff]
        %v2161 = vld [vmem:[%s2134 + $0xd0] sm:$0xff]
        %v2162 = vld [vmem:[%s2134 + $0xd8] sm:$0xff]
        %v2163 = vld [vmem:[%s2134 + $0xe0] sm:$0xff]
        %v2164 = vld [vmem:[%s2134 + $0xe8] sm:$0xff]
        %v2165 = vld [vmem:[%s2134 + $0xf0] sm:$0xff]
        %v2166 = vld [vmem:[%s2134 + $0xf8] sm:$0xff]
        %v2167 = vld [vmem:[%s2134 + $0x100] sm:$0xff]
        %v2168 = vld [vmem:[%s2134 + $0x108] sm:$0xff]
        %v2169 = vld [vmem:[%s2134 + $0x110] sm:$0xff]
        %v2170 = vld [vmem:[%s2134 + $0x118] sm:$0xff]
        %v2171 = vld [vmem:[%s2134 + $0x120] sm:$0xff]
        %v2172 = vld [vmem:[%s2134 + $0x128] sm:$0xff]
        %v2173 = vld [vmem:[%s2134 + $0x130] sm:$0xff]
        %v2174 = vld [vmem:[%s2134 + $0x138] sm:$0xff]
        %v2175 = vld [vmem:[%s2134 + $0x140] sm:$0xff]
        %v2176 = vld [vmem:[%s2134 + $0x148] sm:$0xff]
        %v2177 = vld [vmem:[%s2134 + $0x150] sm:$0xff]
        %v2178 = vld [vmem:[%s2134 + $0x158] sm:$0xff]
        %v2179 = vld [vmem:[%s2134 + $0x160] sm:$0xff]
        %v2180 = vld [vmem:[%s2134 + $0x168] sm:$0xff]
        %v2181 = vld [vmem:[%s2134 + $0x170] sm:$0xff]
        %v2182 = vld [vmem:[%s2134 + $0x178] sm:$0xff]
        %v2183 = vld [vmem:[%s2134 + $0x180] sm:$0xff]
        %v2184 = vld [vmem:[%s2134 + $0x188] sm:$0xff]
        %v2185 = vld [vmem:[%s2134 + $0x190] sm:$0xff]
        %v2186 = vld [vmem:[%s2134 + $0x198] sm:$0xff]
        %v2187 = vld [vmem:[%s2134 + $0x1a0] sm:$0xff]
        %v2188 = vld [vmem:[%s2134 + $0x1a8] sm:$0xff]
        %v2189 = vld [vmem:[%s2134 + $0x1b0] sm:$0xff]
        %v2190 = vld [vmem:[%s2134 + $0x1b8] sm:$0xff]
        %v2191 = vld [vmem:[%s2134 + $0x1c0] sm:$0xff]
        %v2192 = vld [vmem:[%s2134 + $0x1c8] sm:$0xff]
        %v2193 = vld [vmem:[%s2134 + $0x1d0] sm:$0xff]
        %v2194 = vld [vmem:[%s2134 + $0x1d8] sm:$0xff]
        %v2195 = vld [vmem:[%s2134 + $0x1e0] sm:$0xff]
        %v2196 = vld [vmem:[%s2134 + $0x1e8] sm:$0xff]
        %v2197 = vld [vmem:[%s2134 + $0x1f0] sm:$0xff]
        %v2198 = vld [vmem:[%s2134 + $0x1f8] sm:$0xff]
        %2199 = vst [vmem:[#allocation1] ss:$2 sm:$0xff] %v864
        %v2200 = vld.sshfl [vmem:[#allocation1] sm:$0xff pattern:$0x75316420]
        %v2201 = vld.sshfl [vmem:[#allocation1 + $0x8] sm:$0xff pattern:$0x75316420]
        %2204 = vmatpush.msra.mxu0 %v2165
        %2205 = vmatpush.msra.mxu0 %v2163
        %2206 = vmatpush.msra.mxu0 %v2161
        %2207 = vmatpush.msra.mxu0 %v2159
        %2208 = vmatpush.msra.mxu0 %v2157
        %2209 = vmatpush.msra.mxu0 %v2155
        %2210 = vmatpush.msra.mxu0 %v2153
        %2211 = vmatpush.msra.mxu0 %v2151
        %2212 = vmatpush.msra.mxu0 %v2149
        %2213 = vmatpush.msra.mxu0 %v2147
        %2214 = vmatpush.msra.mxu0 %v2145
        %2215 = vmatpush.msra.mxu0 %v2143
        %2216 = vmatpush.msra.mxu0 %v2141
        %2217 = vmatpush.msra.mxu0 %v2139
        %2218 = vmatpush.msra.mxu0 %v2137
        %2219 = vmatpush.msra.mxu0 %v2135
        %2220 = vmatmul.f32.gmra.mxu0 %v2200
        %v2221 = vpop.f32.mrf.mxu0
        %v2222 = vadd.f32 0.0, %v2221
        %2223 = vdwg.mxu0
        %2224 = vmatpush.msra.mxu0 %v2197
        %2225 = vmatpush.msra.mxu0 %v2195
        %2226 = vmatpush.msra.mxu0 %v2193
        %2227 = vmatpush.msra.mxu0 %v2191
        %2228 = vmatpush.msra.mxu0 %v2189
        %2229 = vmatpush.msra.mxu0 %v2187
        %2230 = vmatpush.msra.mxu0 %v2185
        %2231 = vmatpush.msra.mxu0 %v2183
        %2232 = vmatpush.msra.mxu0 %v2181
        %2233 = vmatpush.msra.mxu0 %v2179
        %2234 = vmatpush.msra.mxu0 %v2177
        %2235 = vmatpush.msra.mxu0 %v2175
        %2236 = vmatpush.msra.mxu0 %v2173
        %2237 = vmatpush.msra.mxu0 %v2171
        %2238 = vmatpush.msra.mxu0 %v2169
        %2239 = vmatpush.msra.mxu0 %v2167
        %2240 = vmatmul.f32.gmra.mxu0 %v2201
        %v2241 = vpop.f32.mrf.mxu0
        %v2242 = vadd.f32 %v2222, %v2241
        %2243 = vdwg.mxu0
        %2244 = vmatpush.msra.mxu0 %v2166
        %2245 = vmatpush.msra.mxu0 %v2164
        %2246 = vmatpush.msra.mxu0 %v2162
        %2247 = vmatpush.msra.mxu0 %v2160
        %2248 = vmatpush.msra.mxu0 %v2158
        %2249 = vmatpush.msra.mxu0 %v2156
        %2250 = vmatpush.msra.mxu0 %v2154
        %2251 = vmatpush.msra.mxu0 %v2152
        %2252 = vmatpush.msra.mxu0 %v2150
        %2253 = vmatpush.msra.mxu0 %v2148
        %2254 = vmatpush.msra.mxu0 %v2146
        %2255 = vmatpush.msra.mxu0 %v2144
        %2256 = vmatpush.msra.mxu0 %v2142
        %2257 = vmatpush.msra.mxu0 %v2140
        %2258 = vmatpush.msra.mxu0 %v2138
        %2259 = vmatpush.msra.mxu0 %v2136
        %2260 = vmatmul.f32.gmra.mxu0 %v2200
        %v2261 = vpop.f32.mrf.mxu0
        %v2262 = vadd.f32 0.0, %v2261
        %2263 = vdwg.mxu0
        %2264 = vmatpush.msra.mxu0 %v2198
        %2265 = vmatpush.msra.mxu0 %v2196
        %2266 = vmatpush.msra.mxu0 %v2194
        %2267 = vmatpush.msra.mxu0 %v2192
        %2268 = vmatpush.msra.mxu0 %v2190
        %2269 = vmatpush.msra.mxu0 %v2188
        %2270 = vmatpush.msra.mxu0 %v2186
        %2271 = vmatpush.msra.mxu0 %v2184
        %2272 = vmatpush.msra.mxu0 %v2182
        %2273 = vmatpush.msra.mxu0 %v2180
        %2274 = vmatpush.msra.mxu0 %v2178
        %2275 = vmatpush.msra.mxu0 %v2176
        %2276 = vmatpush.msra.mxu0 %v2174
        %2277 = vmatpush.msra.mxu0 %v2172
        %2278 = vmatpush.msra.mxu0 %v2170
        %2279 = vmatpush.msra.mxu0 %v2168
        %2280 = vmatmul.f32.gmra.mxu0 %v2201
        %v2281 = vpop.f32.mrf.mxu0
        %v2282 = vadd.f32 %v2262, %v2281
        %2283 = vdwg.mxu0
        %s2284 = scalar_lea.vmem %s4, 56
        %v2285 = vld [vmem:[%s2284] sm:$0xff]
        %v2287 = vsel %vm1168, %v2285, 0
        %v2290 = vsel %vm1172, %v2242, 0
        %v2293 = vsel %vm1172, %v2282, 0
        %2295 = vmatpush.msra.mxu0 0.0
        %2296 = vmatpush.msra.mxu0 0.0
        %2297 = vmatpush.msra.mxu0 0.0
        %2298 = vmatpush.msra.mxu0 0.0
        %2299 = vmatpush.msra.mxu0 0.0
        %2300 = vmatpush.msra.mxu0 0.0
        %2301 = vmatpush.msra.mxu0 0.0
        %2302 = vmatpush.msra.mxu0 0.0
        %2303 = vmatpush.msra.mxu0 0.0
        %2304 = vmatpush.msra.mxu0 0.0
        %2305 = vmatpush.msra.mxu0 0.0
        %2306 = vmatpush.msra.mxu0 0.0
        %2307 = vmatpush.msra.mxu0 0.0
        %2308 = vmatpush.msra.mxu0 0.0
        %2309 = vmatpush.msra.mxu0 0.0
        %2310 = vmatpush.msra.mxu0 %v2290
        %2311 = vmatmul.f32.gmra.mxu0 %v2287
        %v2312 = vpop.f32.mrf.mxu0
        %v2313 = vadd.f32 0.0, %v2312
        %2314 = vdwg.mxu0
        %2315 = vmatpush.msra.mxu0 0.0
        %2316 = vmatpush.msra.mxu0 0.0
        %2317 = vmatpush.msra.mxu0 0.0
        %2318 = vmatpush.msra.mxu0 0.0
        %2319 = vmatpush.msra.mxu0 0.0
        %2320 = vmatpush.msra.mxu0 0.0
        %2321 = vmatpush.msra.mxu0 0.0
        %2322 = vmatpush.msra.mxu0 0.0
        %2323 = vmatpush.msra.mxu0 0.0
        %2324 = vmatpush.msra.mxu0 0.0
        %2325 = vmatpush.msra.mxu0 0.0
        %2326 = vmatpush.msra.mxu0 0.0
        %2327 = vmatpush.msra.mxu0 0.0
        %2328 = vmatpush.msra.mxu0 0.0
        %2329 = vmatpush.msra.mxu0 0.0
        %2330 = vmatpush.msra.mxu0 %v2293
        %2331 = vmatmul.f32.gmra.mxu0 %v2287
        %v2332 = vpop.f32.mrf.mxu0
        %v2333 = vadd.f32 0.0, %v2332
        %2334 = vdwg.mxu0
        %v2335 = vadd.f32 %v2132, %v2313
        %v2336 = vadd.f32 %v2133, %v2333
        %s2337 = scalar_lea.vmem [#allocation13], 4096
        %v2338 = vld [vmem:[%s2337] sm:$0xff]
        %v2339 = vld [vmem:[%s2337 + $0x8] sm:$0xff]
        %v2340 = vld [vmem:[%s2337 + $0x10] sm:$0xff]
        %v2341 = vld [vmem:[%s2337 + $0x18] sm:$0xff]
        %v2342 = vld [vmem:[%s2337 + $0x20] sm:$0xff]
        %v2343 = vld [vmem:[%s2337 + $0x28] sm:$0xff]
        %v2344 = vld [vmem:[%s2337 + $0x30] sm:$0xff]
        %v2345 = vld [vmem:[%s2337 + $0x38] sm:$0xff]
        %v2346 = vld [vmem:[%s2337 + $0x40] sm:$0xff]
        %v2347 = vld [vmem:[%s2337 + $0x48] sm:$0xff]
        %v2348 = vld [vmem:[%s2337 + $0x50] sm:$0xff]
        %v2349 = vld [vmem:[%s2337 + $0x58] sm:$0xff]
        %v2350 = vld [vmem:[%s2337 + $0x60] sm:$0xff]
        %v2351 = vld [vmem:[%s2337 + $0x68] sm:$0xff]
        %v2352 = vld [vmem:[%s2337 + $0x70] sm:$0xff]
        %v2353 = vld [vmem:[%s2337 + $0x78] sm:$0xff]
        %v2354 = vld [vmem:[%s2337 + $0x80] sm:$0xff]
        %v2355 = vld [vmem:[%s2337 + $0x88] sm:$0xff]
        %v2356 = vld [vmem:[%s2337 + $0x90] sm:$0xff]
        %v2357 = vld [vmem:[%s2337 + $0x98] sm:$0xff]
        %v2358 = vld [vmem:[%s2337 + $0xa0] sm:$0xff]
        %v2359 = vld [vmem:[%s2337 + $0xa8] sm:$0xff]
        %v2360 = vld [vmem:[%s2337 + $0xb0] sm:$0xff]
        %v2361 = vld [vmem:[%s2337 + $0xb8] sm:$0xff]
        %v2362 = vld [vmem:[%s2337 + $0xc0] sm:$0xff]
        %v2363 = vld [vmem:[%s2337 + $0xc8] sm:$0xff]
        %v2364 = vld [vmem:[%s2337 + $0xd0] sm:$0xff]
        %v2365 = vld [vmem:[%s2337 + $0xd8] sm:$0xff]
        %v2366 = vld [vmem:[%s2337 + $0xe0] sm:$0xff]
        %v2367 = vld [vmem:[%s2337 + $0xe8] sm:$0xff]
        %v2368 = vld [vmem:[%s2337 + $0xf0] sm:$0xff]
        %v2369 = vld [vmem:[%s2337 + $0xf8] sm:$0xff]
        %v2370 = vld [vmem:[%s2337 + $0x100] sm:$0xff]
        %v2371 = vld [vmem:[%s2337 + $0x108] sm:$0xff]
        %v2372 = vld [vmem:[%s2337 + $0x110] sm:$0xff]
        %v2373 = vld [vmem:[%s2337 + $0x118] sm:$0xff]
        %v2374 = vld [vmem:[%s2337 + $0x120] sm:$0xff]
        %v2375 = vld [vmem:[%s2337 + $0x128] sm:$0xff]
        %v2376 = vld [vmem:[%s2337 + $0x130] sm:$0xff]
        %v2377 = vld [vmem:[%s2337 + $0x138] sm:$0xff]
        %v2378 = vld [vmem:[%s2337 + $0x140] sm:$0xff]
        %v2379 = vld [vmem:[%s2337 + $0x148] sm:$0xff]
        %v2380 = vld [vmem:[%s2337 + $0x150] sm:$0xff]
        %v2381 = vld [vmem:[%s2337 + $0x158] sm:$0xff]
        %v2382 = vld [vmem:[%s2337 + $0x160] sm:$0xff]
        %v2383 = vld [vmem:[%s2337 + $0x168] sm:$0xff]
        %v2384 = vld [vmem:[%s2337 + $0x170] sm:$0xff]
        %v2385 = vld [vmem:[%s2337 + $0x178] sm:$0xff]
        %v2386 = vld [vmem:[%s2337 + $0x180] sm:$0xff]
        %v2387 = vld [vmem:[%s2337 + $0x188] sm:$0xff]
        %v2388 = vld [vmem:[%s2337 + $0x190] sm:$0xff]
        %v2389 = vld [vmem:[%s2337 + $0x198] sm:$0xff]
        %v2390 = vld [vmem:[%s2337 + $0x1a0] sm:$0xff]
        %v2391 = vld [vmem:[%s2337 + $0x1a8] sm:$0xff]
        %v2392 = vld [vmem:[%s2337 + $0x1b0] sm:$0xff]
        %v2393 = vld [vmem:[%s2337 + $0x1b8] sm:$0xff]
        %v2394 = vld [vmem:[%s2337 + $0x1c0] sm:$0xff]
        %v2395 = vld [vmem:[%s2337 + $0x1c8] sm:$0xff]
        %v2396 = vld [vmem:[%s2337 + $0x1d0] sm:$0xff]
        %v2397 = vld [vmem:[%s2337 + $0x1d8] sm:$0xff]
        %v2398 = vld [vmem:[%s2337 + $0x1e0] sm:$0xff]
        %v2399 = vld [vmem:[%s2337 + $0x1e8] sm:$0xff]
        %v2400 = vld [vmem:[%s2337 + $0x1f0] sm:$0xff]
        %v2401 = vld [vmem:[%s2337 + $0x1f8] sm:$0xff]
        %2402 = vst [vmem:[#allocation1] ss:$2 sm:$0xff] %v864
        %v2403 = vld.sshfl [vmem:[#allocation1] sm:$0xff pattern:$0x75316420]
        %v2404 = vld.sshfl [vmem:[#allocation1 + $0x8] sm:$0xff pattern:$0x75316420]
        %2407 = vmatpush.msra.mxu0 %v2368
        %2408 = vmatpush.msra.mxu0 %v2366
        %2409 = vmatpush.msra.mxu0 %v2364
        %2410 = vmatpush.msra.mxu0 %v2362
        %2411 = vmatpush.msra.mxu0 %v2360
        %2412 = vmatpush.msra.mxu0 %v2358
        %2413 = vmatpush.msra.mxu0 %v2356
        %2414 = vmatpush.msra.mxu0 %v2354
        %2415 = vmatpush.msra.mxu0 %v2352
        %2416 = vmatpush.msra.mxu0 %v2350
        %2417 = vmatpush.msra.mxu0 %v2348
        %2418 = vmatpush.msra.mxu0 %v2346
        %2419 = vmatpush.msra.mxu0 %v2344
        %2420 = vmatpush.msra.mxu0 %v2342
        %2421 = vmatpush.msra.mxu0 %v2340
        %2422 = vmatpush.msra.mxu0 %v2338
        %2423 = vmatmul.f32.gmra.mxu0 %v2403
        %v2424 = vpop.f32.mrf.mxu0
        %v2425 = vadd.f32 0.0, %v2424
        %2426 = vdwg.mxu0
        %2427 = vmatpush.msra.mxu0 %v2400
        %2428 = vmatpush.msra.mxu0 %v2398
        %2429 = vmatpush.msra.mxu0 %v2396
        %2430 = vmatpush.msra.mxu0 %v2394
        %2431 = vmatpush.msra.mxu0 %v2392
        %2432 = vmatpush.msra.mxu0 %v2390
        %2433 = vmatpush.msra.mxu0 %v2388
        %2434 = vmatpush.msra.mxu0 %v2386
        %2435 = vmatpush.msra.mxu0 %v2384
        %2436 = vmatpush.msra.mxu0 %v2382
        %2437 = vmatpush.msra.mxu0 %v2380
        %2438 = vmatpush.msra.mxu0 %v2378
        %2439 = vmatpush.msra.mxu0 %v2376
        %2440 = vmatpush.msra.mxu0 %v2374
        %2441 = vmatpush.msra.mxu0 %v2372
        %2442 = vmatpush.msra.mxu0 %v2370
        %2443 = vmatmul.f32.gmra.mxu0 %v2404
        %v2444 = vpop.f32.mrf.mxu0
        %v2445 = vadd.f32 %v2425, %v2444
        %2446 = vdwg.mxu0
        %2447 = vmatpush.msra.mxu0 %v2369
        %2448 = vmatpush.msra.mxu0 %v2367
        %2449 = vmatpush.msra.mxu0 %v2365
        %2450 = vmatpush.msra.mxu0 %v2363
        %2451 = vmatpush.msra.mxu0 %v2361
        %2452 = vmatpush.msra.mxu0 %v2359
        %2453 = vmatpush.msra.mxu0 %v2357
        %2454 = vmatpush.msra.mxu0 %v2355
        %2455 = vmatpush.msra.mxu0 %v2353
        %2456 = vmatpush.msra.mxu0 %v2351
        %2457 = vmatpush.msra.mxu0 %v2349
        %2458 = vmatpush.msra.mxu0 %v2347
        %2459 = vmatpush.msra.mxu0 %v2345
        %2460 = vmatpush.msra.mxu0 %v2343
        %2461 = vmatpush.msra.mxu0 %v2341
        %2462 = vmatpush.msra.mxu0 %v2339
        %2463 = vmatmul.f32.gmra.mxu0 %v2403
        %v2464 = vpop.f32.mrf.mxu0
        %v2465 = vadd.f32 0.0, %v2464
        %2466 = vdwg.mxu0
        %2467 = vmatpush.msra.mxu0 %v2401
        %2468 = vmatpush.msra.mxu0 %v2399
        %2469 = vmatpush.msra.mxu0 %v2397
        %2470 = vmatpush.msra.mxu0 %v2395
        %2471 = vmatpush.msra.mxu0 %v2393
        %2472 = vmatpush.msra.mxu0 %v2391
        %2473 = vmatpush.msra.mxu0 %v2389
        %2474 = vmatpush.msra.mxu0 %v2387
        %2475 = vmatpush.msra.mxu0 %v2385
        %2476 = vmatpush.msra.mxu0 %v2383
        %2477 = vmatpush.msra.mxu0 %v2381
        %2478 = vmatpush.msra.mxu0 %v2379
        %2479 = vmatpush.msra.mxu0 %v2377
        %2480 = vmatpush.msra.mxu0 %v2375
        %2481 = vmatpush.msra.mxu0 %v2373
        %2482 = vmatpush.msra.mxu0 %v2371
        %2483 = vmatmul.f32.gmra.mxu0 %v2404
        %v2484 = vpop.f32.mrf.mxu0
        %v2485 = vadd.f32 %v2465, %v2484
        %2486 = vdwg.mxu0
        %s2487 = scalar_lea.vmem %s4, 64
        %v2488 = vld [vmem:[%s2487] sm:$0xff]
        %v2490 = vsel %vm1168, %v2488, 0
        %v2493 = vsel %vm1172, %v2445, 0
        %v2496 = vsel %vm1172, %v2485, 0
        %2498 = vmatpush.msra.mxu0 0.0
        %2499 = vmatpush.msra.mxu0 0.0
        %2500 = vmatpush.msra.mxu0 0.0
        %2501 = vmatpush.msra.mxu0 0.0
        %2502 = vmatpush.msra.mxu0 0.0
        %2503 = vmatpush.msra.mxu0 0.0
        %2504 = vmatpush.msra.mxu0 0.0
        %2505 = vmatpush.msra.mxu0 0.0
        %2506 = vmatpush.msra.mxu0 0.0
        %2507 = vmatpush.msra.mxu0 0.0
        %2508 = vmatpush.msra.mxu0 0.0
        %2509 = vmatpush.msra.mxu0 0.0
        %2510 = vmatpush.msra.mxu0 0.0
        %2511 = vmatpush.msra.mxu0 0.0
        %2512 = vmatpush.msra.mxu0 0.0
        %2513 = vmatpush.msra.mxu0 %v2493
        %2514 = vmatmul.f32.gmra.mxu0 %v2490
        %v2515 = vpop.f32.mrf.mxu0
        %v2516 = vadd.f32 0.0, %v2515
        %2517 = vdwg.mxu0
        %2518 = vmatpush.msra.mxu0 0.0
        %2519 = vmatpush.msra.mxu0 0.0
        %2520 = vmatpush.msra.mxu0 0.0
        %2521 = vmatpush.msra.mxu0 0.0
        %2522 = vmatpush.msra.mxu0 0.0
        %2523 = vmatpush.msra.mxu0 0.0
        %2524 = vmatpush.msra.mxu0 0.0
        %2525 = vmatpush.msra.mxu0 0.0
        %2526 = vmatpush.msra.mxu0 0.0
        %2527 = vmatpush.msra.mxu0 0.0
        %2528 = vmatpush.msra.mxu0 0.0
        %2529 = vmatpush.msra.mxu0 0.0
        %2530 = vmatpush.msra.mxu0 0.0
        %2531 = vmatpush.msra.mxu0 0.0
        %2532 = vmatpush.msra.mxu0 0.0
        %2533 = vmatpush.msra.mxu0 %v2496
        %2534 = vmatmul.f32.gmra.mxu0 %v2490
        %v2535 = vpop.f32.mrf.mxu0
        %v2536 = vadd.f32 0.0, %v2535
        %2537 = vdwg.mxu0
        %v2538 = vadd.f32 %v2335, %v2516
        %v2539 = vadd.f32 %v2336, %v2536
        %v2540 = vld [vmem:[%s5] sm:$0xff]
        %2542 = vset.pattern.permute.xlu0 0
        %2543 = vperm.xlu0 %2542, %v2540
        %v2544 = vpop.permute.xlu0 %2543
        %v2546 = vmul.f32 %v2538, %v2544
        %v2547 = vmul.f32 %v2539, %v2544
        %v2548 = vld [vmem:[%s6] sm:$0xff]
        %2550 = vset.pattern.permute.xlu0 0
        %2551 = vperm.xlu0 %2550, %v2548
        %v2552 = vpop.permute.xlu0 %2551
        %v2554 = vadd.f32 %v2546, %v2552
        %v2555 = vadd.f32 %v2547, %v2552
        %v2556 = vmax.f32 %v2554, 0.0
        %v2557 = vmax.f32 %v2555, 0.0
        %v2558 = vld [vmem:[#allocation14] sm:$0xff]
        %v2559 = vld [vmem:[#allocation14 + $0x8] sm:$0xff]
        %v2560 = vld [vmem:[#allocation14 + $0x10] sm:$0xff]
        %v2561 = vld [vmem:[#allocation14 + $0x18] sm:$0xff]
        %v2562 = vld [vmem:[#allocation14 + $0x20] sm:$0xff]
        %v2563 = vld [vmem:[#allocation14 + $0x28] sm:$0xff]
        %v2564 = vld [vmem:[#allocation14 + $0x30] sm:$0xff]
        %v2565 = vld [vmem:[#allocation14 + $0x38] sm:$0xff]
        %vm2566 = vcmask 523264
        %v2568 = vsel %vm2566, %v863, 0
        %2570 = vmatpush.msra.mxu0 0.0
        %2571 = vmatpush.msra.mxu0 0.0
        %2572 = vmatpush.msra.mxu0 0.0
        %2573 = vmatpush.msra.mxu0 0.0
        %2574 = vmatpush.msra.mxu0 0.0
        %2575 = vmatpush.msra.mxu0 0.0
        %2576 = vmatpush.msra.mxu0 0.0
        %2577 = vmatpush.msra.mxu0 0.0
        %2578 = vmatpush.msra.mxu0 %v2565
        %2579 = vmatpush.msra.mxu0 %v2564
        %2580 = vmatpush.msra.mxu0 %v2563
        %2581 = vmatpush.msra.mxu0 %v2562
        %2582 = vmatpush.msra.mxu0 %v2561
        %2583 = vmatpush.msra.mxu0 %v2560
        %2584 = vmatpush.msra.mxu0 %v2559
        %2585 = vmatpush.msra.mxu0 %v2558
        %2586 = vmatmul.f32.gmra.mxu0 %v2568
        %v2587 = vpop.f32.mrf.mxu0
        %v2588 = vadd.f32 0.0, %v2587
        %2589 = vdwg.mxu0
        %v2590 = vld [vmem:[%s7] sm:$0xff]
        %s2591 = scalar_lea.vmem [#allocation14], 64
        %v2592 = vld [vmem:[%s2591] sm:$0xff]
        %v2593 = vld [vmem:[%s2591 + $0x8] sm:$0xff]
        %v2594 = vld [vmem:[%s2591 + $0x10] sm:$0xff]
        %v2595 = vld [vmem:[%s2591 + $0x18] sm:$0xff]
        %v2596 = vld [vmem:[%s2591 + $0x20] sm:$0xff]
        %v2597 = vld [vmem:[%s2591 + $0x28] sm:$0xff]
        %v2598 = vld [vmem:[%s2591 + $0x30] sm:$0xff]
        %v2599 = vld [vmem:[%s2591 + $0x38] sm:$0xff]
        %2600 = vmatpush.msra.mxu0 0.0
        %2601 = vmatpush.msra.mxu0 0.0
        %2602 = vmatpush.msra.mxu0 0.0
        %2603 = vmatpush.msra.mxu0 0.0
        %2604 = vmatpush.msra.mxu0 0.0
        %2605 = vmatpush.msra.mxu0 0.0
        %2606 = vmatpush.msra.mxu0 0.0
        %2607 = vmatpush.msra.mxu0 0.0
        %2608 = vmatpush.msra.mxu0 %v2599
        %2609 = vmatpush.msra.mxu0 %v2598
        %2610 = vmatpush.msra.mxu0 %v2597
        %2611 = vmatpush.msra.mxu0 %v2596
        %2612 = vmatpush.msra.mxu0 %v2595
        %2613 = vmatpush.msra.mxu0 %v2594
        %2614 = vmatpush.msra.mxu0 %v2593
        %2615 = vmatpush.msra.mxu0 %v2592
        %2616 = vmatmul.f32.gmra.mxu0 %v2568
        %v2617 = vpop.f32.mrf.mxu0
        %v2618 = vadd.f32 0.0, %v2617
        %2619 = vdwg.mxu0
        %s2620 = scalar_lea.vmem %s7, 8
        %v2621 = vld [vmem:[%s2620] sm:$0xff]
        %vm2622 = vcmask 7168
        %v2624 = vsel %vm2622, %v2621, 0
        %vm2626 = vcmask 1040384
        %v2628 = vsel %vm2626, %v2618, 0
        %2630 = vmatpush.msra.mxu0 0.0
        %2631 = vmatpush.msra.mxu0 0.0
        %2632 = vmatpush.msra.mxu0 0.0
        %2633 = vmatpush.msra.mxu0 0.0
        %2634 = vmatpush.msra.mxu0 0.0
        %2635 = vmatpush.msra.mxu0 0.0
        %2636 = vmatpush.msra.mxu0 0.0
        %2637 = vmatpush.msra.mxu0 0.0
        %2638 = vmatpush.msra.mxu0 0.0
        %2639 = vmatpush.msra.mxu0 0.0
        %2640 = vmatpush.msra.mxu0 0.0
        %2641 = vmatpush.msra.mxu0 0.0
        %2642 = vmatpush.msra.mxu0 0.0
        %2643 = vmatpush.msra.mxu0 0.0
        %2644 = vmatpush.msra.mxu0 0.0
        %2645 = vmatpush.msra.mxu0 %v2628
        %2646 = vmatmul.f32.gmra.mxu0 %v2624
        %v2647 = vpop.f32.mrf.mxu0
        %v2648 = vadd.f32 0.0, %v2647
        %2649 = vdwg.mxu0
        %v2651 = vsel %vm2622, %v2590, 0
        %v2654 = vsel %vm2626, %v2588, 0
        %2656 = vmatpush.msra.mxu0 0.0
        %2657 = vmatpush.msra.mxu0 0.0
        %2658 = vmatpush.msra.mxu0 0.0
        %2659 = vmatpush.msra.mxu0 0.0
        %2660 = vmatpush.msra.mxu0 0.0
        %2661 = vmatpush.msra.mxu0 0.0
        %2662 = vmatpush.msra.mxu0 0.0
        %2663 = vmatpush.msra.mxu0 0.0
        %2664 = vmatpush.msra.mxu0 0.0
        %2665 = vmatpush.msra.mxu0 0.0
        %2666 = vmatpush.msra.mxu0 0.0
        %2667 = vmatpush.msra.mxu0 0.0
        %2668 = vmatpush.msra.mxu0 0.0
        %2669 = vmatpush.msra.mxu0 0.0
        %2670 = vmatpush.msra.mxu0 0.0
        %2671 = vmatpush.msra.mxu0 %v2654
        %2672 = vmatmul.f32.gmra.mxu0 %v2651
        %v2673 = vpop.f32.mrf.mxu0
        %v2674 = vadd.f32 %v2648, %v2673
        %2675 = vdwg.mxu0
        %s2676 = scalar_lea.vmem [#allocation14], 128
        %v2677 = vld [vmem:[%s2676] sm:$0xff]
        %v2678 = vld [vmem:[%s2676 + $0x8] sm:$0xff]
        %v2679 = vld [vmem:[%s2676 + $0x10] sm:$0xff]
        %v2680 = vld [vmem:[%s2676 + $0x18] sm:$0xff]
        %v2681 = vld [vmem:[%s2676 + $0x20] sm:$0xff]
        %v2682 = vld [vmem:[%s2676 + $0x28] sm:$0xff]
        %v2683 = vld [vmem:[%s2676 + $0x30] sm:$0xff]
        %v2684 = vld [vmem:[%s2676 + $0x38] sm:$0xff]
        %2685 = vmatpush.msra.mxu0 0.0
        %2686 = vmatpush.msra.mxu0 0.0
        %2687 = vmatpush.msra.mxu0 0.0
        %2688 = vmatpush.msra.mxu0 0.0
        %2689 = vmatpush.msra.mxu0 0.0
        %2690 = vmatpush.msra.mxu0 0.0
        %2691 = vmatpush.msra.mxu0 0.0
        %2692 = vmatpush.msra.mxu0 0.0
        %2693 = vmatpush.msra.mxu0 %v2684
        %2694 = vmatpush.msra.mxu0 %v2683
        %2695 = vmatpush.msra.mxu0 %v2682
        %2696 = vmatpush.msra.mxu0 %v2681
        %2697 = vmatpush.msra.mxu0 %v2680
        %2698 = vmatpush.msra.mxu0 %v2679
        %2699 = vmatpush.msra.mxu0 %v2678
        %2700 = vmatpush.msra.mxu0 %v2677
        %2701 = vmatmul.f32.gmra.mxu0 %v2568
        %v2702 = vpop.f32.mrf.mxu0
        %v2703 = vadd.f32 0.0, %v2702
        %2704 = vdwg.mxu0
        %s2705 = scalar_lea.vmem %s7, 16
        %v2706 = vld [vmem:[%s2705] sm:$0xff]
        %v2708 = vsel %vm2622, %v2706, 0
        %v2711 = vsel %vm2626, %v2703, 0
        %2713 = vmatpush.msra.mxu0 0.0
        %2714 = vmatpush.msra.mxu0 0.0
        %2715 = vmatpush.msra.mxu0 0.0
        %2716 = vmatpush.msra.mxu0 0.0
        %2717 = vmatpush.msra.mxu0 0.0
        %2718 = vmatpush.msra.mxu0 0.0
        %2719 = vmatpush.msra.mxu0 0.0
        %2720 = vmatpush.msra.mxu0 0.0
        %2721 = vmatpush.msra.mxu0 0.0
        %2722 = vmatpush.msra.mxu0 0.0
        %2723 = vmatpush.msra.mxu0 0.0
        %2724 = vmatpush.msra.mxu0 0.0
        %2725 = vmatpush.msra.mxu0 0.0
        %2726 = vmatpush.msra.mxu0 0.0
        %2727 = vmatpush.msra.mxu0 0.0
        %2728 = vmatpush.msra.mxu0 %v2711
        %2729 = vmatmul.f32.gmra.mxu0 %v2708
        %v2730 = vpop.f32.mrf.mxu0
        %v2731 = vadd.f32 0.0, %v2730
        %2732 = vdwg.mxu0
        %v2733 = vadd.f32 %v2674, %v2731
        %s2734 = scalar_lea.vmem [#allocation14], 192
        %v2735 = vld [vmem:[%s2734] sm:$0xff]
        %v2736 = vld [vmem:[%s2734 + $0x8] sm:$0xff]
        %v2737 = vld [vmem:[%s2734 + $0x10] sm:$0xff]
        %v2738 = vld [vmem:[%s2734 + $0x18] sm:$0xff]
        %v2739 = vld [vmem:[%s2734 + $0x20] sm:$0xff]
        %v2740 = vld [vmem:[%s2734 + $0x28] sm:$0xff]
        %v2741 = vld [vmem:[%s2734 + $0x30] sm:$0xff]
        %v2742 = vld [vmem:[%s2734 + $0x38] sm:$0xff]
        %2743 = vmatpush.msra.mxu0 0.0
        %2744 = vmatpush.msra.mxu0 0.0
        %2745 = vmatpush.msra.mxu0 0.0
        %2746 = vmatpush.msra.mxu0 0.0
        %2747 = vmatpush.msra.mxu0 0.0
        %2748 = vmatpush.msra.mxu0 0.0
        %2749 = vmatpush.msra.mxu0 0.0
        %2750 = vmatpush.msra.mxu0 0.0
        %2751 = vmatpush.msra.mxu0 %v2742
        %2752 = vmatpush.msra.mxu0 %v2741
        %2753 = vmatpush.msra.mxu0 %v2740
        %2754 = vmatpush.msra.mxu0 %v2739
        %2755 = vmatpush.msra.mxu0 %v2738
        %2756 = vmatpush.msra.mxu0 %v2737
        %2757 = vmatpush.msra.mxu0 %v2736
        %2758 = vmatpush.msra.mxu0 %v2735
        %2759 = vmatmul.f32.gmra.mxu0 %v2568
        %v2760 = vpop.f32.mrf.mxu0
        %v2761 = vadd.f32 0.0, %v2760
        %2762 = vdwg.mxu0
        %s2763 = scalar_lea.vmem %s7, 24
        %v2764 = vld [vmem:[%s2763] sm:$0xff]
        %v2766 = vsel %vm2622, %v2764, 0
        %v2769 = vsel %vm2626, %v2761, 0
        %2771 = vmatpush.msra.mxu0 0.0
        %2772 = vmatpush.msra.mxu0 0.0
        %2773 = vmatpush.msra.mxu0 0.0
        %2774 = vmatpush.msra.mxu0 0.0
        %2775 = vmatpush.msra.mxu0 0.0
        %2776 = vmatpush.msra.mxu0 0.0
        %2777 = vmatpush.msra.mxu0 0.0
        %2778 = vmatpush.msra.mxu0 0.0
        %2779 = vmatpush.msra.mxu0 0.0
        %2780 = vmatpush.msra.mxu0 0.0
        %2781 = vmatpush.msra.mxu0 0.0
        %2782 = vmatpush.msra.mxu0 0.0
        %2783 = vmatpush.msra.mxu0 0.0
        %2784 = vmatpush.msra.mxu0 0.0
        %2785 = vmatpush.msra.mxu0 0.0
        %2786 = vmatpush.msra.mxu0 %v2769
        %2787 = vmatmul.f32.gmra.mxu0 %v2766
        %v2788 = vpop.f32.mrf.mxu0
        %v2789 = vadd.f32 0.0, %v2788
        %2790 = vdwg.mxu0
        %v2791 = vadd.f32 %v2733, %v2789
        %s2792 = scalar_lea.vmem %s7, 32
        %v2793 = vld [vmem:[%s2792] sm:$0xff]
        %v2795 = vsel %vm2622, %v2793, 0
        %v2797 = vsel %vm2626, %v863, 0
        %2799 = vmatpush.msra.mxu0 0.0
        %2800 = vmatpush.msra.mxu0 0.0
        %2801 = vmatpush.msra.mxu0 0.0
        %2802 = vmatpush.msra.mxu0 0.0
        %2803 = vmatpush.msra.mxu0 0.0
        %2804 = vmatpush.msra.mxu0 0.0
        %2805 = vmatpush.msra.mxu0 0.0
        %2806 = vmatpush.msra.mxu0 0.0
        %2807 = vmatpush.msra.mxu0 0.0
        %2808 = vmatpush.msra.mxu0 0.0
        %2809 = vmatpush.msra.mxu0 0.0
        %2810 = vmatpush.msra.mxu0 0.0
        %2811 = vmatpush.msra.mxu0 0.0
        %2812 = vmatpush.msra.mxu0 0.0
        %2813 = vmatpush.msra.mxu0 0.0
        %2814 = vmatpush.msra.mxu0 %v2797
        %2815 = vmatmul.f32.gmra.mxu0 %v2795
        %v2816 = vpop.f32.mrf.mxu0
        %v2817 = vadd.f32 0.0, %v2816
        %2818 = vdwg.mxu0
        %v2819 = vadd.f32 %v2791, %v2817
        %s2820 = scalar_lea.vmem [#allocation14], 320
        %v2821 = vld [vmem:[%s2820] sm:$0xff]
        %v2822 = vld [vmem:[%s2820 + $0x8] sm:$0xff]
        %v2823 = vld [vmem:[%s2820 + $0x10] sm:$0xff]
        %v2824 = vld [vmem:[%s2820 + $0x18] sm:$0xff]
        %v2825 = vld [vmem:[%s2820 + $0x20] sm:$0xff]
        %v2826 = vld [vmem:[%s2820 + $0x28] sm:$0xff]
        %v2827 = vld [vmem:[%s2820 + $0x30] sm:$0xff]
        %v2828 = vld [vmem:[%s2820 + $0x38] sm:$0xff]
        %2829 = vmatpush.msra.mxu0 0.0
        %2830 = vmatpush.msra.mxu0 0.0
        %2831 = vmatpush.msra.mxu0 0.0
        %2832 = vmatpush.msra.mxu0 0.0
        %2833 = vmatpush.msra.mxu0 0.0
        %2834 = vmatpush.msra.mxu0 0.0
        %2835 = vmatpush.msra.mxu0 0.0
        %2836 = vmatpush.msra.mxu0 0.0
        %2837 = vmatpush.msra.mxu0 %v2828
        %2838 = vmatpush.msra.mxu0 %v2827
        %2839 = vmatpush.msra.mxu0 %v2826
        %2840 = vmatpush.msra.mxu0 %v2825
        %2841 = vmatpush.msra.mxu0 %v2824
        %2842 = vmatpush.msra.mxu0 %v2823
        %2843 = vmatpush.msra.mxu0 %v2822
        %2844 = vmatpush.msra.mxu0 %v2821
        %2845 = vmatmul.f32.gmra.mxu0 %v2568
        %v2846 = vpop.f32.mrf.mxu0
        %v2847 = vadd.f32 0.0, %v2846
        %2848 = vdwg.mxu0
        %s2849 = scalar_lea.vmem %s7, 40
        %v2850 = vld [vmem:[%s2849] sm:$0xff]
        %v2852 = vsel %vm2622, %v2850, 0
        %v2855 = vsel %vm2626, %v2847, 0
        %2857 = vmatpush.msra.mxu0 0.0
        %2858 = vmatpush.msra.mxu0 0.0
        %2859 = vmatpush.msra.mxu0 0.0
        %2860 = vmatpush.msra.mxu0 0.0
        %2861 = vmatpush.msra.mxu0 0.0
        %2862 = vmatpush.msra.mxu0 0.0
        %2863 = vmatpush.msra.mxu0 0.0
        %2864 = vmatpush.msra.mxu0 0.0
        %2865 = vmatpush.msra.mxu0 0.0
        %2866 = vmatpush.msra.mxu0 0.0
        %2867 = vmatpush.msra.mxu0 0.0
        %2868 = vmatpush.msra.mxu0 0.0
        %2869 = vmatpush.msra.mxu0 0.0
        %2870 = vmatpush.msra.mxu0 0.0
        %2871 = vmatpush.msra.mxu0 0.0
        %2872 = vmatpush.msra.mxu0 %v2855
        %2873 = vmatmul.f32.gmra.mxu0 %v2852
        %v2874 = vpop.f32.mrf.mxu0
        %v2875 = vadd.f32 0.0, %v2874
        %2876 = vdwg.mxu0
        %v2877 = vadd.f32 %v2819, %v2875
        %s2878 = scalar_lea.vmem [#allocation14], 384
        %v2879 = vld [vmem:[%s2878] sm:$0xff]
        %v2880 = vld [vmem:[%s2878 + $0x8] sm:$0xff]
        %v2881 = vld [vmem:[%s2878 + $0x10] sm:$0xff]
        %v2882 = vld [vmem:[%s2878 + $0x18] sm:$0xff]
        %v2883 = vld [vmem:[%s2878 + $0x20] sm:$0xff]
        %v2884 = vld [vmem:[%s2878 + $0x28] sm:$0xff]
        %v2885 = vld [vmem:[%s2878 + $0x30] sm:$0xff]
        %v2886 = vld [vmem:[%s2878 + $0x38] sm:$0xff]
        %2887 = vmatpush.msra.mxu0 0.0
        %2888 = vmatpush.msra.mxu0 0.0
        %2889 = vmatpush.msra.mxu0 0.0
        %2890 = vmatpush.msra.mxu0 0.0
        %2891 = vmatpush.msra.mxu0 0.0
        %2892 = vmatpush.msra.mxu0 0.0
        %2893 = vmatpush.msra.mxu0 0.0
        %2894 = vmatpush.msra.mxu0 0.0
        %2895 = vmatpush.msra.mxu0 %v2886
        %2896 = vmatpush.msra.mxu0 %v2885
        %2897 = vmatpush.msra.mxu0 %v2884
        %2898 = vmatpush.msra.mxu0 %v2883
        %2899 = vmatpush.msra.mxu0 %v2882
        %2900 = vmatpush.msra.mxu0 %v2881
        %2901 = vmatpush.msra.mxu0 %v2880
        %2902 = vmatpush.msra.mxu0 %v2879
        %2903 = vmatmul.f32.gmra.mxu0 %v2568
        %v2904 = vpop.f32.mrf.mxu0
        %v2905 = vadd.f32 0.0, %v2904
        %2906 = vdwg.mxu0
        %s2907 = scalar_lea.vmem %s7, 48
        %v2908 = vld [vmem:[%s2907] sm:$0xff]
        %v2910 = vsel %vm2622, %v2908, 0
        %v2913 = vsel %vm2626, %v2905, 0
        %2915 = vmatpush.msra.mxu0 0.0
        %2916 = vmatpush.msra.mxu0 0.0
        %2917 = vmatpush.msra.mxu0 0.0
        %2918 = vmatpush.msra.mxu0 0.0
        %2919 = vmatpush.msra.mxu0 0.0
        %2920 = vmatpush.msra.mxu0 0.0
        %2921 = vmatpush.msra.mxu0 0.0
        %2922 = vmatpush.msra.mxu0 0.0
        %2923 = vmatpush.msra.mxu0 0.0
        %2924 = vmatpush.msra.mxu0 0.0
        %2925 = vmatpush.msra.mxu0 0.0
        %2926 = vmatpush.msra.mxu0 0.0
        %2927 = vmatpush.msra.mxu0 0.0
        %2928 = vmatpush.msra.mxu0 0.0
        %2929 = vmatpush.msra.mxu0 0.0
        %2930 = vmatpush.msra.mxu0 %v2913
        %2931 = vmatmul.f32.gmra.mxu0 %v2910
        %v2932 = vpop.f32.mrf.mxu0
        %v2933 = vadd.f32 0.0, %v2932
        %2934 = vdwg.mxu0
        %v2935 = vadd.f32 %v2877, %v2933
        %s2936 = scalar_lea.vmem [#allocation14], 448
        %v2937 = vld [vmem:[%s2936] sm:$0xff]
        %v2938 = vld [vmem:[%s2936 + $0x8] sm:$0xff]
        %v2939 = vld [vmem:[%s2936 + $0x10] sm:$0xff]
        %v2940 = vld [vmem:[%s2936 + $0x18] sm:$0xff]
        %v2941 = vld [vmem:[%s2936 + $0x20] sm:$0xff]
        %v2942 = vld [vmem:[%s2936 + $0x28] sm:$0xff]
        %v2943 = vld [vmem:[%s2936 + $0x30] sm:$0xff]
        %v2944 = vld [vmem:[%s2936 + $0x38] sm:$0xff]
        %2945 = vmatpush.msra.mxu0 0.0
        %2946 = vmatpush.msra.mxu0 0.0
        %2947 = vmatpush.msra.mxu0 0.0
        %2948 = vmatpush.msra.mxu0 0.0
        %2949 = vmatpush.msra.mxu0 0.0
        %2950 = vmatpush.msra.mxu0 0.0
        %2951 = vmatpush.msra.mxu0 0.0
        %2952 = vmatpush.msra.mxu0 0.0
        %2953 = vmatpush.msra.mxu0 %v2944
        %2954 = vmatpush.msra.mxu0 %v2943
        %2955 = vmatpush.msra.mxu0 %v2942
        %2956 = vmatpush.msra.mxu0 %v2941
        %2957 = vmatpush.msra.mxu0 %v2940
        %2958 = vmatpush.msra.mxu0 %v2939
        %2959 = vmatpush.msra.mxu0 %v2938
        %2960 = vmatpush.msra.mxu0 %v2937
        %2961 = vmatmul.f32.gmra.mxu0 %v2568
        %v2962 = vpop.f32.mrf.mxu0
        %v2963 = vadd.f32 0.0, %v2962
        %2964 = vdwg.mxu0
        %s2965 = scalar_lea.vmem %s7, 56
        %v2966 = vld [vmem:[%s2965] sm:$0xff]
        %v2968 = vsel %vm2622, %v2966, 0
        %v2971 = vsel %vm2626, %v2963, 0
        %2973 = vmatpush.msra.mxu0 0.0
        %2974 = vmatpush.msra.mxu0 0.0
        %2975 = vmatpush.msra.mxu0 0.0
        %2976 = vmatpush.msra.mxu0 0.0
        %2977 = vmatpush.msra.mxu0 0.0
        %2978 = vmatpush.msra.mxu0 0.0
        %2979 = vmatpush.msra.mxu0 0.0
        %2980 = vmatpush.msra.mxu0 0.0
        %2981 = vmatpush.msra.mxu0 0.0
        %2982 = vmatpush.msra.mxu0 0.0
        %2983 = vmatpush.msra.mxu0 0.0
        %2984 = vmatpush.msra.mxu0 0.0
        %2985 = vmatpush.msra.mxu0 0.0
        %2986 = vmatpush.msra.mxu0 0.0
        %2987 = vmatpush.msra.mxu0 0.0
        %2988 = vmatpush.msra.mxu0 %v2971
        %2989 = vmatmul.f32.gmra.mxu0 %v2968
        %v2990 = vpop.f32.mrf.mxu0
        %v2991 = vadd.f32 0.0, %v2990
        %2992 = vdwg.mxu0
        %v2993 = vadd.f32 %v2935, %v2991
        %s2994 = scalar_lea.vmem [#allocation14], 512
        %v2995 = vld [vmem:[%s2994] sm:$0xff]
        %v2996 = vld [vmem:[%s2994 + $0x8] sm:$0xff]
        %v2997 = vld [vmem:[%s2994 + $0x10] sm:$0xff]
        %v2998 = vld [vmem:[%s2994 + $0x18] sm:$0xff]
        %v2999 = vld [vmem:[%s2994 + $0x20] sm:$0xff]
        %v3000 = vld [vmem:[%s2994 + $0x28] sm:$0xff]
        %v3001 = vld [vmem:[%s2994 + $0x30] sm:$0xff]
        %v3002 = vld [vmem:[%s2994 + $0x38] sm:$0xff]
        %3003 = vmatpush.msra.mxu0 0.0
        %3004 = vmatpush.msra.mxu0 0.0
        %3005 = vmatpush.msra.mxu0 0.0
        %3006 = vmatpush.msra.mxu0 0.0
        %3007 = vmatpush.msra.mxu0 0.0
        %3008 = vmatpush.msra.mxu0 0.0
        %3009 = vmatpush.msra.mxu0 0.0
        %3010 = vmatpush.msra.mxu0 0.0
        %3011 = vmatpush.msra.mxu0 %v3002
        %3012 = vmatpush.msra.mxu0 %v3001
        %3013 = vmatpush.msra.mxu0 %v3000
        %3014 = vmatpush.msra.mxu0 %v2999
        %3015 = vmatpush.msra.mxu0 %v2998
        %3016 = vmatpush.msra.mxu0 %v2997
        %3017 = vmatpush.msra.mxu0 %v2996
        %3018 = vmatpush.msra.mxu0 %v2995
        %3019 = vmatmul.f32.gmra.mxu0 %v2568
        %v3020 = vpop.f32.mrf.mxu0
        %v3021 = vadd.f32 0.0, %v3020
        %3022 = vdwg.mxu0
        %s3023 = scalar_lea.vmem %s7, 64
        %v3024 = vld [vmem:[%s3023] sm:$0xff]
        %v3026 = vsel %vm2622, %v3024, 0
        %v3029 = vsel %vm2626, %v3021, 0
        %3031 = vmatpush.msra.mxu0 0.0
        %3032 = vmatpush.msra.mxu0 0.0
        %3033 = vmatpush.msra.mxu0 0.0
        %3034 = vmatpush.msra.mxu0 0.0
        %3035 = vmatpush.msra.mxu0 0.0
        %3036 = vmatpush.msra.mxu0 0.0
        %3037 = vmatpush.msra.mxu0 0.0
        %3038 = vmatpush.msra.mxu0 0.0
        %3039 = vmatpush.msra.mxu0 0.0
        %3040 = vmatpush.msra.mxu0 0.0
        %3041 = vmatpush.msra.mxu0 0.0
        %3042 = vmatpush.msra.mxu0 0.0
        %3043 = vmatpush.msra.mxu0 0.0
        %3044 = vmatpush.msra.mxu0 0.0
        %3045 = vmatpush.msra.mxu0 0.0
        %3046 = vmatpush.msra.mxu0 %v3029
        %3047 = vmatmul.f32.gmra.mxu0 %v3026
        %v3048 = vpop.f32.mrf.mxu0
        %v3049 = vadd.f32 0.0, %v3048
        %3050 = vdwg.mxu0
        %v3051 = vadd.f32 %v2993, %v3049
        %v3052 = vld [vmem:[%s8] sm:$0xff]
        %3054 = vset.pattern.permute.xlu0 0
        %3055 = vperm.xlu0 %3054, %v3052
        %v3056 = vpop.permute.xlu0 %3055
        %v3058 = vmul.f32 %v3051, %v3056
        %v3059 = vld [vmem:[%s9] sm:$0xff]
        %3061 = vset.pattern.permute.xlu0 0
        %3062 = vperm.xlu0 %3061, %v3059
        %v3063 = vpop.permute.xlu0 %3062
        %v3065 = vadd.f32 %v3058, %v3063
        %v3066 = vmax.f32 %v3065, 0.0
        %v3068 = vsel %vm2566, %v3066, 0
        %3070 = vmatpush.msra.mxu0 0.0
        %3071 = vmatpush.msra.mxu0 0.0
        %3072 = vmatpush.msra.mxu0 0.0
        %3073 = vmatpush.msra.mxu0 0.0
        %3074 = vmatpush.msra.mxu0 0.0
        %3075 = vmatpush.msra.mxu0 0.0
        %3076 = vmatpush.msra.mxu0 0.0
        %3077 = vmatpush.msra.mxu0 0.0
        %3078 = vmatpush.msra.mxu0 %v2565
        %3079 = vmatpush.msra.mxu0 %v2564
        %3080 = vmatpush.msra.mxu0 %v2563
        %3081 = vmatpush.msra.mxu0 %v2562
        %3082 = vmatpush.msra.mxu0 %v2561
        %3083 = vmatpush.msra.mxu0 %v2560
        %3084 = vmatpush.msra.mxu0 %v2559
        %3085 = vmatpush.msra.mxu0 %v2558
        %3086 = vmatmul.f32.gmra.mxu0 %v3068
        %v3087 = vpop.f32.mrf.mxu0
        %v3088 = vadd.f32 0.0, %v3087
        %3089 = vdwg.mxu0
        %v3090 = vld [vmem:[%s10] sm:$0xff]
        %3091 = vmatpush.msra.mxu0 0.0
        %3092 = vmatpush.msra.mxu0 0.0
        %3093 = vmatpush.msra.mxu0 0.0
        %3094 = vmatpush.msra.mxu0 0.0
        %3095 = vmatpush.msra.mxu0 0.0
        %3096 = vmatpush.msra.mxu0 0.0
        %3097 = vmatpush.msra.mxu0 0.0
        %3098 = vmatpush.msra.mxu0 0.0
        %3099 = vmatpush.msra.mxu0 %v2599
        %3100 = vmatpush.msra.mxu0 %v2598
        %3101 = vmatpush.msra.mxu0 %v2597
        %3102 = vmatpush.msra.mxu0 %v2596
        %3103 = vmatpush.msra.mxu0 %v2595
        %3104 = vmatpush.msra.mxu0 %v2594
        %3105 = vmatpush.msra.mxu0 %v2593
        %3106 = vmatpush.msra.mxu0 %v2592
        %3107 = vmatmul.f32.gmra.mxu0 %v3068
        %v3108 = vpop.f32.mrf.mxu0
        %v3109 = vadd.f32 0.0, %v3108
        %3110 = vdwg.mxu0
        %s3111 = scalar_lea.vmem %s10, 8
        %v3112 = vld [vmem:[%s3111] sm:$0xff]
        %vm3113 = vcmask 64512
        %v3115 = vsel %vm3113, %v3112, 0
        %3117 = vmatpush.msra.mxu0 0.0
        %3118 = vmatpush.msra.mxu0 0.0
        %3119 = vmatpush.msra.mxu0 0.0
        %3120 = vmatpush.msra.mxu0 0.0
        %3121 = vmatpush.msra.mxu0 0.0
        %3122 = vmatpush.msra.mxu0 0.0
        %3123 = vmatpush.msra.mxu0 0.0
        %3124 = vmatpush.msra.mxu0 0.0
        %3125 = vmatpush.msra.mxu0 0.0
        %3126 = vmatpush.msra.mxu0 0.0
        %3127 = vmatpush.msra.mxu0 0.0
        %3128 = vmatpush.msra.mxu0 0.0
        %3129 = vmatpush.msra.mxu0 0.0
        %3130 = vmatpush.msra.mxu0 0.0
        %3131 = vmatpush.msra.mxu0 0.0
        %3132 = vmatpush.msra.mxu0 %v3109
        %3133 = vmatmul.f32.gmra.mxu0 %v3115
        %v3134 = vpop.f32.mrf.mxu0
        %v3135 = vadd.f32 0.0, %v3134
        %3136 = vdwg.mxu0
        %v3138 = vsel %vm3113, %v3090, 0
        %3140 = vmatpush.msra.mxu0 0.0
        %3141 = vmatpush.msra.mxu0 0.0
        %3142 = vmatpush.msra.mxu0 0.0
        %3143 = vmatpush.msra.mxu0 0.0
        %3144 = vmatpush.msra.mxu0 0.0
        %3145 = vmatpush.msra.mxu0 0.0
        %3146 = vmatpush.msra.mxu0 0.0
        %3147 = vmatpush.msra.mxu0 0.0
        %3148 = vmatpush.msra.mxu0 0.0
        %3149 = vmatpush.msra.mxu0 0.0
        %3150 = vmatpush.msra.mxu0 0.0
        %3151 = vmatpush.msra.mxu0 0.0
        %3152 = vmatpush.msra.mxu0 0.0
        %3153 = vmatpush.msra.mxu0 0.0
        %3154 = vmatpush.msra.mxu0 0.0
        %3155 = vmatpush.msra.mxu0 %v3088
        %3156 = vmatmul.f32.gmra.mxu0 %v3138
        %v3157 = vpop.f32.mrf.mxu0
        %v3158 = vadd.f32 %v3135, %v3157
        %3159 = vdwg.mxu0
        %3160 = vmatpush.msra.mxu0 0.0
        %3161 = vmatpush.msra.mxu0 0.0
        %3162 = vmatpush.msra.mxu0 0.0
        %3163 = vmatpush.msra.mxu0 0.0
        %3164 = vmatpush.msra.mxu0 0.0
        %3165 = vmatpush.msra.mxu0 0.0
        %3166 = vmatpush.msra.mxu0 0.0
        %3167 = vmatpush.msra.mxu0 0.0
        %3168 = vmatpush.msra.mxu0 %v2684
        %3169 = vmatpush.msra.mxu0 %v2683
        %3170 = vmatpush.msra.mxu0 %v2682
        %3171 = vmatpush.msra.mxu0 %v2681
        %3172 = vmatpush.msra.mxu0 %v2680
        %3173 = vmatpush.msra.mxu0 %v2679
        %3174 = vmatpush.msra.mxu0 %v2678
        %3175 = vmatpush.msra.mxu0 %v2677
        %3176 = vmatmul.f32.gmra.mxu0 %v3068
        %v3177 = vpop.f32.mrf.mxu0
        %v3178 = vadd.f32 0.0, %v3177
        %3179 = vdwg.mxu0
        %s3180 = scalar_lea.vmem %s10, 16
        %v3181 = vld [vmem:[%s3180] sm:$0xff]
        %v3183 = vsel %vm3113, %v3181, 0
        %3185 = vmatpush.msra.mxu0 0.0
        %3186 = vmatpush.msra.mxu0 0.0
        %3187 = vmatpush.msra.mxu0 0.0
        %3188 = vmatpush.msra.mxu0 0.0
        %3189 = vmatpush.msra.mxu0 0.0
        %3190 = vmatpush.msra.mxu0 0.0
        %3191 = vmatpush.msra.mxu0 0.0
        %3192 = vmatpush.msra.mxu0 0.0
        %3193 = vmatpush.msra.mxu0 0.0
        %3194 = vmatpush.msra.mxu0 0.0
        %3195 = vmatpush.msra.mxu0 0.0
        %3196 = vmatpush.msra.mxu0 0.0
        %3197 = vmatpush.msra.mxu0 0.0
        %3198 = vmatpush.msra.mxu0 0.0
        %3199 = vmatpush.msra.mxu0 0.0
        %3200 = vmatpush.msra.mxu0 %v3178
        %3201 = vmatmul.f32.gmra.mxu0 %v3183
        %v3202 = vpop.f32.mrf.mxu0
        %v3203 = vadd.f32 0.0, %v3202
        %3204 = vdwg.mxu0
        %v3205 = vadd.f32 %v3158, %v3203
        %3206 = vmatpush.msra.mxu0 0.0
        %3207 = vmatpush.msra.mxu0 0.0
        %3208 = vmatpush.msra.mxu0 0.0
        %3209 = vmatpush.msra.mxu0 0.0
        %3210 = vmatpush.msra.mxu0 0.0
        %3211 = vmatpush.msra.mxu0 0.0
        %3212 = vmatpush.msra.mxu0 0.0
        %3213 = vmatpush.msra.mxu0 0.0
        %3214 = vmatpush.msra.mxu0 %v2742
        %3215 = vmatpush.msra.mxu0 %v2741
        %3216 = vmatpush.msra.mxu0 %v2740
        %3217 = vmatpush.msra.mxu0 %v2739
        %3218 = vmatpush.msra.mxu0 %v2738
        %3219 = vmatpush.msra.mxu0 %v2737
        %3220 = vmatpush.msra.mxu0 %v2736
        %3221 = vmatpush.msra.mxu0 %v2735
        %3222 = vmatmul.f32.gmra.mxu0 %v3068
        %v3223 = vpop.f32.mrf.mxu0
        %v3224 = vadd.f32 0.0, %v3223
        %3225 = vdwg.mxu0
        %s3226 = scalar_lea.vmem %s10, 24
        %v3227 = vld [vmem:[%s3226] sm:$0xff]
        %v3229 = vsel %vm3113, %v3227, 0
        %3231 = vmatpush.msra.mxu0 0.0
        %3232 = vmatpush.msra.mxu0 0.0
        %3233 = vmatpush.msra.mxu0 0.0
        %3234 = vmatpush.msra.mxu0 0.0
        %3235 = vmatpush.msra.mxu0 0.0
        %3236 = vmatpush.msra.mxu0 0.0
        %3237 = vmatpush.msra.mxu0 0.0
        %3238 = vmatpush.msra.mxu0 0.0
        %3239 = vmatpush.msra.mxu0 0.0
        %3240 = vmatpush.msra.mxu0 0.0
        %3241 = vmatpush.msra.mxu0 0.0
        %3242 = vmatpush.msra.mxu0 0.0
        %3243 = vmatpush.msra.mxu0 0.0
        %3244 = vmatpush.msra.mxu0 0.0
        %3245 = vmatpush.msra.mxu0 0.0
        %3246 = vmatpush.msra.mxu0 %v3224
        %3247 = vmatmul.f32.gmra.mxu0 %v3229
        %v3248 = vpop.f32.mrf.mxu0
        %v3249 = vadd.f32 0.0, %v3248
        %3250 = vdwg.mxu0
        %v3251 = vadd.f32 %v3205, %v3249
        %s3252 = scalar_lea.vmem %s10, 32
        %v3253 = vld [vmem:[%s3252] sm:$0xff]
        %v3255 = vsel %vm3113, %v3253, 0
        %3257 = vmatpush.msra.mxu0 0.0
        %3258 = vmatpush.msra.mxu0 0.0
        %3259 = vmatpush.msra.mxu0 0.0
        %3260 = vmatpush.msra.mxu0 0.0
        %3261 = vmatpush.msra.mxu0 0.0
        %3262 = vmatpush.msra.mxu0 0.0
        %3263 = vmatpush.msra.mxu0 0.0
        %3264 = vmatpush.msra.mxu0 0.0
        %3265 = vmatpush.msra.mxu0 0.0
        %3266 = vmatpush.msra.mxu0 0.0
        %3267 = vmatpush.msra.mxu0 0.0
        %3268 = vmatpush.msra.mxu0 0.0
        %3269 = vmatpush.msra.mxu0 0.0
        %3270 = vmatpush.msra.mxu0 0.0
        %3271 = vmatpush.msra.mxu0 0.0
        %3272 = vmatpush.msra.mxu0 %v3066
        %3273 = vmatmul.f32.gmra.mxu0 %v3255
        %v3274 = vpop.f32.mrf.mxu0
        %v3275 = vadd.f32 0.0, %v3274
        %3276 = vdwg.mxu0
        %v3277 = vadd.f32 %v3251, %v3275
        %3278 = vmatpush.msra.mxu0 0.0
        %3279 = vmatpush.msra.mxu0 0.0
        %3280 = vmatpush.msra.mxu0 0.0
        %3281 = vmatpush.msra.mxu0 0.0
        %3282 = vmatpush.msra.mxu0 0.0
        %3283 = vmatpush.msra.mxu0 0.0
        %3284 = vmatpush.msra.mxu0 0.0
        %3285 = vmatpush.msra.mxu0 0.0
        %3286 = vmatpush.msra.mxu0 %v2828
        %3287 = vmatpush.msra.mxu0 %v2827
        %3288 = vmatpush.msra.mxu0 %v2826
        %3289 = vmatpush.msra.mxu0 %v2825
        %3290 = vmatpush.msra.mxu0 %v2824
        %3291 = vmatpush.msra.mxu0 %v2823
        %3292 = vmatpush.msra.mxu0 %v2822
        %3293 = vmatpush.msra.mxu0 %v2821
        %3294 = vmatmul.f32.gmra.mxu0 %v3068
        %v3295 = vpop.f32.mrf.mxu0
        %v3296 = vadd.f32 0.0, %v3295
        %3297 = vdwg.mxu0
        %s3298 = scalar_lea.vmem %s10, 40
        %v3299 = vld [vmem:[%s3298] sm:$0xff]
        %v3301 = vsel %vm3113, %v3299, 0
        %3303 = vmatpush.msra.mxu0 0.0
        %3304 = vmatpush.msra.mxu0 0.0
        %3305 = vmatpush.msra.mxu0 0.0
        %3306 = vmatpush.msra.mxu0 0.0
        %3307 = vmatpush.msra.mxu0 0.0
        %3308 = vmatpush.msra.mxu0 0.0
        %3309 = vmatpush.msra.mxu0 0.0
        %3310 = vmatpush.msra.mxu0 0.0
        %3311 = vmatpush.msra.mxu0 0.0
        %3312 = vmatpush.msra.mxu0 0.0
        %3313 = vmatpush.msra.mxu0 0.0
        %3314 = vmatpush.msra.mxu0 0.0
        %3315 = vmatpush.msra.mxu0 0.0
        %3316 = vmatpush.msra.mxu0 0.0
        %3317 = vmatpush.msra.mxu0 0.0
        %3318 = vmatpush.msra.mxu0 %v3296
        %3319 = vmatmul.f32.gmra.mxu0 %v3301
        %v3320 = vpop.f32.mrf.mxu0
        %v3321 = vadd.f32 0.0, %v3320
        %3322 = vdwg.mxu0
        %v3323 = vadd.f32 %v3277, %v3321
        %3324 = vmatpush.msra.mxu0 0.0
        %3325 = vmatpush.msra.mxu0 0.0
        %3326 = vmatpush.msra.mxu0 0.0
        %3327 = vmatpush.msra.mxu0 0.0
        %3328 = vmatpush.msra.mxu0 0.0
        %3329 = vmatpush.msra.mxu0 0.0
        %3330 = vmatpush.msra.mxu0 0.0
        %3331 = vmatpush.msra.mxu0 0.0
        %3332 = vmatpush.msra.mxu0 %v2886
        %3333 = vmatpush.msra.mxu0 %v2885
        %3334 = vmatpush.msra.mxu0 %v2884
        %3335 = vmatpush.msra.mxu0 %v2883
        %3336 = vmatpush.msra.mxu0 %v2882
        %3337 = vmatpush.msra.mxu0 %v2881
        %3338 = vmatpush.msra.mxu0 %v2880
        %3339 = vmatpush.msra.mxu0 %v2879
        %3340 = vmatmul.f32.gmra.mxu0 %v3068
        %v3341 = vpop.f32.mrf.mxu0
        %v3342 = vadd.f32 0.0, %v3341
        %3343 = vdwg.mxu0
        %s3344 = scalar_lea.vmem %s10, 48
        %v3345 = vld [vmem:[%s3344] sm:$0xff]
        %v3347 = vsel %vm3113, %v3345, 0
        %3349 = vmatpush.msra.mxu0 0.0
        %3350 = vmatpush.msra.mxu0 0.0
        %3351 = vmatpush.msra.mxu0 0.0
        %3352 = vmatpush.msra.mxu0 0.0
        %3353 = vmatpush.msra.mxu0 0.0
        %3354 = vmatpush.msra.mxu0 0.0
        %3355 = vmatpush.msra.mxu0 0.0
        %3356 = vmatpush.msra.mxu0 0.0
        %3357 = vmatpush.msra.mxu0 0.0
        %3358 = vmatpush.msra.mxu0 0.0
        %3359 = vmatpush.msra.mxu0 0.0
        %3360 = vmatpush.msra.mxu0 0.0
        %3361 = vmatpush.msra.mxu0 0.0
        %3362 = vmatpush.msra.mxu0 0.0
        %3363 = vmatpush.msra.mxu0 0.0
        %3364 = vmatpush.msra.mxu0 %v3342
        %3365 = vmatmul.f32.gmra.mxu0 %v3347
        %v3366 = vpop.f32.mrf.mxu0
        %v3367 = vadd.f32 0.0, %v3366
        %3368 = vdwg.mxu0
        %v3369 = vadd.f32 %v3323, %v3367
        %3370 = vmatpush.msra.mxu0 0.0
        %3371 = vmatpush.msra.mxu0 0.0
        %3372 = vmatpush.msra.mxu0 0.0
        %3373 = vmatpush.msra.mxu0 0.0
        %3374 = vmatpush.msra.mxu0 0.0
        %3375 = vmatpush.msra.mxu0 0.0
        %3376 = vmatpush.msra.mxu0 0.0
        %3377 = vmatpush.msra.mxu0 0.0
        %3378 = vmatpush.msra.mxu0 %v2944
        %3379 = vmatpush.msra.mxu0 %v2943
        %3380 = vmatpush.msra.mxu0 %v2942
        %3381 = vmatpush.msra.mxu0 %v2941
        %3382 = vmatpush.msra.mxu0 %v2940
        %3383 = vmatpush.msra.mxu0 %v2939
        %3384 = vmatpush.msra.mxu0 %v2938
        %3385 = vmatpush.msra.mxu0 %v2937
        %3386 = vmatmul.f32.gmra.mxu0 %v3068
        %v3387 = vpop.f32.mrf.mxu0
        %v3388 = vadd.f32 0.0, %v3387
        %3389 = vdwg.mxu0
        %s3390 = scalar_lea.vmem %s10, 56
        %v3391 = vld [vmem:[%s3390] sm:$0xff]
        %v3393 = vsel %vm3113, %v3391, 0
        %3395 = vmatpush.msra.mxu0 0.0
        %3396 = vmatpush.msra.mxu0 0.0
        %3397 = vmatpush.msra.mxu0 0.0
        %3398 = vmatpush.msra.mxu0 0.0
        %3399 = vmatpush.msra.mxu0 0.0
        %3400 = vmatpush.msra.mxu0 0.0
        %3401 = vmatpush.msra.mxu0 0.0
        %3402 = vmatpush.msra.mxu0 0.0
        %3403 = vmatpush.msra.mxu0 0.0
        %3404 = vmatpush.msra.mxu0 0.0
        %3405 = vmatpush.msra.mxu0 0.0
        %3406 = vmatpush.msra.mxu0 0.0
        %3407 = vmatpush.msra.mxu0 0.0
        %3408 = vmatpush.msra.mxu0 0.0
        %3409 = vmatpush.msra.mxu0 0.0
        %3410 = vmatpush.msra.mxu0 %v3388
        %3411 = vmatmul.f32.gmra.mxu0 %v3393
        %v3412 = vpop.f32.mrf.mxu0
        %v3413 = vadd.f32 0.0, %v3412
        %3414 = vdwg.mxu0
        %v3415 = vadd.f32 %v3369, %v3413
        %3416 = vmatpush.msra.mxu0 0.0
        %3417 = vmatpush.msra.mxu0 0.0
        %3418 = vmatpush.msra.mxu0 0.0
        %3419 = vmatpush.msra.mxu0 0.0
        %3420 = vmatpush.msra.mxu0 0.0
        %3421 = vmatpush.msra.mxu0 0.0
        %3422 = vmatpush.msra.mxu0 0.0
        %3423 = vmatpush.msra.mxu0 0.0
        %3424 = vmatpush.msra.mxu0 %v3002
        %3425 = vmatpush.msra.mxu0 %v3001
        %3426 = vmatpush.msra.mxu0 %v3000
        %3427 = vmatpush.msra.mxu0 %v2999
        %3428 = vmatpush.msra.mxu0 %v2998
        %3429 = vmatpush.msra.mxu0 %v2997
        %3430 = vmatpush.msra.mxu0 %v2996
        %3431 = vmatpush.msra.mxu0 %v2995
        %3432 = vmatmul.f32.gmra.mxu0 %v3068
        %v3433 = vpop.f32.mrf.mxu0
        %v3434 = vadd.f32 0.0, %v3433
        %3435 = vdwg.mxu0
        %s3436 = scalar_lea.vmem %s10, 64
        %v3437 = vld [vmem:[%s3436] sm:$0xff]
        %v3439 = vsel %vm3113, %v3437, 0
        %3441 = vmatpush.msra.mxu0 0.0
        %3442 = vmatpush.msra.mxu0 0.0
        %3443 = vmatpush.msra.mxu0 0.0
        %3444 = vmatpush.msra.mxu0 0.0
        %3445 = vmatpush.msra.mxu0 0.0
        %3446 = vmatpush.msra.mxu0 0.0
        %3447 = vmatpush.msra.mxu0 0.0
        %3448 = vmatpush.msra.mxu0 0.0
        %3449 = vmatpush.msra.mxu0 0.0
        %3450 = vmatpush.msra.mxu0 0.0
        %3451 = vmatpush.msra.mxu0 0.0
        %3452 = vmatpush.msra.mxu0 0.0
        %3453 = vmatpush.msra.mxu0 0.0
        %3454 = vmatpush.msra.mxu0 0.0
        %3455 = vmatpush.msra.mxu0 0.0
        %3456 = vmatpush.msra.mxu0 %v3434
        %3457 = vmatmul.f32.gmra.mxu0 %v3439
        %v3458 = vpop.f32.mrf.mxu0
        %v3459 = vadd.f32 0.0, %v3458
        %3460 = vdwg.mxu0
        %v3461 = vadd.f32 %v3415, %v3459
        %v3462 = vld [vmem:[%s11] sm:$0xff]
        %3464 = vset.pattern.permute.xlu0 0
        %3465 = vperm.xlu0 %3464, %v3462
        %v3466 = vpop.permute.xlu0 %3465
        %v3468 = vmul.f32 %v3461, %v3466
        %v3469 = vld [vmem:[%s12] sm:$0xff]
        %3471 = vset.pattern.permute.xlu0 0
        %3472 = vperm.xlu0 %3471, %v3469
        %v3473 = vpop.permute.xlu0 %3472
        %v3475 = vadd.f32 %v3468, %v3473
        %v3476 = vmax.f32 %v3475, 0.0
        %v3478 = vsel %vm2566, %v3476, 0
        %3480 = vmatpush.msra.mxu0 0.0
        %3481 = vmatpush.msra.mxu0 0.0
        %3482 = vmatpush.msra.mxu0 0.0
        %3483 = vmatpush.msra.mxu0 0.0
        %3484 = vmatpush.msra.mxu0 0.0
        %3485 = vmatpush.msra.mxu0 0.0
        %3486 = vmatpush.msra.mxu0 0.0
        %3487 = vmatpush.msra.mxu0 0.0
        %3488 = vmatpush.msra.mxu0 %v2828
        %3489 = vmatpush.msra.mxu0 %v2827
        %3490 = vmatpush.msra.mxu0 %v2826
        %3491 = vmatpush.msra.mxu0 %v2825
        %3492 = vmatpush.msra.mxu0 %v2824
        %3493 = vmatpush.msra.mxu0 %v2823
        %3494 = vmatpush.msra.mxu0 %v2822
        %3495 = vmatpush.msra.mxu0 %v2821
        %3496 = vmatmul.f32.gmra.mxu0 %v3478
        %v3497 = vpop.f32.mrf.mxu0
        %v3498 = vadd.f32 0.0, %v3497
        %3499 = vdwg.mxu0
        %3500 = vmatpush.msra.mxu0 0.0
        %3501 = vmatpush.msra.mxu0 0.0
        %3502 = vmatpush.msra.mxu0 0.0
        %3503 = vmatpush.msra.mxu0 0.0
        %3504 = vmatpush.msra.mxu0 0.0
        %3505 = vmatpush.msra.mxu0 0.0
        %3506 = vmatpush.msra.mxu0 0.0
        %3507 = vmatpush.msra.mxu0 0.0
        %3508 = vmatpush.msra.mxu0 %v2944
        %3509 = vmatpush.msra.mxu0 %v2943
        %3510 = vmatpush.msra.mxu0 %v2942
        %3511 = vmatpush.msra.mxu0 %v2941
        %3512 = vmatpush.msra.mxu0 %v2940
        %3513 = vmatpush.msra.mxu0 %v2939
        %3514 = vmatpush.msra.mxu0 %v2938
        %3515 = vmatpush.msra.mxu0 %v2937
        %3516 = vmatmul.f32.gmra.mxu0 %v3478
        %v3517 = vpop.f32.mrf.mxu0
        %v3518 = vadd.f32 0.0, %v3517
        %3519 = vdwg.mxu0
        %3520 = vmatpush.msra.mxu0 0.0
        %3521 = vmatpush.msra.mxu0 0.0
        %3522 = vmatpush.msra.mxu0 0.0
        %3523 = vmatpush.msra.mxu0 0.0
        %3524 = vmatpush.msra.mxu0 0.0
        %3525 = vmatpush.msra.mxu0 0.0
        %3526 = vmatpush.msra.mxu0 0.0
        %3527 = vmatpush.msra.mxu0 0.0
        %3528 = vmatpush.msra.mxu0 %v3002
        %3529 = vmatpush.msra.mxu0 %v3001
        %3530 = vmatpush.msra.mxu0 %v3000
        %3531 = vmatpush.msra.mxu0 %v2999
        %3532 = vmatpush.msra.mxu0 %v2998
        %3533 = vmatpush.msra.mxu0 %v2997
        %3534 = vmatpush.msra.mxu0 %v2996
        %3535 = vmatpush.msra.mxu0 %v2995
        %3536 = vmatmul.f32.gmra.mxu0 %v3478
        %v3537 = vpop.f32.mrf.mxu0
        %v3538 = vadd.f32 0.0, %v3537
        %3539 = vdwg.mxu0
        %s3540 = scalar_lea.vmem [#allocation8], 32
        %v3541 = vld [vmem:[%s3540] sm:$0xff]
        %v3543 = vsel %vm3113, %v3541, 0
        %3545 = vmatpush.msra.mxu0 0.0
        %3546 = vmatpush.msra.mxu0 0.0
        %3547 = vmatpush.msra.mxu0 0.0
        %3548 = vmatpush.msra.mxu0 0.0
        %3549 = vmatpush.msra.mxu0 0.0
        %3550 = vmatpush.msra.mxu0 0.0
        %3551 = vmatpush.msra.mxu0 0.0
        %3552 = vmatpush.msra.mxu0 0.0
        %3553 = vmatpush.msra.mxu0 0.0
        %3554 = vmatpush.msra.mxu0 0.0
        %3555 = vmatpush.msra.mxu0 0.0
        %3556 = vmatpush.msra.mxu0 0.0
        %3557 = vmatpush.msra.mxu0 0.0
        %3558 = vmatpush.msra.mxu0 0.0
        %3559 = vmatpush.msra.mxu0 0.0
        %3560 = vmatpush.msra.mxu0 %v3476
        %3561 = vmatmul.f32.gmra.mxu0 %v3543
        %v3562 = vpop.f32.mrf.mxu0
        %v3563 = vadd.f32 0.0, %v3562
        %3564 = vdwg.mxu0
        %s3565 = scalar_lea.vmem [#allocation8], 24
        %v3566 = vld [vmem:[%s3565] sm:$0xff]
        %s3567 = scalar_lea.vmem [#allocation8], 40
        %v3568 = vld [vmem:[%s3567] sm:$0xff]
        %v3570 = vsel %vm3113, %v3568, 0
        %3572 = vmatpush.msra.mxu0 0.0
        %3573 = vmatpush.msra.mxu0 0.0
        %3574 = vmatpush.msra.mxu0 0.0
        %3575 = vmatpush.msra.mxu0 0.0
        %3576 = vmatpush.msra.mxu0 0.0
        %3577 = vmatpush.msra.mxu0 0.0
        %3578 = vmatpush.msra.mxu0 0.0
        %3579 = vmatpush.msra.mxu0 0.0
        %3580 = vmatpush.msra.mxu0 0.0
        %3581 = vmatpush.msra.mxu0 0.0
        %3582 = vmatpush.msra.mxu0 0.0
        %3583 = vmatpush.msra.mxu0 0.0
        %3584 = vmatpush.msra.mxu0 0.0
        %3585 = vmatpush.msra.mxu0 0.0
        %3586 = vmatpush.msra.mxu0 0.0
        %3587 = vmatpush.msra.mxu0 %v3476
        %3588 = vmatmul.f32.gmra.mxu0 %v3570
        %v3589 = vpop.f32.mrf.mxu0
        %v3590 = vadd.f32 0.0, %v3589
        %3591 = vdwg.mxu0
        %v3593 = vsel %vm3113, %v3566, 0
        %3595 = vmatpush.msra.mxu0 0.0
        %3596 = vmatpush.msra.mxu0 0.0
        %3597 = vmatpush.msra.mxu0 0.0
        %3598 = vmatpush.msra.mxu0 0.0
        %3599 = vmatpush.msra.mxu0 0.0
        %3600 = vmatpush.msra.mxu0 0.0
        %3601 = vmatpush.msra.mxu0 0.0
        %3602 = vmatpush.msra.mxu0 0.0
        %3603 = vmatpush.msra.mxu0 0.0
        %3604 = vmatpush.msra.mxu0 0.0
        %3605 = vmatpush.msra.mxu0 0.0
        %3606 = vmatpush.msra.mxu0 0.0
        %3607 = vmatpush.msra.mxu0 0.0
        %3608 = vmatpush.msra.mxu0 0.0
        %3609 = vmatpush.msra.mxu0 0.0
        %3610 = vmatpush.msra.mxu0 %v3498
        %3611 = vmatmul.f32.gmra.mxu0 %v3593
        %v3612 = vpop.f32.mrf.mxu0
        %v3613 = vadd.f32 %v3590, %v3612
        %3614 = vdwg.mxu0
        %s3615 = scalar_lea.vmem [#allocation8], 8
        %v3616 = vld [vmem:[%s3615] sm:$0xff]
        %s3617 = scalar_lea.vmem [#allocation8], 56
        %v3618 = vld [vmem:[%s3617] sm:$0xff]
        %v3620 = vsel %vm3113, %v3618, 0
        %3622 = vmatpush.msra.mxu0 0.0
        %3623 = vmatpush.msra.mxu0 0.0
        %3624 = vmatpush.msra.mxu0 0.0
        %3625 = vmatpush.msra.mxu0 0.0
        %3626 = vmatpush.msra.mxu0 0.0
        %3627 = vmatpush.msra.mxu0 0.0
        %3628 = vmatpush.msra.mxu0 0.0
        %3629 = vmatpush.msra.mxu0 0.0
        %3630 = vmatpush.msra.mxu0 0.0
        %3631 = vmatpush.msra.mxu0 0.0
        %3632 = vmatpush.msra.mxu0 0.0
        %3633 = vmatpush.msra.mxu0 0.0
        %3634 = vmatpush.msra.mxu0 0.0
        %3635 = vmatpush.msra.mxu0 0.0
        %3636 = vmatpush.msra.mxu0 0.0
        %3637 = vmatpush.msra.mxu0 %v3476
        %3638 = vmatmul.f32.gmra.mxu0 %v3620
        %v3639 = vpop.f32.mrf.mxu0
        %v3640 = vadd.f32 0.0, %v3639
        %3641 = vdwg.mxu0
        %v3643 = vsel %vm3113, %v3616, 0
        %3645 = vmatpush.msra.mxu0 0.0
        %3646 = vmatpush.msra.mxu0 0.0
        %3647 = vmatpush.msra.mxu0 0.0
        %3648 = vmatpush.msra.mxu0 0.0
        %3649 = vmatpush.msra.mxu0 0.0
        %3650 = vmatpush.msra.mxu0 0.0
        %3651 = vmatpush.msra.mxu0 0.0
        %3652 = vmatpush.msra.mxu0 0.0
        %3653 = vmatpush.msra.mxu0 0.0
        %3654 = vmatpush.msra.mxu0 0.0
        %3655 = vmatpush.msra.mxu0 0.0
        %3656 = vmatpush.msra.mxu0 0.0
        %3657 = vmatpush.msra.mxu0 0.0
        %3658 = vmatpush.msra.mxu0 0.0
        %3659 = vmatpush.msra.mxu0 0.0
        %3660 = vmatpush.msra.mxu0 %v3518
        %3661 = vmatmul.f32.gmra.mxu0 %v3643
        %v3662 = vpop.f32.mrf.mxu0
        %v3663 = vadd.f32 %v3640, %v3662
        %3664 = vdwg.mxu0
        %v3665 = vld [vmem:[#allocation8] sm:$0xff]
        %s3666 = scalar_lea.vmem [#allocation8], 16
        %v3667 = vld [vmem:[%s3666] sm:$0xff]
        %v3669 = vsel %vm3113, %v3667, 0
        %3671 = vmatpush.msra.mxu0 0.0
        %3672 = vmatpush.msra.mxu0 0.0
        %3673 = vmatpush.msra.mxu0 0.0
        %3674 = vmatpush.msra.mxu0 0.0
        %3675 = vmatpush.msra.mxu0 0.0
        %3676 = vmatpush.msra.mxu0 0.0
        %3677 = vmatpush.msra.mxu0 0.0
        %3678 = vmatpush.msra.mxu0 0.0
        %3679 = vmatpush.msra.mxu0 0.0
        %3680 = vmatpush.msra.mxu0 0.0
        %3681 = vmatpush.msra.mxu0 0.0
        %3682 = vmatpush.msra.mxu0 0.0
        %3683 = vmatpush.msra.mxu0 0.0
        %3684 = vmatpush.msra.mxu0 0.0
        %3685 = vmatpush.msra.mxu0 0.0
        %3686 = vmatpush.msra.mxu0 %v3518
        %3687 = vmatmul.f32.gmra.mxu0 %v3669
        %v3688 = vpop.f32.mrf.mxu0
        %v3689 = vadd.f32 0.0, %v3688
        %3690 = vdwg.mxu0
        %v3692 = vsel %vm3113, %v3665, 0
        %3694 = vmatpush.msra.mxu0 0.0
        %3695 = vmatpush.msra.mxu0 0.0
        %3696 = vmatpush.msra.mxu0 0.0
        %3697 = vmatpush.msra.mxu0 0.0
        %3698 = vmatpush.msra.mxu0 0.0
        %3699 = vmatpush.msra.mxu0 0.0
        %3700 = vmatpush.msra.mxu0 0.0
        %3701 = vmatpush.msra.mxu0 0.0
        %3702 = vmatpush.msra.mxu0 0.0
        %3703 = vmatpush.msra.mxu0 0.0
        %3704 = vmatpush.msra.mxu0 0.0
        %3705 = vmatpush.msra.mxu0 0.0
        %3706 = vmatpush.msra.mxu0 0.0
        %3707 = vmatpush.msra.mxu0 0.0
        %3708 = vmatpush.msra.mxu0 0.0
        %3709 = vmatpush.msra.mxu0 %v3538
        %3710 = vmatmul.f32.gmra.mxu0 %v3692
        %v3711 = vpop.f32.mrf.mxu0
        %v3712 = vadd.f32 %v3689, %v3711
        %3713 = vdwg.mxu0
        %s3714 = scalar_lea.vmem [#allocation8], 48
        %v3715 = vld [vmem:[%s3714] sm:$0xff]
        %v3717 = vsel %vm3113, %v3715, 0
        %3719 = vmatpush.msra.mxu0 0.0
        %3720 = vmatpush.msra.mxu0 0.0
        %3721 = vmatpush.msra.mxu0 0.0
        %3722 = vmatpush.msra.mxu0 0.0
        %3723 = vmatpush.msra.mxu0 0.0
        %3724 = vmatpush.msra.mxu0 0.0
        %3725 = vmatpush.msra.mxu0 0.0
        %3726 = vmatpush.msra.mxu0 0.0
        %3727 = vmatpush.msra.mxu0 0.0
        %3728 = vmatpush.msra.mxu0 0.0
        %3729 = vmatpush.msra.mxu0 0.0
        %3730 = vmatpush.msra.mxu0 0.0
        %3731 = vmatpush.msra.mxu0 0.0
        %3732 = vmatpush.msra.mxu0 0.0
        %3733 = vmatpush.msra.mxu0 0.0
        %3734 = vmatpush.msra.mxu0 %v3498
        %3735 = vmatmul.f32.gmra.mxu0 %v3717
        %v3736 = vpop.f32.mrf.mxu0
        %v3737 = vadd.f32 0.0, %v3736
        %3738 = vdwg.mxu0
        %v3739 = vadd.f32 %v3712, %v3737
        %s3740 = scalar_lea.vmem [#allocation8], 64
        %v3741 = vld [vmem:[%s3740] sm:$0xff]
        %v3743 = vsel %vm3113, %v3741, 0
        %3745 = vmatpush.msra.mxu0 0.0
        %3746 = vmatpush.msra.mxu0 0.0
        %3747 = vmatpush.msra.mxu0 0.0
        %3748 = vmatpush.msra.mxu0 0.0
        %3749 = vmatpush.msra.mxu0 0.0
        %3750 = vmatpush.msra.mxu0 0.0
        %3751 = vmatpush.msra.mxu0 0.0
        %3752 = vmatpush.msra.mxu0 0.0
        %3753 = vmatpush.msra.mxu0 0.0
        %3754 = vmatpush.msra.mxu0 0.0
        %3755 = vmatpush.msra.mxu0 0.0
        %3756 = vmatpush.msra.mxu0 0.0
        %3757 = vmatpush.msra.mxu0 0.0
        %3758 = vmatpush.msra.mxu0 0.0
        %3759 = vmatpush.msra.mxu0 0.0
        %3760 = vmatpush.msra.mxu0 %v3476
        %3761 = vmatmul.f32.gmra.mxu0 %v3743
        %v3762 = vpop.f32.mrf.mxu0
        %v3763 = vadd.f32 0.0, %v3762
        %3764 = vdwg.mxu0
        %v3765 = vadd.f32 %v3739, %v3763
        %v3766 = vld [vmem:[#allocation10] sm:$0xff]
        %v3767 = vld [vmem:[#allocation10 + $0x8] sm:$0xff]
        %v3768 = vld [vmem:[#allocation10 + $0x10] sm:$0xff]
        %v3769 = vld [vmem:[#allocation10 + $0x18] sm:$0xff]
        %v3770 = vld [vmem:[#allocation10 + $0x20] sm:$0xff]
        %v3771 = vld [vmem:[#allocation10 + $0x28] sm:$0xff]
        %v3772 = vld [vmem:[#allocation10 + $0x30] sm:$0xff]
        %v3773 = vld [vmem:[#allocation10 + $0x38] sm:$0xff]
        %v3774 = vld [vmem:[#allocation10 + $0x40] sm:$0xff]
        %v3775 = vld [vmem:[#allocation10 + $0x48] sm:$0xff]
        %v3776 = vld [vmem:[#allocation10 + $0x50] sm:$0xff]
        %v3777 = vld [vmem:[#allocation10 + $0x58] sm:$0xff]
        %v3778 = vld [vmem:[#allocation10 + $0x60] sm:$0xff]
        %v3779 = vld [vmem:[#allocation10 + $0x68] sm:$0xff]
        %v3780 = vld [vmem:[#allocation10 + $0x70] sm:$0xff]
        %v3781 = vld [vmem:[#allocation10 + $0x78] sm:$0xff]
        %s3782 = scalar_lea.vmem [#allocation10], 128
        %v3783 = vld [vmem:[%s3782] sm:$0xff]
        %v3784 = vld [vmem:[%s3782 + $0x8] sm:$0xff]
        %v3785 = vld [vmem:[%s3782 + $0x10] sm:$0xff]
        %v3786 = vld [vmem:[%s3782 + $0x18] sm:$0xff]
        %v3787 = vld [vmem:[%s3782 + $0x20] sm:$0xff]
        %v3788 = vld [vmem:[%s3782 + $0x28] sm:$0xff]
        %v3789 = vld [vmem:[%s3782 + $0x30] sm:$0xff]
        %v3790 = vld [vmem:[%s3782 + $0x38] sm:$0xff]
        %v3791 = vld [vmem:[%s3782 + $0x40] sm:$0xff]
        %v3792 = vld [vmem:[%s3782 + $0x48] sm:$0xff]
        %v3793 = vld [vmem:[%s3782 + $0x50] sm:$0xff]
        %v3794 = vld [vmem:[%s3782 + $0x58] sm:$0xff]
        %v3795 = vld [vmem:[%s3782 + $0x60] sm:$0xff]
        %v3796 = vld [vmem:[%s3782 + $0x68] sm:$0xff]
        %v3797 = vld [vmem:[%s3782 + $0x70] sm:$0xff]
        %v3798 = vld [vmem:[%s3782 + $0x78] sm:$0xff]
        %v3800 = vsel %vm2566, %v3613, 0
        %3802 = vmatpush.msra.mxu0 0.0
        %3803 = vmatpush.msra.mxu0 0.0
        %3804 = vmatpush.msra.mxu0 0.0
        %3805 = vmatpush.msra.mxu0 0.0
        %3806 = vmatpush.msra.mxu0 0.0
        %3807 = vmatpush.msra.mxu0 0.0
        %3808 = vmatpush.msra.mxu0 0.0
        %3809 = vmatpush.msra.mxu0 0.0
        %3810 = vmatpush.msra.mxu0 %v3797
        %3811 = vmatpush.msra.mxu0 %v3795
        %3812 = vmatpush.msra.mxu0 %v3793
        %3813 = vmatpush.msra.mxu0 %v3791
        %3814 = vmatpush.msra.mxu0 %v3789
        %3815 = vmatpush.msra.mxu0 %v3787
        %3816 = vmatpush.msra.mxu0 %v3785
        %3817 = vmatpush.msra.mxu0 %v3783
        %3818 = vmatmul.f32.gmra.mxu0 %v3800
        %v3819 = vpop.f32.mrf.mxu0
        %v3820 = vadd.f32 0.0, %v3819
        %3821 = vdwg.mxu0
        %3822 = vmatpush.msra.mxu0 0.0
        %3823 = vmatpush.msra.mxu0 0.0
        %3824 = vmatpush.msra.mxu0 0.0
        %3825 = vmatpush.msra.mxu0 0.0
        %3826 = vmatpush.msra.mxu0 0.0
        %3827 = vmatpush.msra.mxu0 0.0
        %3828 = vmatpush.msra.mxu0 0.0
        %3829 = vmatpush.msra.mxu0 0.0
        %3830 = vmatpush.msra.mxu0 %v3798
        %3831 = vmatpush.msra.mxu0 %v3796
        %3832 = vmatpush.msra.mxu0 %v3794
        %3833 = vmatpush.msra.mxu0 %v3792
        %3834 = vmatpush.msra.mxu0 %v3790
        %3835 = vmatpush.msra.mxu0 %v3788
        %3836 = vmatpush.msra.mxu0 %v3786
        %3837 = vmatpush.msra.mxu0 %v3784
        %3838 = vmatmul.f32.gmra.mxu0 %v3800
        %v3839 = vpop.f32.mrf.mxu0
        %v3840 = vadd.f32 0.0, %v3839
        %3841 = vdwg.mxu0
        %v3843 = vsel %vm2566, %v3563, 0
        %3845 = vmatpush.msra.mxu0 0.0
        %3846 = vmatpush.msra.mxu0 0.0
        %3847 = vmatpush.msra.mxu0 0.0
        %3848 = vmatpush.msra.mxu0 0.0
        %3849 = vmatpush.msra.mxu0 0.0
        %3850 = vmatpush.msra.mxu0 0.0
        %3851 = vmatpush.msra.mxu0 0.0
        %3852 = vmatpush.msra.mxu0 0.0
        %3853 = vmatpush.msra.mxu0 %v3780
        %3854 = vmatpush.msra.mxu0 %v3778
        %3855 = vmatpush.msra.mxu0 %v3776
        %3856 = vmatpush.msra.mxu0 %v3774
        %3857 = vmatpush.msra.mxu0 %v3772
        %3858 = vmatpush.msra.mxu0 %v3770
        %3859 = vmatpush.msra.mxu0 %v3768
        %3860 = vmatpush.msra.mxu0 %v3766
        %3861 = vmatmul.f32.gmra.mxu0 %v3843
        %v3862 = vpop.f32.mrf.mxu0
        %v3863 = vadd.f32 %v3820, %v3862
        %3864 = vdwg.mxu0
        %3865 = vmatpush.msra.mxu0 0.0
        %3866 = vmatpush.msra.mxu0 0.0
        %3867 = vmatpush.msra.mxu0 0.0
        %3868 = vmatpush.msra.mxu0 0.0
        %3869 = vmatpush.msra.mxu0 0.0
        %3870 = vmatpush.msra.mxu0 0.0
        %3871 = vmatpush.msra.mxu0 0.0
        %3872 = vmatpush.msra.mxu0 0.0
        %3873 = vmatpush.msra.mxu0 %v3781
        %3874 = vmatpush.msra.mxu0 %v3779
        %3875 = vmatpush.msra.mxu0 %v3777
        %3876 = vmatpush.msra.mxu0 %v3775
        %3877 = vmatpush.msra.mxu0 %v3773
        %3878 = vmatpush.msra.mxu0 %v3771
        %3879 = vmatpush.msra.mxu0 %v3769
        %3880 = vmatpush.msra.mxu0 %v3767
        %3881 = vmatmul.f32.gmra.mxu0 %v3843
        %v3882 = vpop.f32.mrf.mxu0
        %v3883 = vadd.f32 %v3840, %v3882
        %3884 = vdwg.mxu0
        %s3885 = scalar_lea.vmem [#allocation10], 256
        %v3886 = vld [vmem:[%s3885] sm:$0xff]
        %v3887 = vld [vmem:[%s3885 + $0x8] sm:$0xff]
        %v3888 = vld [vmem:[%s3885 + $0x10] sm:$0xff]
        %v3889 = vld [vmem:[%s3885 + $0x18] sm:$0xff]
        %v3890 = vld [vmem:[%s3885 + $0x20] sm:$0xff]
        %v3891 = vld [vmem:[%s3885 + $0x28] sm:$0xff]
        %v3892 = vld [vmem:[%s3885 + $0x30] sm:$0xff]
        %v3893 = vld [vmem:[%s3885 + $0x38] sm:$0xff]
        %v3894 = vld [vmem:[%s3885 + $0x40] sm:$0xff]
        %v3895 = vld [vmem:[%s3885 + $0x48] sm:$0xff]
        %v3896 = vld [vmem:[%s3885 + $0x50] sm:$0xff]
        %v3897 = vld [vmem:[%s3885 + $0x58] sm:$0xff]
        %v3898 = vld [vmem:[%s3885 + $0x60] sm:$0xff]
        %v3899 = vld [vmem:[%s3885 + $0x68] sm:$0xff]
        %v3900 = vld [vmem:[%s3885 + $0x70] sm:$0xff]
        %v3901 = vld [vmem:[%s3885 + $0x78] sm:$0xff]
        %v3903 = vsel %vm2566, %v3663, 0
        %3905 = vmatpush.msra.mxu0 0.0
        %3906 = vmatpush.msra.mxu0 0.0
        %3907 = vmatpush.msra.mxu0 0.0
        %3908 = vmatpush.msra.mxu0 0.0
        %3909 = vmatpush.msra.mxu0 0.0
        %3910 = vmatpush.msra.mxu0 0.0
        %3911 = vmatpush.msra.mxu0 0.0
        %3912 = vmatpush.msra.mxu0 0.0
        %3913 = vmatpush.msra.mxu0 %v3900
        %3914 = vmatpush.msra.mxu0 %v3898
        %3915 = vmatpush.msra.mxu0 %v3896
        %3916 = vmatpush.msra.mxu0 %v3894
        %3917 = vmatpush.msra.mxu0 %v3892
        %3918 = vmatpush.msra.mxu0 %v3890
        %3919 = vmatpush.msra.mxu0 %v3888
        %3920 = vmatpush.msra.mxu0 %v3886
        %3921 = vmatmul.f32.gmra.mxu0 %v3903
        %v3922 = vpop.f32.mrf.mxu0
        %v3923 = vadd.f32 0.0, %v3922
        %3924 = vdwg.mxu0
        %3925 = vmatpush.msra.mxu0 0.0
        %3926 = vmatpush.msra.mxu0 0.0
        %3927 = vmatpush.msra.mxu0 0.0
        %3928 = vmatpush.msra.mxu0 0.0
        %3929 = vmatpush.msra.mxu0 0.0
        %3930 = vmatpush.msra.mxu0 0.0
        %3931 = vmatpush.msra.mxu0 0.0
        %3932 = vmatpush.msra.mxu0 0.0
        %3933 = vmatpush.msra.mxu0 %v3901
        %3934 = vmatpush.msra.mxu0 %v3899
        %3935 = vmatpush.msra.mxu0 %v3897
        %3936 = vmatpush.msra.mxu0 %v3895
        %3937 = vmatpush.msra.mxu0 %v3893
        %3938 = vmatpush.msra.mxu0 %v3891
        %3939 = vmatpush.msra.mxu0 %v3889
        %3940 = vmatpush.msra.mxu0 %v3887
        %3941 = vmatmul.f32.gmra.mxu0 %v3903
        %v3942 = vpop.f32.mrf.mxu0
        %v3943 = vadd.f32 0.0, %v3942
        %3944 = vdwg.mxu0
        %v3945 = vadd.f32 %v3863, %v3923
        %v3946 = vadd.f32 %v3883, %v3943
        %s3947 = scalar_lea.vmem [#allocation10], 384
        %v3948 = vld [vmem:[%s3947] sm:$0xff]
        %v3949 = vld [vmem:[%s3947 + $0x8] sm:$0xff]
        %v3950 = vld [vmem:[%s3947 + $0x10] sm:$0xff]
        %v3951 = vld [vmem:[%s3947 + $0x18] sm:$0xff]
        %v3952 = vld [vmem:[%s3947 + $0x20] sm:$0xff]
        %v3953 = vld [vmem:[%s3947 + $0x28] sm:$0xff]
        %v3954 = vld [vmem:[%s3947 + $0x30] sm:$0xff]
        %v3955 = vld [vmem:[%s3947 + $0x38] sm:$0xff]
        %v3956 = vld [vmem:[%s3947 + $0x40] sm:$0xff]
        %v3957 = vld [vmem:[%s3947 + $0x48] sm:$0xff]
        %v3958 = vld [vmem:[%s3947 + $0x50] sm:$0xff]
        %v3959 = vld [vmem:[%s3947 + $0x58] sm:$0xff]
        %v3960 = vld [vmem:[%s3947 + $0x60] sm:$0xff]
        %v3961 = vld [vmem:[%s3947 + $0x68] sm:$0xff]
        %v3962 = vld [vmem:[%s3947 + $0x70] sm:$0xff]
        %v3963 = vld [vmem:[%s3947 + $0x78] sm:$0xff]
        %v3965 = vsel %vm2566, %v3765, 0
        %3967 = vmatpush.msra.mxu0 0.0
        %3968 = vmatpush.msra.mxu0 0.0
        %3969 = vmatpush.msra.mxu0 0.0
        %3970 = vmatpush.msra.mxu0 0.0
        %3971 = vmatpush.msra.mxu0 0.0
        %3972 = vmatpush.msra.mxu0 0.0
        %3973 = vmatpush.msra.mxu0 0.0
        %3974 = vmatpush.msra.mxu0 0.0
        %3975 = vmatpush.msra.mxu0 %v3962
        %3976 = vmatpush.msra.mxu0 %v3960
        %3977 = vmatpush.msra.mxu0 %v3958
        %3978 = vmatpush.msra.mxu0 %v3956
        %3979 = vmatpush.msra.mxu0 %v3954
        %3980 = vmatpush.msra.mxu0 %v3952
        %3981 = vmatpush.msra.mxu0 %v3950
        %3982 = vmatpush.msra.mxu0 %v3948
        %3983 = vmatmul.f32.gmra.mxu0 %v3965
        %v3984 = vpop.f32.mrf.mxu0
        %v3985 = vadd.f32 0.0, %v3984
        %3986 = vdwg.mxu0
        %3987 = vmatpush.msra.mxu0 0.0
        %3988 = vmatpush.msra.mxu0 0.0
        %3989 = vmatpush.msra.mxu0 0.0
        %3990 = vmatpush.msra.mxu0 0.0
        %3991 = vmatpush.msra.mxu0 0.0
        %3992 = vmatpush.msra.mxu0 0.0
        %3993 = vmatpush.msra.mxu0 0.0
        %3994 = vmatpush.msra.mxu0 0.0
        %3995 = vmatpush.msra.mxu0 %v3963
        %3996 = vmatpush.msra.mxu0 %v3961
        %3997 = vmatpush.msra.mxu0 %v3959
        %3998 = vmatpush.msra.mxu0 %v3957
        %3999 = vmatpush.msra.mxu0 %v3955
        %4000 = vmatpush.msra.mxu0 %v3953
        %4001 = vmatpush.msra.mxu0 %v3951
        %4002 = vmatpush.msra.mxu0 %v3949
        %4003 = vmatmul.f32.gmra.mxu0 %v3965
        %v4004 = vpop.f32.mrf.mxu0
        %v4005 = vadd.f32 0.0, %v4004
        %4006 = vdwg.mxu0
        %v4007 = vadd.f32 %v3945, %v3985
        %v4008 = vadd.f32 %v3946, %v4005
        %v4009 = vld [vmem:[%s14] sm:$0xff]
        %4011 = vset.pattern.permute.xlu0 0
        %4012 = vperm.xlu0 %4011, %v4009
        %v4013 = vpop.permute.xlu0 %4012
        %v4015 = vmul.f32 %v4007, %v4013
        %v4016 = vmul.f32 %v4008, %v4013
        %v4017 = vld [vmem:[%s15] sm:$0xff]
        %4019 = vset.pattern.permute.xlu0 0
        %4020 = vperm.xlu0 %4019, %v4017
        %v4021 = vpop.permute.xlu0 %4020
        %v4023 = vadd.f32 %v4015, %v4021
        %v4024 = vadd.f32 %v4016, %v4021
        %v4025 = vmax.f32 %v4023, 0.0
        %v4026 = vmax.f32 %v4024, 0.0
        %4027 = vmatpush.msra.mxu0 %v895
        %4028 = vmatpush.msra.mxu0 %v893
        %4029 = vmatpush.msra.mxu0 %v891
        %4030 = vmatpush.msra.mxu0 %v889
        %4031 = vmatpush.msra.mxu0 %v887
        %4032 = vmatpush.msra.mxu0 %v885
        %4033 = vmatpush.msra.mxu0 %v883
        %4034 = vmatpush.msra.mxu0 %v881
        %4035 = vmatpush.msra.mxu0 %v879
        %4036 = vmatpush.msra.mxu0 %v877
        %4037 = vmatpush.msra.mxu0 %v875
        %4038 = vmatpush.msra.mxu0 %v873
        %4039 = vmatpush.msra.mxu0 %v871
        %4040 = vmatpush.msra.mxu0 %v869
        %4041 = vmatpush.msra.mxu0 %v867
        %4042 = vmatpush.msra.mxu0 %v865
        %4043 = vmatmul.f32.gmra.mxu0 %v4025
        %v4044 = vpop.f32.mrf.mxu0
        %v4045 = vadd.f32 0.0, %v4044
        %4046 = vdwg.mxu0
        %4047 = vmatpush.msra.mxu0 %v927
        %4048 = vmatpush.msra.mxu0 %v925
        %4049 = vmatpush.msra.mxu0 %v923
        %4050 = vmatpush.msra.mxu0 %v921
        %4051 = vmatpush.msra.mxu0 %v919
        %4052 = vmatpush.msra.mxu0 %v917
        %4053 = vmatpush.msra.mxu0 %v915
        %4054 = vmatpush.msra.mxu0 %v913
        %4055 = vmatpush.msra.mxu0 %v911
        %4056 = vmatpush.msra.mxu0 %v909
        %4057 = vmatpush.msra.mxu0 %v907
        %4058 = vmatpush.msra.mxu0 %v905
        %4059 = vmatpush.msra.mxu0 %v903
        %4060 = vmatpush.msra.mxu0 %v901
        %4061 = vmatpush.msra.mxu0 %v899
        %4062 = vmatpush.msra.mxu0 %v897
        %4063 = vmatmul.f32.gmra.mxu0 %v4026
        %v4064 = vpop.f32.mrf.mxu0
        %v4065 = vadd.f32 %v4045, %v4064
        %4066 = vdwg.mxu0
        %4067 = vmatpush.msra.mxu0 %v896
        %4068 = vmatpush.msra.mxu0 %v894
        %4069 = vmatpush.msra.mxu0 %v892
        %4070 = vmatpush.msra.mxu0 %v890
        %4071 = vmatpush.msra.mxu0 %v888
        %4072 = vmatpush.msra.mxu0 %v886
        %4073 = vmatpush.msra.mxu0 %v884
        %4074 = vmatpush.msra.mxu0 %v882
        %4075 = vmatpush.msra.mxu0 %v880
        %4076 = vmatpush.msra.mxu0 %v878
        %4077 = vmatpush.msra.mxu0 %v876
        %4078 = vmatpush.msra.mxu0 %v874
        %4079 = vmatpush.msra.mxu0 %v872
        %4080 = vmatpush.msra.mxu0 %v870
        %4081 = vmatpush.msra.mxu0 %v868
        %4082 = vmatpush.msra.mxu0 %v866
        %4083 = vmatmul.f32.gmra.mxu0 %v4025
        %v4084 = vpop.f32.mrf.mxu0
        %v4085 = vadd.f32 0.0, %v4084
        %4086 = vdwg.mxu0
        %4087 = vmatpush.msra.mxu0 %v928
        %4088 = vmatpush.msra.mxu0 %v926
        %4089 = vmatpush.msra.mxu0 %v924
        %4090 = vmatpush.msra.mxu0 %v922
        %4091 = vmatpush.msra.mxu0 %v920
        %4092 = vmatpush.msra.mxu0 %v918
        %4093 = vmatpush.msra.mxu0 %v916
        %4094 = vmatpush.msra.mxu0 %v914
        %4095 = vmatpush.msra.mxu0 %v912
        %4096 = vmatpush.msra.mxu0 %v910
        %4097 = vmatpush.msra.mxu0 %v908
        %4098 = vmatpush.msra.mxu0 %v906
        %4099 = vmatpush.msra.mxu0 %v904
        %4100 = vmatpush.msra.mxu0 %v902
        %4101 = vmatpush.msra.mxu0 %v900
        %4102 = vmatpush.msra.mxu0 %v898
        %4103 = vmatmul.f32.gmra.mxu0 %v4026
        %v4104 = vpop.f32.mrf.mxu0
        %v4105 = vadd.f32 %v4085, %v4104
        %4106 = vdwg.mxu0
        %v4107 = vld [vmem:[%s16] sm:$0xff]
        %4108 = vmatpush.msra.mxu0 %v1047
        %4109 = vmatpush.msra.mxu0 %v1045
        %4110 = vmatpush.msra.mxu0 %v1043
        %4111 = vmatpush.msra.mxu0 %v1041
        %4112 = vmatpush.msra.mxu0 %v1039
        %4113 = vmatpush.msra.mxu0 %v1037
        %4114 = vmatpush.msra.mxu0 %v1035
        %4115 = vmatpush.msra.mxu0 %v1033
        %4116 = vmatpush.msra.mxu0 %v1031
        %4117 = vmatpush.msra.mxu0 %v1029
        %4118 = vmatpush.msra.mxu0 %v1027
        %4119 = vmatpush.msra.mxu0 %v1025
        %4120 = vmatpush.msra.mxu0 %v1023
        %4121 = vmatpush.msra.mxu0 %v1021
        %4122 = vmatpush.msra.mxu0 %v1019
        %4123 = vmatpush.msra.mxu0 %v1017
        %4124 = vmatmul.f32.gmra.mxu0 %v4025
        %v4125 = vpop.f32.mrf.mxu0
        %v4126 = vadd.f32 0.0, %v4125
        %4127 = vdwg.mxu0
        %4128 = vmatpush.msra.mxu0 %v1079
        %4129 = vmatpush.msra.mxu0 %v1077
        %4130 = vmatpush.msra.mxu0 %v1075
        %4131 = vmatpush.msra.mxu0 %v1073
        %4132 = vmatpush.msra.mxu0 %v1071
        %4133 = vmatpush.msra.mxu0 %v1069
        %4134 = vmatpush.msra.mxu0 %v1067
        %4135 = vmatpush.msra.mxu0 %v1065
        %4136 = vmatpush.msra.mxu0 %v1063
        %4137 = vmatpush.msra.mxu0 %v1061
        %4138 = vmatpush.msra.mxu0 %v1059
        %4139 = vmatpush.msra.mxu0 %v1057
        %4140 = vmatpush.msra.mxu0 %v1055
        %4141 = vmatpush.msra.mxu0 %v1053
        %4142 = vmatpush.msra.mxu0 %v1051
        %4143 = vmatpush.msra.mxu0 %v1049
        %4144 = vmatmul.f32.gmra.mxu0 %v4026
        %v4145 = vpop.f32.mrf.mxu0
        %v4146 = vadd.f32 %v4126, %v4145
        %4147 = vdwg.mxu0
        %4148 = vmatpush.msra.mxu0 %v1048
        %4149 = vmatpush.msra.mxu0 %v1046
        %4150 = vmatpush.msra.mxu0 %v1044
        %4151 = vmatpush.msra.mxu0 %v1042
        %4152 = vmatpush.msra.mxu0 %v1040
        %4153 = vmatpush.msra.mxu0 %v1038
        %4154 = vmatpush.msra.mxu0 %v1036
        %4155 = vmatpush.msra.mxu0 %v1034
        %4156 = vmatpush.msra.mxu0 %v1032
        %4157 = vmatpush.msra.mxu0 %v1030
        %4158 = vmatpush.msra.mxu0 %v1028
        %4159 = vmatpush.msra.mxu0 %v1026
        %4160 = vmatpush.msra.mxu0 %v1024
        %4161 = vmatpush.msra.mxu0 %v1022
        %4162 = vmatpush.msra.mxu0 %v1020
        %4163 = vmatpush.msra.mxu0 %v1018
        %4164 = vmatmul.f32.gmra.mxu0 %v4025
        %v4165 = vpop.f32.mrf.mxu0
        %v4166 = vadd.f32 0.0, %v4165
        %4167 = vdwg.mxu0
        %4168 = vmatpush.msra.mxu0 %v1080
        %4169 = vmatpush.msra.mxu0 %v1078
        %4170 = vmatpush.msra.mxu0 %v1076
        %4171 = vmatpush.msra.mxu0 %v1074
        %4172 = vmatpush.msra.mxu0 %v1072
        %4173 = vmatpush.msra.mxu0 %v1070
        %4174 = vmatpush.msra.mxu0 %v1068
        %4175 = vmatpush.msra.mxu0 %v1066
        %4176 = vmatpush.msra.mxu0 %v1064
        %4177 = vmatpush.msra.mxu0 %v1062
        %4178 = vmatpush.msra.mxu0 %v1060
        %4179 = vmatpush.msra.mxu0 %v1058
        %4180 = vmatpush.msra.mxu0 %v1056
        %4181 = vmatpush.msra.mxu0 %v1054
        %4182 = vmatpush.msra.mxu0 %v1052
        %4183 = vmatpush.msra.mxu0 %v1050
        %4184 = vmatmul.f32.gmra.mxu0 %v4026
        %v4185 = vpop.f32.mrf.mxu0
        %v4186 = vadd.f32 %v4166, %v4185
        %4187 = vdwg.mxu0
        %s4188 = scalar_lea.vmem %s16, 8
        %v4189 = vld [vmem:[%s4188] sm:$0xff]
        %v4191 = vsel %vm3113, %v4189, 0
        %4193 = vmatpush.msra.mxu0 0.0
        %4194 = vmatpush.msra.mxu0 0.0
        %4195 = vmatpush.msra.mxu0 0.0
        %4196 = vmatpush.msra.mxu0 0.0
        %4197 = vmatpush.msra.mxu0 0.0
        %4198 = vmatpush.msra.mxu0 0.0
        %4199 = vmatpush.msra.mxu0 0.0
        %4200 = vmatpush.msra.mxu0 0.0
        %4201 = vmatpush.msra.mxu0 0.0
        %4202 = vmatpush.msra.mxu0 0.0
        %4203 = vmatpush.msra.mxu0 0.0
        %4204 = vmatpush.msra.mxu0 0.0
        %4205 = vmatpush.msra.mxu0 0.0
        %4206 = vmatpush.msra.mxu0 0.0
        %4207 = vmatpush.msra.mxu0 0.0
        %4208 = vmatpush.msra.mxu0 %v4146
        %4209 = vmatmul.f32.gmra.mxu0 %v4191
        %v4210 = vpop.f32.mrf.mxu0
        %v4211 = vadd.f32 0.0, %v4210
        %4212 = vdwg.mxu0
        %4213 = vmatpush.msra.mxu0 0.0
        %4214 = vmatpush.msra.mxu0 0.0
        %4215 = vmatpush.msra.mxu0 0.0
        %4216 = vmatpush.msra.mxu0 0.0
        %4217 = vmatpush.msra.mxu0 0.0
        %4218 = vmatpush.msra.mxu0 0.0
        %4219 = vmatpush.msra.mxu0 0.0
        %4220 = vmatpush.msra.mxu0 0.0
        %4221 = vmatpush.msra.mxu0 0.0
        %4222 = vmatpush.msra.mxu0 0.0
        %4223 = vmatpush.msra.mxu0 0.0
        %4224 = vmatpush.msra.mxu0 0.0
        %4225 = vmatpush.msra.mxu0 0.0
        %4226 = vmatpush.msra.mxu0 0.0
        %4227 = vmatpush.msra.mxu0 0.0
        %4228 = vmatpush.msra.mxu0 %v4186
        %4229 = vmatmul.f32.gmra.mxu0 %v4191
        %v4230 = vpop.f32.mrf.mxu0
        %v4231 = vadd.f32 0.0, %v4230
        %4232 = vdwg.mxu0
        %v4234 = vsel %vm3113, %v4107, 0
        %4236 = vmatpush.msra.mxu0 0.0
        %4237 = vmatpush.msra.mxu0 0.0
        %4238 = vmatpush.msra.mxu0 0.0
        %4239 = vmatpush.msra.mxu0 0.0
        %4240 = vmatpush.msra.mxu0 0.0
        %4241 = vmatpush.msra.mxu0 0.0
        %4242 = vmatpush.msra.mxu0 0.0
        %4243 = vmatpush.msra.mxu0 0.0
        %4244 = vmatpush.msra.mxu0 0.0
        %4245 = vmatpush.msra.mxu0 0.0
        %4246 = vmatpush.msra.mxu0 0.0
        %4247 = vmatpush.msra.mxu0 0.0
        %4248 = vmatpush.msra.mxu0 0.0
        %4249 = vmatpush.msra.mxu0 0.0
        %4250 = vmatpush.msra.mxu0 0.0
        %4251 = vmatpush.msra.mxu0 %v4065
        %4252 = vmatmul.f32.gmra.mxu0 %v4234
        %v4253 = vpop.f32.mrf.mxu0
        %v4254 = vadd.f32 %v4211, %v4253
        %4255 = vdwg.mxu0
        %4256 = vmatpush.msra.mxu0 0.0
        %4257 = vmatpush.msra.mxu0 0.0
        %4258 = vmatpush.msra.mxu0 0.0
        %4259 = vmatpush.msra.mxu0 0.0
        %4260 = vmatpush.msra.mxu0 0.0
        %4261 = vmatpush.msra.mxu0 0.0
        %4262 = vmatpush.msra.mxu0 0.0
        %4263 = vmatpush.msra.mxu0 0.0
        %4264 = vmatpush.msra.mxu0 0.0
        %4265 = vmatpush.msra.mxu0 0.0
        %4266 = vmatpush.msra.mxu0 0.0
        %4267 = vmatpush.msra.mxu0 0.0
        %4268 = vmatpush.msra.mxu0 0.0
        %4269 = vmatpush.msra.mxu0 0.0
        %4270 = vmatpush.msra.mxu0 0.0
        %4271 = vmatpush.msra.mxu0 %v4105
        %4272 = vmatmul.f32.gmra.mxu0 %v4234
        %v4273 = vpop.f32.mrf.mxu0
        %v4274 = vadd.f32 %v4231, %v4273
        %4275 = vdwg.mxu0
        %4276 = vmatpush.msra.mxu0 %v1299
        %4277 = vmatpush.msra.mxu0 %v1297
        %4278 = vmatpush.msra.mxu0 %v1295
        %4279 = vmatpush.msra.mxu0 %v1293
        %4280 = vmatpush.msra.mxu0 %v1291
        %4281 = vmatpush.msra.mxu0 %v1289
        %4282 = vmatpush.msra.mxu0 %v1287
        %4283 = vmatpush.msra.mxu0 %v1285
        %4284 = vmatpush.msra.mxu0 %v1283
        %4285 = vmatpush.msra.mxu0 %v1281
        %4286 = vmatpush.msra.mxu0 %v1279
        %4287 = vmatpush.msra.mxu0 %v1277
        %4288 = vmatpush.msra.mxu0 %v1275
        %4289 = vmatpush.msra.mxu0 %v1273
        %4290 = vmatpush.msra.mxu0 %v1271
        %4291 = vmatpush.msra.mxu0 %v1269
        %4292 = vmatmul.f32.gmra.mxu0 %v4025
        %v4293 = vpop.f32.mrf.mxu0
        %v4294 = vadd.f32 0.0, %v4293
        %4295 = vdwg.mxu0
        %4296 = vmatpush.msra.mxu0 %v1331
        %4297 = vmatpush.msra.mxu0 %v1329
        %4298 = vmatpush.msra.mxu0 %v1327
        %4299 = vmatpush.msra.mxu0 %v1325
        %4300 = vmatpush.msra.mxu0 %v1323
        %4301 = vmatpush.msra.mxu0 %v1321
        %4302 = vmatpush.msra.mxu0 %v1319
        %4303 = vmatpush.msra.mxu0 %v1317
        %4304 = vmatpush.msra.mxu0 %v1315
        %4305 = vmatpush.msra.mxu0 %v1313
        %4306 = vmatpush.msra.mxu0 %v1311
        %4307 = vmatpush.msra.mxu0 %v1309
        %4308 = vmatpush.msra.mxu0 %v1307
        %4309 = vmatpush.msra.mxu0 %v1305
        %4310 = vmatpush.msra.mxu0 %v1303
        %4311 = vmatpush.msra.mxu0 %v1301
        %4312 = vmatmul.f32.gmra.mxu0 %v4026
        %v4313 = vpop.f32.mrf.mxu0
        %v4314 = vadd.f32 %v4294, %v4313
        %4315 = vdwg.mxu0
        %4316 = vmatpush.msra.mxu0 %v1300
        %4317 = vmatpush.msra.mxu0 %v1298
        %4318 = vmatpush.msra.mxu0 %v1296
        %4319 = vmatpush.msra.mxu0 %v1294
        %4320 = vmatpush.msra.mxu0 %v1292
        %4321 = vmatpush.msra.mxu0 %v1290
        %4322 = vmatpush.msra.mxu0 %v1288
        %4323 = vmatpush.msra.mxu0 %v1286
        %4324 = vmatpush.msra.mxu0 %v1284
        %4325 = vmatpush.msra.mxu0 %v1282
        %4326 = vmatpush.msra.mxu0 %v1280
        %4327 = vmatpush.msra.mxu0 %v1278
        %4328 = vmatpush.msra.mxu0 %v1276
        %4329 = vmatpush.msra.mxu0 %v1274
        %4330 = vmatpush.msra.mxu0 %v1272
        %4331 = vmatpush.msra.mxu0 %v1270
        %4332 = vmatmul.f32.gmra.mxu0 %v4025
        %v4333 = vpop.f32.mrf.mxu0
        %v4334 = vadd.f32 0.0, %v4333
        %4335 = vdwg.mxu0
        %4336 = vmatpush.msra.mxu0 %v1332
        %4337 = vmatpush.msra.mxu0 %v1330
        %4338 = vmatpush.msra.mxu0 %v1328
        %4339 = vmatpush.msra.mxu0 %v1326
        %4340 = vmatpush.msra.mxu0 %v1324
        %4341 = vmatpush.msra.mxu0 %v1322
        %4342 = vmatpush.msra.mxu0 %v1320
        %4343 = vmatpush.msra.mxu0 %v1318
        %4344 = vmatpush.msra.mxu0 %v1316
        %4345 = vmatpush.msra.mxu0 %v1314
        %4346 = vmatpush.msra.mxu0 %v1312
        %4347 = vmatpush.msra.mxu0 %v1310
        %4348 = vmatpush.msra.mxu0 %v1308
        %4349 = vmatpush.msra.mxu0 %v1306
        %4350 = vmatpush.msra.mxu0 %v1304
        %4351 = vmatpush.msra.mxu0 %v1302
        %4352 = vmatmul.f32.gmra.mxu0 %v4026
        %v4353 = vpop.f32.mrf.mxu0
        %v4354 = vadd.f32 %v4334, %v4353
        %4355 = vdwg.mxu0
        %s4356 = scalar_lea.vmem %s16, 16
        %v4357 = vld [vmem:[%s4356] sm:$0xff]
        %v4359 = vsel %vm3113, %v4357, 0
        %4361 = vmatpush.msra.mxu0 0.0
        %4362 = vmatpush.msra.mxu0 0.0
        %4363 = vmatpush.msra.mxu0 0.0
        %4364 = vmatpush.msra.mxu0 0.0
        %4365 = vmatpush.msra.mxu0 0.0
        %4366 = vmatpush.msra.mxu0 0.0
        %4367 = vmatpush.msra.mxu0 0.0
        %4368 = vmatpush.msra.mxu0 0.0
        %4369 = vmatpush.msra.mxu0 0.0
        %4370 = vmatpush.msra.mxu0 0.0
        %4371 = vmatpush.msra.mxu0 0.0
        %4372 = vmatpush.msra.mxu0 0.0
        %4373 = vmatpush.msra.mxu0 0.0
        %4374 = vmatpush.msra.mxu0 0.0
        %4375 = vmatpush.msra.mxu0 0.0
        %4376 = vmatpush.msra.mxu0 %v4314
        %4377 = vmatmul.f32.gmra.mxu0 %v4359
        %v4378 = vpop.f32.mrf.mxu0
        %v4379 = vadd.f32 0.0, %v4378
        %4380 = vdwg.mxu0
        %4381 = vmatpush.msra.mxu0 0.0
        %4382 = vmatpush.msra.mxu0 0.0
        %4383 = vmatpush.msra.mxu0 0.0
        %4384 = vmatpush.msra.mxu0 0.0
        %4385 = vmatpush.msra.mxu0 0.0
        %4386 = vmatpush.msra.mxu0 0.0
        %4387 = vmatpush.msra.mxu0 0.0
        %4388 = vmatpush.msra.mxu0 0.0
        %4389 = vmatpush.msra.mxu0 0.0
        %4390 = vmatpush.msra.mxu0 0.0
        %4391 = vmatpush.msra.mxu0 0.0
        %4392 = vmatpush.msra.mxu0 0.0
        %4393 = vmatpush.msra.mxu0 0.0
        %4394 = vmatpush.msra.mxu0 0.0
        %4395 = vmatpush.msra.mxu0 0.0
        %4396 = vmatpush.msra.mxu0 %v4354
        %4397 = vmatmul.f32.gmra.mxu0 %v4359
        %v4398 = vpop.f32.mrf.mxu0
        %v4399 = vadd.f32 0.0, %v4398
        %4400 = vdwg.mxu0
        %v4401 = vadd.f32 %v4254, %v4379
        %v4402 = vadd.f32 %v4274, %v4399
        %4403 = vmatpush.msra.mxu0 %v1502
        %4404 = vmatpush.msra.mxu0 %v1500
        %4405 = vmatpush.msra.mxu0 %v1498
        %4406 = vmatpush.msra.mxu0 %v1496
        %4407 = vmatpush.msra.mxu0 %v1494
        %4408 = vmatpush.msra.mxu0 %v1492
        %4409 = vmatpush.msra.mxu0 %v1490
        %4410 = vmatpush.msra.mxu0 %v1488
        %4411 = vmatpush.msra.mxu0 %v1486
        %4412 = vmatpush.msra.mxu0 %v1484
        %4413 = vmatpush.msra.mxu0 %v1482
        %4414 = vmatpush.msra.mxu0 %v1480
        %4415 = vmatpush.msra.mxu0 %v1478
        %4416 = vmatpush.msra.mxu0 %v1476
        %4417 = vmatpush.msra.mxu0 %v1474
        %4418 = vmatpush.msra.mxu0 %v1472
        %4419 = vmatmul.f32.gmra.mxu0 %v4025
        %v4420 = vpop.f32.mrf.mxu0
        %v4421 = vadd.f32 0.0, %v4420
        %4422 = vdwg.mxu0
        %4423 = vmatpush.msra.mxu0 %v1534
        %4424 = vmatpush.msra.mxu0 %v1532
        %4425 = vmatpush.msra.mxu0 %v1530
        %4426 = vmatpush.msra.mxu0 %v1528
        %4427 = vmatpush.msra.mxu0 %v1526
        %4428 = vmatpush.msra.mxu0 %v1524
        %4429 = vmatpush.msra.mxu0 %v1522
        %4430 = vmatpush.msra.mxu0 %v1520
        %4431 = vmatpush.msra.mxu0 %v1518
        %4432 = vmatpush.msra.mxu0 %v1516
        %4433 = vmatpush.msra.mxu0 %v1514
        %4434 = vmatpush.msra.mxu0 %v1512
        %4435 = vmatpush.msra.mxu0 %v1510
        %4436 = vmatpush.msra.mxu0 %v1508
        %4437 = vmatpush.msra.mxu0 %v1506
        %4438 = vmatpush.msra.mxu0 %v1504
        %4439 = vmatmul.f32.gmra.mxu0 %v4026
        %v4440 = vpop.f32.mrf.mxu0
        %v4441 = vadd.f32 %v4421, %v4440
        %4442 = vdwg.mxu0
        %4443 = vmatpush.msra.mxu0 %v1503
        %4444 = vmatpush.msra.mxu0 %v1501
        %4445 = vmatpush.msra.mxu0 %v1499
        %4446 = vmatpush.msra.mxu0 %v1497
        %4447 = vmatpush.msra.mxu0 %v1495
        %4448 = vmatpush.msra.mxu0 %v1493
        %4449 = vmatpush.msra.mxu0 %v1491
        %4450 = vmatpush.msra.mxu0 %v1489
        %4451 = vmatpush.msra.mxu0 %v1487
        %4452 = vmatpush.msra.mxu0 %v1485
        %4453 = vmatpush.msra.mxu0 %v1483
        %4454 = vmatpush.msra.mxu0 %v1481
        %4455 = vmatpush.msra.mxu0 %v1479
        %4456 = vmatpush.msra.mxu0 %v1477
        %4457 = vmatpush.msra.mxu0 %v1475
        %4458 = vmatpush.msra.mxu0 %v1473
        %4459 = vmatmul.f32.gmra.mxu0 %v4025
        %v4460 = vpop.f32.mrf.mxu0
        %v4461 = vadd.f32 0.0, %v4460
        %4462 = vdwg.mxu0
        %4463 = vmatpush.msra.mxu0 %v1535
        %4464 = vmatpush.msra.mxu0 %v1533
        %4465 = vmatpush.msra.mxu0 %v1531
        %4466 = vmatpush.msra.mxu0 %v1529
        %4467 = vmatpush.msra.mxu0 %v1527
        %4468 = vmatpush.msra.mxu0 %v1525
        %4469 = vmatpush.msra.mxu0 %v1523
        %4470 = vmatpush.msra.mxu0 %v1521
        %4471 = vmatpush.msra.mxu0 %v1519
        %4472 = vmatpush.msra.mxu0 %v1517
        %4473 = vmatpush.msra.mxu0 %v1515
        %4474 = vmatpush.msra.mxu0 %v1513
        %4475 = vmatpush.msra.mxu0 %v1511
        %4476 = vmatpush.msra.mxu0 %v1509
        %4477 = vmatpush.msra.mxu0 %v1507
        %4478 = vmatpush.msra.mxu0 %v1505
        %4479 = vmatmul.f32.gmra.mxu0 %v4026
        %v4480 = vpop.f32.mrf.mxu0
        %v4481 = vadd.f32 %v4461, %v4480
        %4482 = vdwg.mxu0
        %s4483 = scalar_lea.vmem %s16, 24
        %v4484 = vld [vmem:[%s4483] sm:$0xff]
        %v4486 = vsel %vm3113, %v4484, 0
        %4488 = vmatpush.msra.mxu0 0.0
        %4489 = vmatpush.msra.mxu0 0.0
        %4490 = vmatpush.msra.mxu0 0.0
        %4491 = vmatpush.msra.mxu0 0.0
        %4492 = vmatpush.msra.mxu0 0.0
        %4493 = vmatpush.msra.mxu0 0.0
        %4494 = vmatpush.msra.mxu0 0.0
        %4495 = vmatpush.msra.mxu0 0.0
        %4496 = vmatpush.msra.mxu0 0.0
        %4497 = vmatpush.msra.mxu0 0.0
        %4498 = vmatpush.msra.mxu0 0.0
        %4499 = vmatpush.msra.mxu0 0.0
        %4500 = vmatpush.msra.mxu0 0.0
        %4501 = vmatpush.msra.mxu0 0.0
        %4502 = vmatpush.msra.mxu0 0.0
        %4503 = vmatpush.msra.mxu0 %v4441
        %4504 = vmatmul.f32.gmra.mxu0 %v4486
        %v4505 = vpop.f32.mrf.mxu0
        %v4506 = vadd.f32 0.0, %v4505
        %4507 = vdwg.mxu0
        %4508 = vmatpush.msra.mxu0 0.0
        %4509 = vmatpush.msra.mxu0 0.0
        %4510 = vmatpush.msra.mxu0 0.0
        %4511 = vmatpush.msra.mxu0 0.0
        %4512 = vmatpush.msra.mxu0 0.0
        %4513 = vmatpush.msra.mxu0 0.0
        %4514 = vmatpush.msra.mxu0 0.0
        %4515 = vmatpush.msra.mxu0 0.0
        %4516 = vmatpush.msra.mxu0 0.0
        %4517 = vmatpush.msra.mxu0 0.0
        %4518 = vmatpush.msra.mxu0 0.0
        %4519 = vmatpush.msra.mxu0 0.0
        %4520 = vmatpush.msra.mxu0 0.0
        %4521 = vmatpush.msra.mxu0 0.0
        %4522 = vmatpush.msra.mxu0 0.0
        %4523 = vmatpush.msra.mxu0 %v4481
        %4524 = vmatmul.f32.gmra.mxu0 %v4486
        %v4525 = vpop.f32.mrf.mxu0
        %v4526 = vadd.f32 0.0, %v4525
        %4527 = vdwg.mxu0
        %v4528 = vadd.f32 %v4401, %v4506
        %v4529 = vadd.f32 %v4402, %v4526
        %s4530 = scalar_lea.vmem %s16, 32
        %v4531 = vld [vmem:[%s4530] sm:$0xff]
        %v4533 = vsel %vm3113, %v4531, 0
        %4535 = vmatpush.msra.mxu0 0.0
        %4536 = vmatpush.msra.mxu0 0.0
        %4537 = vmatpush.msra.mxu0 0.0
        %4538 = vmatpush.msra.mxu0 0.0
        %4539 = vmatpush.msra.mxu0 0.0
        %4540 = vmatpush.msra.mxu0 0.0
        %4541 = vmatpush.msra.mxu0 0.0
        %4542 = vmatpush.msra.mxu0 0.0
        %4543 = vmatpush.msra.mxu0 0.0
        %4544 = vmatpush.msra.mxu0 0.0
        %4545 = vmatpush.msra.mxu0 0.0
        %4546 = vmatpush.msra.mxu0 0.0
        %4547 = vmatpush.msra.mxu0 0.0
        %4548 = vmatpush.msra.mxu0 0.0
        %4549 = vmatpush.msra.mxu0 0.0
        %4550 = vmatpush.msra.mxu0 %v4025
        %4551 = vmatmul.f32.gmra.mxu0 %v4533
        %v4552 = vpop.f32.mrf.mxu0
        %v4553 = vadd.f32 0.0, %v4552
        %4554 = vdwg.mxu0
        %4555 = vmatpush.msra.mxu0 0.0
        %4556 = vmatpush.msra.mxu0 0.0
        %4557 = vmatpush.msra.mxu0 0.0
        %4558 = vmatpush.msra.mxu0 0.0
        %4559 = vmatpush.msra.mxu0 0.0
        %4560 = vmatpush.msra.mxu0 0.0
        %4561 = vmatpush.msra.mxu0 0.0
        %4562 = vmatpush.msra.mxu0 0.0
        %4563 = vmatpush.msra.mxu0 0.0
        %4564 = vmatpush.msra.mxu0 0.0
        %4565 = vmatpush.msra.mxu0 0.0
        %4566 = vmatpush.msra.mxu0 0.0
        %4567 = vmatpush.msra.mxu0 0.0
        %4568 = vmatpush.msra.mxu0 0.0
        %4569 = vmatpush.msra.mxu0 0.0
        %4570 = vmatpush.msra.mxu0 %v4026
        %4571 = vmatmul.f32.gmra.mxu0 %v4533
        %v4572 = vpop.f32.mrf.mxu0
        %v4573 = vadd.f32 0.0, %v4572
        %4574 = vdwg.mxu0
        %v4575 = vadd.f32 %v4528, %v4553
        %v4576 = vadd.f32 %v4529, %v4573
        %4577 = vmatpush.msra.mxu0 %v1759
        %4578 = vmatpush.msra.mxu0 %v1757
        %4579 = vmatpush.msra.mxu0 %v1755
        %4580 = vmatpush.msra.mxu0 %v1753
        %4581 = vmatpush.msra.mxu0 %v1751
        %4582 = vmatpush.msra.mxu0 %v1749
        %4583 = vmatpush.msra.mxu0 %v1747
        %4584 = vmatpush.msra.mxu0 %v1745
        %4585 = vmatpush.msra.mxu0 %v1743
        %4586 = vmatpush.msra.mxu0 %v1741
        %4587 = vmatpush.msra.mxu0 %v1739
        %4588 = vmatpush.msra.mxu0 %v1737
        %4589 = vmatpush.msra.mxu0 %v1735
        %4590 = vmatpush.msra.mxu0 %v1733
        %4591 = vmatpush.msra.mxu0 %v1731
        %4592 = vmatpush.msra.mxu0 %v1729
        %4593 = vmatmul.f32.gmra.mxu0 %v4025
        %v4594 = vpop.f32.mrf.mxu0
        %v4595 = vadd.f32 0.0, %v4594
        %4596 = vdwg.mxu0
        %4597 = vmatpush.msra.mxu0 %v1791
        %4598 = vmatpush.msra.mxu0 %v1789
        %4599 = vmatpush.msra.mxu0 %v1787
        %4600 = vmatpush.msra.mxu0 %v1785
        %4601 = vmatpush.msra.mxu0 %v1783
        %4602 = vmatpush.msra.mxu0 %v1781
        %4603 = vmatpush.msra.mxu0 %v1779
        %4604 = vmatpush.msra.mxu0 %v1777
        %4605 = vmatpush.msra.mxu0 %v1775
        %4606 = vmatpush.msra.mxu0 %v1773
        %4607 = vmatpush.msra.mxu0 %v1771
        %4608 = vmatpush.msra.mxu0 %v1769
        %4609 = vmatpush.msra.mxu0 %v1767
        %4610 = vmatpush.msra.mxu0 %v1765
        %4611 = vmatpush.msra.mxu0 %v1763
        %4612 = vmatpush.msra.mxu0 %v1761
        %4613 = vmatmul.f32.gmra.mxu0 %v4026
        %v4614 = vpop.f32.mrf.mxu0
        %v4615 = vadd.f32 %v4595, %v4614
        %4616 = vdwg.mxu0
        %4617 = vmatpush.msra.mxu0 %v1760
        %4618 = vmatpush.msra.mxu0 %v1758
        %4619 = vmatpush.msra.mxu0 %v1756
        %4620 = vmatpush.msra.mxu0 %v1754
        %4621 = vmatpush.msra.mxu0 %v1752
        %4622 = vmatpush.msra.mxu0 %v1750
        %4623 = vmatpush.msra.mxu0 %v1748
        %4624 = vmatpush.msra.mxu0 %v1746
        %4625 = vmatpush.msra.mxu0 %v1744
        %4626 = vmatpush.msra.mxu0 %v1742
        %4627 = vmatpush.msra.mxu0 %v1740
        %4628 = vmatpush.msra.mxu0 %v1738
        %4629 = vmatpush.msra.mxu0 %v1736
        %4630 = vmatpush.msra.mxu0 %v1734
        %4631 = vmatpush.msra.mxu0 %v1732
        %4632 = vmatpush.msra.mxu0 %v1730
        %4633 = vmatmul.f32.gmra.mxu0 %v4025
        %v4634 = vpop.f32.mrf.mxu0
        %v4635 = vadd.f32 0.0, %v4634
        %4636 = vdwg.mxu0
        %4637 = vmatpush.msra.mxu0 %v1792
        %4638 = vmatpush.msra.mxu0 %v1790
        %4639 = vmatpush.msra.mxu0 %v1788
        %4640 = vmatpush.msra.mxu0 %v1786
        %4641 = vmatpush.msra.mxu0 %v1784
        %4642 = vmatpush.msra.mxu0 %v1782
        %4643 = vmatpush.msra.mxu0 %v1780
        %4644 = vmatpush.msra.mxu0 %v1778
        %4645 = vmatpush.msra.mxu0 %v1776
        %4646 = vmatpush.msra.mxu0 %v1774
        %4647 = vmatpush.msra.mxu0 %v1772
        %4648 = vmatpush.msra.mxu0 %v1770
        %4649 = vmatpush.msra.mxu0 %v1768
        %4650 = vmatpush.msra.mxu0 %v1766
        %4651 = vmatpush.msra.mxu0 %v1764
        %4652 = vmatpush.msra.mxu0 %v1762
        %4653 = vmatmul.f32.gmra.mxu0 %v4026
        %v4654 = vpop.f32.mrf.mxu0
        %v4655 = vadd.f32 %v4635, %v4654
        %4656 = vdwg.mxu0
        %s4657 = scalar_lea.vmem %s16, 40
        %v4658 = vld [vmem:[%s4657] sm:$0xff]
        %v4660 = vsel %vm3113, %v4658, 0
        %4662 = vmatpush.msra.mxu0 0.0
        %4663 = vmatpush.msra.mxu0 0.0
        %4664 = vmatpush.msra.mxu0 0.0
        %4665 = vmatpush.msra.mxu0 0.0
        %4666 = vmatpush.msra.mxu0 0.0
        %4667 = vmatpush.msra.mxu0 0.0
        %4668 = vmatpush.msra.mxu0 0.0
        %4669 = vmatpush.msra.mxu0 0.0
        %4670 = vmatpush.msra.mxu0 0.0
        %4671 = vmatpush.msra.mxu0 0.0
        %4672 = vmatpush.msra.mxu0 0.0
        %4673 = vmatpush.msra.mxu0 0.0
        %4674 = vmatpush.msra.mxu0 0.0
        %4675 = vmatpush.msra.mxu0 0.0
        %4676 = vmatpush.msra.mxu0 0.0
        %4677 = vmatpush.msra.mxu0 %v4615
        %4678 = vmatmul.f32.gmra.mxu0 %v4660
        %v4679 = vpop.f32.mrf.mxu0
        %v4680 = vadd.f32 0.0, %v4679
        %4681 = vdwg.mxu0
        %4682 = vmatpush.msra.mxu0 0.0
        %4683 = vmatpush.msra.mxu0 0.0
        %4684 = vmatpush.msra.mxu0 0.0
        %4685 = vmatpush.msra.mxu0 0.0
        %4686 = vmatpush.msra.mxu0 0.0
        %4687 = vmatpush.msra.mxu0 0.0
        %4688 = vmatpush.msra.mxu0 0.0
        %4689 = vmatpush.msra.mxu0 0.0
        %4690 = vmatpush.msra.mxu0 0.0
        %4691 = vmatpush.msra.mxu0 0.0
        %4692 = vmatpush.msra.mxu0 0.0
        %4693 = vmatpush.msra.mxu0 0.0
        %4694 = vmatpush.msra.mxu0 0.0
        %4695 = vmatpush.msra.mxu0 0.0
        %4696 = vmatpush.msra.mxu0 0.0
        %4697 = vmatpush.msra.mxu0 %v4655
        %4698 = vmatmul.f32.gmra.mxu0 %v4660
        %v4699 = vpop.f32.mrf.mxu0
        %v4700 = vadd.f32 0.0, %v4699
        %4701 = vdwg.mxu0
        %v4702 = vadd.f32 %v4575, %v4680
        %v4703 = vadd.f32 %v4576, %v4700
        %4704 = vmatpush.msra.mxu0 %v1962
        %4705 = vmatpush.msra.mxu0 %v1960
        %4706 = vmatpush.msra.mxu0 %v1958
        %4707 = vmatpush.msra.mxu0 %v1956
        %4708 = vmatpush.msra.mxu0 %v1954
        %4709 = vmatpush.msra.mxu0 %v1952
        %4710 = vmatpush.msra.mxu0 %v1950
        %4711 = vmatpush.msra.mxu0 %v1948
        %4712 = vmatpush.msra.mxu0 %v1946
        %4713 = vmatpush.msra.mxu0 %v1944
        %4714 = vmatpush.msra.mxu0 %v1942
        %4715 = vmatpush.msra.mxu0 %v1940
        %4716 = vmatpush.msra.mxu0 %v1938
        %4717 = vmatpush.msra.mxu0 %v1936
        %4718 = vmatpush.msra.mxu0 %v1934
        %4719 = vmatpush.msra.mxu0 %v1932
        %4720 = vmatmul.f32.gmra.mxu0 %v4025
        %v4721 = vpop.f32.mrf.mxu0
        %v4722 = vadd.f32 0.0, %v4721
        %4723 = vdwg.mxu0
        %4724 = vmatpush.msra.mxu0 %v1994
        %4725 = vmatpush.msra.mxu0 %v1992
        %4726 = vmatpush.msra.mxu0 %v1990
        %4727 = vmatpush.msra.mxu0 %v1988
        %4728 = vmatpush.msra.mxu0 %v1986
        %4729 = vmatpush.msra.mxu0 %v1984
        %4730 = vmatpush.msra.mxu0 %v1982
        %4731 = vmatpush.msra.mxu0 %v1980
        %4732 = vmatpush.msra.mxu0 %v1978
        %4733 = vmatpush.msra.mxu0 %v1976
        %4734 = vmatpush.msra.mxu0 %v1974
        %4735 = vmatpush.msra.mxu0 %v1972
        %4736 = vmatpush.msra.mxu0 %v1970
        %4737 = vmatpush.msra.mxu0 %v1968
        %4738 = vmatpush.msra.mxu0 %v1966
        %4739 = vmatpush.msra.mxu0 %v1964
        %4740 = vmatmul.f32.gmra.mxu0 %v4026
        %v4741 = vpop.f32.mrf.mxu0
        %v4742 = vadd.f32 %v4722, %v4741
        %4743 = vdwg.mxu0
        %4744 = vmatpush.msra.mxu0 %v1963
        %4745 = vmatpush.msra.mxu0 %v1961
        %4746 = vmatpush.msra.mxu0 %v1959
        %4747 = vmatpush.msra.mxu0 %v1957
        %4748 = vmatpush.msra.mxu0 %v1955
        %4749 = vmatpush.msra.mxu0 %v1953
        %4750 = vmatpush.msra.mxu0 %v1951
        %4751 = vmatpush.msra.mxu0 %v1949
        %4752 = vmatpush.msra.mxu0 %v1947
        %4753 = vmatpush.msra.mxu0 %v1945
        %4754 = vmatpush.msra.mxu0 %v1943
        %4755 = vmatpush.msra.mxu0 %v1941
        %4756 = vmatpush.msra.mxu0 %v1939
        %4757 = vmatpush.msra.mxu0 %v1937
        %4758 = vmatpush.msra.mxu0 %v1935
        %4759 = vmatpush.msra.mxu0 %v1933
        %4760 = vmatmul.f32.gmra.mxu0 %v4025
        %v4761 = vpop.f32.mrf.mxu0
        %v4762 = vadd.f32 0.0, %v4761
        %4763 = vdwg.mxu0
        %4764 = vmatpush.msra.mxu0 %v1995
        %4765 = vmatpush.msra.mxu0 %v1993
        %4766 = vmatpush.msra.mxu0 %v1991
        %4767 = vmatpush.msra.mxu0 %v1989
        %4768 = vmatpush.msra.mxu0 %v1987
        %4769 = vmatpush.msra.mxu0 %v1985
        %4770 = vmatpush.msra.mxu0 %v1983
        %4771 = vmatpush.msra.mxu0 %v1981
        %4772 = vmatpush.msra.mxu0 %v1979
        %4773 = vmatpush.msra.mxu0 %v1977
        %4774 = vmatpush.msra.mxu0 %v1975
        %4775 = vmatpush.msra.mxu0 %v1973
        %4776 = vmatpush.msra.mxu0 %v1971
        %4777 = vmatpush.msra.mxu0 %v1969
        %4778 = vmatpush.msra.mxu0 %v1967
        %4779 = vmatpush.msra.mxu0 %v1965
        %4780 = vmatmul.f32.gmra.mxu0 %v4026
        %v4781 = vpop.f32.mrf.mxu0
        %v4782 = vadd.f32 %v4762, %v4781
        %4783 = vdwg.mxu0
        %s4784 = scalar_lea.vmem %s16, 48
        %v4785 = vld [vmem:[%s4784] sm:$0xff]
        %v4787 = vsel %vm3113, %v4785, 0
        %4789 = vmatpush.msra.mxu0 0.0
        %4790 = vmatpush.msra.mxu0 0.0
        %4791 = vmatpush.msra.mxu0 0.0
        %4792 = vmatpush.msra.mxu0 0.0
        %4793 = vmatpush.msra.mxu0 0.0
        %4794 = vmatpush.msra.mxu0 0.0
        %4795 = vmatpush.msra.mxu0 0.0
        %4796 = vmatpush.msra.mxu0 0.0
        %4797 = vmatpush.msra.mxu0 0.0
        %4798 = vmatpush.msra.mxu0 0.0
        %4799 = vmatpush.msra.mxu0 0.0
        %4800 = vmatpush.msra.mxu0 0.0
        %4801 = vmatpush.msra.mxu0 0.0
        %4802 = vmatpush.msra.mxu0 0.0
        %4803 = vmatpush.msra.mxu0 0.0
        %4804 = vmatpush.msra.mxu0 %v4742
        %4805 = vmatmul.f32.gmra.mxu0 %v4787
        %v4806 = vpop.f32.mrf.mxu0
        %v4807 = vadd.f32 0.0, %v4806
        %4808 = vdwg.mxu0
        %4809 = vmatpush.msra.mxu0 0.0
        %4810 = vmatpush.msra.mxu0 0.0
        %4811 = vmatpush.msra.mxu0 0.0
        %4812 = vmatpush.msra.mxu0 0.0
        %4813 = vmatpush.msra.mxu0 0.0
        %4814 = vmatpush.msra.mxu0 0.0
        %4815 = vmatpush.msra.mxu0 0.0
        %4816 = vmatpush.msra.mxu0 0.0
        %4817 = vmatpush.msra.mxu0 0.0
        %4818 = vmatpush.msra.mxu0 0.0
        %4819 = vmatpush.msra.mxu0 0.0
        %4820 = vmatpush.msra.mxu0 0.0
        %4821 = vmatpush.msra.mxu0 0.0
        %4822 = vmatpush.msra.mxu0 0.0
        %4823 = vmatpush.msra.mxu0 0.0
        %4824 = vmatpush.msra.mxu0 %v4782
        %4825 = vmatmul.f32.gmra.mxu0 %v4787
        %v4826 = vpop.f32.mrf.mxu0
        %v4827 = vadd.f32 0.0, %v4826
        %4828 = vdwg.mxu0
        %v4829 = vadd.f32 %v4702, %v4807
        %v4830 = vadd.f32 %v4703, %v4827
        %4831 = vmatpush.msra.mxu0 %v2165
        %4832 = vmatpush.msra.mxu0 %v2163
        %4833 = vmatpush.msra.mxu0 %v2161
        %4834 = vmatpush.msra.mxu0 %v2159
        %4835 = vmatpush.msra.mxu0 %v2157
        %4836 = vmatpush.msra.mxu0 %v2155
        %4837 = vmatpush.msra.mxu0 %v2153
        %4838 = vmatpush.msra.mxu0 %v2151
        %4839 = vmatpush.msra.mxu0 %v2149
        %4840 = vmatpush.msra.mxu0 %v2147
        %4841 = vmatpush.msra.mxu0 %v2145
        %4842 = vmatpush.msra.mxu0 %v2143
        %4843 = vmatpush.msra.mxu0 %v2141
        %4844 = vmatpush.msra.mxu0 %v2139
        %4845 = vmatpush.msra.mxu0 %v2137
        %4846 = vmatpush.msra.mxu0 %v2135
        %4847 = vmatmul.f32.gmra.mxu0 %v4025
        %v4848 = vpop.f32.mrf.mxu0
        %v4849 = vadd.f32 0.0, %v4848
        %4850 = vdwg.mxu0
        %4851 = vmatpush.msra.mxu0 %v2197
        %4852 = vmatpush.msra.mxu0 %v2195
        %4853 = vmatpush.msra.mxu0 %v2193
        %4854 = vmatpush.msra.mxu0 %v2191
        %4855 = vmatpush.msra.mxu0 %v2189
        %4856 = vmatpush.msra.mxu0 %v2187
        %4857 = vmatpush.msra.mxu0 %v2185
        %4858 = vmatpush.msra.mxu0 %v2183
        %4859 = vmatpush.msra.mxu0 %v2181
        %4860 = vmatpush.msra.mxu0 %v2179
        %4861 = vmatpush.msra.mxu0 %v2177
        %4862 = vmatpush.msra.mxu0 %v2175
        %4863 = vmatpush.msra.mxu0 %v2173
        %4864 = vmatpush.msra.mxu0 %v2171
        %4865 = vmatpush.msra.mxu0 %v2169
        %4866 = vmatpush.msra.mxu0 %v2167
        %4867 = vmatmul.f32.gmra.mxu0 %v4026
        %v4868 = vpop.f32.mrf.mxu0
        %v4869 = vadd.f32 %v4849, %v4868
        %4870 = vdwg.mxu0
        %4871 = vmatpush.msra.mxu0 %v2166
        %4872 = vmatpush.msra.mxu0 %v2164
        %4873 = vmatpush.msra.mxu0 %v2162
        %4874 = vmatpush.msra.mxu0 %v2160
        %4875 = vmatpush.msra.mxu0 %v2158
        %4876 = vmatpush.msra.mxu0 %v2156
        %4877 = vmatpush.msra.mxu0 %v2154
        %4878 = vmatpush.msra.mxu0 %v2152
        %4879 = vmatpush.msra.mxu0 %v2150
        %4880 = vmatpush.msra.mxu0 %v2148
        %4881 = vmatpush.msra.mxu0 %v2146
        %4882 = vmatpush.msra.mxu0 %v2144
        %4883 = vmatpush.msra.mxu0 %v2142
        %4884 = vmatpush.msra.mxu0 %v2140
        %4885 = vmatpush.msra.mxu0 %v2138
        %4886 = vmatpush.msra.mxu0 %v2136
        %4887 = vmatmul.f32.gmra.mxu0 %v4025
        %v4888 = vpop.f32.mrf.mxu0
        %v4889 = vadd.f32 0.0, %v4888
        %4890 = vdwg.mxu0
        %4891 = vmatpush.msra.mxu0 %v2198
        %4892 = vmatpush.msra.mxu0 %v2196
        %4893 = vmatpush.msra.mxu0 %v2194
        %4894 = vmatpush.msra.mxu0 %v2192
        %4895 = vmatpush.msra.mxu0 %v2190
        %4896 = vmatpush.msra.mxu0 %v2188
        %4897 = vmatpush.msra.mxu0 %v2186
        %4898 = vmatpush.msra.mxu0 %v2184
        %4899 = vmatpush.msra.mxu0 %v2182
        %4900 = vmatpush.msra.mxu0 %v2180
        %4901 = vmatpush.msra.mxu0 %v2178
        %4902 = vmatpush.msra.mxu0 %v2176
        %4903 = vmatpush.msra.mxu0 %v2174
        %4904 = vmatpush.msra.mxu0 %v2172
        %4905 = vmatpush.msra.mxu0 %v2170
        %4906 = vmatpush.msra.mxu0 %v2168
        %4907 = vmatmul.f32.gmra.mxu0 %v4026
        %v4908 = vpop.f32.mrf.mxu0
        %v4909 = vadd.f32 %v4889, %v4908
        %4910 = vdwg.mxu0
        %s4911 = scalar_lea.vmem %s16, 56
        %v4912 = vld [vmem:[%s4911] sm:$0xff]
        %v4914 = vsel %vm3113, %v4912, 0
        %4916 = vmatpush.msra.mxu0 0.0
        %4917 = vmatpush.msra.mxu0 0.0
        %4918 = vmatpush.msra.mxu0 0.0
        %4919 = vmatpush.msra.mxu0 0.0
        %4920 = vmatpush.msra.mxu0 0.0
        %4921 = vmatpush.msra.mxu0 0.0
        %4922 = vmatpush.msra.mxu0 0.0
        %4923 = vmatpush.msra.mxu0 0.0
        %4924 = vmatpush.msra.mxu0 0.0
        %4925 = vmatpush.msra.mxu0 0.0
        %4926 = vmatpush.msra.mxu0 0.0
        %4927 = vmatpush.msra.mxu0 0.0
        %4928 = vmatpush.msra.mxu0 0.0
        %4929 = vmatpush.msra.mxu0 0.0
        %4930 = vmatpush.msra.mxu0 0.0
        %4931 = vmatpush.msra.mxu0 %v4869
        %4932 = vmatmul.f32.gmra.mxu0 %v4914
        %v4933 = vpop.f32.mrf.mxu0
        %v4934 = vadd.f32 0.0, %v4933
        %4935 = vdwg.mxu0
        %4936 = vmatpush.msra.mxu0 0.0
        %4937 = vmatpush.msra.mxu0 0.0
        %4938 = vmatpush.msra.mxu0 0.0
        %4939 = vmatpush.msra.mxu0 0.0
        %4940 = vmatpush.msra.mxu0 0.0
        %4941 = vmatpush.msra.mxu0 0.0
        %4942 = vmatpush.msra.mxu0 0.0
        %4943 = vmatpush.msra.mxu0 0.0
        %4944 = vmatpush.msra.mxu0 0.0
        %4945 = vmatpush.msra.mxu0 0.0
        %4946 = vmatpush.msra.mxu0 0.0
        %4947 = vmatpush.msra.mxu0 0.0
        %4948 = vmatpush.msra.mxu0 0.0
        %4949 = vmatpush.msra.mxu0 0.0
        %4950 = vmatpush.msra.mxu0 0.0
        %4951 = vmatpush.msra.mxu0 %v4909
        %4952 = vmatmul.f32.gmra.mxu0 %v4914
        %v4953 = vpop.f32.mrf.mxu0
        %v4954 = vadd.f32 0.0, %v4953
        %4955 = vdwg.mxu0
        %v4956 = vadd.f32 %v4829, %v4934
        %v4957 = vadd.f32 %v4830, %v4954
        %4958 = vmatpush.msra.mxu0 %v2368
        %4959 = vmatpush.msra.mxu0 %v2366
        %4960 = vmatpush.msra.mxu0 %v2364
        %4961 = vmatpush.msra.mxu0 %v2362
        %4962 = vmatpush.msra.mxu0 %v2360
        %4963 = vmatpush.msra.mxu0 %v2358
        %4964 = vmatpush.msra.mxu0 %v2356
        %4965 = vmatpush.msra.mxu0 %v2354
        %4966 = vmatpush.msra.mxu0 %v2352
        %4967 = vmatpush.msra.mxu0 %v2350
        %4968 = vmatpush.msra.mxu0 %v2348
        %4969 = vmatpush.msra.mxu0 %v2346
        %4970 = vmatpush.msra.mxu0 %v2344
        %4971 = vmatpush.msra.mxu0 %v2342
        %4972 = vmatpush.msra.mxu0 %v2340
        %4973 = vmatpush.msra.mxu0 %v2338
        %4974 = vmatmul.f32.gmra.mxu0 %v4025
        %v4975 = vpop.f32.mrf.mxu0
        %v4976 = vadd.f32 0.0, %v4975
        %4977 = vdwg.mxu0
        %4978 = vmatpush.msra.mxu0 %v2400
        %4979 = vmatpush.msra.mxu0 %v2398
        %4980 = vmatpush.msra.mxu0 %v2396
        %4981 = vmatpush.msra.mxu0 %v2394
        %4982 = vmatpush.msra.mxu0 %v2392
        %4983 = vmatpush.msra.mxu0 %v2390
        %4984 = vmatpush.msra.mxu0 %v2388
        %4985 = vmatpush.msra.mxu0 %v2386
        %4986 = vmatpush.msra.mxu0 %v2384
        %4987 = vmatpush.msra.mxu0 %v2382
        %4988 = vmatpush.msra.mxu0 %v2380
        %4989 = vmatpush.msra.mxu0 %v2378
        %4990 = vmatpush.msra.mxu0 %v2376
        %4991 = vmatpush.msra.mxu0 %v2374
        %4992 = vmatpush.msra.mxu0 %v2372
        %4993 = vmatpush.msra.mxu0 %v2370
        %4994 = vmatmul.f32.gmra.mxu0 %v4026
        %v4995 = vpop.f32.mrf.mxu0
        %v4996 = vadd.f32 %v4976, %v4995
        %4997 = vdwg.mxu0
        %4998 = vmatpush.msra.mxu0 %v2369
        %4999 = vmatpush.msra.mxu0 %v2367
        %5000 = vmatpush.msra.mxu0 %v2365
        %5001 = vmatpush.msra.mxu0 %v2363
        %5002 = vmatpush.msra.mxu0 %v2361
        %5003 = vmatpush.msra.mxu0 %v2359
        %5004 = vmatpush.msra.mxu0 %v2357
        %5005 = vmatpush.msra.mxu0 %v2355
        %5006 = vmatpush.msra.mxu0 %v2353
        %5007 = vmatpush.msra.mxu0 %v2351
        %5008 = vmatpush.msra.mxu0 %v2349
        %5009 = vmatpush.msra.mxu0 %v2347
        %5010 = vmatpush.msra.mxu0 %v2345
        %5011 = vmatpush.msra.mxu0 %v2343
        %5012 = vmatpush.msra.mxu0 %v2341
        %5013 = vmatpush.msra.mxu0 %v2339
        %5014 = vmatmul.f32.gmra.mxu0 %v4025
        %v5015 = vpop.f32.mrf.mxu0
        %v5016 = vadd.f32 0.0, %v5015
        %5017 = vdwg.mxu0
        %5018 = vmatpush.msra.mxu0 %v2401
        %5019 = vmatpush.msra.mxu0 %v2399
        %5020 = vmatpush.msra.mxu0 %v2397
        %5021 = vmatpush.msra.mxu0 %v2395
        %5022 = vmatpush.msra.mxu0 %v2393
        %5023 = vmatpush.msra.mxu0 %v2391
        %5024 = vmatpush.msra.mxu0 %v2389
        %5025 = vmatpush.msra.mxu0 %v2387
        %5026 = vmatpush.msra.mxu0 %v2385
        %5027 = vmatpush.msra.mxu0 %v2383
        %5028 = vmatpush.msra.mxu0 %v2381
        %5029 = vmatpush.msra.mxu0 %v2379
        %5030 = vmatpush.msra.mxu0 %v2377
        %5031 = vmatpush.msra.mxu0 %v2375
        %5032 = vmatpush.msra.mxu0 %v2373
        %5033 = vmatpush.msra.mxu0 %v2371
        %5034 = vmatmul.f32.gmra.mxu0 %v4026
        %v5035 = vpop.f32.mrf.mxu0
        %v5036 = vadd.f32 %v5016, %v5035
        %5037 = vdwg.mxu0
        %s5038 = scalar_lea.vmem %s16, 64
        %v5039 = vld [vmem:[%s5038] sm:$0xff]
        %v5041 = vsel %vm3113, %v5039, 0
        %5043 = vmatpush.msra.mxu0 0.0
        %5044 = vmatpush.msra.mxu0 0.0
        %5045 = vmatpush.msra.mxu0 0.0
        %5046 = vmatpush.msra.mxu0 0.0
        %5047 = vmatpush.msra.mxu0 0.0
        %5048 = vmatpush.msra.mxu0 0.0
        %5049 = vmatpush.msra.mxu0 0.0
        %5050 = vmatpush.msra.mxu0 0.0
        %5051 = vmatpush.msra.mxu0 0.0
        %5052 = vmatpush.msra.mxu0 0.0
        %5053 = vmatpush.msra.mxu0 0.0
        %5054 = vmatpush.msra.mxu0 0.0
        %5055 = vmatpush.msra.mxu0 0.0
        %5056 = vmatpush.msra.mxu0 0.0
        %5057 = vmatpush.msra.mxu0 0.0
        %5058 = vmatpush.msra.mxu0 %v4996
        %5059 = vmatmul.f32.gmra.mxu0 %v5041
        %v5060 = vpop.f32.mrf.mxu0
        %v5061 = vadd.f32 0.0, %v5060
        %5062 = vdwg.mxu0
        %5063 = vmatpush.msra.mxu0 0.0
        %5064 = vmatpush.msra.mxu0 0.0
        %5065 = vmatpush.msra.mxu0 0.0
        %5066 = vmatpush.msra.mxu0 0.0
        %5067 = vmatpush.msra.mxu0 0.0
        %5068 = vmatpush.msra.mxu0 0.0
        %5069 = vmatpush.msra.mxu0 0.0
        %5070 = vmatpush.msra.mxu0 0.0
        %5071 = vmatpush.msra.mxu0 0.0
        %5072 = vmatpush.msra.mxu0 0.0
        %5073 = vmatpush.msra.mxu0 0.0
        %5074 = vmatpush.msra.mxu0 0.0
        %5075 = vmatpush.msra.mxu0 0.0
        %5076 = vmatpush.msra.mxu0 0.0
        %5077 = vmatpush.msra.mxu0 0.0
        %5078 = vmatpush.msra.mxu0 %v5036
        %5079 = vmatmul.f32.gmra.mxu0 %v5041
        %v5080 = vpop.f32.mrf.mxu0
        %v5081 = vadd.f32 0.0, %v5080
        %5082 = vdwg.mxu0
        %v5083 = vadd.f32 %v4956, %v5061
        %v5084 = vadd.f32 %v4957, %v5081
        %5085 = vmatpush.msra.mxu0 %v895
        %5086 = vmatpush.msra.mxu0 %v893
        %5087 = vmatpush.msra.mxu0 %v891
        %5088 = vmatpush.msra.mxu0 %v889
        %5089 = vmatpush.msra.mxu0 %v887
        %5090 = vmatpush.msra.mxu0 %v885
        %5091 = vmatpush.msra.mxu0 %v883
        %5092 = vmatpush.msra.mxu0 %v881
        %5093 = vmatpush.msra.mxu0 %v879
        %5094 = vmatpush.msra.mxu0 %v877
        %5095 = vmatpush.msra.mxu0 %v875
        %5096 = vmatpush.msra.mxu0 %v873
        %5097 = vmatpush.msra.mxu0 %v871
        %5098 = vmatpush.msra.mxu0 %v869
        %5099 = vmatpush.msra.mxu0 %v867
        %5100 = vmatpush.msra.mxu0 %v865
        %5101 = vmatmul.f32.gmra.mxu0 %v2556
        %v5102 = vpop.f32.mrf.mxu0
        %v5103 = vadd.f32 0.0, %v5102
        %5104 = vdwg.mxu0
        %5105 = vmatpush.msra.mxu0 %v927
        %5106 = vmatpush.msra.mxu0 %v925
        %5107 = vmatpush.msra.mxu0 %v923
        %5108 = vmatpush.msra.mxu0 %v921
        %5109 = vmatpush.msra.mxu0 %v919
        %5110 = vmatpush.msra.mxu0 %v917
        %5111 = vmatpush.msra.mxu0 %v915
        %5112 = vmatpush.msra.mxu0 %v913
        %5113 = vmatpush.msra.mxu0 %v911
        %5114 = vmatpush.msra.mxu0 %v909
        %5115 = vmatpush.msra.mxu0 %v907
        %5116 = vmatpush.msra.mxu0 %v905
        %5117 = vmatpush.msra.mxu0 %v903
        %5118 = vmatpush.msra.mxu0 %v901
        %5119 = vmatpush.msra.mxu0 %v899
        %5120 = vmatpush.msra.mxu0 %v897
        %5121 = vmatmul.f32.gmra.mxu0 %v2557
        %v5122 = vpop.f32.mrf.mxu0
        %v5123 = vadd.f32 %v5103, %v5122
        %5124 = vdwg.mxu0
        %5125 = vmatpush.msra.mxu0 %v896
        %5126 = vmatpush.msra.mxu0 %v894
        %5127 = vmatpush.msra.mxu0 %v892
        %5128 = vmatpush.msra.mxu0 %v890
        %5129 = vmatpush.msra.mxu0 %v888
        %5130 = vmatpush.msra.mxu0 %v886
        %5131 = vmatpush.msra.mxu0 %v884
        %5132 = vmatpush.msra.mxu0 %v882
        %5133 = vmatpush.msra.mxu0 %v880
        %5134 = vmatpush.msra.mxu0 %v878
        %5135 = vmatpush.msra.mxu0 %v876
        %5136 = vmatpush.msra.mxu0 %v874
        %5137 = vmatpush.msra.mxu0 %v872
        %5138 = vmatpush.msra.mxu0 %v870
        %5139 = vmatpush.msra.mxu0 %v868
        %5140 = vmatpush.msra.mxu0 %v866
        %5141 = vmatmul.f32.gmra.mxu0 %v2556
        %v5142 = vpop.f32.mrf.mxu0
        %v5143 = vadd.f32 0.0, %v5142
        %5144 = vdwg.mxu0
        %5145 = vmatpush.msra.mxu0 %v928
        %5146 = vmatpush.msra.mxu0 %v926
        %5147 = vmatpush.msra.mxu0 %v924
        %5148 = vmatpush.msra.mxu0 %v922
        %5149 = vmatpush.msra.mxu0 %v920
        %5150 = vmatpush.msra.mxu0 %v918
        %5151 = vmatpush.msra.mxu0 %v916
        %5152 = vmatpush.msra.mxu0 %v914
        %5153 = vmatpush.msra.mxu0 %v912
        %5154 = vmatpush.msra.mxu0 %v910
        %5155 = vmatpush.msra.mxu0 %v908
        %5156 = vmatpush.msra.mxu0 %v906
        %5157 = vmatpush.msra.mxu0 %v904
        %5158 = vmatpush.msra.mxu0 %v902
        %5159 = vmatpush.msra.mxu0 %v900
        %5160 = vmatpush.msra.mxu0 %v898
        %5161 = vmatmul.f32.gmra.mxu0 %v2557
        %v5162 = vpop.f32.mrf.mxu0
        %v5163 = vadd.f32 %v5143, %v5162
        %5164 = vdwg.mxu0
        %v5165 = vld [vmem:[%s17] sm:$0xff]
        %5166 = vmatpush.msra.mxu0 %v1047
        %5167 = vmatpush.msra.mxu0 %v1045
        %5168 = vmatpush.msra.mxu0 %v1043
        %5169 = vmatpush.msra.mxu0 %v1041
        %5170 = vmatpush.msra.mxu0 %v1039
        %5171 = vmatpush.msra.mxu0 %v1037
        %5172 = vmatpush.msra.mxu0 %v1035
        %5173 = vmatpush.msra.mxu0 %v1033
        %5174 = vmatpush.msra.mxu0 %v1031
        %5175 = vmatpush.msra.mxu0 %v1029
        %5176 = vmatpush.msra.mxu0 %v1027
        %5177 = vmatpush.msra.mxu0 %v1025
        %5178 = vmatpush.msra.mxu0 %v1023
        %5179 = vmatpush.msra.mxu0 %v1021
        %5180 = vmatpush.msra.mxu0 %v1019
        %5181 = vmatpush.msra.mxu0 %v1017
        %5182 = vmatmul.f32.gmra.mxu0 %v2556
        %v5183 = vpop.f32.mrf.mxu0
        %v5184 = vadd.f32 0.0, %v5183
        %5185 = vdwg.mxu0
        %5186 = vmatpush.msra.mxu0 %v1079
        %5187 = vmatpush.msra.mxu0 %v1077
        %5188 = vmatpush.msra.mxu0 %v1075
        %5189 = vmatpush.msra.mxu0 %v1073
        %5190 = vmatpush.msra.mxu0 %v1071
        %5191 = vmatpush.msra.mxu0 %v1069
        %5192 = vmatpush.msra.mxu0 %v1067
        %5193 = vmatpush.msra.mxu0 %v1065
        %5194 = vmatpush.msra.mxu0 %v1063
        %5195 = vmatpush.msra.mxu0 %v1061
        %5196 = vmatpush.msra.mxu0 %v1059
        %5197 = vmatpush.msra.mxu0 %v1057
        %5198 = vmatpush.msra.mxu0 %v1055
        %5199 = vmatpush.msra.mxu0 %v1053
        %5200 = vmatpush.msra.mxu0 %v1051
        %5201 = vmatpush.msra.mxu0 %v1049
        %5202 = vmatmul.f32.gmra.mxu0 %v2557
        %v5203 = vpop.f32.mrf.mxu0
        %v5204 = vadd.f32 %v5184, %v5203
        %5205 = vdwg.mxu0
        %5206 = vmatpush.msra.mxu0 %v1048
        %5207 = vmatpush.msra.mxu0 %v1046
        %5208 = vmatpush.msra.mxu0 %v1044
        %5209 = vmatpush.msra.mxu0 %v1042
        %5210 = vmatpush.msra.mxu0 %v1040
        %5211 = vmatpush.msra.mxu0 %v1038
        %5212 = vmatpush.msra.mxu0 %v1036
        %5213 = vmatpush.msra.mxu0 %v1034
        %5214 = vmatpush.msra.mxu0 %v1032
        %5215 = vmatpush.msra.mxu0 %v1030
        %5216 = vmatpush.msra.mxu0 %v1028
        %5217 = vmatpush.msra.mxu0 %v1026
        %5218 = vmatpush.msra.mxu0 %v1024
        %5219 = vmatpush.msra.mxu0 %v1022
        %5220 = vmatpush.msra.mxu0 %v1020
        %5221 = vmatpush.msra.mxu0 %v1018
        %5222 = vmatmul.f32.gmra.mxu0 %v2556
        %v5223 = vpop.f32.mrf.mxu0
        %v5224 = vadd.f32 0.0, %v5223
        %5225 = vdwg.mxu0
        %5226 = vmatpush.msra.mxu0 %v1080
        %5227 = vmatpush.msra.mxu0 %v1078
        %5228 = vmatpush.msra.mxu0 %v1076
        %5229 = vmatpush.msra.mxu0 %v1074
        %5230 = vmatpush.msra.mxu0 %v1072
        %5231 = vmatpush.msra.mxu0 %v1070
        %5232 = vmatpush.msra.mxu0 %v1068
        %5233 = vmatpush.msra.mxu0 %v1066
        %5234 = vmatpush.msra.mxu0 %v1064
        %5235 = vmatpush.msra.mxu0 %v1062
        %5236 = vmatpush.msra.mxu0 %v1060
        %5237 = vmatpush.msra.mxu0 %v1058
        %5238 = vmatpush.msra.mxu0 %v1056
        %5239 = vmatpush.msra.mxu0 %v1054
        %5240 = vmatpush.msra.mxu0 %v1052
        %5241 = vmatpush.msra.mxu0 %v1050
        %5242 = vmatmul.f32.gmra.mxu0 %v2557
        %v5243 = vpop.f32.mrf.mxu0
        %v5244 = vadd.f32 %v5224, %v5243
        %5245 = vdwg.mxu0
        %s5246 = scalar_lea.vmem %s17, 8
        %v5247 = vld [vmem:[%s5246] sm:$0xff]
        %v5249 = vsel %vm3113, %v5247, 0
        %5251 = vmatpush.msra.mxu0 0.0
        %5252 = vmatpush.msra.mxu0 0.0
        %5253 = vmatpush.msra.mxu0 0.0
        %5254 = vmatpush.msra.mxu0 0.0
        %5255 = vmatpush.msra.mxu0 0.0
        %5256 = vmatpush.msra.mxu0 0.0
        %5257 = vmatpush.msra.mxu0 0.0
        %5258 = vmatpush.msra.mxu0 0.0
        %5259 = vmatpush.msra.mxu0 0.0
        %5260 = vmatpush.msra.mxu0 0.0
        %5261 = vmatpush.msra.mxu0 0.0
        %5262 = vmatpush.msra.mxu0 0.0
        %5263 = vmatpush.msra.mxu0 0.0
        %5264 = vmatpush.msra.mxu0 0.0
        %5265 = vmatpush.msra.mxu0 0.0
        %5266 = vmatpush.msra.mxu0 %v5204
        %5267 = vmatmul.f32.gmra.mxu0 %v5249
        %v5268 = vpop.f32.mrf.mxu0
        %v5269 = vadd.f32 0.0, %v5268
        %5270 = vdwg.mxu0
        %5271 = vmatpush.msra.mxu0 0.0
        %5272 = vmatpush.msra.mxu0 0.0
        %5273 = vmatpush.msra.mxu0 0.0
        %5274 = vmatpush.msra.mxu0 0.0
        %5275 = vmatpush.msra.mxu0 0.0
        %5276 = vmatpush.msra.mxu0 0.0
        %5277 = vmatpush.msra.mxu0 0.0
        %5278 = vmatpush.msra.mxu0 0.0
        %5279 = vmatpush.msra.mxu0 0.0
        %5280 = vmatpush.msra.mxu0 0.0
        %5281 = vmatpush.msra.mxu0 0.0
        %5282 = vmatpush.msra.mxu0 0.0
        %5283 = vmatpush.msra.mxu0 0.0
        %5284 = vmatpush.msra.mxu0 0.0
        %5285 = vmatpush.msra.mxu0 0.0
        %5286 = vmatpush.msra.mxu0 %v5244
        %5287 = vmatmul.f32.gmra.mxu0 %v5249
        %v5288 = vpop.f32.mrf.mxu0
        %v5289 = vadd.f32 0.0, %v5288
        %5290 = vdwg.mxu0
        %v5292 = vsel %vm3113, %v5165, 0
        %5294 = vmatpush.msra.mxu0 0.0
        %5295 = vmatpush.msra.mxu0 0.0
        %5296 = vmatpush.msra.mxu0 0.0
        %5297 = vmatpush.msra.mxu0 0.0
        %5298 = vmatpush.msra.mxu0 0.0
        %5299 = vmatpush.msra.mxu0 0.0
        %5300 = vmatpush.msra.mxu0 0.0
        %5301 = vmatpush.msra.mxu0 0.0
        %5302 = vmatpush.msra.mxu0 0.0
        %5303 = vmatpush.msra.mxu0 0.0
        %5304 = vmatpush.msra.mxu0 0.0
        %5305 = vmatpush.msra.mxu0 0.0
        %5306 = vmatpush.msra.mxu0 0.0
        %5307 = vmatpush.msra.mxu0 0.0
        %5308 = vmatpush.msra.mxu0 0.0
        %5309 = vmatpush.msra.mxu0 %v5123
        %5310 = vmatmul.f32.gmra.mxu0 %v5292
        %v5311 = vpop.f32.mrf.mxu0
        %v5312 = vadd.f32 %v5269, %v5311
        %5313 = vdwg.mxu0
        %5314 = vmatpush.msra.mxu0 0.0
        %5315 = vmatpush.msra.mxu0 0.0
        %5316 = vmatpush.msra.mxu0 0.0
        %5317 = vmatpush.msra.mxu0 0.0
        %5318 = vmatpush.msra.mxu0 0.0
        %5319 = vmatpush.msra.mxu0 0.0
        %5320 = vmatpush.msra.mxu0 0.0
        %5321 = vmatpush.msra.mxu0 0.0
        %5322 = vmatpush.msra.mxu0 0.0
        %5323 = vmatpush.msra.mxu0 0.0
        %5324 = vmatpush.msra.mxu0 0.0
        %5325 = vmatpush.msra.mxu0 0.0
        %5326 = vmatpush.msra.mxu0 0.0
        %5327 = vmatpush.msra.mxu0 0.0
        %5328 = vmatpush.msra.mxu0 0.0
        %5329 = vmatpush.msra.mxu0 %v5163
        %5330 = vmatmul.f32.gmra.mxu0 %v5292
        %v5331 = vpop.f32.mrf.mxu0
        %v5332 = vadd.f32 %v5289, %v5331
        %5333 = vdwg.mxu0
        %5334 = vmatpush.msra.mxu0 %v1299
        %5335 = vmatpush.msra.mxu0 %v1297
        %5336 = vmatpush.msra.mxu0 %v1295
        %5337 = vmatpush.msra.mxu0 %v1293
        %5338 = vmatpush.msra.mxu0 %v1291
        %5339 = vmatpush.msra.mxu0 %v1289
        %5340 = vmatpush.msra.mxu0 %v1287
        %5341 = vmatpush.msra.mxu0 %v1285
        %5342 = vmatpush.msra.mxu0 %v1283
        %5343 = vmatpush.msra.mxu0 %v1281
        %5344 = vmatpush.msra.mxu0 %v1279
        %5345 = vmatpush.msra.mxu0 %v1277
        %5346 = vmatpush.msra.mxu0 %v1275
        %5347 = vmatpush.msra.mxu0 %v1273
        %5348 = vmatpush.msra.mxu0 %v1271
        %5349 = vmatpush.msra.mxu0 %v1269
        %5350 = vmatmul.f32.gmra.mxu0 %v2556
        %v5351 = vpop.f32.mrf.mxu0
        %v5352 = vadd.f32 0.0, %v5351
        %5353 = vdwg.mxu0
        %5354 = vmatpush.msra.mxu0 %v1331
        %5355 = vmatpush.msra.mxu0 %v1329
        %5356 = vmatpush.msra.mxu0 %v1327
        %5357 = vmatpush.msra.mxu0 %v1325
        %5358 = vmatpush.msra.mxu0 %v1323
        %5359 = vmatpush.msra.mxu0 %v1321
        %5360 = vmatpush.msra.mxu0 %v1319
        %5361 = vmatpush.msra.mxu0 %v1317
        %5362 = vmatpush.msra.mxu0 %v1315
        %5363 = vmatpush.msra.mxu0 %v1313
        %5364 = vmatpush.msra.mxu0 %v1311
        %5365 = vmatpush.msra.mxu0 %v1309
        %5366 = vmatpush.msra.mxu0 %v1307
        %5367 = vmatpush.msra.mxu0 %v1305
        %5368 = vmatpush.msra.mxu0 %v1303
        %5369 = vmatpush.msra.mxu0 %v1301
        %5370 = vmatmul.f32.gmra.mxu0 %v2557
        %v5371 = vpop.f32.mrf.mxu0
        %v5372 = vadd.f32 %v5352, %v5371
        %5373 = vdwg.mxu0
        %5374 = vmatpush.msra.mxu0 %v1300
        %5375 = vmatpush.msra.mxu0 %v1298
        %5376 = vmatpush.msra.mxu0 %v1296
        %5377 = vmatpush.msra.mxu0 %v1294
        %5378 = vmatpush.msra.mxu0 %v1292
        %5379 = vmatpush.msra.mxu0 %v1290
        %5380 = vmatpush.msra.mxu0 %v1288
        %5381 = vmatpush.msra.mxu0 %v1286
        %5382 = vmatpush.msra.mxu0 %v1284
        %5383 = vmatpush.msra.mxu0 %v1282
        %5384 = vmatpush.msra.mxu0 %v1280
        %5385 = vmatpush.msra.mxu0 %v1278
        %5386 = vmatpush.msra.mxu0 %v1276
        %5387 = vmatpush.msra.mxu0 %v1274
        %5388 = vmatpush.msra.mxu0 %v1272
        %5389 = vmatpush.msra.mxu0 %v1270
        %5390 = vmatmul.f32.gmra.mxu0 %v2556
        %v5391 = vpop.f32.mrf.mxu0
        %v5392 = vadd.f32 0.0, %v5391
        %5393 = vdwg.mxu0
        %5394 = vmatpush.msra.mxu0 %v1332
        %5395 = vmatpush.msra.mxu0 %v1330
        %5396 = vmatpush.msra.mxu0 %v1328
        %5397 = vmatpush.msra.mxu0 %v1326
        %5398 = vmatpush.msra.mxu0 %v1324
        %5399 = vmatpush.msra.mxu0 %v1322
        %5400 = vmatpush.msra.mxu0 %v1320
        %5401 = vmatpush.msra.mxu0 %v1318
        %5402 = vmatpush.msra.mxu0 %v1316
        %5403 = vmatpush.msra.mxu0 %v1314
        %5404 = vmatpush.msra.mxu0 %v1312
        %5405 = vmatpush.msra.mxu0 %v1310
        %5406 = vmatpush.msra.mxu0 %v1308
        %5407 = vmatpush.msra.mxu0 %v1306
        %5408 = vmatpush.msra.mxu0 %v1304
        %5409 = vmatpush.msra.mxu0 %v1302
        %5410 = vmatmul.f32.gmra.mxu0 %v2557
        %v5411 = vpop.f32.mrf.mxu0
        %v5412 = vadd.f32 %v5392, %v5411
        %5413 = vdwg.mxu0
        %s5414 = scalar_lea.vmem %s17, 16
        %v5415 = vld [vmem:[%s5414] sm:$0xff]
        %v5417 = vsel %vm3113, %v5415, 0
        %5419 = vmatpush.msra.mxu0 0.0
        %5420 = vmatpush.msra.mxu0 0.0
        %5421 = vmatpush.msra.mxu0 0.0
        %5422 = vmatpush.msra.mxu0 0.0
        %5423 = vmatpush.msra.mxu0 0.0
        %5424 = vmatpush.msra.mxu0 0.0
        %5425 = vmatpush.msra.mxu0 0.0
        %5426 = vmatpush.msra.mxu0 0.0
        %5427 = vmatpush.msra.mxu0 0.0
        %5428 = vmatpush.msra.mxu0 0.0
        %5429 = vmatpush.msra.mxu0 0.0
        %5430 = vmatpush.msra.mxu0 0.0
        %5431 = vmatpush.msra.mxu0 0.0
        %5432 = vmatpush.msra.mxu0 0.0
        %5433 = vmatpush.msra.mxu0 0.0
        %5434 = vmatpush.msra.mxu0 %v5372
        %5435 = vmatmul.f32.gmra.mxu0 %v5417
        %v5436 = vpop.f32.mrf.mxu0
        %v5437 = vadd.f32 0.0, %v5436
        %5438 = vdwg.mxu0
        %5439 = vmatpush.msra.mxu0 0.0
        %5440 = vmatpush.msra.mxu0 0.0
        %5441 = vmatpush.msra.mxu0 0.0
        %5442 = vmatpush.msra.mxu0 0.0
        %5443 = vmatpush.msra.mxu0 0.0
        %5444 = vmatpush.msra.mxu0 0.0
        %5445 = vmatpush.msra.mxu0 0.0
        %5446 = vmatpush.msra.mxu0 0.0
        %5447 = vmatpush.msra.mxu0 0.0
        %5448 = vmatpush.msra.mxu0 0.0
        %5449 = vmatpush.msra.mxu0 0.0
        %5450 = vmatpush.msra.mxu0 0.0
        %5451 = vmatpush.msra.mxu0 0.0
        %5452 = vmatpush.msra.mxu0 0.0
        %5453 = vmatpush.msra.mxu0 0.0
        %5454 = vmatpush.msra.mxu0 %v5412
        %5455 = vmatmul.f32.gmra.mxu0 %v5417
        %v5456 = vpop.f32.mrf.mxu0
        %v5457 = vadd.f32 0.0, %v5456
        %5458 = vdwg.mxu0
        %v5459 = vadd.f32 %v5312, %v5437
        %v5460 = vadd.f32 %v5332, %v5457
        %5461 = vmatpush.msra.mxu0 %v1502
        %5462 = vmatpush.msra.mxu0 %v1500
        %5463 = vmatpush.msra.mxu0 %v1498
        %5464 = vmatpush.msra.mxu0 %v1496
        %5465 = vmatpush.msra.mxu0 %v1494
        %5466 = vmatpush.msra.mxu0 %v1492
        %5467 = vmatpush.msra.mxu0 %v1490
        %5468 = vmatpush.msra.mxu0 %v1488
        %5469 = vmatpush.msra.mxu0 %v1486
        %5470 = vmatpush.msra.mxu0 %v1484
        %5471 = vmatpush.msra.mxu0 %v1482
        %5472 = vmatpush.msra.mxu0 %v1480
        %5473 = vmatpush.msra.mxu0 %v1478
        %5474 = vmatpush.msra.mxu0 %v1476
        %5475 = vmatpush.msra.mxu0 %v1474
        %5476 = vmatpush.msra.mxu0 %v1472
        %5477 = vmatmul.f32.gmra.mxu0 %v2556
        %v5478 = vpop.f32.mrf.mxu0
        %v5479 = vadd.f32 0.0, %v5478
        %5480 = vdwg.mxu0
        %5481 = vmatpush.msra.mxu0 %v1534
        %5482 = vmatpush.msra.mxu0 %v1532
        %5483 = vmatpush.msra.mxu0 %v1530
        %5484 = vmatpush.msra.mxu0 %v1528
        %5485 = vmatpush.msra.mxu0 %v1526
        %5486 = vmatpush.msra.mxu0 %v1524
        %5487 = vmatpush.msra.mxu0 %v1522
        %5488 = vmatpush.msra.mxu0 %v1520
        %5489 = vmatpush.msra.mxu0 %v1518
        %5490 = vmatpush.msra.mxu0 %v1516
        %5491 = vmatpush.msra.mxu0 %v1514
        %5492 = vmatpush.msra.mxu0 %v1512
        %5493 = vmatpush.msra.mxu0 %v1510
        %5494 = vmatpush.msra.mxu0 %v1508
        %5495 = vmatpush.msra.mxu0 %v1506
        %5496 = vmatpush.msra.mxu0 %v1504
        %5497 = vmatmul.f32.gmra.mxu0 %v2557
        %v5498 = vpop.f32.mrf.mxu0
        %v5499 = vadd.f32 %v5479, %v5498
        %5500 = vdwg.mxu0
        %5501 = vmatpush.msra.mxu0 %v1503
        %5502 = vmatpush.msra.mxu0 %v1501
        %5503 = vmatpush.msra.mxu0 %v1499
        %5504 = vmatpush.msra.mxu0 %v1497
        %5505 = vmatpush.msra.mxu0 %v1495
        %5506 = vmatpush.msra.mxu0 %v1493
        %5507 = vmatpush.msra.mxu0 %v1491
        %5508 = vmatpush.msra.mxu0 %v1489
        %5509 = vmatpush.msra.mxu0 %v1487
        %5510 = vmatpush.msra.mxu0 %v1485
        %5511 = vmatpush.msra.mxu0 %v1483
        %5512 = vmatpush.msra.mxu0 %v1481
        %5513 = vmatpush.msra.mxu0 %v1479
        %5514 = vmatpush.msra.mxu0 %v1477
        %5515 = vmatpush.msra.mxu0 %v1475
        %5516 = vmatpush.msra.mxu0 %v1473
        %5517 = vmatmul.f32.gmra.mxu0 %v2556
        %v5518 = vpop.f32.mrf.mxu0
        %v5519 = vadd.f32 0.0, %v5518
        %5520 = vdwg.mxu0
        %5521 = vmatpush.msra.mxu0 %v1535
        %5522 = vmatpush.msra.mxu0 %v1533
        %5523 = vmatpush.msra.mxu0 %v1531
        %5524 = vmatpush.msra.mxu0 %v1529
        %5525 = vmatpush.msra.mxu0 %v1527
        %5526 = vmatpush.msra.mxu0 %v1525
        %5527 = vmatpush.msra.mxu0 %v1523
        %5528 = vmatpush.msra.mxu0 %v1521
        %5529 = vmatpush.msra.mxu0 %v1519
        %5530 = vmatpush.msra.mxu0 %v1517
        %5531 = vmatpush.msra.mxu0 %v1515
        %5532 = vmatpush.msra.mxu0 %v1513
        %5533 = vmatpush.msra.mxu0 %v1511
        %5534 = vmatpush.msra.mxu0 %v1509
        %5535 = vmatpush.msra.mxu0 %v1507
        %5536 = vmatpush.msra.mxu0 %v1505
        %5537 = vmatmul.f32.gmra.mxu0 %v2557
        %v5538 = vpop.f32.mrf.mxu0
        %v5539 = vadd.f32 %v5519, %v5538
        %5540 = vdwg.mxu0
        %s5541 = scalar_lea.vmem %s17, 24
        %v5542 = vld [vmem:[%s5541] sm:$0xff]
        %v5544 = vsel %vm3113, %v5542, 0
        %5546 = vmatpush.msra.mxu0 0.0
        %5547 = vmatpush.msra.mxu0 0.0
        %5548 = vmatpush.msra.mxu0 0.0
        %5549 = vmatpush.msra.mxu0 0.0
        %5550 = vmatpush.msra.mxu0 0.0
        %5551 = vmatpush.msra.mxu0 0.0
        %5552 = vmatpush.msra.mxu0 0.0
        %5553 = vmatpush.msra.mxu0 0.0
        %5554 = vmatpush.msra.mxu0 0.0
        %5555 = vmatpush.msra.mxu0 0.0
        %5556 = vmatpush.msra.mxu0 0.0
        %5557 = vmatpush.msra.mxu0 0.0
        %5558 = vmatpush.msra.mxu0 0.0
        %5559 = vmatpush.msra.mxu0 0.0
        %5560 = vmatpush.msra.mxu0 0.0
        %5561 = vmatpush.msra.mxu0 %v5499
        %5562 = vmatmul.f32.gmra.mxu0 %v5544
        %v5563 = vpop.f32.mrf.mxu0
        %v5564 = vadd.f32 0.0, %v5563
        %5565 = vdwg.mxu0
        %5566 = vmatpush.msra.mxu0 0.0
        %5567 = vmatpush.msra.mxu0 0.0
        %5568 = vmatpush.msra.mxu0 0.0
        %5569 = vmatpush.msra.mxu0 0.0
        %5570 = vmatpush.msra.mxu0 0.0
        %5571 = vmatpush.msra.mxu0 0.0
        %5572 = vmatpush.msra.mxu0 0.0
        %5573 = vmatpush.msra.mxu0 0.0
        %5574 = vmatpush.msra.mxu0 0.0
        %5575 = vmatpush.msra.mxu0 0.0
        %5576 = vmatpush.msra.mxu0 0.0
        %5577 = vmatpush.msra.mxu0 0.0
        %5578 = vmatpush.msra.mxu0 0.0
        %5579 = vmatpush.msra.mxu0 0.0
        %5580 = vmatpush.msra.mxu0 0.0
        %5581 = vmatpush.msra.mxu0 %v5539
        %5582 = vmatmul.f32.gmra.mxu0 %v5544
        %v5583 = vpop.f32.mrf.mxu0
        %v5584 = vadd.f32 0.0, %v5583
        %5585 = vdwg.mxu0
        %v5586 = vadd.f32 %v5459, %v5564
        %v5587 = vadd.f32 %v5460, %v5584
        %s5588 = scalar_lea.vmem %s17, 32
        %v5589 = vld [vmem:[%s5588] sm:$0xff]
        %v5591 = vsel %vm3113, %v5589, 0
        %5593 = vmatpush.msra.mxu0 0.0
        %5594 = vmatpush.msra.mxu0 0.0
        %5595 = vmatpush.msra.mxu0 0.0
        %5596 = vmatpush.msra.mxu0 0.0
        %5597 = vmatpush.msra.mxu0 0.0
        %5598 = vmatpush.msra.mxu0 0.0
        %5599 = vmatpush.msra.mxu0 0.0
        %5600 = vmatpush.msra.mxu0 0.0
        %5601 = vmatpush.msra.mxu0 0.0
        %5602 = vmatpush.msra.mxu0 0.0
        %5603 = vmatpush.msra.mxu0 0.0
        %5604 = vmatpush.msra.mxu0 0.0
        %5605 = vmatpush.msra.mxu0 0.0
        %5606 = vmatpush.msra.mxu0 0.0
        %5607 = vmatpush.msra.mxu0 0.0
        %5608 = vmatpush.msra.mxu0 %v2556
        %5609 = vmatmul.f32.gmra.mxu0 %v5591
        %v5610 = vpop.f32.mrf.mxu0
        %v5611 = vadd.f32 0.0, %v5610
        %5612 = vdwg.mxu0
        %5613 = vmatpush.msra.mxu0 0.0
        %5614 = vmatpush.msra.mxu0 0.0
        %5615 = vmatpush.msra.mxu0 0.0
        %5616 = vmatpush.msra.mxu0 0.0
        %5617 = vmatpush.msra.mxu0 0.0
        %5618 = vmatpush.msra.mxu0 0.0
        %5619 = vmatpush.msra.mxu0 0.0
        %5620 = vmatpush.msra.mxu0 0.0
        %5621 = vmatpush.msra.mxu0 0.0
        %5622 = vmatpush.msra.mxu0 0.0
        %5623 = vmatpush.msra.mxu0 0.0
        %5624 = vmatpush.msra.mxu0 0.0
        %5625 = vmatpush.msra.mxu0 0.0
        %5626 = vmatpush.msra.mxu0 0.0
        %5627 = vmatpush.msra.mxu0 0.0
        %5628 = vmatpush.msra.mxu0 %v2557
        %5629 = vmatmul.f32.gmra.mxu0 %v5591
        %v5630 = vpop.f32.mrf.mxu0
        %v5631 = vadd.f32 0.0, %v5630
        %5632 = vdwg.mxu0
        %v5633 = vadd.f32 %v5586, %v5611
        %v5634 = vadd.f32 %v5587, %v5631
        %5635 = vmatpush.msra.mxu0 %v1759
        %5636 = vmatpush.msra.mxu0 %v1757
        %5637 = vmatpush.msra.mxu0 %v1755
        %5638 = vmatpush.msra.mxu0 %v1753
        %5639 = vmatpush.msra.mxu0 %v1751
        %5640 = vmatpush.msra.mxu0 %v1749
        %5641 = vmatpush.msra.mxu0 %v1747
        %5642 = vmatpush.msra.mxu0 %v1745
        %5643 = vmatpush.msra.mxu0 %v1743
        %5644 = vmatpush.msra.mxu0 %v1741
        %5645 = vmatpush.msra.mxu0 %v1739
        %5646 = vmatpush.msra.mxu0 %v1737
        %5647 = vmatpush.msra.mxu0 %v1735
        %5648 = vmatpush.msra.mxu0 %v1733
        %5649 = vmatpush.msra.mxu0 %v1731
        %5650 = vmatpush.msra.mxu0 %v1729
        %5651 = vmatmul.f32.gmra.mxu0 %v2556
        %v5652 = vpop.f32.mrf.mxu0
        %v5653 = vadd.f32 0.0, %v5652
        %5654 = vdwg.mxu0
        %5655 = vmatpush.msra.mxu0 %v1791
        %5656 = vmatpush.msra.mxu0 %v1789
        %5657 = vmatpush.msra.mxu0 %v1787
        %5658 = vmatpush.msra.mxu0 %v1785
        %5659 = vmatpush.msra.mxu0 %v1783
        %5660 = vmatpush.msra.mxu0 %v1781
        %5661 = vmatpush.msra.mxu0 %v1779
        %5662 = vmatpush.msra.mxu0 %v1777
        %5663 = vmatpush.msra.mxu0 %v1775
        %5664 = vmatpush.msra.mxu0 %v1773
        %5665 = vmatpush.msra.mxu0 %v1771
        %5666 = vmatpush.msra.mxu0 %v1769
        %5667 = vmatpush.msra.mxu0 %v1767
        %5668 = vmatpush.msra.mxu0 %v1765
        %5669 = vmatpush.msra.mxu0 %v1763
        %5670 = vmatpush.msra.mxu0 %v1761
        %5671 = vmatmul.f32.gmra.mxu0 %v2557
        %v5672 = vpop.f32.mrf.mxu0
        %v5673 = vadd.f32 %v5653, %v5672
        %5674 = vdwg.mxu0
        %5675 = vmatpush.msra.mxu0 %v1760
        %5676 = vmatpush.msra.mxu0 %v1758
        %5677 = vmatpush.msra.mxu0 %v1756
        %5678 = vmatpush.msra.mxu0 %v1754
        %5679 = vmatpush.msra.mxu0 %v1752
        %5680 = vmatpush.msra.mxu0 %v1750
        %5681 = vmatpush.msra.mxu0 %v1748
        %5682 = vmatpush.msra.mxu0 %v1746
        %5683 = vmatpush.msra.mxu0 %v1744
        %5684 = vmatpush.msra.mxu0 %v1742
        %5685 = vmatpush.msra.mxu0 %v1740
        %5686 = vmatpush.msra.mxu0 %v1738
        %5687 = vmatpush.msra.mxu0 %v1736
        %5688 = vmatpush.msra.mxu0 %v1734
        %5689 = vmatpush.msra.mxu0 %v1732
        %5690 = vmatpush.msra.mxu0 %v1730
        %5691 = vmatmul.f32.gmra.mxu0 %v2556
        %v5692 = vpop.f32.mrf.mxu0
        %v5693 = vadd.f32 0.0, %v5692
        %5694 = vdwg.mxu0
        %5695 = vmatpush.msra.mxu0 %v1792
        %5696 = vmatpush.msra.mxu0 %v1790
        %5697 = vmatpush.msra.mxu0 %v1788
        %5698 = vmatpush.msra.mxu0 %v1786
        %5699 = vmatpush.msra.mxu0 %v1784
        %5700 = vmatpush.msra.mxu0 %v1782
        %5701 = vmatpush.msra.mxu0 %v1780
        %5702 = vmatpush.msra.mxu0 %v1778
        %5703 = vmatpush.msra.mxu0 %v1776
        %5704 = vmatpush.msra.mxu0 %v1774
        %5705 = vmatpush.msra.mxu0 %v1772
        %5706 = vmatpush.msra.mxu0 %v1770
        %5707 = vmatpush.msra.mxu0 %v1768
        %5708 = vmatpush.msra.mxu0 %v1766
        %5709 = vmatpush.msra.mxu0 %v1764
        %5710 = vmatpush.msra.mxu0 %v1762
        %5711 = vmatmul.f32.gmra.mxu0 %v2557
        %v5712 = vpop.f32.mrf.mxu0
        %v5713 = vadd.f32 %v5693, %v5712
        %5714 = vdwg.mxu0
        %s5715 = scalar_lea.vmem %s17, 40
        %v5716 = vld [vmem:[%s5715] sm:$0xff]
        %v5718 = vsel %vm3113, %v5716, 0
        %5720 = vmatpush.msra.mxu0 0.0
        %5721 = vmatpush.msra.mxu0 0.0
        %5722 = vmatpush.msra.mxu0 0.0
        %5723 = vmatpush.msra.mxu0 0.0
        %5724 = vmatpush.msra.mxu0 0.0
        %5725 = vmatpush.msra.mxu0 0.0
        %5726 = vmatpush.msra.mxu0 0.0
        %5727 = vmatpush.msra.mxu0 0.0
        %5728 = vmatpush.msra.mxu0 0.0
        %5729 = vmatpush.msra.mxu0 0.0
        %5730 = vmatpush.msra.mxu0 0.0
        %5731 = vmatpush.msra.mxu0 0.0
        %5732 = vmatpush.msra.mxu0 0.0
        %5733 = vmatpush.msra.mxu0 0.0
        %5734 = vmatpush.msra.mxu0 0.0
        %5735 = vmatpush.msra.mxu0 %v5673
        %5736 = vmatmul.f32.gmra.mxu0 %v5718
        %v5737 = vpop.f32.mrf.mxu0
        %v5738 = vadd.f32 0.0, %v5737
        %5739 = vdwg.mxu0
        %5740 = vmatpush.msra.mxu0 0.0
        %5741 = vmatpush.msra.mxu0 0.0
        %5742 = vmatpush.msra.mxu0 0.0
        %5743 = vmatpush.msra.mxu0 0.0
        %5744 = vmatpush.msra.mxu0 0.0
        %5745 = vmatpush.msra.mxu0 0.0
        %5746 = vmatpush.msra.mxu0 0.0
        %5747 = vmatpush.msra.mxu0 0.0
        %5748 = vmatpush.msra.mxu0 0.0
        %5749 = vmatpush.msra.mxu0 0.0
        %5750 = vmatpush.msra.mxu0 0.0
        %5751 = vmatpush.msra.mxu0 0.0
        %5752 = vmatpush.msra.mxu0 0.0
        %5753 = vmatpush.msra.mxu0 0.0
        %5754 = vmatpush.msra.mxu0 0.0
        %5755 = vmatpush.msra.mxu0 %v5713
        %5756 = vmatmul.f32.gmra.mxu0 %v5718
        %v5757 = vpop.f32.mrf.mxu0
        %v5758 = vadd.f32 0.0, %v5757
        %5759 = vdwg.mxu0
        %v5760 = vadd.f32 %v5633, %v5738
        %v5761 = vadd.f32 %v5634, %v5758
        %5762 = vmatpush.msra.mxu0 %v1962
        %5763 = vmatpush.msra.mxu0 %v1960
        %5764 = vmatpush.msra.mxu0 %v1958
        %5765 = vmatpush.msra.mxu0 %v1956
        %5766 = vmatpush.msra.mxu0 %v1954
        %5767 = vmatpush.msra.mxu0 %v1952
        %5768 = vmatpush.msra.mxu0 %v1950
        %5769 = vmatpush.msra.mxu0 %v1948
        %5770 = vmatpush.msra.mxu0 %v1946
        %5771 = vmatpush.msra.mxu0 %v1944
        %5772 = vmatpush.msra.mxu0 %v1942
        %5773 = vmatpush.msra.mxu0 %v1940
        %5774 = vmatpush.msra.mxu0 %v1938
        %5775 = vmatpush.msra.mxu0 %v1936
        %5776 = vmatpush.msra.mxu0 %v1934
        %5777 = vmatpush.msra.mxu0 %v1932
        %5778 = vmatmul.f32.gmra.mxu0 %v2556
        %v5779 = vpop.f32.mrf.mxu0
        %v5780 = vadd.f32 0.0, %v5779
        %5781 = vdwg.mxu0
        %5782 = vmatpush.msra.mxu0 %v1994
        %5783 = vmatpush.msra.mxu0 %v1992
        %5784 = vmatpush.msra.mxu0 %v1990
        %5785 = vmatpush.msra.mxu0 %v1988
        %5786 = vmatpush.msra.mxu0 %v1986
        %5787 = vmatpush.msra.mxu0 %v1984
        %5788 = vmatpush.msra.mxu0 %v1982
        %5789 = vmatpush.msra.mxu0 %v1980
        %5790 = vmatpush.msra.mxu0 %v1978
        %5791 = vmatpush.msra.mxu0 %v1976
        %5792 = vmatpush.msra.mxu0 %v1974
        %5793 = vmatpush.msra.mxu0 %v1972
        %5794 = vmatpush.msra.mxu0 %v1970
        %5795 = vmatpush.msra.mxu0 %v1968
        %5796 = vmatpush.msra.mxu0 %v1966
        %5797 = vmatpush.msra.mxu0 %v1964
        %5798 = vmatmul.f32.gmra.mxu0 %v2557
        %v5799 = vpop.f32.mrf.mxu0
        %v5800 = vadd.f32 %v5780, %v5799
        %5801 = vdwg.mxu0
        %5802 = vmatpush.msra.mxu0 %v1963
        %5803 = vmatpush.msra.mxu0 %v1961
        %5804 = vmatpush.msra.mxu0 %v1959
        %5805 = vmatpush.msra.mxu0 %v1957
        %5806 = vmatpush.msra.mxu0 %v1955
        %5807 = vmatpush.msra.mxu0 %v1953
        %5808 = vmatpush.msra.mxu0 %v1951
        %5809 = vmatpush.msra.mxu0 %v1949
        %5810 = vmatpush.msra.mxu0 %v1947
        %5811 = vmatpush.msra.mxu0 %v1945
        %5812 = vmatpush.msra.mxu0 %v1943
        %5813 = vmatpush.msra.mxu0 %v1941
        %5814 = vmatpush.msra.mxu0 %v1939
        %5815 = vmatpush.msra.mxu0 %v1937
        %5816 = vmatpush.msra.mxu0 %v1935
        %5817 = vmatpush.msra.mxu0 %v1933
        %5818 = vmatmul.f32.gmra.mxu0 %v2556
        %v5819 = vpop.f32.mrf.mxu0
        %v5820 = vadd.f32 0.0, %v5819
        %5821 = vdwg.mxu0
        %5822 = vmatpush.msra.mxu0 %v1995
        %5823 = vmatpush.msra.mxu0 %v1993
        %5824 = vmatpush.msra.mxu0 %v1991
        %5825 = vmatpush.msra.mxu0 %v1989
        %5826 = vmatpush.msra.mxu0 %v1987
        %5827 = vmatpush.msra.mxu0 %v1985
        %5828 = vmatpush.msra.mxu0 %v1983
        %5829 = vmatpush.msra.mxu0 %v1981
        %5830 = vmatpush.msra.mxu0 %v1979
        %5831 = vmatpush.msra.mxu0 %v1977
        %5832 = vmatpush.msra.mxu0 %v1975
        %5833 = vmatpush.msra.mxu0 %v1973
        %5834 = vmatpush.msra.mxu0 %v1971
        %5835 = vmatpush.msra.mxu0 %v1969
        %5836 = vmatpush.msra.mxu0 %v1967
        %5837 = vmatpush.msra.mxu0 %v1965
        %5838 = vmatmul.f32.gmra.mxu0 %v2557
        %v5839 = vpop.f32.mrf.mxu0
        %v5840 = vadd.f32 %v5820, %v5839
        %5841 = vdwg.mxu0
        %s5842 = scalar_lea.vmem %s17, 48
        %v5843 = vld [vmem:[%s5842] sm:$0xff]
        %v5845 = vsel %vm3113, %v5843, 0
        %5847 = vmatpush.msra.mxu0 0.0
        %5848 = vmatpush.msra.mxu0 0.0
        %5849 = vmatpush.msra.mxu0 0.0
        %5850 = vmatpush.msra.mxu0 0.0
        %5851 = vmatpush.msra.mxu0 0.0
        %5852 = vmatpush.msra.mxu0 0.0
        %5853 = vmatpush.msra.mxu0 0.0
        %5854 = vmatpush.msra.mxu0 0.0
        %5855 = vmatpush.msra.mxu0 0.0
        %5856 = vmatpush.msra.mxu0 0.0
        %5857 = vmatpush.msra.mxu0 0.0
        %5858 = vmatpush.msra.mxu0 0.0
        %5859 = vmatpush.msra.mxu0 0.0
        %5860 = vmatpush.msra.mxu0 0.0
        %5861 = vmatpush.msra.mxu0 0.0
        %5862 = vmatpush.msra.mxu0 %v5800
        %5863 = vmatmul.f32.gmra.mxu0 %v5845
        %v5864 = vpop.f32.mrf.mxu0
        %v5865 = vadd.f32 0.0, %v5864
        %5866 = vdwg.mxu0
        %5867 = vmatpush.msra.mxu0 0.0
        %5868 = vmatpush.msra.mxu0 0.0
        %5869 = vmatpush.msra.mxu0 0.0
        %5870 = vmatpush.msra.mxu0 0.0
        %5871 = vmatpush.msra.mxu0 0.0
        %5872 = vmatpush.msra.mxu0 0.0
        %5873 = vmatpush.msra.mxu0 0.0
        %5874 = vmatpush.msra.mxu0 0.0
        %5875 = vmatpush.msra.mxu0 0.0
        %5876 = vmatpush.msra.mxu0 0.0
        %5877 = vmatpush.msra.mxu0 0.0
        %5878 = vmatpush.msra.mxu0 0.0
        %5879 = vmatpush.msra.mxu0 0.0
        %5880 = vmatpush.msra.mxu0 0.0
        %5881 = vmatpush.msra.mxu0 0.0
        %5882 = vmatpush.msra.mxu0 %v5840
        %5883 = vmatmul.f32.gmra.mxu0 %v5845
        %v5884 = vpop.f32.mrf.mxu0
        %v5885 = vadd.f32 0.0, %v5884
        %5886 = vdwg.mxu0
        %v5887 = vadd.f32 %v5760, %v5865
        %v5888 = vadd.f32 %v5761, %v5885
        %5889 = vmatpush.msra.mxu0 %v2165
        %5890 = vmatpush.msra.mxu0 %v2163
        %5891 = vmatpush.msra.mxu0 %v2161
        %5892 = vmatpush.msra.mxu0 %v2159
        %5893 = vmatpush.msra.mxu0 %v2157
        %5894 = vmatpush.msra.mxu0 %v2155
        %5895 = vmatpush.msra.mxu0 %v2153
        %5896 = vmatpush.msra.mxu0 %v2151
        %5897 = vmatpush.msra.mxu0 %v2149
        %5898 = vmatpush.msra.mxu0 %v2147
        %5899 = vmatpush.msra.mxu0 %v2145
        %5900 = vmatpush.msra.mxu0 %v2143
        %5901 = vmatpush.msra.mxu0 %v2141
        %5902 = vmatpush.msra.mxu0 %v2139
        %5903 = vmatpush.msra.mxu0 %v2137
        %5904 = vmatpush.msra.mxu0 %v2135
        %5905 = vmatmul.f32.gmra.mxu0 %v2556
        %v5906 = vpop.f32.mrf.mxu0
        %v5907 = vadd.f32 0.0, %v5906
        %5908 = vdwg.mxu0
        %5909 = vmatpush.msra.mxu0 %v2197
        %5910 = vmatpush.msra.mxu0 %v2195
        %5911 = vmatpush.msra.mxu0 %v2193
        %5912 = vmatpush.msra.mxu0 %v2191
        %5913 = vmatpush.msra.mxu0 %v2189
        %5914 = vmatpush.msra.mxu0 %v2187
        %5915 = vmatpush.msra.mxu0 %v2185
        %5916 = vmatpush.msra.mxu0 %v2183
        %5917 = vmatpush.msra.mxu0 %v2181
        %5918 = vmatpush.msra.mxu0 %v2179
        %5919 = vmatpush.msra.mxu0 %v2177
        %5920 = vmatpush.msra.mxu0 %v2175
        %5921 = vmatpush.msra.mxu0 %v2173
        %5922 = vmatpush.msra.mxu0 %v2171
        %5923 = vmatpush.msra.mxu0 %v2169
        %5924 = vmatpush.msra.mxu0 %v2167
        %5925 = vmatmul.f32.gmra.mxu0 %v2557
        %v5926 = vpop.f32.mrf.mxu0
        %v5927 = vadd.f32 %v5907, %v5926
        %5928 = vdwg.mxu0
        %5929 = vmatpush.msra.mxu0 %v2166
        %5930 = vmatpush.msra.mxu0 %v2164
        %5931 = vmatpush.msra.mxu0 %v2162
        %5932 = vmatpush.msra.mxu0 %v2160
        %5933 = vmatpush.msra.mxu0 %v2158
        %5934 = vmatpush.msra.mxu0 %v2156
        %5935 = vmatpush.msra.mxu0 %v2154
        %5936 = vmatpush.msra.mxu0 %v2152
        %5937 = vmatpush.msra.mxu0 %v2150
        %5938 = vmatpush.msra.mxu0 %v2148
        %5939 = vmatpush.msra.mxu0 %v2146
        %5940 = vmatpush.msra.mxu0 %v2144
        %5941 = vmatpush.msra.mxu0 %v2142
        %5942 = vmatpush.msra.mxu0 %v2140
        %5943 = vmatpush.msra.mxu0 %v2138
        %5944 = vmatpush.msra.mxu0 %v2136
        %5945 = vmatmul.f32.gmra.mxu0 %v2556
        %v5946 = vpop.f32.mrf.mxu0
        %v5947 = vadd.f32 0.0, %v5946
        %5948 = vdwg.mxu0
        %5949 = vmatpush.msra.mxu0 %v2198
        %5950 = vmatpush.msra.mxu0 %v2196
        %5951 = vmatpush.msra.mxu0 %v2194
        %5952 = vmatpush.msra.mxu0 %v2192
        %5953 = vmatpush.msra.mxu0 %v2190
        %5954 = vmatpush.msra.mxu0 %v2188
        %5955 = vmatpush.msra.mxu0 %v2186
        %5956 = vmatpush.msra.mxu0 %v2184
        %5957 = vmatpush.msra.mxu0 %v2182
        %5958 = vmatpush.msra.mxu0 %v2180
        %5959 = vmatpush.msra.mxu0 %v2178
        %5960 = vmatpush.msra.mxu0 %v2176
        %5961 = vmatpush.msra.mxu0 %v2174
        %5962 = vmatpush.msra.mxu0 %v2172
        %5963 = vmatpush.msra.mxu0 %v2170
        %5964 = vmatpush.msra.mxu0 %v2168
        %5965 = vmatmul.f32.gmra.mxu0 %v2557
        %v5966 = vpop.f32.mrf.mxu0
        %v5967 = vadd.f32 %v5947, %v5966
        %5968 = vdwg.mxu0
        %s5969 = scalar_lea.vmem %s17, 56
        %v5970 = vld [vmem:[%s5969] sm:$0xff]
        %v5972 = vsel %vm3113, %v5970, 0
        %5974 = vmatpush.msra.mxu0 0.0
        %5975 = vmatpush.msra.mxu0 0.0
        %5976 = vmatpush.msra.mxu0 0.0
        %5977 = vmatpush.msra.mxu0 0.0
        %5978 = vmatpush.msra.mxu0 0.0
        %5979 = vmatpush.msra.mxu0 0.0
        %5980 = vmatpush.msra.mxu0 0.0
        %5981 = vmatpush.msra.mxu0 0.0
        %5982 = vmatpush.msra.mxu0 0.0
        %5983 = vmatpush.msra.mxu0 0.0
        %5984 = vmatpush.msra.mxu0 0.0
        %5985 = vmatpush.msra.mxu0 0.0
        %5986 = vmatpush.msra.mxu0 0.0
        %5987 = vmatpush.msra.mxu0 0.0
        %5988 = vmatpush.msra.mxu0 0.0
        %5989 = vmatpush.msra.mxu0 %v5927
        %5990 = vmatmul.f32.gmra.mxu0 %v5972
        %v5991 = vpop.f32.mrf.mxu0
        %v5992 = vadd.f32 0.0, %v5991
        %5993 = vdwg.mxu0
        %5994 = vmatpush.msra.mxu0 0.0
        %5995 = vmatpush.msra.mxu0 0.0
        %5996 = vmatpush.msra.mxu0 0.0
        %5997 = vmatpush.msra.mxu0 0.0
        %5998 = vmatpush.msra.mxu0 0.0
        %5999 = vmatpush.msra.mxu0 0.0
        %6000 = vmatpush.msra.mxu0 0.0
        %6001 = vmatpush.msra.mxu0 0.0
        %6002 = vmatpush.msra.mxu0 0.0
        %6003 = vmatpush.msra.mxu0 0.0
        %6004 = vmatpush.msra.mxu0 0.0
        %6005 = vmatpush.msra.mxu0 0.0
        %6006 = vmatpush.msra.mxu0 0.0
        %6007 = vmatpush.msra.mxu0 0.0
        %6008 = vmatpush.msra.mxu0 0.0
        %6009 = vmatpush.msra.mxu0 %v5967
        %6010 = vmatmul.f32.gmra.mxu0 %v5972
        %v6011 = vpop.f32.mrf.mxu0
        %v6012 = vadd.f32 0.0, %v6011
        %6013 = vdwg.mxu0
        %v6014 = vadd.f32 %v5887, %v5992
        %v6015 = vadd.f32 %v5888, %v6012
        %6016 = vmatpush.msra.mxu0 %v2368
        %6017 = vmatpush.msra.mxu0 %v2366
        %6018 = vmatpush.msra.mxu0 %v2364
        %6019 = vmatpush.msra.mxu0 %v2362
        %6020 = vmatpush.msra.mxu0 %v2360
        %6021 = vmatpush.msra.mxu0 %v2358
        %6022 = vmatpush.msra.mxu0 %v2356
        %6023 = vmatpush.msra.mxu0 %v2354
        %6024 = vmatpush.msra.mxu0 %v2352
        %6025 = vmatpush.msra.mxu0 %v2350
        %6026 = vmatpush.msra.mxu0 %v2348
        %6027 = vmatpush.msra.mxu0 %v2346
        %6028 = vmatpush.msra.mxu0 %v2344
        %6029 = vmatpush.msra.mxu0 %v2342
        %6030 = vmatpush.msra.mxu0 %v2340
        %6031 = vmatpush.msra.mxu0 %v2338
        %6032 = vmatmul.f32.gmra.mxu0 %v2556
        %v6033 = vpop.f32.mrf.mxu0
        %v6034 = vadd.f32 0.0, %v6033
        %6035 = vdwg.mxu0
        %6036 = vmatpush.msra.mxu0 %v2400
        %6037 = vmatpush.msra.mxu0 %v2398
        %6038 = vmatpush.msra.mxu0 %v2396
        %6039 = vmatpush.msra.mxu0 %v2394
        %6040 = vmatpush.msra.mxu0 %v2392
        %6041 = vmatpush.msra.mxu0 %v2390
        %6042 = vmatpush.msra.mxu0 %v2388
        %6043 = vmatpush.msra.mxu0 %v2386
        %6044 = vmatpush.msra.mxu0 %v2384
        %6045 = vmatpush.msra.mxu0 %v2382
        %6046 = vmatpush.msra.mxu0 %v2380
        %6047 = vmatpush.msra.mxu0 %v2378
        %6048 = vmatpush.msra.mxu0 %v2376
        %6049 = vmatpush.msra.mxu0 %v2374
        %6050 = vmatpush.msra.mxu0 %v2372
        %6051 = vmatpush.msra.mxu0 %v2370
        %6052 = vmatmul.f32.gmra.mxu0 %v2557
        %v6053 = vpop.f32.mrf.mxu0
        %v6054 = vadd.f32 %v6034, %v6053
        %6055 = vdwg.mxu0
        %6056 = vmatpush.msra.mxu0 %v2369
        %6057 = vmatpush.msra.mxu0 %v2367
        %6058 = vmatpush.msra.mxu0 %v2365
        %6059 = vmatpush.msra.mxu0 %v2363
        %6060 = vmatpush.msra.mxu0 %v2361
        %6061 = vmatpush.msra.mxu0 %v2359
        %6062 = vmatpush.msra.mxu0 %v2357
        %6063 = vmatpush.msra.mxu0 %v2355
        %6064 = vmatpush.msra.mxu0 %v2353
        %6065 = vmatpush.msra.mxu0 %v2351
        %6066 = vmatpush.msra.mxu0 %v2349
        %6067 = vmatpush.msra.mxu0 %v2347
        %6068 = vmatpush.msra.mxu0 %v2345
        %6069 = vmatpush.msra.mxu0 %v2343
        %6070 = vmatpush.msra.mxu0 %v2341
        %6071 = vmatpush.msra.mxu0 %v2339
        %6072 = vmatmul.f32.gmra.mxu0 %v2556
        %v6073 = vpop.f32.mrf.mxu0
        %v6074 = vadd.f32 0.0, %v6073
        %6075 = vdwg.mxu0
        %6076 = vmatpush.msra.mxu0 %v2401
        %6077 = vmatpush.msra.mxu0 %v2399
        %6078 = vmatpush.msra.mxu0 %v2397
        %6079 = vmatpush.msra.mxu0 %v2395
        %6080 = vmatpush.msra.mxu0 %v2393
        %6081 = vmatpush.msra.mxu0 %v2391
        %6082 = vmatpush.msra.mxu0 %v2389
        %6083 = vmatpush.msra.mxu0 %v2387
        %6084 = vmatpush.msra.mxu0 %v2385
        %6085 = vmatpush.msra.mxu0 %v2383
        %6086 = vmatpush.msra.mxu0 %v2381
        %6087 = vmatpush.msra.mxu0 %v2379
        %6088 = vmatpush.msra.mxu0 %v2377
        %6089 = vmatpush.msra.mxu0 %v2375
        %6090 = vmatpush.msra.mxu0 %v2373
        %6091 = vmatpush.msra.mxu0 %v2371
        %6092 = vmatmul.f32.gmra.mxu0 %v2557
        %v6093 = vpop.f32.mrf.mxu0
        %v6094 = vadd.f32 %v6074, %v6093
        %6095 = vdwg.mxu0
        %s6096 = scalar_lea.vmem %s17, 64
        %v6097 = vld [vmem:[%s6096] sm:$0xff]
        %v6099 = vsel %vm3113, %v6097, 0
        %6101 = vmatpush.msra.mxu0 0.0
        %6102 = vmatpush.msra.mxu0 0.0
        %6103 = vmatpush.msra.mxu0 0.0
        %6104 = vmatpush.msra.mxu0 0.0
        %6105 = vmatpush.msra.mxu0 0.0
        %6106 = vmatpush.msra.mxu0 0.0
        %6107 = vmatpush.msra.mxu0 0.0
        %6108 = vmatpush.msra.mxu0 0.0
        %6109 = vmatpush.msra.mxu0 0.0
        %6110 = vmatpush.msra.mxu0 0.0
        %6111 = vmatpush.msra.mxu0 0.0
        %6112 = vmatpush.msra.mxu0 0.0
        %6113 = vmatpush.msra.mxu0 0.0
        %6114 = vmatpush.msra.mxu0 0.0
        %6115 = vmatpush.msra.mxu0 0.0
        %6116 = vmatpush.msra.mxu0 %v6054
        %6117 = vmatmul.f32.gmra.mxu0 %v6099
        %v6118 = vpop.f32.mrf.mxu0
        %v6119 = vadd.f32 0.0, %v6118
        %6120 = vdwg.mxu0
        %6121 = vmatpush.msra.mxu0 0.0
        %6122 = vmatpush.msra.mxu0 0.0
        %6123 = vmatpush.msra.mxu0 0.0
        %6124 = vmatpush.msra.mxu0 0.0
        %6125 = vmatpush.msra.mxu0 0.0
        %6126 = vmatpush.msra.mxu0 0.0
        %6127 = vmatpush.msra.mxu0 0.0
        %6128 = vmatpush.msra.mxu0 0.0
        %6129 = vmatpush.msra.mxu0 0.0
        %6130 = vmatpush.msra.mxu0 0.0
        %6131 = vmatpush.msra.mxu0 0.0
        %6132 = vmatpush.msra.mxu0 0.0
        %6133 = vmatpush.msra.mxu0 0.0
        %6134 = vmatpush.msra.mxu0 0.0
        %6135 = vmatpush.msra.mxu0 0.0
        %6136 = vmatpush.msra.mxu0 %v6094
        %6137 = vmatmul.f32.gmra.mxu0 %v6099
        %v6138 = vpop.f32.mrf.mxu0
        %v6139 = vadd.f32 0.0, %v6138
        %6140 = vdwg.mxu0
        %v6141 = vadd.f32 %v6014, %v6119
        %v6142 = vadd.f32 %v6015, %v6139
        %v6143 = vadd.f32 %v5083, %v6141
        %v6144 = vadd.f32 %v5084, %v6142
        %v6145 = vld [vmem:[%s18] sm:$0xff]
        %6147 = vset.pattern.permute.xlu0 0
        %6148 = vperm.xlu0 %6147, %v6145
        %v6149 = vpop.permute.xlu0 %6148
        %v6151 = vmul.f32 %v6143, %v6149
        %v6152 = vmul.f32 %v6144, %v6149
        %v6153 = vld [vmem:[%s19] sm:$0xff]
        %6155 = vset.pattern.permute.xlu0 0
        %6156 = vperm.xlu0 %6155, %v6153
        %v6157 = vpop.permute.xlu0 %6156
        %v6159 = vadd.f32 %v6151, %v6157
        %v6160 = vadd.f32 %v6152, %v6157
        %v6161 = vmax.f32 %v6159, 0.0
        %v6162 = vmax.f32 %v6160, 0.0
        %6163 = vmatpush.msra.mxu0 %v895
        %6164 = vmatpush.msra.mxu0 %v893
        %6165 = vmatpush.msra.mxu0 %v891
        %6166 = vmatpush.msra.mxu0 %v889
        %6167 = vmatpush.msra.mxu0 %v887
        %6168 = vmatpush.msra.mxu0 %v885
        %6169 = vmatpush.msra.mxu0 %v883
        %6170 = vmatpush.msra.mxu0 %v881
        %6171 = vmatpush.msra.mxu0 %v879
        %6172 = vmatpush.msra.mxu0 %v877
        %6173 = vmatpush.msra.mxu0 %v875
        %6174 = vmatpush.msra.mxu0 %v873
        %6175 = vmatpush.msra.mxu0 %v871
        %6176 = vmatpush.msra.mxu0 %v869
        %6177 = vmatpush.msra.mxu0 %v867
        %6178 = vmatpush.msra.mxu0 %v865
        %6179 = vmatmul.f32.gmra.mxu0 %v6161
        %v6180 = vpop.f32.mrf.mxu0
        %v6181 = vadd.f32 0.0, %v6180
        %6182 = vdwg.mxu0
        %6183 = vmatpush.msra.mxu0 %v927
        %6184 = vmatpush.msra.mxu0 %v925
        %6185 = vmatpush.msra.mxu0 %v923
        %6186 = vmatpush.msra.mxu0 %v921
        %6187 = vmatpush.msra.mxu0 %v919
        %6188 = vmatpush.msra.mxu0 %v917
        %6189 = vmatpush.msra.mxu0 %v915
        %6190 = vmatpush.msra.mxu0 %v913
        %6191 = vmatpush.msra.mxu0 %v911
        %6192 = vmatpush.msra.mxu0 %v909
        %6193 = vmatpush.msra.mxu0 %v907
        %6194 = vmatpush.msra.mxu0 %v905
        %6195 = vmatpush.msra.mxu0 %v903
        %6196 = vmatpush.msra.mxu0 %v901
        %6197 = vmatpush.msra.mxu0 %v899
        %6198 = vmatpush.msra.mxu0 %v897
        %6199 = vmatmul.f32.gmra.mxu0 %v6162
        %v6200 = vpop.f32.mrf.mxu0
        %v6201 = vadd.f32 %v6181, %v6200
        %6202 = vdwg.mxu0
        %6203 = vmatpush.msra.mxu0 %v896
        %6204 = vmatpush.msra.mxu0 %v894
        %6205 = vmatpush.msra.mxu0 %v892
        %6206 = vmatpush.msra.mxu0 %v890
        %6207 = vmatpush.msra.mxu0 %v888
        %6208 = vmatpush.msra.mxu0 %v886
        %6209 = vmatpush.msra.mxu0 %v884
        %6210 = vmatpush.msra.mxu0 %v882
        %6211 = vmatpush.msra.mxu0 %v880
        %6212 = vmatpush.msra.mxu0 %v878
        %6213 = vmatpush.msra.mxu0 %v876
        %6214 = vmatpush.msra.mxu0 %v874
        %6215 = vmatpush.msra.mxu0 %v872
        %6216 = vmatpush.msra.mxu0 %v870
        %6217 = vmatpush.msra.mxu0 %v868
        %6218 = vmatpush.msra.mxu0 %v866
        %6219 = vmatmul.f32.gmra.mxu0 %v6161
        %v6220 = vpop.f32.mrf.mxu0
        %v6221 = vadd.f32 0.0, %v6220
        %6222 = vdwg.mxu0
        %6223 = vmatpush.msra.mxu0 %v928
        %6224 = vmatpush.msra.mxu0 %v926
        %6225 = vmatpush.msra.mxu0 %v924
        %6226 = vmatpush.msra.mxu0 %v922
        %6227 = vmatpush.msra.mxu0 %v920
        %6228 = vmatpush.msra.mxu0 %v918
        %6229 = vmatpush.msra.mxu0 %v916
        %6230 = vmatpush.msra.mxu0 %v914
        %6231 = vmatpush.msra.mxu0 %v912
        %6232 = vmatpush.msra.mxu0 %v910
        %6233 = vmatpush.msra.mxu0 %v908
        %6234 = vmatpush.msra.mxu0 %v906
        %6235 = vmatpush.msra.mxu0 %v904
        %6236 = vmatpush.msra.mxu0 %v902
        %6237 = vmatpush.msra.mxu0 %v900
        %6238 = vmatpush.msra.mxu0 %v898
        %6239 = vmatmul.f32.gmra.mxu0 %v6162
        %v6240 = vpop.f32.mrf.mxu0
        %v6241 = vadd.f32 %v6221, %v6240
        %6242 = vdwg.mxu0
        %v6243 = vld [vmem:[%s20] sm:$0x1]
        %6244 = vmatpush.msra.mxu0 %v1047
        %6245 = vmatpush.msra.mxu0 %v1045
        %6246 = vmatpush.msra.mxu0 %v1043
        %6247 = vmatpush.msra.mxu0 %v1041
        %6248 = vmatpush.msra.mxu0 %v1039
        %6249 = vmatpush.msra.mxu0 %v1037
        %6250 = vmatpush.msra.mxu0 %v1035
        %6251 = vmatpush.msra.mxu0 %v1033
        %6252 = vmatpush.msra.mxu0 %v1031
        %6253 = vmatpush.msra.mxu0 %v1029
        %6254 = vmatpush.msra.mxu0 %v1027
        %6255 = vmatpush.msra.mxu0 %v1025
        %6256 = vmatpush.msra.mxu0 %v1023
        %6257 = vmatpush.msra.mxu0 %v1021
        %6258 = vmatpush.msra.mxu0 %v1019
        %6259 = vmatpush.msra.mxu0 %v1017
        %6260 = vmatmul.f32.gmra.mxu0 %v6161
        %v6261 = vpop.f32.mrf.mxu0
        %v6262 = vadd.f32 0.0, %v6261
        %6263 = vdwg.mxu0
        %6264 = vmatpush.msra.mxu0 %v1079
        %6265 = vmatpush.msra.mxu0 %v1077
        %6266 = vmatpush.msra.mxu0 %v1075
        %6267 = vmatpush.msra.mxu0 %v1073
        %6268 = vmatpush.msra.mxu0 %v1071
        %6269 = vmatpush.msra.mxu0 %v1069
        %6270 = vmatpush.msra.mxu0 %v1067
        %6271 = vmatpush.msra.mxu0 %v1065
        %6272 = vmatpush.msra.mxu0 %v1063
        %6273 = vmatpush.msra.mxu0 %v1061
        %6274 = vmatpush.msra.mxu0 %v1059
        %6275 = vmatpush.msra.mxu0 %v1057
        %6276 = vmatpush.msra.mxu0 %v1055
        %6277 = vmatpush.msra.mxu0 %v1053
        %6278 = vmatpush.msra.mxu0 %v1051
        %6279 = vmatpush.msra.mxu0 %v1049
        %6280 = vmatmul.f32.gmra.mxu0 %v6162
        %v6281 = vpop.f32.mrf.mxu0
        %v6282 = vadd.f32 %v6262, %v6281
        %6283 = vdwg.mxu0
        %6284 = vmatpush.msra.mxu0 %v1048
        %6285 = vmatpush.msra.mxu0 %v1046
        %6286 = vmatpush.msra.mxu0 %v1044
        %6287 = vmatpush.msra.mxu0 %v1042
        %6288 = vmatpush.msra.mxu0 %v1040
        %6289 = vmatpush.msra.mxu0 %v1038
        %6290 = vmatpush.msra.mxu0 %v1036
        %6291 = vmatpush.msra.mxu0 %v1034
        %6292 = vmatpush.msra.mxu0 %v1032
        %6293 = vmatpush.msra.mxu0 %v1030
        %6294 = vmatpush.msra.mxu0 %v1028
        %6295 = vmatpush.msra.mxu0 %v1026
        %6296 = vmatpush.msra.mxu0 %v1024
        %6297 = vmatpush.msra.mxu0 %v1022
        %6298 = vmatpush.msra.mxu0 %v1020
        %6299 = vmatpush.msra.mxu0 %v1018
        %6300 = vmatmul.f32.gmra.mxu0 %v6161
        %v6301 = vpop.f32.mrf.mxu0
        %v6302 = vadd.f32 0.0, %v6301
        %6303 = vdwg.mxu0
        %6304 = vmatpush.msra.mxu0 %v1080
        %6305 = vmatpush.msra.mxu0 %v1078
        %6306 = vmatpush.msra.mxu0 %v1076
        %6307 = vmatpush.msra.mxu0 %v1074
        %6308 = vmatpush.msra.mxu0 %v1072
        %6309 = vmatpush.msra.mxu0 %v1070
        %6310 = vmatpush.msra.mxu0 %v1068
        %6311 = vmatpush.msra.mxu0 %v1066
        %6312 = vmatpush.msra.mxu0 %v1064
        %6313 = vmatpush.msra.mxu0 %v1062
        %6314 = vmatpush.msra.mxu0 %v1060
        %6315 = vmatpush.msra.mxu0 %v1058
        %6316 = vmatpush.msra.mxu0 %v1056
        %6317 = vmatpush.msra.mxu0 %v1054
        %6318 = vmatpush.msra.mxu0 %v1052
        %6319 = vmatpush.msra.mxu0 %v1050
        %6320 = vmatmul.f32.gmra.mxu0 %v6162
        %v6321 = vpop.f32.mrf.mxu0
        %v6322 = vadd.f32 %v6302, %v6321
        %6323 = vdwg.mxu0
        %s6324 = scalar_lea.vmem %s20, 1
        %v6325 = vld [vmem:[%s6324] sm:$0x1]
        %v6327 = vsel %vm3113, %v6325, 0
        %6329 = vmatpush.msra.mxu0 0.0
        %6330 = vmatpush.msra.mxu0 0.0
        %6331 = vmatpush.msra.mxu0 0.0
        %6332 = vmatpush.msra.mxu0 0.0
        %6333 = vmatpush.msra.mxu0 0.0
        %6334 = vmatpush.msra.mxu0 0.0
        %6335 = vmatpush.msra.mxu0 0.0
        %6336 = vmatpush.msra.mxu0 0.0
        %6337 = vmatpush.msra.mxu0 0.0
        %6338 = vmatpush.msra.mxu0 0.0
        %6339 = vmatpush.msra.mxu0 0.0
        %6340 = vmatpush.msra.mxu0 0.0
        %6341 = vmatpush.msra.mxu0 0.0
        %6342 = vmatpush.msra.mxu0 0.0
        %6343 = vmatpush.msra.mxu0 0.0
        %6344 = vmatpush.msra.mxu0 %v6282
        %6345 = vmatmul.f32.gmra.mxu0 %v6327
        %v6346 = vpop.f32.mrf.mxu0
        %v6347 = vadd.f32 0.0, %v6346
        %6348 = vdwg.mxu0
        %6349 = vmatpush.msra.mxu0 0.0
        %6350 = vmatpush.msra.mxu0 0.0
        %6351 = vmatpush.msra.mxu0 0.0
        %6352 = vmatpush.msra.mxu0 0.0
        %6353 = vmatpush.msra.mxu0 0.0
        %6354 = vmatpush.msra.mxu0 0.0
        %6355 = vmatpush.msra.mxu0 0.0
        %6356 = vmatpush.msra.mxu0 0.0
        %6357 = vmatpush.msra.mxu0 0.0
        %6358 = vmatpush.msra.mxu0 0.0
        %6359 = vmatpush.msra.mxu0 0.0
        %6360 = vmatpush.msra.mxu0 0.0
        %6361 = vmatpush.msra.mxu0 0.0
        %6362 = vmatpush.msra.mxu0 0.0
        %6363 = vmatpush.msra.mxu0 0.0
        %6364 = vmatpush.msra.mxu0 %v6322
        %6365 = vmatmul.f32.gmra.mxu0 %v6327
        %v6366 = vpop.f32.mrf.mxu0
        %v6367 = vadd.f32 0.0, %v6366
        %6368 = vdwg.mxu0
        %v6370 = vsel %vm3113, %v6243, 0
        %6372 = vmatpush.msra.mxu0 0.0
        %6373 = vmatpush.msra.mxu0 0.0
        %6374 = vmatpush.msra.mxu0 0.0
        %6375 = vmatpush.msra.mxu0 0.0
        %6376 = vmatpush.msra.mxu0 0.0
        %6377 = vmatpush.msra.mxu0 0.0
        %6378 = vmatpush.msra.mxu0 0.0
        %6379 = vmatpush.msra.mxu0 0.0
        %6380 = vmatpush.msra.mxu0 0.0
        %6381 = vmatpush.msra.mxu0 0.0
        %6382 = vmatpush.msra.mxu0 0.0
        %6383 = vmatpush.msra.mxu0 0.0
        %6384 = vmatpush.msra.mxu0 0.0
        %6385 = vmatpush.msra.mxu0 0.0
        %6386 = vmatpush.msra.mxu0 0.0
        %6387 = vmatpush.msra.mxu0 %v6201
        %6388 = vmatmul.f32.gmra.mxu0 %v6370
        %v6389 = vpop.f32.mrf.mxu0
        %v6390 = vadd.f32 %v6347, %v6389
        %6391 = vdwg.mxu0
        %6392 = vmatpush.msra.mxu0 0.0
        %6393 = vmatpush.msra.mxu0 0.0
        %6394 = vmatpush.msra.mxu0 0.0
        %6395 = vmatpush.msra.mxu0 0.0
        %6396 = vmatpush.msra.mxu0 0.0
        %6397 = vmatpush.msra.mxu0 0.0
        %6398 = vmatpush.msra.mxu0 0.0
        %6399 = vmatpush.msra.mxu0 0.0
        %6400 = vmatpush.msra.mxu0 0.0
        %6401 = vmatpush.msra.mxu0 0.0
        %6402 = vmatpush.msra.mxu0 0.0
        %6403 = vmatpush.msra.mxu0 0.0
        %6404 = vmatpush.msra.mxu0 0.0
        %6405 = vmatpush.msra.mxu0 0.0
        %6406 = vmatpush.msra.mxu0 0.0
        %6407 = vmatpush.msra.mxu0 %v6241
        %6408 = vmatmul.f32.gmra.mxu0 %v6370
        %v6409 = vpop.f32.mrf.mxu0
        %v6410 = vadd.f32 %v6367, %v6409
        %6411 = vdwg.mxu0
        %6412 = vmatpush.msra.mxu0 %v1299
        %6413 = vmatpush.msra.mxu0 %v1297
        %6414 = vmatpush.msra.mxu0 %v1295
        %6415 = vmatpush.msra.mxu0 %v1293
        %6416 = vmatpush.msra.mxu0 %v1291
        %6417 = vmatpush.msra.mxu0 %v1289
        %6418 = vmatpush.msra.mxu0 %v1287
        %6419 = vmatpush.msra.mxu0 %v1285
        %6420 = vmatpush.msra.mxu0 %v1283
        %6421 = vmatpush.msra.mxu0 %v1281
        %6422 = vmatpush.msra.mxu0 %v1279
        %6423 = vmatpush.msra.mxu0 %v1277
        %6424 = vmatpush.msra.mxu0 %v1275
        %6425 = vmatpush.msra.mxu0 %v1273
        %6426 = vmatpush.msra.mxu0 %v1271
        %6427 = vmatpush.msra.mxu0 %v1269
        %6428 = vmatmul.f32.gmra.mxu0 %v6161
        %v6429 = vpop.f32.mrf.mxu0
        %v6430 = vadd.f32 0.0, %v6429
        %6431 = vdwg.mxu0
        %6432 = vmatpush.msra.mxu0 %v1331
        %6433 = vmatpush.msra.mxu0 %v1329
        %6434 = vmatpush.msra.mxu0 %v1327
        %6435 = vmatpush.msra.mxu0 %v1325
        %6436 = vmatpush.msra.mxu0 %v1323
        %6437 = vmatpush.msra.mxu0 %v1321
        %6438 = vmatpush.msra.mxu0 %v1319
        %6439 = vmatpush.msra.mxu0 %v1317
        %6440 = vmatpush.msra.mxu0 %v1315
        %6441 = vmatpush.msra.mxu0 %v1313
        %6442 = vmatpush.msra.mxu0 %v1311
        %6443 = vmatpush.msra.mxu0 %v1309
        %6444 = vmatpush.msra.mxu0 %v1307
        %6445 = vmatpush.msra.mxu0 %v1305
        %6446 = vmatpush.msra.mxu0 %v1303
        %6447 = vmatpush.msra.mxu0 %v1301
        %6448 = vmatmul.f32.gmra.mxu0 %v6162
        %v6449 = vpop.f32.mrf.mxu0
        %v6450 = vadd.f32 %v6430, %v6449
        %6451 = vdwg.mxu0
        %6452 = vmatpush.msra.mxu0 %v1300
        %6453 = vmatpush.msra.mxu0 %v1298
        %6454 = vmatpush.msra.mxu0 %v1296
        %6455 = vmatpush.msra.mxu0 %v1294
        %6456 = vmatpush.msra.mxu0 %v1292
        %6457 = vmatpush.msra.mxu0 %v1290
        %6458 = vmatpush.msra.mxu0 %v1288
        %6459 = vmatpush.msra.mxu0 %v1286
        %6460 = vmatpush.msra.mxu0 %v1284
        %6461 = vmatpush.msra.mxu0 %v1282
        %6462 = vmatpush.msra.mxu0 %v1280
        %6463 = vmatpush.msra.mxu0 %v1278
        %6464 = vmatpush.msra.mxu0 %v1276
        %6465 = vmatpush.msra.mxu0 %v1274
        %6466 = vmatpush.msra.mxu0 %v1272
        %6467 = vmatpush.msra.mxu0 %v1270
        %6468 = vmatmul.f32.gmra.mxu0 %v6161
        %v6469 = vpop.f32.mrf.mxu0
        %v6470 = vadd.f32 0.0, %v6469
        %6471 = vdwg.mxu0
        %6472 = vmatpush.msra.mxu0 %v1332
        %6473 = vmatpush.msra.mxu0 %v1330
        %6474 = vmatpush.msra.mxu0 %v1328
        %6475 = vmatpush.msra.mxu0 %v1326
        %6476 = vmatpush.msra.mxu0 %v1324
        %6477 = vmatpush.msra.mxu0 %v1322
        %6478 = vmatpush.msra.mxu0 %v1320
        %6479 = vmatpush.msra.mxu0 %v1318
        %6480 = vmatpush.msra.mxu0 %v1316
        %6481 = vmatpush.msra.mxu0 %v1314
        %6482 = vmatpush.msra.mxu0 %v1312
        %6483 = vmatpush.msra.mxu0 %v1310
        %6484 = vmatpush.msra.mxu0 %v1308
        %6485 = vmatpush.msra.mxu0 %v1306
        %6486 = vmatpush.msra.mxu0 %v1304
        %6487 = vmatpush.msra.mxu0 %v1302
        %6488 = vmatmul.f32.gmra.mxu0 %v6162
        %v6489 = vpop.f32.mrf.mxu0
        %v6490 = vadd.f32 %v6470, %v6489
        %6491 = vdwg.mxu0
        %s6492 = scalar_lea.vmem %s20, 2
        %v6493 = vld [vmem:[%s6492] sm:$0x1]
        %v6495 = vsel %vm3113, %v6493, 0
        %6497 = vmatpush.msra.mxu0 0.0
        %6498 = vmatpush.msra.mxu0 0.0
        %6499 = vmatpush.msra.mxu0 0.0
        %6500 = vmatpush.msra.mxu0 0.0
        %6501 = vmatpush.msra.mxu0 0.0
        %6502 = vmatpush.msra.mxu0 0.0
        %6503 = vmatpush.msra.mxu0 0.0
        %6504 = vmatpush.msra.mxu0 0.0
        %6505 = vmatpush.msra.mxu0 0.0
        %6506 = vmatpush.msra.mxu0 0.0
        %6507 = vmatpush.msra.mxu0 0.0
        %6508 = vmatpush.msra.mxu0 0.0
        %6509 = vmatpush.msra.mxu0 0.0
        %6510 = vmatpush.msra.mxu0 0.0
        %6511 = vmatpush.msra.mxu0 0.0
        %6512 = vmatpush.msra.mxu0 %v6450
        %6513 = vmatmul.f32.gmra.mxu0 %v6495
        %v6514 = vpop.f32.mrf.mxu0
        %v6515 = vadd.f32 0.0, %v6514
        %6516 = vdwg.mxu0
        %6517 = vmatpush.msra.mxu0 0.0
        %6518 = vmatpush.msra.mxu0 0.0
        %6519 = vmatpush.msra.mxu0 0.0
        %6520 = vmatpush.msra.mxu0 0.0
        %6521 = vmatpush.msra.mxu0 0.0
        %6522 = vmatpush.msra.mxu0 0.0
        %6523 = vmatpush.msra.mxu0 0.0
        %6524 = vmatpush.msra.mxu0 0.0
        %6525 = vmatpush.msra.mxu0 0.0
        %6526 = vmatpush.msra.mxu0 0.0
        %6527 = vmatpush.msra.mxu0 0.0
        %6528 = vmatpush.msra.mxu0 0.0
        %6529 = vmatpush.msra.mxu0 0.0
        %6530 = vmatpush.msra.mxu0 0.0
        %6531 = vmatpush.msra.mxu0 0.0
        %6532 = vmatpush.msra.mxu0 %v6490
        %6533 = vmatmul.f32.gmra.mxu0 %v6495
        %v6534 = vpop.f32.mrf.mxu0
        %v6535 = vadd.f32 0.0, %v6534
        %6536 = vdwg.mxu0
        %v6537 = vadd.f32 %v6390, %v6515
        %v6538 = vadd.f32 %v6410, %v6535
        %6539 = vmatpush.msra.mxu0 %v1502
        %6540 = vmatpush.msra.mxu0 %v1500
        %6541 = vmatpush.msra.mxu0 %v1498
        %6542 = vmatpush.msra.mxu0 %v1496
        %6543 = vmatpush.msra.mxu0 %v1494
        %6544 = vmatpush.msra.mxu0 %v1492
        %6545 = vmatpush.msra.mxu0 %v1490
        %6546 = vmatpush.msra.mxu0 %v1488
        %6547 = vmatpush.msra.mxu0 %v1486
        %6548 = vmatpush.msra.mxu0 %v1484
        %6549 = vmatpush.msra.mxu0 %v1482
        %6550 = vmatpush.msra.mxu0 %v1480
        %6551 = vmatpush.msra.mxu0 %v1478
        %6552 = vmatpush.msra.mxu0 %v1476
        %6553 = vmatpush.msra.mxu0 %v1474
        %6554 = vmatpush.msra.mxu0 %v1472
        %6555 = vmatmul.f32.gmra.mxu0 %v6161
        %v6556 = vpop.f32.mrf.mxu0
        %v6557 = vadd.f32 0.0, %v6556
        %6558 = vdwg.mxu0
        %6559 = vmatpush.msra.mxu0 %v1534
        %6560 = vmatpush.msra.mxu0 %v1532
        %6561 = vmatpush.msra.mxu0 %v1530
        %6562 = vmatpush.msra.mxu0 %v1528
        %6563 = vmatpush.msra.mxu0 %v1526
        %6564 = vmatpush.msra.mxu0 %v1524
        %6565 = vmatpush.msra.mxu0 %v1522
        %6566 = vmatpush.msra.mxu0 %v1520
        %6567 = vmatpush.msra.mxu0 %v1518
        %6568 = vmatpush.msra.mxu0 %v1516
        %6569 = vmatpush.msra.mxu0 %v1514
        %6570 = vmatpush.msra.mxu0 %v1512
        %6571 = vmatpush.msra.mxu0 %v1510
        %6572 = vmatpush.msra.mxu0 %v1508
        %6573 = vmatpush.msra.mxu0 %v1506
        %6574 = vmatpush.msra.mxu0 %v1504
        %6575 = vmatmul.f32.gmra.mxu0 %v6162
        %v6576 = vpop.f32.mrf.mxu0
        %v6577 = vadd.f32 %v6557, %v6576
        %6578 = vdwg.mxu0
        %6579 = vmatpush.msra.mxu0 %v1503
        %6580 = vmatpush.msra.mxu0 %v1501
        %6581 = vmatpush.msra.mxu0 %v1499
        %6582 = vmatpush.msra.mxu0 %v1497
        %6583 = vmatpush.msra.mxu0 %v1495
        %6584 = vmatpush.msra.mxu0 %v1493
        %6585 = vmatpush.msra.mxu0 %v1491
        %6586 = vmatpush.msra.mxu0 %v1489
        %6587 = vmatpush.msra.mxu0 %v1487
        %6588 = vmatpush.msra.mxu0 %v1485
        %6589 = vmatpush.msra.mxu0 %v1483
        %6590 = vmatpush.msra.mxu0 %v1481
        %6591 = vmatpush.msra.mxu0 %v1479
        %6592 = vmatpush.msra.mxu0 %v1477
        %6593 = vmatpush.msra.mxu0 %v1475
        %6594 = vmatpush.msra.mxu0 %v1473
        %6595 = vmatmul.f32.gmra.mxu0 %v6161
        %v6596 = vpop.f32.mrf.mxu0
        %v6597 = vadd.f32 0.0, %v6596
        %6598 = vdwg.mxu0
        %6599 = vmatpush.msra.mxu0 %v1535
        %6600 = vmatpush.msra.mxu0 %v1533
        %6601 = vmatpush.msra.mxu0 %v1531
        %6602 = vmatpush.msra.mxu0 %v1529
        %6603 = vmatpush.msra.mxu0 %v1527
        %6604 = vmatpush.msra.mxu0 %v1525
        %6605 = vmatpush.msra.mxu0 %v1523
        %6606 = vmatpush.msra.mxu0 %v1521
        %6607 = vmatpush.msra.mxu0 %v1519
        %6608 = vmatpush.msra.mxu0 %v1517
        %6609 = vmatpush.msra.mxu0 %v1515
        %6610 = vmatpush.msra.mxu0 %v1513
        %6611 = vmatpush.msra.mxu0 %v1511
        %6612 = vmatpush.msra.mxu0 %v1509
        %6613 = vmatpush.msra.mxu0 %v1507
        %6614 = vmatpush.msra.mxu0 %v1505
        %6615 = vmatmul.f32.gmra.mxu0 %v6162
        %v6616 = vpop.f32.mrf.mxu0
        %v6617 = vadd.f32 %v6597, %v6616
        %6618 = vdwg.mxu0
        %s6619 = scalar_lea.vmem %s20, 3
        %v6620 = vld [vmem:[%s6619] sm:$0x1]
        %v6622 = vsel %vm3113, %v6620, 0
        %6624 = vmatpush.msra.mxu0 0.0
        %6625 = vmatpush.msra.mxu0 0.0
        %6626 = vmatpush.msra.mxu0 0.0
        %6627 = vmatpush.msra.mxu0 0.0
        %6628 = vmatpush.msra.mxu0 0.0
        %6629 = vmatpush.msra.mxu0 0.0
        %6630 = vmatpush.msra.mxu0 0.0
        %6631 = vmatpush.msra.mxu0 0.0
        %6632 = vmatpush.msra.mxu0 0.0
        %6633 = vmatpush.msra.mxu0 0.0
        %6634 = vmatpush.msra.mxu0 0.0
        %6635 = vmatpush.msra.mxu0 0.0
        %6636 = vmatpush.msra.mxu0 0.0
        %6637 = vmatpush.msra.mxu0 0.0
        %6638 = vmatpush.msra.mxu0 0.0
        %6639 = vmatpush.msra.mxu0 %v6577
        %6640 = vmatmul.f32.gmra.mxu0 %v6622
        %v6641 = vpop.f32.mrf.mxu0
        %v6642 = vadd.f32 0.0, %v6641
        %6643 = vdwg.mxu0
        %6644 = vmatpush.msra.mxu0 0.0
        %6645 = vmatpush.msra.mxu0 0.0
        %6646 = vmatpush.msra.mxu0 0.0
        %6647 = vmatpush.msra.mxu0 0.0
        %6648 = vmatpush.msra.mxu0 0.0
        %6649 = vmatpush.msra.mxu0 0.0
        %6650 = vmatpush.msra.mxu0 0.0
        %6651 = vmatpush.msra.mxu0 0.0
        %6652 = vmatpush.msra.mxu0 0.0
        %6653 = vmatpush.msra.mxu0 0.0
        %6654 = vmatpush.msra.mxu0 0.0
        %6655 = vmatpush.msra.mxu0 0.0
        %6656 = vmatpush.msra.mxu0 0.0
        %6657 = vmatpush.msra.mxu0 0.0
        %6658 = vmatpush.msra.mxu0 0.0
        %6659 = vmatpush.msra.mxu0 %v6617
        %6660 = vmatmul.f32.gmra.mxu0 %v6622
        %v6661 = vpop.f32.mrf.mxu0
        %v6662 = vadd.f32 0.0, %v6661
        %6663 = vdwg.mxu0
        %v6664 = vadd.f32 %v6537, %v6642
        %v6665 = vadd.f32 %v6538, %v6662
        %s6666 = scalar_lea.vmem %s20, 4
        %v6667 = vld [vmem:[%s6666] sm:$0x1]
        %v6669 = vsel %vm3113, %v6667, 0
        %6671 = vmatpush.msra.mxu0 0.0
        %6672 = vmatpush.msra.mxu0 0.0
        %6673 = vmatpush.msra.mxu0 0.0
        %6674 = vmatpush.msra.mxu0 0.0
        %6675 = vmatpush.msra.mxu0 0.0
        %6676 = vmatpush.msra.mxu0 0.0
        %6677 = vmatpush.msra.mxu0 0.0
        %6678 = vmatpush.msra.mxu0 0.0
        %6679 = vmatpush.msra.mxu0 0.0
        %6680 = vmatpush.msra.mxu0 0.0
        %6681 = vmatpush.msra.mxu0 0.0
        %6682 = vmatpush.msra.mxu0 0.0
        %6683 = vmatpush.msra.mxu0 0.0
        %6684 = vmatpush.msra.mxu0 0.0
        %6685 = vmatpush.msra.mxu0 0.0
        %6686 = vmatpush.msra.mxu0 %v6161
        %6687 = vmatmul.f32.gmra.mxu0 %v6669
        %v6688 = vpop.f32.mrf.mxu0
        %v6689 = vadd.f32 0.0, %v6688
        %6690 = vdwg.mxu0
        %6691 = vmatpush.msra.mxu0 0.0
        %6692 = vmatpush.msra.mxu0 0.0
        %6693 = vmatpush.msra.mxu0 0.0
        %6694 = vmatpush.msra.mxu0 0.0
        %6695 = vmatpush.msra.mxu0 0.0
        %6696 = vmatpush.msra.mxu0 0.0
        %6697 = vmatpush.msra.mxu0 0.0
        %6698 = vmatpush.msra.mxu0 0.0
        %6699 = vmatpush.msra.mxu0 0.0
        %6700 = vmatpush.msra.mxu0 0.0
        %6701 = vmatpush.msra.mxu0 0.0
        %6702 = vmatpush.msra.mxu0 0.0
        %6703 = vmatpush.msra.mxu0 0.0
        %6704 = vmatpush.msra.mxu0 0.0
        %6705 = vmatpush.msra.mxu0 0.0
        %6706 = vmatpush.msra.mxu0 %v6162
        %6707 = vmatmul.f32.gmra.mxu0 %v6669
        %v6708 = vpop.f32.mrf.mxu0
        %v6709 = vadd.f32 0.0, %v6708
        %6710 = vdwg.mxu0
        %v6711 = vadd.f32 %v6664, %v6689
        %v6712 = vadd.f32 %v6665, %v6709
        %6713 = vmatpush.msra.mxu0 %v1759
        %6714 = vmatpush.msra.mxu0 %v1757
        %6715 = vmatpush.msra.mxu0 %v1755
        %6716 = vmatpush.msra.mxu0 %v1753
        %6717 = vmatpush.msra.mxu0 %v1751
        %6718 = vmatpush.msra.mxu0 %v1749
        %6719 = vmatpush.msra.mxu0 %v1747
        %6720 = vmatpush.msra.mxu0 %v1745
        %6721 = vmatpush.msra.mxu0 %v1743
        %6722 = vmatpush.msra.mxu0 %v1741
        %6723 = vmatpush.msra.mxu0 %v1739
        %6724 = vmatpush.msra.mxu0 %v1737
        %6725 = vmatpush.msra.mxu0 %v1735
        %6726 = vmatpush.msra.mxu0 %v1733
        %6727 = vmatpush.msra.mxu0 %v1731
        %6728 = vmatpush.msra.mxu0 %v1729
        %6729 = vmatmul.f32.gmra.mxu0 %v6161
        %v6730 = vpop.f32.mrf.mxu0
        %v6731 = vadd.f32 0.0, %v6730
        %6732 = vdwg.mxu0
        %6733 = vmatpush.msra.mxu0 %v1791
        %6734 = vmatpush.msra.mxu0 %v1789
        %6735 = vmatpush.msra.mxu0 %v1787
        %6736 = vmatpush.msra.mxu0 %v1785
        %6737 = vmatpush.msra.mxu0 %v1783
        %6738 = vmatpush.msra.mxu0 %v1781
        %6739 = vmatpush.msra.mxu0 %v1779
        %6740 = vmatpush.msra.mxu0 %v1777
        %6741 = vmatpush.msra.mxu0 %v1775
        %6742 = vmatpush.msra.mxu0 %v1773
        %6743 = vmatpush.msra.mxu0 %v1771
        %6744 = vmatpush.msra.mxu0 %v1769
        %6745 = vmatpush.msra.mxu0 %v1767
        %6746 = vmatpush.msra.mxu0 %v1765
        %6747 = vmatpush.msra.mxu0 %v1763
        %6748 = vmatpush.msra.mxu0 %v1761
        %6749 = vmatmul.f32.gmra.mxu0 %v6162
        %v6750 = vpop.f32.mrf.mxu0
        %v6751 = vadd.f32 %v6731, %v6750
        %6752 = vdwg.mxu0
        %6753 = vmatpush.msra.mxu0 %v1760
        %6754 = vmatpush.msra.mxu0 %v1758
        %6755 = vmatpush.msra.mxu0 %v1756
        %6756 = vmatpush.msra.mxu0 %v1754
        %6757 = vmatpush.msra.mxu0 %v1752
        %6758 = vmatpush.msra.mxu0 %v1750
        %6759 = vmatpush.msra.mxu0 %v1748
        %6760 = vmatpush.msra.mxu0 %v1746
        %6761 = vmatpush.msra.mxu0 %v1744
        %6762 = vmatpush.msra.mxu0 %v1742
        %6763 = vmatpush.msra.mxu0 %v1740
        %6764 = vmatpush.msra.mxu0 %v1738
        %6765 = vmatpush.msra.mxu0 %v1736
        %6766 = vmatpush.msra.mxu0 %v1734
        %6767 = vmatpush.msra.mxu0 %v1732
        %6768 = vmatpush.msra.mxu0 %v1730
        %6769 = vmatmul.f32.gmra.mxu0 %v6161
        %v6770 = vpop.f32.mrf.mxu0
        %v6771 = vadd.f32 0.0, %v6770
        %6772 = vdwg.mxu0
        %6773 = vmatpush.msra.mxu0 %v1792
        %6774 = vmatpush.msra.mxu0 %v1790
        %6775 = vmatpush.msra.mxu0 %v1788
        %6776 = vmatpush.msra.mxu0 %v1786
        %6777 = vmatpush.msra.mxu0 %v1784
        %6778 = vmatpush.msra.mxu0 %v1782
        %6779 = vmatpush.msra.mxu0 %v1780
        %6780 = vmatpush.msra.mxu0 %v1778
        %6781 = vmatpush.msra.mxu0 %v1776
        %6782 = vmatpush.msra.mxu0 %v1774
        %6783 = vmatpush.msra.mxu0 %v1772
        %6784 = vmatpush.msra.mxu0 %v1770
        %6785 = vmatpush.msra.mxu0 %v1768
        %6786 = vmatpush.msra.mxu0 %v1766
        %6787 = vmatpush.msra.mxu0 %v1764
        %6788 = vmatpush.msra.mxu0 %v1762
        %6789 = vmatmul.f32.gmra.mxu0 %v6162
        %v6790 = vpop.f32.mrf.mxu0
        %v6791 = vadd.f32 %v6771, %v6790
        %6792 = vdwg.mxu0
        %s6793 = scalar_lea.vmem %s20, 5
        %v6794 = vld [vmem:[%s6793] sm:$0x1]
        %v6796 = vsel %vm3113, %v6794, 0
        %6798 = vmatpush.msra.mxu0 0.0
        %6799 = vmatpush.msra.mxu0 0.0
        %6800 = vmatpush.msra.mxu0 0.0
        %6801 = vmatpush.msra.mxu0 0.0
        %6802 = vmatpush.msra.mxu0 0.0
        %6803 = vmatpush.msra.mxu0 0.0
        %6804 = vmatpush.msra.mxu0 0.0
        %6805 = vmatpush.msra.mxu0 0.0
        %6806 = vmatpush.msra.mxu0 0.0
        %6807 = vmatpush.msra.mxu0 0.0
        %6808 = vmatpush.msra.mxu0 0.0
        %6809 = vmatpush.msra.mxu0 0.0
        %6810 = vmatpush.msra.mxu0 0.0
        %6811 = vmatpush.msra.mxu0 0.0
        %6812 = vmatpush.msra.mxu0 0.0
        %6813 = vmatpush.msra.mxu0 %v6751
        %6814 = vmatmul.f32.gmra.mxu0 %v6796
        %v6815 = vpop.f32.mrf.mxu0
        %v6816 = vadd.f32 0.0, %v6815
        %6817 = vdwg.mxu0
        %6818 = vmatpush.msra.mxu0 0.0
        %6819 = vmatpush.msra.mxu0 0.0
        %6820 = vmatpush.msra.mxu0 0.0
        %6821 = vmatpush.msra.mxu0 0.0
        %6822 = vmatpush.msra.mxu0 0.0
        %6823 = vmatpush.msra.mxu0 0.0
        %6824 = vmatpush.msra.mxu0 0.0
        %6825 = vmatpush.msra.mxu0 0.0
        %6826 = vmatpush.msra.mxu0 0.0
        %6827 = vmatpush.msra.mxu0 0.0
        %6828 = vmatpush.msra.mxu0 0.0
        %6829 = vmatpush.msra.mxu0 0.0
        %6830 = vmatpush.msra.mxu0 0.0
        %6831 = vmatpush.msra.mxu0 0.0
        %6832 = vmatpush.msra.mxu0 0.0
        %6833 = vmatpush.msra.mxu0 %v6791
        %6834 = vmatmul.f32.gmra.mxu0 %v6796
        %v6835 = vpop.f32.mrf.mxu0
        %v6836 = vadd.f32 0.0, %v6835
        %6837 = vdwg.mxu0
        %v6838 = vadd.f32 %v6711, %v6816
        %v6839 = vadd.f32 %v6712, %v6836
        %6840 = vmatpush.msra.mxu0 %v1962
        %6841 = vmatpush.msra.mxu0 %v1960
        %6842 = vmatpush.msra.mxu0 %v1958
        %6843 = vmatpush.msra.mxu0 %v1956
        %6844 = vmatpush.msra.mxu0 %v1954
        %6845 = vmatpush.msra.mxu0 %v1952
        %6846 = vmatpush.msra.mxu0 %v1950
        %6847 = vmatpush.msra.mxu0 %v1948
        %6848 = vmatpush.msra.mxu0 %v1946
        %6849 = vmatpush.msra.mxu0 %v1944
        %6850 = vmatpush.msra.mxu0 %v1942
        %6851 = vmatpush.msra.mxu0 %v1940
        %6852 = vmatpush.msra.mxu0 %v1938
        %6853 = vmatpush.msra.mxu0 %v1936
        %6854 = vmatpush.msra.mxu0 %v1934
        %6855 = vmatpush.msra.mxu0 %v1932
        %6856 = vmatmul.f32.gmra.mxu0 %v6161
        %v6857 = vpop.f32.mrf.mxu0
        %v6858 = vadd.f32 0.0, %v6857
        %6859 = vdwg.mxu0
        %6860 = vmatpush.msra.mxu0 %v1994
        %6861 = vmatpush.msra.mxu0 %v1992
        %6862 = vmatpush.msra.mxu0 %v1990
        %6863 = vmatpush.msra.mxu0 %v1988
        %6864 = vmatpush.msra.mxu0 %v1986
        %6865 = vmatpush.msra.mxu0 %v1984
        %6866 = vmatpush.msra.mxu0 %v1982
        %6867 = vmatpush.msra.mxu0 %v1980
        %6868 = vmatpush.msra.mxu0 %v1978
        %6869 = vmatpush.msra.mxu0 %v1976
        %6870 = vmatpush.msra.mxu0 %v1974
        %6871 = vmatpush.msra.mxu0 %v1972
        %6872 = vmatpush.msra.mxu0 %v1970
        %6873 = vmatpush.msra.mxu0 %v1968
        %6874 = vmatpush.msra.mxu0 %v1966
        %6875 = vmatpush.msra.mxu0 %v1964
        %6876 = vmatmul.f32.gmra.mxu0 %v6162
        %v6877 = vpop.f32.mrf.mxu0
        %v6878 = vadd.f32 %v6858, %v6877
        %6879 = vdwg.mxu0
        %6880 = vmatpush.msra.mxu0 %v1963
        %6881 = vmatpush.msra.mxu0 %v1961
        %6882 = vmatpush.msra.mxu0 %v1959
        %6883 = vmatpush.msra.mxu0 %v1957
        %6884 = vmatpush.msra.mxu0 %v1955
        %6885 = vmatpush.msra.mxu0 %v1953
        %6886 = vmatpush.msra.mxu0 %v1951
        %6887 = vmatpush.msra.mxu0 %v1949
        %6888 = vmatpush.msra.mxu0 %v1947
        %6889 = vmatpush.msra.mxu0 %v1945
        %6890 = vmatpush.msra.mxu0 %v1943
        %6891 = vmatpush.msra.mxu0 %v1941
        %6892 = vmatpush.msra.mxu0 %v1939
        %6893 = vmatpush.msra.mxu0 %v1937
        %6894 = vmatpush.msra.mxu0 %v1935
        %6895 = vmatpush.msra.mxu0 %v1933
        %6896 = vmatmul.f32.gmra.mxu0 %v6161
        %v6897 = vpop.f32.mrf.mxu0
        %v6898 = vadd.f32 0.0, %v6897
        %6899 = vdwg.mxu0
        %6900 = vmatpush.msra.mxu0 %v1995
        %6901 = vmatpush.msra.mxu0 %v1993
        %6902 = vmatpush.msra.mxu0 %v1991
        %6903 = vmatpush.msra.mxu0 %v1989
        %6904 = vmatpush.msra.mxu0 %v1987
        %6905 = vmatpush.msra.mxu0 %v1985
        %6906 = vmatpush.msra.mxu0 %v1983
        %6907 = vmatpush.msra.mxu0 %v1981
        %6908 = vmatpush.msra.mxu0 %v1979
        %6909 = vmatpush.msra.mxu0 %v1977
        %6910 = vmatpush.msra.mxu0 %v1975
        %6911 = vmatpush.msra.mxu0 %v1973
        %6912 = vmatpush.msra.mxu0 %v1971
        %6913 = vmatpush.msra.mxu0 %v1969
        %6914 = vmatpush.msra.mxu0 %v1967
        %6915 = vmatpush.msra.mxu0 %v1965
        %6916 = vmatmul.f32.gmra.mxu0 %v6162
        %v6917 = vpop.f32.mrf.mxu0
        %v6918 = vadd.f32 %v6898, %v6917
        %6919 = vdwg.mxu0
        %s6920 = scalar_lea.vmem %s20, 6
        %v6921 = vld [vmem:[%s6920] sm:$0x1]
        %v6923 = vsel %vm3113, %v6921, 0
        %6925 = vmatpush.msra.mxu0 0.0
        %6926 = vmatpush.msra.mxu0 0.0
        %6927 = vmatpush.msra.mxu0 0.0
        %6928 = vmatpush.msra.mxu0 0.0
        %6929 = vmatpush.msra.mxu0 0.0
        %6930 = vmatpush.msra.mxu0 0.0
        %6931 = vmatpush.msra.mxu0 0.0
        %6932 = vmatpush.msra.mxu0 0.0
        %6933 = vmatpush.msra.mxu0 0.0
        %6934 = vmatpush.msra.mxu0 0.0
        %6935 = vmatpush.msra.mxu0 0.0
        %6936 = vmatpush.msra.mxu0 0.0
        %6937 = vmatpush.msra.mxu0 0.0
        %6938 = vmatpush.msra.mxu0 0.0
        %6939 = vmatpush.msra.mxu0 0.0
        %6940 = vmatpush.msra.mxu0 %v6878
        %6941 = vmatmul.f32.gmra.mxu0 %v6923
        %v6942 = vpop.f32.mrf.mxu0
        %v6943 = vadd.f32 0.0, %v6942
        %6944 = vdwg.mxu0
        %6945 = vmatpush.msra.mxu0 0.0
        %6946 = vmatpush.msra.mxu0 0.0
        %6947 = vmatpush.msra.mxu0 0.0
        %6948 = vmatpush.msra.mxu0 0.0
        %6949 = vmatpush.msra.mxu0 0.0
        %6950 = vmatpush.msra.mxu0 0.0
        %6951 = vmatpush.msra.mxu0 0.0
        %6952 = vmatpush.msra.mxu0 0.0
        %6953 = vmatpush.msra.mxu0 0.0
        %6954 = vmatpush.msra.mxu0 0.0
        %6955 = vmatpush.msra.mxu0 0.0
        %6956 = vmatpush.msra.mxu0 0.0
        %6957 = vmatpush.msra.mxu0 0.0
        %6958 = vmatpush.msra.mxu0 0.0
        %6959 = vmatpush.msra.mxu0 0.0
        %6960 = vmatpush.msra.mxu0 %v6918
        %6961 = vmatmul.f32.gmra.mxu0 %v6923
        %v6962 = vpop.f32.mrf.mxu0
        %v6963 = vadd.f32 0.0, %v6962
        %6964 = vdwg.mxu0
        %v6965 = vadd.f32 %v6838, %v6943
        %v6966 = vadd.f32 %v6839, %v6963
        %6967 = vmatpush.msra.mxu0 %v2165
        %6968 = vmatpush.msra.mxu0 %v2163
        %6969 = vmatpush.msra.mxu0 %v2161
        %6970 = vmatpush.msra.mxu0 %v2159
        %6971 = vmatpush.msra.mxu0 %v2157
        %6972 = vmatpush.msra.mxu0 %v2155
        %6973 = vmatpush.msra.mxu0 %v2153
        %6974 = vmatpush.msra.mxu0 %v2151
        %6975 = vmatpush.msra.mxu0 %v2149
        %6976 = vmatpush.msra.mxu0 %v2147
        %6977 = vmatpush.msra.mxu0 %v2145
        %6978 = vmatpush.msra.mxu0 %v2143
        %6979 = vmatpush.msra.mxu0 %v2141
        %6980 = vmatpush.msra.mxu0 %v2139
        %6981 = vmatpush.msra.mxu0 %v2137
        %6982 = vmatpush.msra.mxu0 %v2135
        %6983 = vmatmul.f32.gmra.mxu0 %v6161
        %v6984 = vpop.f32.mrf.mxu0
        %v6985 = vadd.f32 0.0, %v6984
        %6986 = vdwg.mxu0
        %6987 = vmatpush.msra.mxu0 %v2197
        %6988 = vmatpush.msra.mxu0 %v2195
        %6989 = vmatpush.msra.mxu0 %v2193
        %6990 = vmatpush.msra.mxu0 %v2191
        %6991 = vmatpush.msra.mxu0 %v2189
        %6992 = vmatpush.msra.mxu0 %v2187
        %6993 = vmatpush.msra.mxu0 %v2185
        %6994 = vmatpush.msra.mxu0 %v2183
        %6995 = vmatpush.msra.mxu0 %v2181
        %6996 = vmatpush.msra.mxu0 %v2179
        %6997 = vmatpush.msra.mxu0 %v2177
        %6998 = vmatpush.msra.mxu0 %v2175
        %6999 = vmatpush.msra.mxu0 %v2173
        %7000 = vmatpush.msra.mxu0 %v2171
        %7001 = vmatpush.msra.mxu0 %v2169
        %7002 = vmatpush.msra.mxu0 %v2167
        %7003 = vmatmul.f32.gmra.mxu0 %v6162
        %v7004 = vpop.f32.mrf.mxu0
        %v7005 = vadd.f32 %v6985, %v7004
        %7006 = vdwg.mxu0
        %7007 = vmatpush.msra.mxu0 %v2166
        %7008 = vmatpush.msra.mxu0 %v2164
        %7009 = vmatpush.msra.mxu0 %v2162
        %7010 = vmatpush.msra.mxu0 %v2160
        %7011 = vmatpush.msra.mxu0 %v2158
        %7012 = vmatpush.msra.mxu0 %v2156
        %7013 = vmatpush.msra.mxu0 %v2154
        %7014 = vmatpush.msra.mxu0 %v2152
        %7015 = vmatpush.msra.mxu0 %v2150
        %7016 = vmatpush.msra.mxu0 %v2148
        %7017 = vmatpush.msra.mxu0 %v2146
        %7018 = vmatpush.msra.mxu0 %v2144
        %7019 = vmatpush.msra.mxu0 %v2142
        %7020 = vmatpush.msra.mxu0 %v2140
        %7021 = vmatpush.msra.mxu0 %v2138
        %7022 = vmatpush.msra.mxu0 %v2136
        %7023 = vmatmul.f32.gmra.mxu0 %v6161
        %v7024 = vpop.f32.mrf.mxu0
        %v7025 = vadd.f32 0.0, %v7024
        %7026 = vdwg.mxu0
        %7027 = vmatpush.msra.mxu0 %v2198
        %7028 = vmatpush.msra.mxu0 %v2196
        %7029 = vmatpush.msra.mxu0 %v2194
        %7030 = vmatpush.msra.mxu0 %v2192
        %7031 = vmatpush.msra.mxu0 %v2190
        %7032 = vmatpush.msra.mxu0 %v2188
        %7033 = vmatpush.msra.mxu0 %v2186
        %7034 = vmatpush.msra.mxu0 %v2184
        %7035 = vmatpush.msra.mxu0 %v2182
        %7036 = vmatpush.msra.mxu0 %v2180
        %7037 = vmatpush.msra.mxu0 %v2178
        %7038 = vmatpush.msra.mxu0 %v2176
        %7039 = vmatpush.msra.mxu0 %v2174
        %7040 = vmatpush.msra.mxu0 %v2172
        %7041 = vmatpush.msra.mxu0 %v2170
        %7042 = vmatpush.msra.mxu0 %v2168
        %7043 = vmatmul.f32.gmra.mxu0 %v6162
        %v7044 = vpop.f32.mrf.mxu0
        %v7045 = vadd.f32 %v7025, %v7044
        %7046 = vdwg.mxu0
        %s7047 = scalar_lea.vmem %s20, 7
        %v7048 = vld [vmem:[%s7047] sm:$0x1]
        %v7050 = vsel %vm3113, %v7048, 0
        %7052 = vmatpush.msra.mxu0 0.0
        %7053 = vmatpush.msra.mxu0 0.0
        %7054 = vmatpush.msra.mxu0 0.0
        %7055 = vmatpush.msra.mxu0 0.0
        %7056 = vmatpush.msra.mxu0 0.0
        %7057 = vmatpush.msra.mxu0 0.0
        %7058 = vmatpush.msra.mxu0 0.0
        %7059 = vmatpush.msra.mxu0 0.0
        %7060 = vmatpush.msra.mxu0 0.0
        %7061 = vmatpush.msra.mxu0 0.0
        %7062 = vmatpush.msra.mxu0 0.0
        %7063 = vmatpush.msra.mxu0 0.0
        %7064 = vmatpush.msra.mxu0 0.0
        %7065 = vmatpush.msra.mxu0 0.0
        %7066 = vmatpush.msra.mxu0 0.0
        %7067 = vmatpush.msra.mxu0 %v7005
        %7068 = vmatmul.f32.gmra.mxu0 %v7050
        %v7069 = vpop.f32.mrf.mxu0
        %v7070 = vadd.f32 0.0, %v7069
        %7071 = vdwg.mxu0
        %7072 = vmatpush.msra.mxu0 0.0
        %7073 = vmatpush.msra.mxu0 0.0
        %7074 = vmatpush.msra.mxu0 0.0
        %7075 = vmatpush.msra.mxu0 0.0
        %7076 = vmatpush.msra.mxu0 0.0
        %7077 = vmatpush.msra.mxu0 0.0
        %7078 = vmatpush.msra.mxu0 0.0
        %7079 = vmatpush.msra.mxu0 0.0
        %7080 = vmatpush.msra.mxu0 0.0
        %7081 = vmatpush.msra.mxu0 0.0
        %7082 = vmatpush.msra.mxu0 0.0
        %7083 = vmatpush.msra.mxu0 0.0
        %7084 = vmatpush.msra.mxu0 0.0
        %7085 = vmatpush.msra.mxu0 0.0
        %7086 = vmatpush.msra.mxu0 0.0
        %7087 = vmatpush.msra.mxu0 %v7045
        %7088 = vmatmul.f32.gmra.mxu0 %v7050
        %v7089 = vpop.f32.mrf.mxu0
        %v7090 = vadd.f32 0.0, %v7089
        %7091 = vdwg.mxu0
        %v7092 = vadd.f32 %v6965, %v7070
        %v7093 = vadd.f32 %v6966, %v7090
        %7094 = vmatpush.msra.mxu0 %v2368
        %7095 = vmatpush.msra.mxu0 %v2366
        %7096 = vmatpush.msra.mxu0 %v2364
        %7097 = vmatpush.msra.mxu0 %v2362
        %7098 = vmatpush.msra.mxu0 %v2360
        %7099 = vmatpush.msra.mxu0 %v2358
        %7100 = vmatpush.msra.mxu0 %v2356
        %7101 = vmatpush.msra.mxu0 %v2354
        %7102 = vmatpush.msra.mxu0 %v2352
        %7103 = vmatpush.msra.mxu0 %v2350
        %7104 = vmatpush.msra.mxu0 %v2348
        %7105 = vmatpush.msra.mxu0 %v2346
        %7106 = vmatpush.msra.mxu0 %v2344
        %7107 = vmatpush.msra.mxu0 %v2342
        %7108 = vmatpush.msra.mxu0 %v2340
        %7109 = vmatpush.msra.mxu0 %v2338
        %7110 = vmatmul.f32.gmra.mxu0 %v6161
        %v7111 = vpop.f32.mrf.mxu0
        %v7112 = vadd.f32 0.0, %v7111
        %7113 = vdwg.mxu0
        %7114 = vmatpush.msra.mxu0 %v2400
        %7115 = vmatpush.msra.mxu0 %v2398
        %7116 = vmatpush.msra.mxu0 %v2396
        %7117 = vmatpush.msra.mxu0 %v2394
        %7118 = vmatpush.msra.mxu0 %v2392
        %7119 = vmatpush.msra.mxu0 %v2390
        %7120 = vmatpush.msra.mxu0 %v2388
        %7121 = vmatpush.msra.mxu0 %v2386
        %7122 = vmatpush.msra.mxu0 %v2384
        %7123 = vmatpush.msra.mxu0 %v2382
        %7124 = vmatpush.msra.mxu0 %v2380
        %7125 = vmatpush.msra.mxu0 %v2378
        %7126 = vmatpush.msra.mxu0 %v2376
        %7127 = vmatpush.msra.mxu0 %v2374
        %7128 = vmatpush.msra.mxu0 %v2372
        %7129 = vmatpush.msra.mxu0 %v2370
        %7130 = vmatmul.f32.gmra.mxu0 %v6162
        %v7131 = vpop.f32.mrf.mxu0
        %v7132 = vadd.f32 %v7112, %v7131
        %7133 = vdwg.mxu0
        %7134 = vmatpush.msra.mxu0 %v2369
        %7135 = vmatpush.msra.mxu0 %v2367
        %7136 = vmatpush.msra.mxu0 %v2365
        %7137 = vmatpush.msra.mxu0 %v2363
        %7138 = vmatpush.msra.mxu0 %v2361
        %7139 = vmatpush.msra.mxu0 %v2359
        %7140 = vmatpush.msra.mxu0 %v2357
        %7141 = vmatpush.msra.mxu0 %v2355
        %7142 = vmatpush.msra.mxu0 %v2353
        %7143 = vmatpush.msra.mxu0 %v2351
        %7144 = vmatpush.msra.mxu0 %v2349
        %7145 = vmatpush.msra.mxu0 %v2347
        %7146 = vmatpush.msra.mxu0 %v2345
        %7147 = vmatpush.msra.mxu0 %v2343
        %7148 = vmatpush.msra.mxu0 %v2341
        %7149 = vmatpush.msra.mxu0 %v2339
        %7150 = vmatmul.f32.gmra.mxu0 %v6161
        %v7151 = vpop.f32.mrf.mxu0
        %v7152 = vadd.f32 0.0, %v7151
        %7153 = vdwg.mxu0
        %7154 = vmatpush.msra.mxu0 %v2401
        %7155 = vmatpush.msra.mxu0 %v2399
        %7156 = vmatpush.msra.mxu0 %v2397
        %7157 = vmatpush.msra.mxu0 %v2395
        %7158 = vmatpush.msra.mxu0 %v2393
        %7159 = vmatpush.msra.mxu0 %v2391
        %7160 = vmatpush.msra.mxu0 %v2389
        %7161 = vmatpush.msra.mxu0 %v2387
        %7162 = vmatpush.msra.mxu0 %v2385
        %7163 = vmatpush.msra.mxu0 %v2383
        %7164 = vmatpush.msra.mxu0 %v2381
        %7165 = vmatpush.msra.mxu0 %v2379
        %7166 = vmatpush.msra.mxu0 %v2377
        %7167 = vmatpush.msra.mxu0 %v2375
        %7168 = vmatpush.msra.mxu0 %v2373
        %7169 = vmatpush.msra.mxu0 %v2371
        %7170 = vmatmul.f32.gmra.mxu0 %v6162
        %v7171 = vpop.f32.mrf.mxu0
        %v7172 = vadd.f32 %v7152, %v7171
        %7173 = vdwg.mxu0
        %s7174 = scalar_lea.vmem %s20, 8
        %v7175 = vld [vmem:[%s7174] sm:$0x1]
        %v7177 = vsel %vm3113, %v7175, 0
        %7179 = vmatpush.msra.mxu0 0.0
        %7180 = vmatpush.msra.mxu0 0.0
        %7181 = vmatpush.msra.mxu0 0.0
        %7182 = vmatpush.msra.mxu0 0.0
        %7183 = vmatpush.msra.mxu0 0.0
        %7184 = vmatpush.msra.mxu0 0.0
        %7185 = vmatpush.msra.mxu0 0.0
        %7186 = vmatpush.msra.mxu0 0.0
        %7187 = vmatpush.msra.mxu0 0.0
        %7188 = vmatpush.msra.mxu0 0.0
        %7189 = vmatpush.msra.mxu0 0.0
        %7190 = vmatpush.msra.mxu0 0.0
        %7191 = vmatpush.msra.mxu0 0.0
        %7192 = vmatpush.msra.mxu0 0.0
        %7193 = vmatpush.msra.mxu0 0.0
        %7194 = vmatpush.msra.mxu0 %v7132
        %7195 = vmatmul.f32.gmra.mxu0 %v7177
        %v7196 = vpop.f32.mrf.mxu0
        %v7197 = vadd.f32 0.0, %v7196
        %7198 = vdwg.mxu0
        %7199 = vmatpush.msra.mxu0 0.0
        %7200 = vmatpush.msra.mxu0 0.0
        %7201 = vmatpush.msra.mxu0 0.0
        %7202 = vmatpush.msra.mxu0 0.0
        %7203 = vmatpush.msra.mxu0 0.0
        %7204 = vmatpush.msra.mxu0 0.0
        %7205 = vmatpush.msra.mxu0 0.0
        %7206 = vmatpush.msra.mxu0 0.0
        %7207 = vmatpush.msra.mxu0 0.0
        %7208 = vmatpush.msra.mxu0 0.0
        %7209 = vmatpush.msra.mxu0 0.0
        %7210 = vmatpush.msra.mxu0 0.0
        %7211 = vmatpush.msra.mxu0 0.0
        %7212 = vmatpush.msra.mxu0 0.0
        %7213 = vmatpush.msra.mxu0 0.0
        %7214 = vmatpush.msra.mxu0 %v7172
        %7215 = vmatmul.f32.gmra.mxu0 %v7177
        %v7216 = vpop.f32.mrf.mxu0
        %v7217 = vadd.f32 0.0, %v7216
        %7218 = vdwg.mxu0
        %v7219 = vadd.f32 %v7092, %v7197
        %v7220 = vadd.f32 %v7093, %v7217
        %v7221 = vld [vmem:[#allocation11] sm:$0xff]
        %v7222 = vld [vmem:[#allocation11 + $0x8] sm:$0xff]
        %v7223 = vld [vmem:[#allocation11 + $0x10] sm:$0xff]
        %v7224 = vld [vmem:[#allocation11 + $0x18] sm:$0xff]
        %v7225 = vld [vmem:[#allocation11 + $0x20] sm:$0xff]
        %v7226 = vld [vmem:[#allocation11 + $0x28] sm:$0xff]
        %v7227 = vld [vmem:[#allocation11 + $0x30] sm:$0xff]
        %v7228 = vld [vmem:[#allocation11 + $0x38] sm:$0xff]
        %v7229 = vld [vmem:[#allocation11 + $0x40] sm:$0xff]
        %v7230 = vld [vmem:[#allocation11 + $0x48] sm:$0xff]
        %v7231 = vld [vmem:[#allocation11 + $0x50] sm:$0xff]
        %v7232 = vld [vmem:[#allocation11 + $0x58] sm:$0xff]
        %v7233 = vld [vmem:[#allocation11 + $0x60] sm:$0xff]
        %v7234 = vld [vmem:[#allocation11 + $0x68] sm:$0xff]
        %v7235 = vld [vmem:[#allocation11 + $0x70] sm:$0xff]
        %v7236 = vld [vmem:[#allocation11 + $0x78] sm:$0xff]
        %7237 = vmatpush.msra.mxu0 0.0
        %7238 = vmatpush.msra.mxu0 0.0
        %7239 = vmatpush.msra.mxu0 0.0
        %7240 = vmatpush.msra.mxu0 0.0
        %7241 = vmatpush.msra.mxu0 0.0
        %7242 = vmatpush.msra.mxu0 0.0
        %7243 = vmatpush.msra.mxu0 0.0
        %7244 = vmatpush.msra.mxu0 0.0
        %7245 = vmatpush.msra.mxu0 %v7235
        %7246 = vmatpush.msra.mxu0 %v7233
        %7247 = vmatpush.msra.mxu0 %v7231
        %7248 = vmatpush.msra.mxu0 %v7229
        %7249 = vmatpush.msra.mxu0 %v7227
        %7250 = vmatpush.msra.mxu0 %v7225
        %7251 = vmatpush.msra.mxu0 %v7223
        %7252 = vmatpush.msra.mxu0 %v7221
        %7253 = vmatmul.f32.gmra.mxu0 %v2568
        %v7254 = vpop.f32.mrf.mxu0
        %v7255 = vadd.f32 %v7219, %v7254
        %7256 = vdwg.mxu0
        %7257 = vmatpush.msra.mxu0 0.0
        %7258 = vmatpush.msra.mxu0 0.0
        %7259 = vmatpush.msra.mxu0 0.0
        %7260 = vmatpush.msra.mxu0 0.0
        %7261 = vmatpush.msra.mxu0 0.0
        %7262 = vmatpush.msra.mxu0 0.0
        %7263 = vmatpush.msra.mxu0 0.0
        %7264 = vmatpush.msra.mxu0 0.0
        %7265 = vmatpush.msra.mxu0 %v7236
        %7266 = vmatpush.msra.mxu0 %v7234
        %7267 = vmatpush.msra.mxu0 %v7232
        %7268 = vmatpush.msra.mxu0 %v7230
        %7269 = vmatpush.msra.mxu0 %v7228
        %7270 = vmatpush.msra.mxu0 %v7226
        %7271 = vmatpush.msra.mxu0 %v7224
        %7272 = vmatpush.msra.mxu0 %v7222
        %7273 = vmatmul.f32.gmra.mxu0 %v2568
        %v7274 = vpop.f32.mrf.mxu0
        %v7275 = vadd.f32 %v7220, %v7274
        %7276 = vdwg.mxu0
        %v7277 = vmul.f32 %v7255, %v848
        %v7278 = vmul.f32 %v7275, %v848
        %v7279 = vadd.f32 %v7277, %v846
        %v7280 = vadd.f32 %v7278, %v846
        %v7283 = vrot.slane %v7280, 7
        %v7284 = vsel %vm2626, %v7279, %v7283
        %v7286 = vlaneseq
        %vm7287 = vcmp.ge.s32.totalorder %v7286, 0
        %vm7288 = vcmp.lt.s32.totalorder %v7286, 256
        %vm7289 = vmand %vm7287, %vm7288
        %7290 = vst.msk [vmem:[%s836] sm:$0x3] %vm7289, %v7284
        %s7291 = sand.u32 %s559, 1
        %s7292 = scalar_lea.sflag [#allocation7], %s7291
        %s7293 = sand.u32 %s559, 1
        %s7294 = smul.addr %s7293, 2
        %s7295 = scalar_lea.vmem [#allocation16], %s7294
        // Predicated region
        $region137: #{tpu_custom_call.1} parent=111 // pred_check
          %p7296 = pneg %p569
        $region138: #{tpu_custom_call.1} parent=111 // pred_check_branch
          %7298 = sbr.rel (%p7296) target = $region140
        $region139: #{tpu_custom_call.1} parent=111 // pred_region
          %7300 = vsyncadd %s7292, 0
          %s7301 = smul.addr %s58, 2
          %s7302 = scalar_lea.hbm %s25, %s7301
          %s7304 = sshll.u32 %s7295, 4
          %s7305 = int_to_ptr.vmem [resolvable:$true] %s7304
          %s7306 = sshll.u32 %s7302, 4
          %s7307 = int_to_ptr.hbm [resolvable:$true] %s7306
          %7309 = dma.vmem_to_hbm [thread:$0]  %s7305, 32, %s7307, %s7292
        $region140: #{tpu_custom_call.1} parent=111 // pred_fallthru
          _
      $region112: #{tpu_custom_call.1} parent=5 // pred_fallthru
        _
      %p7310 = scmp.le.s32.totalorder 2, %s53
      // Predicated region
      $region141: #{tpu_custom_call.1} parent=5 // pred_check
        %p7311 = pneg %p7310
      $region142: #{tpu_custom_call.1} parent=5 // pred_check_branch
        %7313 = sbr.rel (%p7311) target = $region144
      $region143: #{tpu_custom_call.1} parent=5 // pred_region
        %s7314 = ssub.s32 %s53, 2
        // Predicated region
        $region145: #{tpu_custom_call.1} parent=143 // pred_check
          %p7315 = pneg %p575
        $region146: #{tpu_custom_call.1} parent=143 // pred_check_branch
          %7317 = sbr.rel (%p7315) target = $region148
        $region147: #{tpu_custom_call.1} parent=143 // pred_region
          %s7318 = sand.u32 %s560, 1
          %s7319 = scalar_lea.sflag [#allocation7], %s7318
          %s7320 = sand.u32 %s560, 1
          %s7321 = smul.addr %s7320, 2
          %s7322 = scalar_lea.vmem [#allocation16], %s7321
          %7324 = dma.done %s7319, 32
        $region148: #{tpu_custom_call.1} parent=143 // pred_fallthru
          _
      $region144: #{tpu_custom_call.1} parent=5 // pred_fallthru
        _
    $region6: #{tpu_custom_call.1} parent=1 // loop_footer
      %s57 = sadd.s32 1, %s53
    $region7: #{tpu_custom_call.1} parent=1 // loop_footer_branch
      %52 = sbr.rel target = $region3
    $region8: #{tpu_custom_call.1} parent=1 // loop_exit
      _
    %7325 = vsyncpa [#allocation6], 1
    %s7326 = scalar_lea.sflag [#allocation6], 1
    %7327 = vsyncpa %s7326, 1
    %7328 = vsyncpa [#allocation9], 1
    %7329 = vsyncpa [#allocation12], 1
    %7330 = vsyncpa [#allocation15], 1
    %7331 = vsyncpa [#allocation7], 1
    %s7332 = scalar_lea.sflag [#allocation7], 1
    %7333 = vsyncpa %s7332, 1

</llo_original>
